<compile_context>
chip_gen: v7x
topology: tpu7x:2x2x1
jax: 0.10.0
libtpu: 0.0.40
codegen_flags: <defaults>
</compile_context>

<pallas_src>
import functools

import jax
import jax.numpy as jnp
from jax.experimental import pallas as pl
from jax.experimental.pallas import tpu as pltpu


def _vmem_limit_bytes():
    # ~75% of per-core VMEM: ~48 MiB on v7x (64 MiB/TC), ~96 MiB on v5e/v6e.
    try:
        cap = pltpu.get_tpu_info().vmem_capacity_bytes
    except Exception:
        cap = 64 * 1024 * 1024
    return int(cap) * 3 // 4


VMEM_LIMIT = _vmem_limit_bytes()


# ----------------------------------------------------------------------------
# Conv 3x3 (padding=1) + bias + ReLU (+ optional fused 2x2 maxpool).
# Grid = (batch blocks, Cout blocks); in-kernel zero padding via VMEM scratch.
# ----------------------------------------------------------------------------
def _conv3x3_kernel(x_ref, w_ref, b_ref, o_ref, pad_ref, *, rs, pool, concat_k):
    # x_ref  : (bt, H, W, Cin)       un-padded input block
    # w_ref  : (3, 3, Cin, Cout)     Cout = tcout block
    # b_ref  : (1, Cout) f32
    # o_ref  : (bt, Ho, Wo, Cout)    Ho/Wo = H/W (halved if pool)
    # pad_ref: (bt, H+2, W+2, Cin)   VMEM scratch (padded slab)
    bt, H, W, Cin = x_ref.shape
    Cout = o_ref.shape[-1]
    dt = x_ref.dtype

    # In-kernel zero padding (replaces wrapper-side jnp.pad -> no extra HBM
    # round-trip).  Only the 1-element halo is zeroed, every step, so it is
    # correct even when the parallel grid is split across TensorCores.
    zrow = jnp.zeros((bt, 1, W + 2, Cin), dt)
    zcol = jnp.zeros((bt, H + 2, 1, Cin), dt)
    pad_ref[:, 0:1, :, :] = zrow
    pad_ref[:, H + 1:H + 2, :, :] = zrow
    pad_ref[:, :, 0:1, :] = zcol
    pad_ref[:, :, W + 1:W + 2, :] = zcol
    pad_ref[:, 1:H + 1, 1:W + 1, :] = x_ref[...]

    bias = b_ref[...]                                   # (1, Cout) f32
    n_chunks = H // rs
    rs_out = rs // 2 if pool else rs

    def chunk(c, carry):
        r0 = c * rs
        if not isinstance(r0, int):
            r0 = pl.multiple_of(r0, rs)

        # Load the 3 dx-shifted (sublane) views ONCE per chunk; dy sub-slices
        # of the loaded values below are cheap major-axis slices.
        views = [pad_ref[:, pl.ds(r0, rs + 2), dx:dx + W, :] for dx in range(3)]

        acc = None
        if concat_k:
            # Cin % 128 == 0: lane-aligned concat of the dx taps along K
            # -> 3 MXU dots per chunk with K = 3*Cin (better MXU depth fill).
            cat = jnp.concatenate(views, axis=-1)       # (bt, rs+2, W, 3*Cin)
            for dy in range(3):
                lhs = cat[:, dy:dy + rs, :, :].reshape(bt * rs * W, 3 * Cin)
                part = jnp.dot(lhs, w_ref[dy].reshape(3 * Cin, Cout),
                               preferred_element_type=jnp.float32)
                acc = part if acc is None else acc + part
        else:
            for dy in range(3):
                for dx in range(3):
                    patch = views[dx][:, dy:dy + rs, :, :]
                    part = jnp.dot(patch.reshape(bt * rs * W, Cin),
                                   w_ref[dy, dx],
                                   preferred_element_type=jnp.float32)
                    acc = part if acc is None else acc + part

        out = jnp.maximum(acc + bias, 0.0)              # bias + ReLU (f32)
        out = out.reshape(bt, rs, W, Cout)
        if pool:
            # Fused 2x2 maxpool (stride 2) via reshape + max reductions.
            out = out.reshape(bt, rs // 2, 2, W, Cout).max(axis=2)
            out = out.reshape(bt, rs // 2, W // 2, 2, Cout).max(axis=3)
        o_ref[:, pl.ds(c * rs_out, rs_out), :, :] = out.astype(o_ref.dtype)
        return carry

    if n_chunks == 1:
        chunk(0, None)
    else:
        # Bounded code size / register live ranges at large H (e.g. 224x224).
        jax.lax.fori_loop(0, n_chunks, chunk, None, unroll=(n_chunks <= 4))


def _pick_rows(H, W, bt, tcout, pool):
    """Largest row chunk whose f32 accumulator fits ~512 KiB.

    (Per perf review: the old 64 KiB cap starved the MXU with M=32-64 on the
    256/512-channel layers; a 256-512 KiB accumulator keeps M = bt*rs*W big.)
    """
    budget = 512 * 1024
    rs = H
    floor = 2 if pool else 1
    while rs > floor and bt * rs * W * tcout * 4 > budget:
        rs //= 2
    return max(rs, floor)


def conv3x3_relu(x, w, b, *, pool=False):
    """x: (B,H,W,Cin) NHWC bf16; w: (3,3,Cin,Cout) HWIO bf16; b: (Cout,) f32."""
    B, H, W, Cin = x.shape
    Cout = w.shape[-1]
    Ho, Wo = (H // 2, W // 2) if pool else (H, W)

    # Deep small-spatial layers fold the whole batch into the matmul M dim.
    bt = B if H * W <= 256 else 1
    assert B % bt == 0

    # Split Cout into parallel blocks so the grid has >=2 parallel steps even
    # when the batch axis collapses to one step (keeps both v7x TensorCores
    # busy; harmless on single-TC v5e/v6e).
    tcout = min(Cout, 256)
    if B // bt == 1 and Cout // tcout == 1 and Cout % 256 == 0:
        tcout = Cout // 2
    n_cout = Cout // tcout

    rs = _pick_rows(H, W, bt, tcout, pool)
    assert H % rs == 0 and (not pool or rs % 2 == 0)

    concat_k = (Cin % 128 == 0)   # lane-tile-aligned K-concat path

    kernel = functools.partial(_conv3x3_kernel, rs=rs, pool=pool, concat_k=concat_k)
    return pl.pallas_call(
        kernel,
        out_shape=jax.ShapeDtypeStruct((B, Ho, Wo, Cout), x.dtype),
        grid_spec=pltpu.PrefetchScalarGridSpec(
            num_scalar_prefetch=0,
            grid=(B // bt, n_cout),
            in_specs=[
                pl.BlockSpec((bt, H, W, Cin), lambda i, j: (i, 0, 0, 0)),
                pl.BlockSpec((3, 3, Cin, tcout), lambda i, j: (0, 0, 0, j)),
                pl.BlockSpec((1, tcout), lambda i, j: (0, j)),
            ],
            out_specs=pl.BlockSpec((bt, Ho, Wo, tcout), lambda i, j: (i, 0, 0, j)),
            scratch_shapes=[pltpu.VMEM((bt, H + 2, W + 2, Cin), x.dtype)],
        ),
        compiler_params=pltpu.CompilerParams(
            dimension_semantics=("parallel", "parallel"),
            vmem_limit_bytes=VMEM_LIMIT,
        ),
    )(x, w, b.reshape(1, Cout))


# ----------------------------------------------------------------------------
# Linear (+ optional ReLU), tiled over output features (parallel) and the
# contraction K (arbitrary) with a f32 VMEM accumulator.
# ----------------------------------------------------------------------------
def _linear_kernel(x_ref, w_ref, b_ref, o_ref, acc_ref, *, relu):
    @pl.when(pl.program_id(1) == 0)
    def _():
        acc_ref[...] = jnp.zeros_like(acc_ref)

    acc_ref[...] += jnp.dot(x_ref[...], w_ref[...],
                            preferred_element_type=jnp.float32)

    @pl.when(pl.program_id(1) == pl.num_programs(1) - 1)
    def _():
        y = acc_ref[...] + b_ref[...]
        if relu:
            y = jnp.maximum(y, 0.0)
        o_ref[...] = y.astype(o_ref.dtype)


def linear(x, w, b, *, relu=False, tn=1024, tk=2048, out_dtype=None):
    """x: (M,K) bf16; w: (K,N) bf16; b: (N,) f32."""
    M, K = x.shape
    N = w.shape[1]
    out_dtype = out_dtype if out_dtype is not None else x.dtype
    tn = min(tn, N)
    tk = min(tk, K)
    assert N % tn == 0 and K % tk == 0
    return pl.pallas_call(
        functools.partial(_linear_kernel, relu=relu),
        out_shape=jax.ShapeDtypeStruct((M, N), out_dtype),
        grid_spec=pltpu.PrefetchScalarGridSpec(
            num_scalar_prefetch=0,
            grid=(N // tn, K // tk),          # reduction (K) axis last
            in_specs=[
                pl.BlockSpec((M, tk), lambda j, k: (0, k)),
                pl.BlockSpec((tk, tn), lambda j, k: (k, j)),
                pl.BlockSpec((1, tn), lambda j, k: (0, j)),
            ],
            out_specs=pl.BlockSpec((M, tn), lambda j, k: (0, j)),
            scratch_shapes=[pltpu.VMEM((M, tn), jnp.float32)],
        ),
        compiler_params=pltpu.CompilerParams(
            dimension_semantics=("parallel", "arbitrary"),
            vmem_limit_bytes=VMEM_LIMIT,
        ),
    )(x, w, b.reshape(1, N))


# ----------------------------------------------------------------------------
# Parameter construction (deterministic, synthetic — no checkpoint load).
# Weights bf16 for the MXU; biases f32 (f32 accumulate + bias + ReLU).
# ----------------------------------------------------------------------------
_CONV_CHANNELS = [
    (3, 64), (64, 64),                     # conv1, conv2
    (64, 128), (128, 128),                 # conv3, conv4
    (128, 256), (256, 256), (256, 256),    # conv5-7
    (256, 512), (512, 512), (512, 512),    # conv8-10
    (512, 512), (512, 512), (512, 512),    # conv11-13
]


def init_params(key, flat_dim):
    params = {"conv_w": [], "conv_b": []}
    for (cin, cout) in _CONV_CHANNELS:
        key, kw, kb = jax.random.split(key, 3)
        fan_in = 3 * 3 * cin
        w = jax.random.normal(kw, (3, 3, cin, cout), jnp.float32) * (2.0 / fan_in) ** 0.5
        b = jax.random.normal(kb, (cout,), jnp.float32) * 0.01
        params["conv_w"].append(w.astype(jnp.bfloat16))
        params["conv_b"].append(b)

    fc_dims = [(flat_dim, 4096), (4096, 4096), (4096, 256)]
    params["fc_w"], params["fc_b"] = [], []
    for (kin, kout) in fc_dims:
        key, kw, kb = jax.random.split(key, 3)
        w = jax.random.normal(kw, (kin, kout), jnp.float32) * (2.0 / kin) ** 0.5
        b = jax.random.normal(kb, (kout,), jnp.float32) * 0.01
        params["fc_w"].append(w.astype(jnp.bfloat16))
        params["fc_b"].append(b)
    return params


# ----------------------------------------------------------------------------
# Full forward pass (mirrors vgg_16_custom.forward).
# ----------------------------------------------------------------------------
def vgg16_custom_forward(params, x_nchw):
    # Convert PyTorch NCHW input to NHWC, bf16 activations on the MXU.
    x = jnp.transpose(x_nchw, (0, 2, 3, 1)).astype(jnp.bfloat16)

    cw, cb = params["conv_w"], params["conv_b"]
    x = conv3x3_relu(x, cw[0], cb[0])                  # relu(conv1)
    x = conv3x3_relu(x, cw[1], cb[1], pool=True)       # pool(relu(conv2))  [fused]
    x = conv3x3_relu(x, cw[2], cb[2])                  # relu(conv3)
    x = conv3x3_relu(x, cw[3], cb[3], pool=True)       # pool(relu(conv4))  [fused]
    x = conv3x3_relu(x, cw[4], cb[4])                  # relu(conv5)
    x = conv3x3_relu(x, cw[5], cb[5])                  # relu(conv6)
    x = conv3x3_relu(x, cw[6], cb[6], pool=True)       # pool(relu(conv7))  [fused]
    x = conv3x3_relu(x, cw[7], cb[7])                  # relu(conv8)
    x = conv3x3_relu(x, cw[8], cb[8])                  # relu(conv9)
    x = conv3x3_relu(x, cw[9], cb[9], pool=True)       # pool(relu(conv10)) [fused]
    x = conv3x3_relu(x, cw[10], cb[10])                # relu(conv11)
    x = conv3x3_relu(x, cw[11], cb[11])                # relu(conv12)
    x = conv3x3_relu(x, cw[12], cb[12], pool=True)     # pool(relu(conv13)) [fused]

    # NHWC flatten fed straight into fc1 (identical to the PyTorch NCHW
    # flatten here since H=W=1 after the pools; for a real checkpoint the row
    # permutation of fc1's weight is a one-time offline step).
    B, H, W, C = x.shape
    x = x.reshape(B, H * W * C)

    fw, fb = params["fc_w"], params["fc_b"]
    x = linear(x, fw[0], fb[0], relu=True)             # do(relu(fc1)) — dropout = identity (eval)
    x = linear(x, fw[1], fb[1], relu=True)             # do(relu(fc2)) — dropout = identity (eval)
    x = linear(x, fw[2], fb[2], relu=False, out_dtype=jnp.float32)   # fc3
    return x


if __name__ == "__main__":
    key = jax.random.PRNGKey(0)
    k_in, k_par = jax.random.split(key)

    B, C, H, W = 2, 3, 32, 32          # small input; module nominal is (B,3,224,224)
    x = jax.random.normal(k_in, (B, C, H, W), jnp.float32)

    flat_dim = 512 * (H // 32) * (W // 32)   # = 512 here; 25088 at 224x224
    params = init_params(k_par, flat_dim)

    out = vgg16_custom_forward(params, x)
    out = jax.block_until_ready(out)
    assert out.shape == (B, 256), out.shape
    assert jnp.all(jnp.isfinite(out))
    print("KERNEL_OK")
</pallas_src>

<mosaic_0001>
module attributes {stable_mosaic.version = 11 : i64} {
  func.func @_conv3x3_kernel(%arg0: i32, %arg1: i32, %arg2: memref<1x32x32x3xbf16, #tpu.memory_space<vmem>>, %arg3: memref<3x3x3x64xbf16, #tpu.memory_space<vmem>>, %arg4: memref<1x64xf32, #tpu.memory_space<vmem>>, %arg5: memref<1x32x32x64xbf16, #tpu.memory_space<vmem>>, %arg6: memref<1x34x34x3xbf16, #tpu.memory_space<vmem>>) attributes {dimension_semantics = [#tpu.dimension_semantics<parallel>, #tpu.dimension_semantics<parallel>], iteration_bounds = array<i64: 2, 1>, scalar_prefetch = 0 : i64, scratch_operands = 1 : i64, tpu.core_type = #tpu.core_type<tc>, window_params = [{transform_indices = @transform_0, window_bounds = array<i64: 1, 32, 32, 3>}, {transform_indices = @transform_1, window_bounds = array<i64: 3, 3, 3, 64>}, {transform_indices = @transform_2, window_bounds = array<i64: 1, 64>}, {transform_indices = @transform_3, window_bounds = array<i64: 1, 32, 32, 64>}]} {
    %cst = arith.constant 0.000000e+00 : bf16
    %0 = vector.broadcast %cst : bf16 to vector<1x1x34x3xbf16>
    %cst_0 = arith.constant 0.000000e+00 : bf16
    %1 = vector.broadcast %cst_0 : bf16 to vector<1x34x1x3xbf16>
    %c0 = arith.constant 0 : index
    %c0_1 = arith.constant 0 : index
    %c0_2 = arith.constant 0 : index
    %c0_3 = arith.constant 0 : index
    %2 = vector.load %arg6[%c0, %c0_1, %c0_2, %c0_3] : memref<1x34x34x3xbf16, #tpu.memory_space<vmem>>, vector<1x1x34x3xbf16>
    tpu.vector_store %arg6[%c0, %c0_1, %c0_2, %c0_3], %0 {strides = array<i32>} : memref<1x34x34x3xbf16, #tpu.memory_space<vmem>>, vector<1x1x34x3xbf16>,
    %c0_4 = arith.constant 0 : index
    %c33 = arith.constant 33 : index
    %c0_5 = arith.constant 0 : index
    %c0_6 = arith.constant 0 : index
    %3 = vector.load %arg6[%c0_4, %c33, %c0_5, %c0_6] : memref<1x34x34x3xbf16, #tpu.memory_space<vmem>>, vector<1x1x34x3xbf16>
    tpu.vector_store %arg6[%c0_4, %c33, %c0_5, %c0_6], %0 {strides = array<i32>} : memref<1x34x34x3xbf16, #tpu.memory_space<vmem>>, vector<1x1x34x3xbf16>,
    %c0_7 = arith.constant 0 : index
    %c0_8 = arith.constant 0 : index
    %c0_9 = arith.constant 0 : index
    %c0_10 = arith.constant 0 : index
    %4 = vector.load %arg6[%c0_7, %c0_8, %c0_9, %c0_10] : memref<1x34x34x3xbf16, #tpu.memory_space<vmem>>, vector<1x34x1x3xbf16>
    tpu.vector_store %arg6[%c0_7, %c0_8, %c0_9, %c0_10], %1 {strides = array<i32>} : memref<1x34x34x3xbf16, #tpu.memory_space<vmem>>, vector<1x34x1x3xbf16>,
    %c0_11 = arith.constant 0 : index
    %c0_12 = arith.constant 0 : index
    %c33_13 = arith.constant 33 : index
    %c0_14 = arith.constant 0 : index
    %5 = vector.load %arg6[%c0_11, %c0_12, %c33_13, %c0_14] : memref<1x34x34x3xbf16, #tpu.memory_space<vmem>>, vector<1x34x1x3xbf16>
    tpu.vector_store %arg6[%c0_11, %c0_12, %c33_13, %c0_14], %1 {strides = array<i32>} : memref<1x34x34x3xbf16, #tpu.memory_space<vmem>>, vector<1x34x1x3xbf16>,
    %c0_15 = arith.constant 0 : index
    %c0_16 = arith.constant 0 : index
    %c0_17 = arith.constant 0 : index
    %c0_18 = arith.constant 0 : index
    %6 = vector.load %arg2[%c0_15, %c0_16, %c0_17, %c0_18] : memref<1x32x32x3xbf16, #tpu.memory_space<vmem>>, vector<1x32x32x3xbf16>
    %c0_19 = arith.constant 0 : index
    %c1 = arith.constant 1 : index
    %c1_20 = arith.constant 1 : index
    %c0_21 = arith.constant 0 : index
    %7 = vector.load %arg6[%c0_19, %c1, %c1_20, %c0_21] : memref<1x34x34x3xbf16, #tpu.memory_space<vmem>>, vector<1x32x32x3xbf16>
    tpu.vector_store %arg6[%c0_19, %c1, %c1_20, %c0_21], %6 {strides = array<i32>} : memref<1x34x34x3xbf16, #tpu.memory_space<vmem>>, vector<1x32x32x3xbf16>,
    %c0_22 = arith.constant 0 : index
    %c0_23 = arith.constant 0 : index
    %8 = vector.load %arg4[%c0_22, %c0_23] : memref<1x64xf32, #tpu.memory_space<vmem>>, vector<1x64xf32>
    %c0_24 = arith.constant 0 : index
    %c0_25 = arith.constant 0 : index
    %c0_26 = arith.constant 0 : index
    %c0_27 = arith.constant 0 : index
    %9 = vector.load %arg6[%c0_24, %c0_25, %c0_26, %c0_27] : memref<1x34x34x3xbf16, #tpu.memory_space<vmem>>, vector<1x34x32x3xbf16>
    %c0_28 = arith.constant 0 : index
    %c0_29 = arith.constant 0 : index
    %c1_30 = arith.constant 1 : index
    %c0_31 = arith.constant 0 : index
    %10 = vector.load %arg6[%c0_28, %c0_29, %c1_30, %c0_31] : memref<1x34x34x3xbf16, #tpu.memory_space<vmem>>, vector<1x34x32x3xbf16>
    %c0_32 = arith.constant 0 : index
    %c0_33 = arith.constant 0 : index
    %c2 = arith.constant 2 : index
    %c0_34 = arith.constant 0 : index
    %11 = vector.load %arg6[%c0_32, %c0_33, %c2, %c0_34] : memref<1x34x34x3xbf16, #tpu.memory_space<vmem>>, vector<1x34x32x3xbf16>
    %12 = vector.extract_strided_slice %9 {offsets = [0, 0, 0, 0], sizes = [1, 32, 32, 3], strides = [1, 1, 1, 1]} : vector<1x34x32x3xbf16> to vector<1x32x32x3xbf16>
    %13 = vector.shape_cast %12 : vector<1x32x32x3xbf16> to vector<1024x3xbf16>
    %c0_35 = arith.constant 0 : index
    %c0_36 = arith.constant 0 : index
    %c0_37 = arith.constant 0 : index
    %c0_38 = arith.constant 0 : index
    %14 = vector.load %arg3[%c0_35, %c0_36, %c0_37, %c0_38] : memref<3x3x3x64xbf16, #tpu.memory_space<vmem>>, vector<1x1x3x64xbf16>
    %15 = vector.shape_cast %14 : vector<1x1x3x64xbf16> to vector<3x64xbf16>
    %cst_39 = arith.constant dense<0.000000e+00> : vector<1024x64xf32>
    %16 = tpu.matmul %13, %15, %cst_39 {dimension_numbers = #tpu.dot_dimension_numbers<[1], [0], [0], [1], [0, 0, 1, 1], [], []>} : vector<1024x3xbf16>, vector<3x64xbf16>, vector<1024x64xf32> -> vector<1024x64xf32>
    %17 = vector.extract_strided_slice %10 {offsets = [0, 0, 0, 0], sizes = [1, 32, 32, 3], strides = [1, 1, 1, 1]} : vector<1x34x32x3xbf16> to vector<1x32x32x3xbf16>
    %18 = vector.shape_cast %17 : vector<1x32x32x3xbf16> to vector<1024x3xbf16>
    %c0_40 = arith.constant 0 : index
    %c1_41 = arith.constant 1 : index
    %c0_42 = arith.constant 0 : index
    %c0_43 = arith.constant 0 : index
    %19 = vector.load %arg3[%c0_40, %c1_41, %c0_42, %c0_43] : memref<3x3x3x64xbf16, #tpu.memory_space<vmem>>, vector<1x1x3x64xbf16>
    %20 = vector.shape_cast %19 : vector<1x1x3x64xbf16> to vector<3x64xbf16>
    %cst_44 = arith.constant dense<0.000000e+00> : vector<1024x64xf32>
    %21 = tpu.matmul %18, %20, %cst_44 {dimension_numbers = #tpu.dot_dimension_numbers<[1], [0], [0], [1], [0, 0, 1, 1], [], []>} : vector<1024x3xbf16>, vector<3x64xbf16>, vector<1024x64xf32> -> vector<1024x64xf32>
    %22 = arith.addf %16, %21 : vector<1024x64xf32>
    %23 = vector.extract_strided_slice %11 {offsets = [0, 0, 0, 0], sizes = [1, 32, 32, 3], strides = [1, 1, 1, 1]} : vector<1x34x32x3xbf16> to vector<1x32x32x3xbf16>
    %24 = vector.shape_cast %23 : vector<1x32x32x3xbf16> to vector<1024x3xbf16>
    %c0_45 = arith.constant 0 : index
    %c2_46 = arith.constant 2 : index
    %c0_47 = arith.constant 0 : index
    %c0_48 = arith.constant 0 : index
    %25 = vector.load %arg3[%c0_45, %c2_46, %c0_47, %c0_48] : memref<3x3x3x64xbf16, #tpu.memory_space<vmem>>, vector<1x1x3x64xbf16>
    %26 = vector.shape_cast %25 : vector<1x1x3x64xbf16> to vector<3x64xbf16>
    %cst_49 = arith.constant dense<0.000000e+00> : vector<1024x64xf32>
    %27 = tpu.matmul %24, %26, %cst_49 {dimension_numbers = #tpu.dot_dimension_numbers<[1], [0], [0], [1], [0, 0, 1, 1], [], []>} : vector<1024x3xbf16>, vector<3x64xbf16>, vector<1024x64xf32> -> vector<1024x64xf32>
    %28 = arith.addf %22, %27 : vector<1024x64xf32>
    %29 = vector.extract_strided_slice %9 {offsets = [0, 1, 0, 0], sizes = [1, 32, 32, 3], strides = [1, 1, 1, 1]} : vector<1x34x32x3xbf16> to vector<1x32x32x3xbf16>
    %30 = vector.shape_cast %29 : vector<1x32x32x3xbf16> to vector<1024x3xbf16>
    %c1_50 = arith.constant 1 : index
    %c0_51 = arith.constant 0 : index
    %c0_52 = arith.constant 0 : index
    %c0_53 = arith.constant 0 : index
    %31 = vector.load %arg3[%c1_50, %c0_51, %c0_52, %c0_53] : memref<3x3x3x64xbf16, #tpu.memory_space<vmem>>, vector<1x1x3x64xbf16>
    %32 = vector.shape_cast %31 : vector<1x1x3x64xbf16> to vector<3x64xbf16>
    %cst_54 = arith.constant dense<0.000000e+00> : vector<1024x64xf32>
    %33 = tpu.matmul %30, %32, %cst_54 {dimension_numbers = #tpu.dot_dimension_numbers<[1], [0], [0], [1], [0, 0, 1, 1], [], []>} : vector<1024x3xbf16>, vector<3x64xbf16>, vector<1024x64xf32> -> vector<1024x64xf32>
    %34 = arith.addf %28, %33 : vector<1024x64xf32>
    %35 = vector.extract_strided_slice %10 {offsets = [0, 1, 0, 0], sizes = [1, 32, 32, 3], strides = [1, 1, 1, 1]} : vector<1x34x32x3xbf16> to vector<1x32x32x3xbf16>
    %36 = vector.shape_cast %35 : vector<1x32x32x3xbf16> to vector<1024x3xbf16>
    %c1_55 = arith.constant 1 : index
    %c1_56 = arith.constant 1 : index
    %c0_57 = arith.constant 0 : index
    %c0_58 = arith.constant 0 : index
    %37 = vector.load %arg3[%c1_55, %c1_56, %c0_57, %c0_58] : memref<3x3x3x64xbf16, #tpu.memory_space<vmem>>, vector<1x1x3x64xbf16>
    %38 = vector.shape_cast %37 : vector<1x1x3x64xbf16> to vector<3x64xbf16>
    %cst_59 = arith.constant dense<0.000000e+00> : vector<1024x64xf32>
    %39 = tpu.matmul %36, %38, %cst_59 {dimension_numbers = #tpu.dot_dimension_numbers<[1], [0], [0], [1], [0, 0, 1, 1], [], []>} : vector<1024x3xbf16>, vector<3x64xbf16>, vector<1024x64xf32> -> vector<1024x64xf32>
    %40 = arith.addf %34, %39 : vector<1024x64xf32>
    %41 = vector.extract_strided_slice %11 {offsets = [0, 1, 0, 0], sizes = [1, 32, 32, 3], strides = [1, 1, 1, 1]} : vector<1x34x32x3xbf16> to vector<1x32x32x3xbf16>
    %42 = vector.shape_cast %41 : vector<1x32x32x3xbf16> to vector<1024x3xbf16>
    %c1_60 = arith.constant 1 : index
    %c2_61 = arith.constant 2 : index
    %c0_62 = arith.constant 0 : index
    %c0_63 = arith.constant 0 : index
    %43 = vector.load %arg3[%c1_60, %c2_61, %c0_62, %c0_63] : memref<3x3x3x64xbf16, #tpu.memory_space<vmem>>, vector<1x1x3x64xbf16>
    %44 = vector.shape_cast %43 : vector<1x1x3x64xbf16> to vector<3x64xbf16>
    %cst_64 = arith.constant dense<0.000000e+00> : vector<1024x64xf32>
    %45 = tpu.matmul %42, %44, %cst_64 {dimension_numbers = #tpu.dot_dimension_numbers<[1], [0], [0], [1], [0, 0, 1, 1], [], []>} : vector<1024x3xbf16>, vector<3x64xbf16>, vector<1024x64xf32> -> vector<1024x64xf32>
    %46 = arith.addf %40, %45 : vector<1024x64xf32>
    %47 = vector.extract_strided_slice %9 {offsets = [0, 2, 0, 0], sizes = [1, 32, 32, 3], strides = [1, 1, 1, 1]} : vector<1x34x32x3xbf16> to vector<1x32x32x3xbf16>
    %48 = vector.shape_cast %47 : vector<1x32x32x3xbf16> to vector<1024x3xbf16>
    %c2_65 = arith.constant 2 : index
    %c0_66 = arith.constant 0 : index
    %c0_67 = arith.constant 0 : index
    %c0_68 = arith.constant 0 : index
    %49 = vector.load %arg3[%c2_65, %c0_66, %c0_67, %c0_68] : memref<3x3x3x64xbf16, #tpu.memory_space<vmem>>, vector<1x1x3x64xbf16>
    %50 = vector.shape_cast %49 : vector<1x1x3x64xbf16> to vector<3x64xbf16>
    %cst_69 = arith.constant dense<0.000000e+00> : vector<1024x64xf32>
    %51 = tpu.matmul %48, %50, %cst_69 {dimension_numbers = #tpu.dot_dimension_numbers<[1], [0], [0], [1], [0, 0, 1, 1], [], []>} : vector<1024x3xbf16>, vector<3x64xbf16>, vector<1024x64xf32> -> vector<1024x64xf32>
    %52 = arith.addf %46, %51 : vector<1024x64xf32>
    %53 = vector.extract_strided_slice %10 {offsets = [0, 2, 0, 0], sizes = [1, 32, 32, 3], strides = [1, 1, 1, 1]} : vector<1x34x32x3xbf16> to vector<1x32x32x3xbf16>
    %54 = vector.shape_cast %53 : vector<1x32x32x3xbf16> to vector<1024x3xbf16>
    %c2_70 = arith.constant 2 : index
    %c1_71 = arith.constant 1 : index
    %c0_72 = arith.constant 0 : index
    %c0_73 = arith.constant 0 : index
    %55 = vector.load %arg3[%c2_70, %c1_71, %c0_72, %c0_73] : memref<3x3x3x64xbf16, #tpu.memory_space<vmem>>, vector<1x1x3x64xbf16>
    %56 = vector.shape_cast %55 : vector<1x1x3x64xbf16> to vector<3x64xbf16>
    %cst_74 = arith.constant dense<0.000000e+00> : vector<1024x64xf32>
    %57 = tpu.matmul %54, %56, %cst_74 {dimension_numbers = #tpu.dot_dimension_numbers<[1], [0], [0], [1], [0, 0, 1, 1], [], []>} : vector<1024x3xbf16>, vector<3x64xbf16>, vector<1024x64xf32> -> vector<1024x64xf32>
    %58 = arith.addf %52, %57 : vector<1024x64xf32>
    %59 = vector.extract_strided_slice %11 {offsets = [0, 2, 0, 0], sizes = [1, 32, 32, 3], strides = [1, 1, 1, 1]} : vector<1x34x32x3xbf16> to vector<1x32x32x3xbf16>
    %60 = vector.shape_cast %59 : vector<1x32x32x3xbf16> to vector<1024x3xbf16>
    %c2_75 = arith.constant 2 : index
    %c2_76 = arith.constant 2 : index
    %c0_77 = arith.constant 0 : index
    %c0_78 = arith.constant 0 : index
    %61 = vector.load %arg3[%c2_75, %c2_76, %c0_77, %c0_78] : memref<3x3x3x64xbf16, #tpu.memory_space<vmem>>, vector<1x1x3x64xbf16>
    %62 = vector.shape_cast %61 : vector<1x1x3x64xbf16> to vector<3x64xbf16>
    %cst_79 = arith.constant dense<0.000000e+00> : vector<1024x64xf32>
    %63 = tpu.matmul %60, %62, %cst_79 {dimension_numbers = #tpu.dot_dimension_numbers<[1], [0], [0], [1], [0, 0, 1, 1], [], []>} : vector<1024x3xbf16>, vector<3x64xbf16>, vector<1024x64xf32> -> vector<1024x64xf32>
    %64 = arith.addf %58, %63 : vector<1024x64xf32>
    %65 = vector.broadcast %8 : vector<1x64xf32> to vector<1024x64xf32>
    %66 = arith.addf %64, %65 : vector<1024x64xf32>
    %cst_80 = arith.constant 0.000000e+00 : f32
    %67 = vector.broadcast %cst_80 : f32 to vector<1024x64xf32>
    %68 = arith.maximumf %66, %67 : vector<1024x64xf32>
    %69 = vector.shape_cast %68 : vector<1024x64xf32> to vector<1x32x32x64xf32>
    %70 = arith.truncf %69 : vector<1x32x32x64xf32> to vector<1x32x32x64xbf16>
    %c0_81 = arith.constant 0 : index
    %c0_82 = arith.constant 0 : index
    %c0_83 = arith.constant 0 : index
    %c0_84 = arith.constant 0 : index
    %71 = vector.load %arg5[%c0_81, %c0_82, %c0_83, %c0_84] : memref<1x32x32x64xbf16, #tpu.memory_space<vmem>>, vector<1x32x32x64xbf16>
    tpu.vector_store %arg5[%c0_81, %c0_82, %c0_83, %c0_84], %70 {strides = array<i32>} : memref<1x32x32x64xbf16, #tpu.memory_space<vmem>>, vector<1x32x32x64xbf16>,
    return
  }
  func.func @transform_0(%arg0: i32, %arg1: i32) -> (i32, i32, i32, i32) {
    %c0_i32 = arith.constant 0 : i32
    %c0_i32_0 = arith.constant 0 : i32
    %c0_i32_1 = arith.constant 0 : i32
    %c0_i32_2 = arith.constant 0 : i32
    return %arg0, %c0_i32, %c0_i32_0, %c0_i32_1 : i32, i32, i32, i32
  }
  func.func @transform_1(%arg0: i32, %arg1: i32) -> (i32, i32, i32, i32) {
    %c0_i32 = arith.constant 0 : i32
    %c0_i32_0 = arith.constant 0 : i32
    %c0_i32_1 = arith.constant 0 : i32
    %c0_i32_2 = arith.constant 0 : i32
    return %c0_i32, %c0_i32_0, %c0_i32_1, %arg1 : i32, i32, i32, i32
  }
  func.func @transform_2(%arg0: i32, %arg1: i32) -> (i32, i32) {
    %c0_i32 = arith.constant 0 : i32
    %c0_i32_0 = arith.constant 0 : i32
    return %c0_i32, %arg1 : i32, i32
  }
  func.func @transform_3(%arg0: i32, %arg1: i32) -> (i32, i32, i32, i32) {
    %c0_i32 = arith.constant 0 : i32
    %c0_i32_0 = arith.constant 0 : i32
    %c0_i32_1 = arith.constant 0 : i32
    return %arg0, %c0_i32, %c0_i32_0, %arg1 : i32, i32, i32, i32
  }
}

</mosaic_0001>

<llo_original>
// kernel: tpu_custom_call.1
$region0: #{tpu_custom_call.1}
  #allocation0 [shape = 'u32[]', space=smem, size = 0x4, offset = 0x4, fixed_abs, tag = 'smem constant byte address 0x4 - core index']
  #allocation1 [shape = 'u32[144,128]{1,0:T(1,128)}', space=vmem, size = 0x12000, scoped, tag = 'internal scratch']
  #allocation2 [shape = 'bf16[1,34,34,3]{3,2,1,0:T(8,128)(2,1)}', space=vmem, size = 0x55000, scoped, tag = 'scratch operand']
  %s0 = inlined_call_operand.vmem [shape: bf16[2,32,32,3], index: 0, kind: input, shape index: {}]
  %s1 = inlined_call_operand.vmem [shape: bf16[3,3,3,64], index: 1, kind: input, shape index: {}]
  %s2 = inlined_call_operand.vmem [shape: f32[1,64], index: 2, kind: input, shape index: {}]
  %s3 = inlined_call_operand.hbm [shape: bf16[2,32,32,64], index: 3, kind: output, shape index: {}]
  %s4 = sld [smem:[#allocation0]]
  $region45: #{tpu_custom_call.1} parent=0
    _
  %s6 = ssub.s32 1, %s4
  %s7 = scalar_select 0, %s6, %s4
  $region1: #{tpu_custom_call.1} parent=0
    #allocation3 [shape = 'u8[524288]{0}', space=vmem, size = 0x80000, scoped, tag = 'output window, operand 0']
    #allocation4 [shape = 's32[2]{0}', space=sflag, size = 0x8, scoped, tag = 'scoped memory for tpu_custom_call.1']
    %8 = vsyncpa [#allocation4], 0
    %s9 = scalar_lea.sflag [#allocation4], 1
    %10 = vsyncpa %s9, 0
    loop: start=0, step=1, limit=4
    $region2: #{tpu_custom_call.1} parent=1 // loop_pre_header
      _
    $region3: #{tpu_custom_call.1} parent=1 // loop_header
      %s12 = sphi 0, %s16
      %p13 = scmp.ge.s32.totalorder %s12, 4
      %s19 = sphi 0, %s31
      %s20 = sphi 0, %s27
      %s21 = sphi 0, %s19
      %s22 = sphi 0, %s20
      %s23 = sphi 0, %s21
      %s24 = sphi 0, %s22
      %s34 = sphi 0, %s36
      %s37 = sphi 0, %s34
      %s38 = sphi 0, %s37
      %s54 = sphi 0, %s38
      %s60 = sphi 0, %s62
      %s63 = sphi 0, %s60
      %s64 = sphi 0, %s63
      %s80 = sphi 0, %s64
      %s86 = sphi 0, %s88
      %s89 = sphi 0, %s86
      %s90 = sphi 0, %s89
      %s106 = sphi 0, %s90
      %s114 = sphi 0, %s116
      %s117 = sphi 0, %s114
      %s118 = sphi 0, %s117
      %s134 = sphi 0, %s118
    $region4: #{tpu_custom_call.1} parent=1 // loop_header_branch
      %15 = sbr.rel (%p13) target = $region8
    $region5: #{tpu_custom_call.1} parent=1 // loop_body
      %s17 = ssub.s32 %s12, 1
      %s18 = ssub.s32 %s12, 2
      %s25 = sadd.s32 1, %s20
      %p26 = scmp.ge.s32.totalorder %s25, 1
      %s27 = scalar_select %p26, 0, %s25
      %s28 = sadd.s32 1, %s19
      %s29 = scalar_select %p26, %s28, %s19
      %p30 = scmp.ge.s32.totalorder %s29, 2
      %s31 = scalar_select %p30, 0, %s29
      %s32 = ssub.s32 %s19, %s31
      %p33 = scmp.eq.s32.totalorder %s32, 0
      %s35 = sadd.s32 %s34, 1
      %s36 = scalar_select %p33, %s34, %s35
      %p39 = pneg %p33
      %p40 = scmp.eq.s32.totalorder %s12, 1
      %p41 = por %p39, %p40
      %p42 = scmp.ne.s32.totalorder %s34, %s37
      %p43 = scmp.eq.s32.totalorder %s12, 0
      %p44 = por %p42, %p43
      %p45 = scmp.ne.s32.totalorder %s34, %s37
      %p46 = scmp.eq.s32.totalorder %s17, 1
      %p47 = por %p45, %p46
      %p48 = scmp.ne.s32.totalorder %s37, %s38
      %p49 = scmp.eq.s32.totalorder %s17, 0
      %p50 = por %p48, %p49
      %p51 = scmp.ne.s32.totalorder %s37, %s38
      %p52 = scmp.eq.s32.totalorder %s18, 1
      %p53 = por %p51, %p52
      %p55 = scmp.ne.s32.totalorder %s38, %s54
      %p56 = scmp.eq.s32.totalorder %s18, 0
      %p57 = por %p55, %p56
      %s58 = ssub.s32 %s20, %s27
      %p59 = scmp.eq.s32.totalorder %s58, 0
      %s61 = sadd.s32 %s60, 1
      %s62 = scalar_select %p59, %s60, %s61
      %p65 = pneg %p59
      %p66 = scmp.eq.s32.totalorder %s12, 1
      %p67 = por %p65, %p66
      %p68 = scmp.ne.s32.totalorder %s60, %s63
      %p69 = scmp.eq.s32.totalorder %s12, 0
      %p70 = por %p68, %p69
      %p71 = scmp.ne.s32.totalorder %s60, %s63
      %p72 = scmp.eq.s32.totalorder %s17, 1
      %p73 = por %p71, %p72
      %p74 = scmp.ne.s32.totalorder %s63, %s64
      %p75 = scmp.eq.s32.totalorder %s17, 0
      %p76 = por %p74, %p75
      %p77 = scmp.ne.s32.totalorder %s63, %s64
      %p78 = scmp.eq.s32.totalorder %s18, 1
      %p79 = por %p77, %p78
      %p81 = scmp.ne.s32.totalorder %s64, %s80
      %p82 = scmp.eq.s32.totalorder %s18, 0
      %p83 = por %p81, %p82
      %s84 = ssub.s32 %s20, %s27
      %p85 = scmp.eq.s32.totalorder %s84, 0
      %s87 = sadd.s32 %s86, 1
      %s88 = scalar_select %p85, %s86, %s87
      %p91 = pneg %p85
      %p92 = scmp.eq.s32.totalorder %s12, 1
      %p93 = por %p91, %p92
      %p94 = scmp.ne.s32.totalorder %s86, %s89
      %p95 = scmp.eq.s32.totalorder %s12, 0
      %p96 = por %p94, %p95
      %p97 = scmp.ne.s32.totalorder %s86, %s89
      %p98 = scmp.eq.s32.totalorder %s17, 1
      %p99 = por %p97, %p98
      %p100 = scmp.ne.s32.totalorder %s89, %s90
      %p101 = scmp.eq.s32.totalorder %s17, 0
      %p102 = por %p100, %p101
      %p103 = scmp.ne.s32.totalorder %s89, %s90
      %p104 = scmp.eq.s32.totalorder %s18, 1
      %p105 = por %p103, %p104
      %p107 = scmp.ne.s32.totalorder %s90, %s106
      %p108 = scmp.eq.s32.totalorder %s18, 0
      %p109 = por %p107, %p108
      %s110 = ssub.s32 %s19, %s31
      %s111 = ssub.s32 %s20, %s27
      %s112 = sor.u32 %s110, %s111
      %p113 = scmp.eq.s32.totalorder %s112, 0
      %s115 = sadd.s32 %s114, 1
      %s116 = scalar_select %p113, %s114, %s115
      %p119 = pneg %p113
      %p120 = scmp.eq.s32.totalorder %s12, 1
      %p121 = por %p119, %p120
      %p122 = scmp.ne.s32.totalorder %s114, %s117
      %p123 = scmp.eq.s32.totalorder %s12, 0
      %p124 = por %p122, %p123
      %p125 = scmp.ne.s32.totalorder %s114, %s117
      %p126 = scmp.eq.s32.totalorder %s17, 1
      %p127 = por %p125, %p126
      %p128 = scmp.ne.s32.totalorder %s117, %s118
      %p129 = scmp.eq.s32.totalorder %s17, 0
      %p130 = por %p128, %p129
      %p131 = scmp.ne.s32.totalorder %s117, %s118
      %p132 = scmp.eq.s32.totalorder %s18, 1
      %p133 = por %p131, %p132
      %p135 = scmp.ne.s32.totalorder %s118, %s134
      %p136 = scmp.eq.s32.totalorder %s18, 0
      %p137 = por %p135, %p136
      %p138 = scmp.le.s32.totalorder 1, %s12
      %p139 = scmp.lt.s32.totalorder %s12, 3
      %p140 = pnand %p138, %p139
      %p141 = pneg %p140
      // Predicated region
      $region9: #{tpu_custom_call.1} parent=5 // pred_check
        _
      $region10: #{tpu_custom_call.1} parent=5 // pred_check_branch
        %143 = sbr.rel (%p140) target = $region12
      $region11: #{tpu_custom_call.1} parent=5 // pred_region
        %s144 = ssub.s32 %s12, 1
        // Predicated region
        $region13: #{tpu_custom_call.1} parent=11 // pred_check
          %p145 = pneg %p76
        $region14: #{tpu_custom_call.1} parent=11 // pred_check_branch
          %147 = sbr.rel (%p145) target = $region16
        $region15: #{tpu_custom_call.1} parent=11 // pred_region
          %p148 = scmp.lt.s32.totalorder %s22, 0
          %s149 = scalar_select %p148, %s22, 0
          %s150 = smul.addr %s149, 2
          %s151 = scalar_lea.vmem %s1, %s150
        $region16: #{tpu_custom_call.1} parent=11 // pred_fallthru
          _
        // Predicated region
        $region17: #{tpu_custom_call.1} parent=11 // pred_check
          %p152 = pneg %p102
        $region18: #{tpu_custom_call.1} parent=11 // pred_check_branch
          %154 = sbr.rel (%p152) target = $region20
        $region19: #{tpu_custom_call.1} parent=11 // pred_region
          %p155 = scmp.lt.s32.totalorder %s22, 0
          %s156 = scalar_select %p155, %s22, 0
          %s157 = scalar_lea.vmem %s2, %s156
        $region20: #{tpu_custom_call.1} parent=11 // pred_fallthru
          _
      $region12: #{tpu_custom_call.1} parent=5 // pred_fallthru
        _
      %p158 = scmp.lt.s32.totalorder %s12, 2
      // Predicated region
      $region21: #{tpu_custom_call.1} parent=5 // pred_check
        %p159 = pneg %p158
      $region22: #{tpu_custom_call.1} parent=5 // pred_check_branch
        %161 = sbr.rel (%p159) target = $region24
      $region23: #{tpu_custom_call.1} parent=5 // pred_region
        // Predicated region
        $region25: #{tpu_custom_call.1} parent=23 // pred_check
          %p162 = pneg %p44
        $region26: #{tpu_custom_call.1} parent=23 // pred_check_branch
          %164 = sbr.rel (%p162) target = $region28
        $region27: #{tpu_custom_call.1} parent=23 // pred_region
          %p165 = scmp.lt.s32.totalorder %s19, 1
          %s166 = scalar_select %p165, %s19, 1
          %s167 = smul.addr %s166, 128
          %s168 = smul.addr %s167, 4
          %s169 = scalar_lea.vmem %s0, %s168
        $region28: #{tpu_custom_call.1} parent=23 // pred_fallthru
          _
      $region24: #{tpu_custom_call.1} parent=5 // pred_fallthru
        _
      %p170 = scmp.le.s32.totalorder 1, %s12
      %p171 = scmp.lt.s32.totalorder %s12, 3
      %p172 = pnand %p170, %p171
      %p173 = pneg %p172
      // Predicated region
      $region29: #{tpu_custom_call.1} parent=5 // pred_check
        _
      $region30: #{tpu_custom_call.1} parent=5 // pred_check_branch
        %175 = sbr.rel (%p172) target = $region32
      $region31: #{tpu_custom_call.1} parent=5 // pred_region
        %s176 = ssub.s32 %s12, 1
        %p177 = scmp.lt.s32.totalorder %s21, 1
        %s178 = scalar_select %p177, %s21, 1
        %s179 = smul.addr %s178, 128
        %s180 = smul.addr %s179, 4
        %s181 = scalar_lea.vmem %s0, %s180
        %p182 = pneg %p50
        %p183 = pneg %p47
        %p184 = scmp.lt.s32.totalorder %s22, 0
        %s185 = scalar_select %p184, %s22, 0
        %s186 = smul.addr %s185, 2
        %s187 = scalar_lea.vmem %s1, %s186
        %p188 = pneg %p76
        %p189 = pneg %p73
        %p190 = scmp.lt.s32.totalorder %s22, 0
        %s191 = scalar_select %p190, %s22, 0
        %s192 = scalar_lea.vmem %s2, %s191
        %p193 = pneg %p102
        %p194 = pneg %p99
        %p195 = pneg %p130
        %p196 = pneg %p127
        %s197 = sand.u32 %s117, 1
        %s198 = scalar_lea.sflag [#allocation4], %s197
        %s199 = sand.u32 %s117, 1
        %s200 = smul.addr %s199, 512
        %s201 = scalar_lea.vmem [#allocation3], %s200
        %p202 = scmp.lt.s32.totalorder %s21, 1
        %s203 = scalar_select %p202, %s21, 1
        %s204 = smul.addr %s203, 128
        %s205 = smul.addr %s204, 4
        %s206 = scalar_lea.vmem %s0, %s205
        %p207 = scmp.lt.s32.totalorder %s22, 0
        %s208 = scalar_select %p207, %s22, 0
        %s209 = smul.addr %s208, 2
        %s210 = scalar_lea.vmem %s1, %s209
        %p211 = scmp.lt.s32.totalorder %s22, 0
        %s212 = scalar_select %p211, %s22, 0
        %s213 = scalar_lea.vmem %s2, %s212
        %vm215 = vcmask 19456
        %216 = vst.msk [vmem:[#allocation2] sm:$0xf] %vm215, 0
        %217 = vst.msk [vmem:[#allocation2 + $0x4] sm:$0xf] %vm215, 0
        %218 = vst.msk [vmem:[#allocation2 + $0x8] sm:$0xf] %vm215, 0
        %219 = vst.msk [vmem:[#allocation2 + $0xc] sm:$0xf] %vm215, 0
        %vm220 = vcmask 16384
        %221 = vst.msk [vmem:[#allocation2 + $0x10] sm:$0x1] %vm220, 0
        %s222 = scalar_lea.vmem [#allocation2], 660
        %223 = vst.msk [vmem:[%s222] sm:$0xf] %vm215, 0
        %224 = vst.msk [vmem:[%s222 + $0x4] sm:$0xf] %vm215, 0
        %225 = vst.msk [vmem:[%s222 + $0x8] sm:$0xf] %vm215, 0
        %226 = vst.msk [vmem:[%s222 + $0xc] sm:$0xf] %vm215, 0
        %227 = vst.msk [vmem:[%s222 + $0x10] sm:$0x1] %vm220, 0
        %vm228 = vcmask 16384
        %vm229 = vsmask.f32 256
        %vm230 = vmand %vm228, %vm229
        %v231 = vld [vmem:[#allocation2] sm:$0x1]
        %v232 = vsel %vm230, 0, %v231
        %233 = vst [vmem:[#allocation2] sm:$0x1] %v232
        %v234 = vld [vmem:[#allocation2 + $0x14] sm:$0x1]
        %v235 = vsel %vm230, 0, %v234
        %236 = vst [vmem:[#allocation2 + $0x14] sm:$0x1] %v235
        %v237 = vld [vmem:[#allocation2 + $0x28] sm:$0x1]
        %v238 = vsel %vm230, 0, %v237
        %239 = vst [vmem:[#allocation2 + $0x28] sm:$0x1] %v238
        %v240 = vld [vmem:[#allocation2 + $0x3c] sm:$0x1]
        %v241 = vsel %vm230, 0, %v240
        %242 = vst [vmem:[#allocation2 + $0x3c] sm:$0x1] %v241
        %v243 = vld [vmem:[#allocation2 + $0x50] sm:$0x1]
        %v244 = vsel %vm230, 0, %v243
        %245 = vst [vmem:[#allocation2 + $0x50] sm:$0x1] %v244
        %v246 = vld [vmem:[#allocation2 + $0x64] sm:$0x1]
        %v247 = vsel %vm230, 0, %v246
        %248 = vst [vmem:[#allocation2 + $0x64] sm:$0x1] %v247
        %v249 = vld [vmem:[#allocation2 + $0x78] sm:$0x1]
        %v250 = vsel %vm230, 0, %v249
        %251 = vst [vmem:[#allocation2 + $0x78] sm:$0x1] %v250
        %v252 = vld [vmem:[#allocation2 + $0x8c] sm:$0x1]
        %v253 = vsel %vm230, 0, %v252
        %254 = vst [vmem:[#allocation2 + $0x8c] sm:$0x1] %v253
        %v255 = vld [vmem:[#allocation2 + $0xa0] sm:$0x1]
        %v256 = vsel %vm230, 0, %v255
        %257 = vst [vmem:[#allocation2 + $0xa0] sm:$0x1] %v256
        %v258 = vld [vmem:[#allocation2 + $0xb4] sm:$0x1]
        %v259 = vsel %vm230, 0, %v258
        %260 = vst [vmem:[#allocation2 + $0xb4] sm:$0x1] %v259
        %v261 = vld [vmem:[#allocation2 + $0xc8] sm:$0x1]
        %v262 = vsel %vm230, 0, %v261
        %263 = vst [vmem:[#allocation2 + $0xc8] sm:$0x1] %v262
        %v264 = vld [vmem:[#allocation2 + $0xdc] sm:$0x1]
        %v265 = vsel %vm230, 0, %v264
        %266 = vst [vmem:[#allocation2 + $0xdc] sm:$0x1] %v265
        %v267 = vld [vmem:[#allocation2 + $0xf0] sm:$0x1]
        %v268 = vsel %vm230, 0, %v267
        %269 = vst [vmem:[#allocation2 + $0xf0] sm:$0x1] %v268
        %v270 = vld [vmem:[#allocation2 + $0x104] sm:$0x1]
        %v271 = vsel %vm230, 0, %v270
        %272 = vst [vmem:[#allocation2 + $0x104] sm:$0x1] %v271
        %v273 = vld [vmem:[#allocation2 + $0x118] sm:$0x1]
        %v274 = vsel %vm230, 0, %v273
        %275 = vst [vmem:[#allocation2 + $0x118] sm:$0x1] %v274
        %v276 = vld [vmem:[#allocation2 + $0x12c] sm:$0x1]
        %v277 = vsel %vm230, 0, %v276
        %278 = vst [vmem:[#allocation2 + $0x12c] sm:$0x1] %v277
        %v279 = vld [vmem:[#allocation2 + $0x140] sm:$0x1]
        %v280 = vsel %vm230, 0, %v279
        %281 = vst [vmem:[#allocation2 + $0x140] sm:$0x1] %v280
        %v282 = vld [vmem:[#allocation2 + $0x154] sm:$0x1]
        %v283 = vsel %vm230, 0, %v282
        %284 = vst [vmem:[#allocation2 + $0x154] sm:$0x1] %v283
        %v285 = vld [vmem:[#allocation2 + $0x168] sm:$0x1]
        %v286 = vsel %vm230, 0, %v285
        %287 = vst [vmem:[#allocation2 + $0x168] sm:$0x1] %v286
        %v288 = vld [vmem:[#allocation2 + $0x17c] sm:$0x1]
        %v289 = vsel %vm230, 0, %v288
        %290 = vst [vmem:[#allocation2 + $0x17c] sm:$0x1] %v289
        %v291 = vld [vmem:[#allocation2 + $0x190] sm:$0x1]
        %v292 = vsel %vm230, 0, %v291
        %293 = vst [vmem:[#allocation2 + $0x190] sm:$0x1] %v292
        %v294 = vld [vmem:[#allocation2 + $0x1a4] sm:$0x1]
        %v295 = vsel %vm230, 0, %v294
        %296 = vst [vmem:[#allocation2 + $0x1a4] sm:$0x1] %v295
        %v297 = vld [vmem:[#allocation2 + $0x1b8] sm:$0x1]
        %v298 = vsel %vm230, 0, %v297
        %299 = vst [vmem:[#allocation2 + $0x1b8] sm:$0x1] %v298
        %v300 = vld [vmem:[#allocation2 + $0x1cc] sm:$0x1]
        %v301 = vsel %vm230, 0, %v300
        %302 = vst [vmem:[#allocation2 + $0x1cc] sm:$0x1] %v301
        %v303 = vld [vmem:[#allocation2 + $0x1e0] sm:$0x1]
        %v304 = vsel %vm230, 0, %v303
        %305 = vst [vmem:[#allocation2 + $0x1e0] sm:$0x1] %v304
        %v306 = vld [vmem:[#allocation2 + $0x1f4] sm:$0x1]
        %v307 = vsel %vm230, 0, %v306
        %308 = vst [vmem:[#allocation2 + $0x1f4] sm:$0x1] %v307
        %v309 = vld [vmem:[#allocation2 + $0x208] sm:$0x1]
        %v310 = vsel %vm230, 0, %v309
        %311 = vst [vmem:[#allocation2 + $0x208] sm:$0x1] %v310
        %v312 = vld [vmem:[#allocation2 + $0x21c] sm:$0x1]
        %v313 = vsel %vm230, 0, %v312
        %314 = vst [vmem:[#allocation2 + $0x21c] sm:$0x1] %v313
        %v315 = vld [vmem:[#allocation2 + $0x230] sm:$0x1]
        %v316 = vsel %vm230, 0, %v315
        %317 = vst [vmem:[#allocation2 + $0x230] sm:$0x1] %v316
        %v318 = vld [vmem:[#allocation2 + $0x244] sm:$0x1]
        %v319 = vsel %vm230, 0, %v318
        %320 = vst [vmem:[#allocation2 + $0x244] sm:$0x1] %v319
        %v321 = vld [vmem:[#allocation2 + $0x258] sm:$0x1]
        %v322 = vsel %vm230, 0, %v321
        %323 = vst [vmem:[#allocation2 + $0x258] sm:$0x1] %v322
        %v324 = vld [vmem:[#allocation2 + $0x26c] sm:$0x1]
        %v325 = vsel %vm230, 0, %v324
        %326 = vst [vmem:[#allocation2 + $0x26c] sm:$0x1] %v325
        %v327 = vld [vmem:[#allocation2 + $0x280] sm:$0x1]
        %v328 = vsel %vm230, 0, %v327
        %329 = vst [vmem:[#allocation2 + $0x280] sm:$0x1] %v328
        %v330 = vld [vmem:[#allocation2 + $0x294] sm:$0x1]
        %v331 = vsel %vm230, 0, %v330
        %332 = vst [vmem:[#allocation2 + $0x294] sm:$0x1] %v331
        %vm333 = vsmask.f32 7938
        %vm334 = vmand %vm228, %vm333
        %v335 = vld [vmem:[#allocation2 + $0x10] sm:$0x1]
        %v336 = vsel %vm334, 0, %v335
        %337 = vst [vmem:[#allocation2 + $0x10] sm:$0x1] %v336
        %v338 = vld [vmem:[#allocation2 + $0x24] sm:$0x1]
        %v339 = vsel %vm334, 0, %v338
        %340 = vst [vmem:[#allocation2 + $0x24] sm:$0x1] %v339
        %v341 = vld [vmem:[#allocation2 + $0x38] sm:$0x1]
        %v342 = vsel %vm334, 0, %v341
        %343 = vst [vmem:[#allocation2 + $0x38] sm:$0x1] %v342
        %v344 = vld [vmem:[#allocation2 + $0x4c] sm:$0x1]
        %v345 = vsel %vm334, 0, %v344
        %346 = vst [vmem:[#allocation2 + $0x4c] sm:$0x1] %v345
        %v347 = vld [vmem:[#allocation2 + $0x60] sm:$0x1]
        %v348 = vsel %vm334, 0, %v347
        %349 = vst [vmem:[#allocation2 + $0x60] sm:$0x1] %v348
        %v350 = vld [vmem:[#allocation2 + $0x74] sm:$0x1]
        %v351 = vsel %vm334, 0, %v350
        %352 = vst [vmem:[#allocation2 + $0x74] sm:$0x1] %v351
        %v353 = vld [vmem:[#allocation2 + $0x88] sm:$0x1]
        %v354 = vsel %vm334, 0, %v353
        %355 = vst [vmem:[#allocation2 + $0x88] sm:$0x1] %v354
        %v356 = vld [vmem:[#allocation2 + $0x9c] sm:$0x1]
        %v357 = vsel %vm334, 0, %v356
        %358 = vst [vmem:[#allocation2 + $0x9c] sm:$0x1] %v357
        %v359 = vld [vmem:[#allocation2 + $0xb0] sm:$0x1]
        %v360 = vsel %vm334, 0, %v359
        %361 = vst [vmem:[#allocation2 + $0xb0] sm:$0x1] %v360
        %v362 = vld [vmem:[#allocation2 + $0xc4] sm:$0x1]
        %v363 = vsel %vm334, 0, %v362
        %364 = vst [vmem:[#allocation2 + $0xc4] sm:$0x1] %v363
        %v365 = vld [vmem:[#allocation2 + $0xd8] sm:$0x1]
        %v366 = vsel %vm334, 0, %v365
        %367 = vst [vmem:[#allocation2 + $0xd8] sm:$0x1] %v366
        %v368 = vld [vmem:[#allocation2 + $0xec] sm:$0x1]
        %v369 = vsel %vm334, 0, %v368
        %370 = vst [vmem:[#allocation2 + $0xec] sm:$0x1] %v369
        %v371 = vld [vmem:[#allocation2 + $0x100] sm:$0x1]
        %v372 = vsel %vm334, 0, %v371
        %373 = vst [vmem:[#allocation2 + $0x100] sm:$0x1] %v372
        %v374 = vld [vmem:[#allocation2 + $0x114] sm:$0x1]
        %v375 = vsel %vm334, 0, %v374
        %376 = vst [vmem:[#allocation2 + $0x114] sm:$0x1] %v375
        %v377 = vld [vmem:[#allocation2 + $0x128] sm:$0x1]
        %v378 = vsel %vm334, 0, %v377
        %379 = vst [vmem:[#allocation2 + $0x128] sm:$0x1] %v378
        %v380 = vld [vmem:[#allocation2 + $0x13c] sm:$0x1]
        %v381 = vsel %vm334, 0, %v380
        %382 = vst [vmem:[#allocation2 + $0x13c] sm:$0x1] %v381
        %v383 = vld [vmem:[#allocation2 + $0x150] sm:$0x1]
        %v384 = vsel %vm334, 0, %v383
        %385 = vst [vmem:[#allocation2 + $0x150] sm:$0x1] %v384
        %v386 = vld [vmem:[#allocation2 + $0x164] sm:$0x1]
        %v387 = vsel %vm334, 0, %v386
        %388 = vst [vmem:[#allocation2 + $0x164] sm:$0x1] %v387
        %v389 = vld [vmem:[#allocation2 + $0x178] sm:$0x1]
        %v390 = vsel %vm334, 0, %v389
        %391 = vst [vmem:[#allocation2 + $0x178] sm:$0x1] %v390
        %v392 = vld [vmem:[#allocation2 + $0x18c] sm:$0x1]
        %v393 = vsel %vm334, 0, %v392
        %394 = vst [vmem:[#allocation2 + $0x18c] sm:$0x1] %v393
        %v395 = vld [vmem:[#allocation2 + $0x1a0] sm:$0x1]
        %v396 = vsel %vm334, 0, %v395
        %397 = vst [vmem:[#allocation2 + $0x1a0] sm:$0x1] %v396
        %v398 = vld [vmem:[#allocation2 + $0x1b4] sm:$0x1]
        %v399 = vsel %vm334, 0, %v398
        %400 = vst [vmem:[#allocation2 + $0x1b4] sm:$0x1] %v399
        %v401 = vld [vmem:[#allocation2 + $0x1c8] sm:$0x1]
        %v402 = vsel %vm334, 0, %v401
        %403 = vst [vmem:[#allocation2 + $0x1c8] sm:$0x1] %v402
        %v404 = vld [vmem:[#allocation2 + $0x1dc] sm:$0x1]
        %v405 = vsel %vm334, 0, %v404
        %406 = vst [vmem:[#allocation2 + $0x1dc] sm:$0x1] %v405
        %v407 = vld [vmem:[#allocation2 + $0x1f0] sm:$0x1]
        %v408 = vsel %vm334, 0, %v407
        %409 = vst [vmem:[#allocation2 + $0x1f0] sm:$0x1] %v408
        %v410 = vld [vmem:[#allocation2 + $0x204] sm:$0x1]
        %v411 = vsel %vm334, 0, %v410
        %412 = vst [vmem:[#allocation2 + $0x204] sm:$0x1] %v411
        %v413 = vld [vmem:[#allocation2 + $0x218] sm:$0x1]
        %v414 = vsel %vm334, 0, %v413
        %415 = vst [vmem:[#allocation2 + $0x218] sm:$0x1] %v414
        %v416 = vld [vmem:[#allocation2 + $0x22c] sm:$0x1]
        %v417 = vsel %vm334, 0, %v416
        %418 = vst [vmem:[#allocation2 + $0x22c] sm:$0x1] %v417
        %v419 = vld [vmem:[#allocation2 + $0x240] sm:$0x1]
        %v420 = vsel %vm334, 0, %v419
        %421 = vst [vmem:[#allocation2 + $0x240] sm:$0x1] %v420
        %v422 = vld [vmem:[#allocation2 + $0x254] sm:$0x1]
        %v423 = vsel %vm334, 0, %v422
        %424 = vst [vmem:[#allocation2 + $0x254] sm:$0x1] %v423
        %v425 = vld [vmem:[#allocation2 + $0x268] sm:$0x1]
        %v426 = vsel %vm334, 0, %v425
        %427 = vst [vmem:[#allocation2 + $0x268] sm:$0x1] %v426
        %v428 = vld [vmem:[#allocation2 + $0x27c] sm:$0x1]
        %v429 = vsel %vm334, 0, %v428
        %430 = vst [vmem:[#allocation2 + $0x27c] sm:$0x1] %v429
        %v431 = vld [vmem:[#allocation2 + $0x290] sm:$0x1]
        %v432 = vsel %vm334, 0, %v431
        %433 = vst [vmem:[#allocation2 + $0x290] sm:$0x1] %v432
        %v434 = vld [vmem:[#allocation2 + $0x2a4] sm:$0x1]
        %v435 = vsel %vm334, 0, %v434
        %436 = vst [vmem:[#allocation2 + $0x2a4] sm:$0x1] %v435
        %v437 = vld [vmem:[%s206] sm:$0xf]
        %v438 = vld [vmem:[%s206 + $0x4] sm:$0xf]
        %v439 = vld [vmem:[%s206 + $0x8] sm:$0xf]
        %v440 = vld [vmem:[%s206 + $0xc] sm:$0xf]
        %v441 = vld [vmem:[%s206 + $0x10] sm:$0xf]
        %v442 = vld [vmem:[%s206 + $0x14] sm:$0xf]
        %v443 = vld [vmem:[%s206 + $0x18] sm:$0xf]
        %v444 = vld [vmem:[%s206 + $0x1c] sm:$0xf]
        %v445 = vld [vmem:[%s206 + $0x20] sm:$0xf]
        %v446 = vld [vmem:[%s206 + $0x24] sm:$0xf]
        %v447 = vld [vmem:[%s206 + $0x28] sm:$0xf]
        %v448 = vld [vmem:[%s206 + $0x2c] sm:$0xf]
        %v449 = vld [vmem:[%s206 + $0x30] sm:$0xf]
        %v450 = vld [vmem:[%s206 + $0x34] sm:$0xf]
        %v451 = vld [vmem:[%s206 + $0x38] sm:$0xf]
        %v452 = vld [vmem:[%s206 + $0x3c] sm:$0xf]
        %v453 = vld [vmem:[%s206 + $0x40] sm:$0xf]
        %v454 = vld [vmem:[%s206 + $0x44] sm:$0xf]
        %v455 = vld [vmem:[%s206 + $0x48] sm:$0xf]
        %v456 = vld [vmem:[%s206 + $0x4c] sm:$0xf]
        %v457 = vld [vmem:[%s206 + $0x50] sm:$0xf]
        %v458 = vld [vmem:[%s206 + $0x54] sm:$0xf]
        %v459 = vld [vmem:[%s206 + $0x58] sm:$0xf]
        %v460 = vld [vmem:[%s206 + $0x5c] sm:$0xf]
        %v461 = vld [vmem:[%s206 + $0x60] sm:$0xf]
        %v462 = vld [vmem:[%s206 + $0x64] sm:$0xf]
        %v463 = vld [vmem:[%s206 + $0x68] sm:$0xf]
        %v464 = vld [vmem:[%s206 + $0x6c] sm:$0xf]
        %v465 = vld [vmem:[%s206 + $0x70] sm:$0xf]
        %v466 = vld [vmem:[%s206 + $0x74] sm:$0xf]
        %v467 = vld [vmem:[%s206 + $0x78] sm:$0xf]
        %v468 = vld [vmem:[%s206 + $0x7c] sm:$0xf]
        %v469 = vld [vmem:[%s206 + $0x80] sm:$0xf]
        %v470 = vld [vmem:[%s206 + $0x84] sm:$0xf]
        %v471 = vld [vmem:[%s206 + $0x88] sm:$0xf]
        %v472 = vld [vmem:[%s206 + $0x8c] sm:$0xf]
        %v473 = vld [vmem:[%s206 + $0x90] sm:$0xf]
        %v474 = vld [vmem:[%s206 + $0x94] sm:$0xf]
        %v475 = vld [vmem:[%s206 + $0x98] sm:$0xf]
        %v476 = vld [vmem:[%s206 + $0x9c] sm:$0xf]
        %v477 = vld [vmem:[%s206 + $0xa0] sm:$0xf]
        %v478 = vld [vmem:[%s206 + $0xa4] sm:$0xf]
        %v479 = vld [vmem:[%s206 + $0xa8] sm:$0xf]
        %v480 = vld [vmem:[%s206 + $0xac] sm:$0xf]
        %v481 = vld [vmem:[%s206 + $0xb0] sm:$0xf]
        %v482 = vld [vmem:[%s206 + $0xb4] sm:$0xf]
        %v483 = vld [vmem:[%s206 + $0xb8] sm:$0xf]
        %v484 = vld [vmem:[%s206 + $0xbc] sm:$0xf]
        %v485 = vld [vmem:[%s206 + $0xc0] sm:$0xf]
        %v486 = vld [vmem:[%s206 + $0xc4] sm:$0xf]
        %v487 = vld [vmem:[%s206 + $0xc8] sm:$0xf]
        %v488 = vld [vmem:[%s206 + $0xcc] sm:$0xf]
        %v489 = vld [vmem:[%s206 + $0xd0] sm:$0xf]
        %v490 = vld [vmem:[%s206 + $0xd4] sm:$0xf]
        %v491 = vld [vmem:[%s206 + $0xd8] sm:$0xf]
        %v492 = vld [vmem:[%s206 + $0xdc] sm:$0xf]
        %v493 = vld [vmem:[%s206 + $0xe0] sm:$0xf]
        %v494 = vld [vmem:[%s206 + $0xe4] sm:$0xf]
        %v495 = vld [vmem:[%s206 + $0xe8] sm:$0xf]
        %v496 = vld [vmem:[%s206 + $0xec] sm:$0xf]
        %v497 = vld [vmem:[%s206 + $0xf0] sm:$0xf]
        %v498 = vld [vmem:[%s206 + $0xf4] sm:$0xf]
        %v499 = vld [vmem:[%s206 + $0xf8] sm:$0xf]
        %v500 = vld [vmem:[%s206 + $0xfc] sm:$0xf]
        %v501 = vld [vmem:[%s206 + $0x100] sm:$0xf]
        %v502 = vld [vmem:[%s206 + $0x104] sm:$0xf]
        %v503 = vld [vmem:[%s206 + $0x108] sm:$0xf]
        %v504 = vld [vmem:[%s206 + $0x10c] sm:$0xf]
        %v505 = vld [vmem:[%s206 + $0x110] sm:$0xf]
        %v506 = vld [vmem:[%s206 + $0x114] sm:$0xf]
        %v507 = vld [vmem:[%s206 + $0x118] sm:$0xf]
        %v508 = vld [vmem:[%s206 + $0x11c] sm:$0xf]
        %v509 = vld [vmem:[%s206 + $0x120] sm:$0xf]
        %v510 = vld [vmem:[%s206 + $0x124] sm:$0xf]
        %v511 = vld [vmem:[%s206 + $0x128] sm:$0xf]
        %v512 = vld [vmem:[%s206 + $0x12c] sm:$0xf]
        %v513 = vld [vmem:[%s206 + $0x130] sm:$0xf]
        %v514 = vld [vmem:[%s206 + $0x134] sm:$0xf]
        %v515 = vld [vmem:[%s206 + $0x138] sm:$0xf]
        %v516 = vld [vmem:[%s206 + $0x13c] sm:$0xf]
        %v517 = vld [vmem:[%s206 + $0x140] sm:$0xf]
        %v518 = vld [vmem:[%s206 + $0x144] sm:$0xf]
        %v519 = vld [vmem:[%s206 + $0x148] sm:$0xf]
        %v520 = vld [vmem:[%s206 + $0x14c] sm:$0xf]
        %v521 = vld [vmem:[%s206 + $0x150] sm:$0xf]
        %v522 = vld [vmem:[%s206 + $0x154] sm:$0xf]
        %v523 = vld [vmem:[%s206 + $0x158] sm:$0xf]
        %v524 = vld [vmem:[%s206 + $0x15c] sm:$0xf]
        %v525 = vld [vmem:[%s206 + $0x160] sm:$0xf]
        %v526 = vld [vmem:[%s206 + $0x164] sm:$0xf]
        %v527 = vld [vmem:[%s206 + $0x168] sm:$0xf]
        %v528 = vld [vmem:[%s206 + $0x16c] sm:$0xf]
        %v529 = vld [vmem:[%s206 + $0x170] sm:$0xf]
        %v530 = vld [vmem:[%s206 + $0x174] sm:$0xf]
        %v531 = vld [vmem:[%s206 + $0x178] sm:$0xf]
        %v532 = vld [vmem:[%s206 + $0x17c] sm:$0xf]
        %v533 = vld [vmem:[%s206 + $0x180] sm:$0xf]
        %v534 = vld [vmem:[%s206 + $0x184] sm:$0xf]
        %v535 = vld [vmem:[%s206 + $0x188] sm:$0xf]
        %v536 = vld [vmem:[%s206 + $0x18c] sm:$0xf]
        %v537 = vld [vmem:[%s206 + $0x190] sm:$0xf]
        %v538 = vld [vmem:[%s206 + $0x194] sm:$0xf]
        %v539 = vld [vmem:[%s206 + $0x198] sm:$0xf]
        %v540 = vld [vmem:[%s206 + $0x19c] sm:$0xf]
        %v541 = vld [vmem:[%s206 + $0x1a0] sm:$0xf]
        %v542 = vld [vmem:[%s206 + $0x1a4] sm:$0xf]
        %v543 = vld [vmem:[%s206 + $0x1a8] sm:$0xf]
        %v544 = vld [vmem:[%s206 + $0x1ac] sm:$0xf]
        %v545 = vld [vmem:[%s206 + $0x1b0] sm:$0xf]
        %v546 = vld [vmem:[%s206 + $0x1b4] sm:$0xf]
        %v547 = vld [vmem:[%s206 + $0x1b8] sm:$0xf]
        %v548 = vld [vmem:[%s206 + $0x1bc] sm:$0xf]
        %v549 = vld [vmem:[%s206 + $0x1c0] sm:$0xf]
        %v550 = vld [vmem:[%s206 + $0x1c4] sm:$0xf]
        %v551 = vld [vmem:[%s206 + $0x1c8] sm:$0xf]
        %v552 = vld [vmem:[%s206 + $0x1cc] sm:$0xf]
        %v553 = vld [vmem:[%s206 + $0x1d0] sm:$0xf]
        %v554 = vld [vmem:[%s206 + $0x1d4] sm:$0xf]
        %v555 = vld [vmem:[%s206 + $0x1d8] sm:$0xf]
        %v556 = vld [vmem:[%s206 + $0x1dc] sm:$0xf]
        %v557 = vld [vmem:[%s206 + $0x1e0] sm:$0xf]
        %v558 = vld [vmem:[%s206 + $0x1e4] sm:$0xf]
        %v559 = vld [vmem:[%s206 + $0x1e8] sm:$0xf]
        %v560 = vld [vmem:[%s206 + $0x1ec] sm:$0xf]
        %v561 = vld [vmem:[%s206 + $0x1f0] sm:$0xf]
        %v562 = vld [vmem:[%s206 + $0x1f4] sm:$0xf]
        %v563 = vld [vmem:[%s206 + $0x1f8] sm:$0xf]
        %v564 = vld [vmem:[%s206 + $0x1fc] sm:$0xf]
        %vm565 = vsmask.f32 4368
        %vm566 = vmor %vm229, %vm565
        %v568 = vshrl.u32 %v437, 16
        %v570 = vrot.slane %v568, 7
        %v571 = vshll.u32 %v437, 16
        %v573 = vor.u32 %v570, %v571
        %v574 = vrot.slane %v570, 4
        %v576 = vshrl.u32 %v438, 16
        %v578 = vrot.slane %v576, 7
        %v579 = vshll.u32 %v438, 16
        %v581 = vor.u32 %v578, %v579
        %v582 = vsel %vm566, %v574, %v581
        %v583 = vrot.slane %v578, 4
        %v585 = vshrl.u32 %v439, 16
        %v587 = vrot.slane %v585, 7
        %v588 = vshll.u32 %v439, 16
        %v590 = vor.u32 %v587, %v588
        %v591 = vsel %vm566, %v583, %v590
        %v592 = vrot.slane %v587, 4
        %v594 = vshrl.u32 %v440, 16
        %v596 = vrot.slane %v594, 7
        %v597 = vshll.u32 %v440, 16
        %v599 = vor.u32 %v596, %v597
        %v600 = vsel %vm566, %v592, %v599
        %v601 = vrot.slane %v596, 4
        %v603 = vshrl.u32 %v441, 16
        %v605 = vrot.slane %v603, 7
        %v606 = vshll.u32 %v441, 16
        %v608 = vor.u32 %v605, %v606
        %v609 = vrot.slane %v605, 4
        %v611 = vshrl.u32 %v442, 16
        %v613 = vrot.slane %v611, 7
        %v614 = vshll.u32 %v442, 16
        %v616 = vor.u32 %v613, %v614
        %v617 = vsel %vm566, %v609, %v616
        %v618 = vrot.slane %v613, 4
        %v620 = vshrl.u32 %v443, 16
        %v622 = vrot.slane %v620, 7
        %v623 = vshll.u32 %v443, 16
        %v625 = vor.u32 %v622, %v623
        %v626 = vsel %vm566, %v618, %v625
        %v627 = vrot.slane %v622, 4
        %v629 = vshrl.u32 %v444, 16
        %v631 = vrot.slane %v629, 7
        %v632 = vshll.u32 %v444, 16
        %v634 = vor.u32 %v631, %v632
        %v635 = vsel %vm566, %v627, %v634
        %v636 = vrot.slane %v631, 4
        %v638 = vshrl.u32 %v445, 16
        %v640 = vrot.slane %v638, 7
        %v641 = vshll.u32 %v445, 16
        %v643 = vor.u32 %v640, %v641
        %v644 = vrot.slane %v640, 4
        %v646 = vshrl.u32 %v446, 16
        %v648 = vrot.slane %v646, 7
        %v649 = vshll.u32 %v446, 16
        %v651 = vor.u32 %v648, %v649
        %v652 = vsel %vm566, %v644, %v651
        %v653 = vrot.slane %v648, 4
        %v655 = vshrl.u32 %v447, 16
        %v657 = vrot.slane %v655, 7
        %v658 = vshll.u32 %v447, 16
        %v660 = vor.u32 %v657, %v658
        %v661 = vsel %vm566, %v653, %v660
        %v662 = vrot.slane %v657, 4
        %v664 = vshrl.u32 %v448, 16
        %v666 = vrot.slane %v664, 7
        %v667 = vshll.u32 %v448, 16
        %v669 = vor.u32 %v666, %v667
        %v670 = vsel %vm566, %v662, %v669
        %v671 = vrot.slane %v666, 4
        %v673 = vshrl.u32 %v449, 16
        %v675 = vrot.slane %v673, 7
        %v676 = vshll.u32 %v449, 16
        %v678 = vor.u32 %v675, %v676
        %v679 = vrot.slane %v675, 4
        %v681 = vshrl.u32 %v450, 16
        %v683 = vrot.slane %v681, 7
        %v684 = vshll.u32 %v450, 16
        %v686 = vor.u32 %v683, %v684
        %v687 = vsel %vm566, %v679, %v686
        %v688 = vrot.slane %v683, 4
        %v690 = vshrl.u32 %v451, 16
        %v692 = vrot.slane %v690, 7
        %v693 = vshll.u32 %v451, 16
        %v695 = vor.u32 %v692, %v693
        %v696 = vsel %vm566, %v688, %v695
        %v697 = vrot.slane %v692, 4
        %v699 = vshrl.u32 %v452, 16
        %v701 = vrot.slane %v699, 7
        %v702 = vshll.u32 %v452, 16
        %v704 = vor.u32 %v701, %v702
        %v705 = vsel %vm566, %v697, %v704
        %v706 = vrot.slane %v701, 4
        %v708 = vshrl.u32 %v453, 16
        %v710 = vrot.slane %v708, 7
        %v711 = vshll.u32 %v453, 16
        %v713 = vor.u32 %v710, %v711
        %v714 = vrot.slane %v710, 4
        %v716 = vshrl.u32 %v454, 16
        %v718 = vrot.slane %v716, 7
        %v719 = vshll.u32 %v454, 16
        %v721 = vor.u32 %v718, %v719
        %v722 = vsel %vm566, %v714, %v721
        %v723 = vrot.slane %v718, 4
        %v725 = vshrl.u32 %v455, 16
        %v727 = vrot.slane %v725, 7
        %v728 = vshll.u32 %v455, 16
        %v730 = vor.u32 %v727, %v728
        %v731 = vsel %vm566, %v723, %v730
        %v732 = vrot.slane %v727, 4
        %v734 = vshrl.u32 %v456, 16
        %v736 = vrot.slane %v734, 7
        %v737 = vshll.u32 %v456, 16
        %v739 = vor.u32 %v736, %v737
        %v740 = vsel %vm566, %v732, %v739
        %v741 = vrot.slane %v736, 4
        %v743 = vshrl.u32 %v457, 16
        %v745 = vrot.slane %v743, 7
        %v746 = vshll.u32 %v457, 16
        %v748 = vor.u32 %v745, %v746
        %v749 = vrot.slane %v745, 4
        %v751 = vshrl.u32 %v458, 16
        %v753 = vrot.slane %v751, 7
        %v754 = vshll.u32 %v458, 16
        %v756 = vor.u32 %v753, %v754
        %v757 = vsel %vm566, %v749, %v756
        %v758 = vrot.slane %v753, 4
        %v760 = vshrl.u32 %v459, 16
        %v762 = vrot.slane %v760, 7
        %v763 = vshll.u32 %v459, 16
        %v765 = vor.u32 %v762, %v763
        %v766 = vsel %vm566, %v758, %v765
        %v767 = vrot.slane %v762, 4
        %v769 = vshrl.u32 %v460, 16
        %v771 = vrot.slane %v769, 7
        %v772 = vshll.u32 %v460, 16
        %v774 = vor.u32 %v771, %v772
        %v775 = vsel %vm566, %v767, %v774
        %v776 = vrot.slane %v771, 4
        %v778 = vshrl.u32 %v461, 16
        %v780 = vrot.slane %v778, 7
        %v781 = vshll.u32 %v461, 16
        %v783 = vor.u32 %v780, %v781
        %v784 = vrot.slane %v780, 4
        %v786 = vshrl.u32 %v462, 16
        %v788 = vrot.slane %v786, 7
        %v789 = vshll.u32 %v462, 16
        %v791 = vor.u32 %v788, %v789
        %v792 = vsel %vm566, %v784, %v791
        %v793 = vrot.slane %v788, 4
        %v795 = vshrl.u32 %v463, 16
        %v797 = vrot.slane %v795, 7
        %v798 = vshll.u32 %v463, 16
        %v800 = vor.u32 %v797, %v798
        %v801 = vsel %vm566, %v793, %v800
        %v802 = vrot.slane %v797, 4
        %v804 = vshrl.u32 %v464, 16
        %v806 = vrot.slane %v804, 7
        %v807 = vshll.u32 %v464, 16
        %v809 = vor.u32 %v806, %v807
        %v810 = vsel %vm566, %v802, %v809
        %v811 = vrot.slane %v806, 4
        %v813 = vshrl.u32 %v465, 16
        %v815 = vrot.slane %v813, 7
        %v816 = vshll.u32 %v465, 16
        %v818 = vor.u32 %v815, %v816
        %v819 = vrot.slane %v815, 4
        %v821 = vshrl.u32 %v466, 16
        %v823 = vrot.slane %v821, 7
        %v824 = vshll.u32 %v466, 16
        %v826 = vor.u32 %v823, %v824
        %v827 = vsel %vm566, %v819, %v826
        %v828 = vrot.slane %v823, 4
        %v830 = vshrl.u32 %v467, 16
        %v832 = vrot.slane %v830, 7
        %v833 = vshll.u32 %v467, 16
        %v835 = vor.u32 %v832, %v833
        %v836 = vsel %vm566, %v828, %v835
        %v837 = vrot.slane %v832, 4
        %v839 = vshrl.u32 %v468, 16
        %v841 = vrot.slane %v839, 7
        %v842 = vshll.u32 %v468, 16
        %v844 = vor.u32 %v841, %v842
        %v845 = vsel %vm566, %v837, %v844
        %v846 = vrot.slane %v841, 4
        %v848 = vshrl.u32 %v469, 16
        %v850 = vrot.slane %v848, 7
        %v851 = vshll.u32 %v469, 16
        %v853 = vor.u32 %v850, %v851
        %v854 = vrot.slane %v850, 4
        %v856 = vshrl.u32 %v470, 16
        %v858 = vrot.slane %v856, 7
        %v859 = vshll.u32 %v470, 16
        %v861 = vor.u32 %v858, %v859
        %v862 = vsel %vm566, %v854, %v861
        %v863 = vrot.slane %v858, 4
        %v865 = vshrl.u32 %v471, 16
        %v867 = vrot.slane %v865, 7
        %v868 = vshll.u32 %v471, 16
        %v870 = vor.u32 %v867, %v868
        %v871 = vsel %vm566, %v863, %v870
        %v872 = vrot.slane %v867, 4
        %v874 = vshrl.u32 %v472, 16
        %v876 = vrot.slane %v874, 7
        %v877 = vshll.u32 %v472, 16
        %v879 = vor.u32 %v876, %v877
        %v880 = vsel %vm566, %v872, %v879
        %v881 = vrot.slane %v876, 4
        %v883 = vshrl.u32 %v473, 16
        %v885 = vrot.slane %v883, 7
        %v886 = vshll.u32 %v473, 16
        %v888 = vor.u32 %v885, %v886
        %v889 = vrot.slane %v885, 4
        %v891 = vshrl.u32 %v474, 16
        %v893 = vrot.slane %v891, 7
        %v894 = vshll.u32 %v474, 16
        %v896 = vor.u32 %v893, %v894
        %v897 = vsel %vm566, %v889, %v896
        %v898 = vrot.slane %v893, 4
        %v900 = vshrl.u32 %v475, 16
        %v902 = vrot.slane %v900, 7
        %v903 = vshll.u32 %v475, 16
        %v905 = vor.u32 %v902, %v903
        %v906 = vsel %vm566, %v898, %v905
        %v907 = vrot.slane %v902, 4
        %v909 = vshrl.u32 %v476, 16
        %v911 = vrot.slane %v909, 7
        %v912 = vshll.u32 %v476, 16
        %v914 = vor.u32 %v911, %v912
        %v915 = vsel %vm566, %v907, %v914
        %v916 = vrot.slane %v911, 4
        %v918 = vshrl.u32 %v477, 16
        %v920 = vrot.slane %v918, 7
        %v921 = vshll.u32 %v477, 16
        %v923 = vor.u32 %v920, %v921
        %v924 = vrot.slane %v920, 4
        %v926 = vshrl.u32 %v478, 16
        %v928 = vrot.slane %v926, 7
        %v929 = vshll.u32 %v478, 16
        %v931 = vor.u32 %v928, %v929
        %v932 = vsel %vm566, %v924, %v931
        %v933 = vrot.slane %v928, 4
        %v935 = vshrl.u32 %v479, 16
        %v937 = vrot.slane %v935, 7
        %v938 = vshll.u32 %v479, 16
        %v940 = vor.u32 %v937, %v938
        %v941 = vsel %vm566, %v933, %v940
        %v942 = vrot.slane %v937, 4
        %v944 = vshrl.u32 %v480, 16
        %v946 = vrot.slane %v944, 7
        %v947 = vshll.u32 %v480, 16
        %v949 = vor.u32 %v946, %v947
        %v950 = vsel %vm566, %v942, %v949
        %v951 = vrot.slane %v946, 4
        %v953 = vshrl.u32 %v481, 16
        %v955 = vrot.slane %v953, 7
        %v956 = vshll.u32 %v481, 16
        %v958 = vor.u32 %v955, %v956
        %v959 = vrot.slane %v955, 4
        %v961 = vshrl.u32 %v482, 16
        %v963 = vrot.slane %v961, 7
        %v964 = vshll.u32 %v482, 16
        %v966 = vor.u32 %v963, %v964
        %v967 = vsel %vm566, %v959, %v966
        %v968 = vrot.slane %v963, 4
        %v970 = vshrl.u32 %v483, 16
        %v972 = vrot.slane %v970, 7
        %v973 = vshll.u32 %v483, 16
        %v975 = vor.u32 %v972, %v973
        %v976 = vsel %vm566, %v968, %v975
        %v977 = vrot.slane %v972, 4
        %v979 = vshrl.u32 %v484, 16
        %v981 = vrot.slane %v979, 7
        %v982 = vshll.u32 %v484, 16
        %v984 = vor.u32 %v981, %v982
        %v985 = vsel %vm566, %v977, %v984
        %v986 = vrot.slane %v981, 4
        %v988 = vshrl.u32 %v485, 16
        %v990 = vrot.slane %v988, 7
        %v991 = vshll.u32 %v485, 16
        %v993 = vor.u32 %v990, %v991
        %v994 = vrot.slane %v990, 4
        %v996 = vshrl.u32 %v486, 16
        %v998 = vrot.slane %v996, 7
        %v999 = vshll.u32 %v486, 16
        %v1001 = vor.u32 %v998, %v999
        %v1002 = vsel %vm566, %v994, %v1001
        %v1003 = vrot.slane %v998, 4
        %v1005 = vshrl.u32 %v487, 16
        %v1007 = vrot.slane %v1005, 7
        %v1008 = vshll.u32 %v487, 16
        %v1010 = vor.u32 %v1007, %v1008
        %v1011 = vsel %vm566, %v1003, %v1010
        %v1012 = vrot.slane %v1007, 4
        %v1014 = vshrl.u32 %v488, 16
        %v1016 = vrot.slane %v1014, 7
        %v1017 = vshll.u32 %v488, 16
        %v1019 = vor.u32 %v1016, %v1017
        %v1020 = vsel %vm566, %v1012, %v1019
        %v1021 = vrot.slane %v1016, 4
        %v1023 = vshrl.u32 %v489, 16
        %v1025 = vrot.slane %v1023, 7
        %v1026 = vshll.u32 %v489, 16
        %v1028 = vor.u32 %v1025, %v1026
        %v1029 = vrot.slane %v1025, 4
        %v1031 = vshrl.u32 %v490, 16
        %v1033 = vrot.slane %v1031, 7
        %v1034 = vshll.u32 %v490, 16
        %v1036 = vor.u32 %v1033, %v1034
        %v1037 = vsel %vm566, %v1029, %v1036
        %v1038 = vrot.slane %v1033, 4
        %v1040 = vshrl.u32 %v491, 16
        %v1042 = vrot.slane %v1040, 7
        %v1043 = vshll.u32 %v491, 16
        %v1045 = vor.u32 %v1042, %v1043
        %v1046 = vsel %vm566, %v1038, %v1045
        %v1047 = vrot.slane %v1042, 4
        %v1049 = vshrl.u32 %v492, 16
        %v1051 = vrot.slane %v1049, 7
        %v1052 = vshll.u32 %v492, 16
        %v1054 = vor.u32 %v1051, %v1052
        %v1055 = vsel %vm566, %v1047, %v1054
        %v1056 = vrot.slane %v1051, 4
        %v1058 = vshrl.u32 %v493, 16
        %v1060 = vrot.slane %v1058, 7
        %v1061 = vshll.u32 %v493, 16
        %v1063 = vor.u32 %v1060, %v1061
        %v1064 = vrot.slane %v1060, 4
        %v1066 = vshrl.u32 %v494, 16
        %v1068 = vrot.slane %v1066, 7
        %v1069 = vshll.u32 %v494, 16
        %v1071 = vor.u32 %v1068, %v1069
        %v1072 = vsel %vm566, %v1064, %v1071
        %v1073 = vrot.slane %v1068, 4
        %v1075 = vshrl.u32 %v495, 16
        %v1077 = vrot.slane %v1075, 7
        %v1078 = vshll.u32 %v495, 16
        %v1080 = vor.u32 %v1077, %v1078
        %v1081 = vsel %vm566, %v1073, %v1080
        %v1082 = vrot.slane %v1077, 4
        %v1084 = vshrl.u32 %v496, 16
        %v1086 = vrot.slane %v1084, 7
        %v1087 = vshll.u32 %v496, 16
        %v1089 = vor.u32 %v1086, %v1087
        %v1090 = vsel %vm566, %v1082, %v1089
        %v1091 = vrot.slane %v1086, 4
        %v1093 = vshrl.u32 %v497, 16
        %v1095 = vrot.slane %v1093, 7
        %v1096 = vshll.u32 %v497, 16
        %v1098 = vor.u32 %v1095, %v1096
        %v1099 = vrot.slane %v1095, 4
        %v1101 = vshrl.u32 %v498, 16
        %v1103 = vrot.slane %v1101, 7
        %v1104 = vshll.u32 %v498, 16
        %v1106 = vor.u32 %v1103, %v1104
        %v1107 = vsel %vm566, %v1099, %v1106
        %v1108 = vrot.slane %v1103, 4
        %v1110 = vshrl.u32 %v499, 16
        %v1112 = vrot.slane %v1110, 7
        %v1113 = vshll.u32 %v499, 16
        %v1115 = vor.u32 %v1112, %v1113
        %v1116 = vsel %vm566, %v1108, %v1115
        %v1117 = vrot.slane %v1112, 4
        %v1119 = vshrl.u32 %v500, 16
        %v1121 = vrot.slane %v1119, 7
        %v1122 = vshll.u32 %v500, 16
        %v1124 = vor.u32 %v1121, %v1122
        %v1125 = vsel %vm566, %v1117, %v1124
        %v1126 = vrot.slane %v1121, 4
        %v1128 = vshrl.u32 %v501, 16
        %v1130 = vrot.slane %v1128, 7
        %v1131 = vshll.u32 %v501, 16
        %v1133 = vor.u32 %v1130, %v1131
        %v1134 = vrot.slane %v1130, 4
        %v1136 = vshrl.u32 %v502, 16
        %v1138 = vrot.slane %v1136, 7
        %v1139 = vshll.u32 %v502, 16
        %v1141 = vor.u32 %v1138, %v1139
        %v1142 = vsel %vm566, %v1134, %v1141
        %v1143 = vrot.slane %v1138, 4
        %v1145 = vshrl.u32 %v503, 16
        %v1147 = vrot.slane %v1145, 7
        %v1148 = vshll.u32 %v503, 16
        %v1150 = vor.u32 %v1147, %v1148
        %v1151 = vsel %vm566, %v1143, %v1150
        %v1152 = vrot.slane %v1147, 4
        %v1154 = vshrl.u32 %v504, 16
        %v1156 = vrot.slane %v1154, 7
        %v1157 = vshll.u32 %v504, 16
        %v1159 = vor.u32 %v1156, %v1157
        %v1160 = vsel %vm566, %v1152, %v1159
        %v1161 = vrot.slane %v1156, 4
        %v1163 = vshrl.u32 %v505, 16
        %v1165 = vrot.slane %v1163, 7
        %v1166 = vshll.u32 %v505, 16
        %v1168 = vor.u32 %v1165, %v1166
        %v1169 = vrot.slane %v1165, 4
        %v1171 = vshrl.u32 %v506, 16
        %v1173 = vrot.slane %v1171, 7
        %v1174 = vshll.u32 %v506, 16
        %v1176 = vor.u32 %v1173, %v1174
        %v1177 = vsel %vm566, %v1169, %v1176
        %v1178 = vrot.slane %v1173, 4
        %v1180 = vshrl.u32 %v507, 16
        %v1182 = vrot.slane %v1180, 7
        %v1183 = vshll.u32 %v507, 16
        %v1185 = vor.u32 %v1182, %v1183
        %v1186 = vsel %vm566, %v1178, %v1185
        %v1187 = vrot.slane %v1182, 4
        %v1189 = vshrl.u32 %v508, 16
        %v1191 = vrot.slane %v1189, 7
        %v1192 = vshll.u32 %v508, 16
        %v1194 = vor.u32 %v1191, %v1192
        %v1195 = vsel %vm566, %v1187, %v1194
        %v1196 = vrot.slane %v1191, 4
        %v1198 = vshrl.u32 %v509, 16
        %v1200 = vrot.slane %v1198, 7
        %v1201 = vshll.u32 %v509, 16
        %v1203 = vor.u32 %v1200, %v1201
        %v1204 = vrot.slane %v1200, 4
        %v1206 = vshrl.u32 %v510, 16
        %v1208 = vrot.slane %v1206, 7
        %v1209 = vshll.u32 %v510, 16
        %v1211 = vor.u32 %v1208, %v1209
        %v1212 = vsel %vm566, %v1204, %v1211
        %v1213 = vrot.slane %v1208, 4
        %v1215 = vshrl.u32 %v511, 16
        %v1217 = vrot.slane %v1215, 7
        %v1218 = vshll.u32 %v511, 16
        %v1220 = vor.u32 %v1217, %v1218
        %v1221 = vsel %vm566, %v1213, %v1220
        %v1222 = vrot.slane %v1217, 4
        %v1224 = vshrl.u32 %v512, 16
        %v1226 = vrot.slane %v1224, 7
        %v1227 = vshll.u32 %v512, 16
        %v1229 = vor.u32 %v1226, %v1227
        %v1230 = vsel %vm566, %v1222, %v1229
        %v1231 = vrot.slane %v1226, 4
        %v1233 = vshrl.u32 %v513, 16
        %v1235 = vrot.slane %v1233, 7
        %v1236 = vshll.u32 %v513, 16
        %v1238 = vor.u32 %v1235, %v1236
        %v1239 = vrot.slane %v1235, 4
        %v1241 = vshrl.u32 %v514, 16
        %v1243 = vrot.slane %v1241, 7
        %v1244 = vshll.u32 %v514, 16
        %v1246 = vor.u32 %v1243, %v1244
        %v1247 = vsel %vm566, %v1239, %v1246
        %v1248 = vrot.slane %v1243, 4
        %v1250 = vshrl.u32 %v515, 16
        %v1252 = vrot.slane %v1250, 7
        %v1253 = vshll.u32 %v515, 16
        %v1255 = vor.u32 %v1252, %v1253
        %v1256 = vsel %vm566, %v1248, %v1255
        %v1257 = vrot.slane %v1252, 4
        %v1259 = vshrl.u32 %v516, 16
        %v1261 = vrot.slane %v1259, 7
        %v1262 = vshll.u32 %v516, 16
        %v1264 = vor.u32 %v1261, %v1262
        %v1265 = vsel %vm566, %v1257, %v1264
        %v1266 = vrot.slane %v1261, 4
        %v1268 = vshrl.u32 %v517, 16
        %v1270 = vrot.slane %v1268, 7
        %v1271 = vshll.u32 %v517, 16
        %v1273 = vor.u32 %v1270, %v1271
        %v1274 = vrot.slane %v1270, 4
        %v1276 = vshrl.u32 %v518, 16
        %v1278 = vrot.slane %v1276, 7
        %v1279 = vshll.u32 %v518, 16
        %v1281 = vor.u32 %v1278, %v1279
        %v1282 = vsel %vm566, %v1274, %v1281
        %v1283 = vrot.slane %v1278, 4
        %v1285 = vshrl.u32 %v519, 16
        %v1287 = vrot.slane %v1285, 7
        %v1288 = vshll.u32 %v519, 16
        %v1290 = vor.u32 %v1287, %v1288
        %v1291 = vsel %vm566, %v1283, %v1290
        %v1292 = vrot.slane %v1287, 4
        %v1294 = vshrl.u32 %v520, 16
        %v1296 = vrot.slane %v1294, 7
        %v1297 = vshll.u32 %v520, 16
        %v1299 = vor.u32 %v1296, %v1297
        %v1300 = vsel %vm566, %v1292, %v1299
        %v1301 = vrot.slane %v1296, 4
        %v1303 = vshrl.u32 %v521, 16
        %v1305 = vrot.slane %v1303, 7
        %v1306 = vshll.u32 %v521, 16
        %v1308 = vor.u32 %v1305, %v1306
        %v1309 = vrot.slane %v1305, 4
        %v1311 = vshrl.u32 %v522, 16
        %v1313 = vrot.slane %v1311, 7
        %v1314 = vshll.u32 %v522, 16
        %v1316 = vor.u32 %v1313, %v1314
        %v1317 = vsel %vm566, %v1309, %v1316
        %v1318 = vrot.slane %v1313, 4
        %v1320 = vshrl.u32 %v523, 16
        %v1322 = vrot.slane %v1320, 7
        %v1323 = vshll.u32 %v523, 16
        %v1325 = vor.u32 %v1322, %v1323
        %v1326 = vsel %vm566, %v1318, %v1325
        %v1327 = vrot.slane %v1322, 4
        %v1329 = vshrl.u32 %v524, 16
        %v1331 = vrot.slane %v1329, 7
        %v1332 = vshll.u32 %v524, 16
        %v1334 = vor.u32 %v1331, %v1332
        %v1335 = vsel %vm566, %v1327, %v1334
        %v1336 = vrot.slane %v1331, 4
        %v1338 = vshrl.u32 %v525, 16
        %v1340 = vrot.slane %v1338, 7
        %v1341 = vshll.u32 %v525, 16
        %v1343 = vor.u32 %v1340, %v1341
        %v1344 = vrot.slane %v1340, 4
        %v1346 = vshrl.u32 %v526, 16
        %v1348 = vrot.slane %v1346, 7
        %v1349 = vshll.u32 %v526, 16
        %v1351 = vor.u32 %v1348, %v1349
        %v1352 = vsel %vm566, %v1344, %v1351
        %v1353 = vrot.slane %v1348, 4
        %v1355 = vshrl.u32 %v527, 16
        %v1357 = vrot.slane %v1355, 7
        %v1358 = vshll.u32 %v527, 16
        %v1360 = vor.u32 %v1357, %v1358
        %v1361 = vsel %vm566, %v1353, %v1360
        %v1362 = vrot.slane %v1357, 4
        %v1364 = vshrl.u32 %v528, 16
        %v1366 = vrot.slane %v1364, 7
        %v1367 = vshll.u32 %v528, 16
        %v1369 = vor.u32 %v1366, %v1367
        %v1370 = vsel %vm566, %v1362, %v1369
        %v1371 = vrot.slane %v1366, 4
        %v1373 = vshrl.u32 %v529, 16
        %v1375 = vrot.slane %v1373, 7
        %v1376 = vshll.u32 %v529, 16
        %v1378 = vor.u32 %v1375, %v1376
        %v1379 = vrot.slane %v1375, 4
        %v1381 = vshrl.u32 %v530, 16
        %v1383 = vrot.slane %v1381, 7
        %v1384 = vshll.u32 %v530, 16
        %v1386 = vor.u32 %v1383, %v1384
        %v1387 = vsel %vm566, %v1379, %v1386
        %v1388 = vrot.slane %v1383, 4
        %v1390 = vshrl.u32 %v531, 16
        %v1392 = vrot.slane %v1390, 7
        %v1393 = vshll.u32 %v531, 16
        %v1395 = vor.u32 %v1392, %v1393
        %v1396 = vsel %vm566, %v1388, %v1395
        %v1397 = vrot.slane %v1392, 4
        %v1399 = vshrl.u32 %v532, 16
        %v1401 = vrot.slane %v1399, 7
        %v1402 = vshll.u32 %v532, 16
        %v1404 = vor.u32 %v1401, %v1402
        %v1405 = vsel %vm566, %v1397, %v1404
        %v1406 = vrot.slane %v1401, 4
        %v1408 = vshrl.u32 %v533, 16
        %v1410 = vrot.slane %v1408, 7
        %v1411 = vshll.u32 %v533, 16
        %v1413 = vor.u32 %v1410, %v1411
        %v1414 = vrot.slane %v1410, 4
        %v1416 = vshrl.u32 %v534, 16
        %v1418 = vrot.slane %v1416, 7
        %v1419 = vshll.u32 %v534, 16
        %v1421 = vor.u32 %v1418, %v1419
        %v1422 = vsel %vm566, %v1414, %v1421
        %v1423 = vrot.slane %v1418, 4
        %v1425 = vshrl.u32 %v535, 16
        %v1427 = vrot.slane %v1425, 7
        %v1428 = vshll.u32 %v535, 16
        %v1430 = vor.u32 %v1427, %v1428
        %v1431 = vsel %vm566, %v1423, %v1430
        %v1432 = vrot.slane %v1427, 4
        %v1434 = vshrl.u32 %v536, 16
        %v1436 = vrot.slane %v1434, 7
        %v1437 = vshll.u32 %v536, 16
        %v1439 = vor.u32 %v1436, %v1437
        %v1440 = vsel %vm566, %v1432, %v1439
        %v1441 = vrot.slane %v1436, 4
        %v1443 = vshrl.u32 %v537, 16
        %v1445 = vrot.slane %v1443, 7
        %v1446 = vshll.u32 %v537, 16
        %v1448 = vor.u32 %v1445, %v1446
        %v1449 = vrot.slane %v1445, 4
        %v1451 = vshrl.u32 %v538, 16
        %v1453 = vrot.slane %v1451, 7
        %v1454 = vshll.u32 %v538, 16
        %v1456 = vor.u32 %v1453, %v1454
        %v1457 = vsel %vm566, %v1449, %v1456
        %v1458 = vrot.slane %v1453, 4
        %v1460 = vshrl.u32 %v539, 16
        %v1462 = vrot.slane %v1460, 7
        %v1463 = vshll.u32 %v539, 16
        %v1465 = vor.u32 %v1462, %v1463
        %v1466 = vsel %vm566, %v1458, %v1465
        %v1467 = vrot.slane %v1462, 4
        %v1469 = vshrl.u32 %v540, 16
        %v1471 = vrot.slane %v1469, 7
        %v1472 = vshll.u32 %v540, 16
        %v1474 = vor.u32 %v1471, %v1472
        %v1475 = vsel %vm566, %v1467, %v1474
        %v1476 = vrot.slane %v1471, 4
        %v1478 = vshrl.u32 %v541, 16
        %v1480 = vrot.slane %v1478, 7
        %v1481 = vshll.u32 %v541, 16
        %v1483 = vor.u32 %v1480, %v1481
        %v1484 = vrot.slane %v1480, 4
        %v1486 = vshrl.u32 %v542, 16
        %v1488 = vrot.slane %v1486, 7
        %v1489 = vshll.u32 %v542, 16
        %v1491 = vor.u32 %v1488, %v1489
        %v1492 = vsel %vm566, %v1484, %v1491
        %v1493 = vrot.slane %v1488, 4
        %v1495 = vshrl.u32 %v543, 16
        %v1497 = vrot.slane %v1495, 7
        %v1498 = vshll.u32 %v543, 16
        %v1500 = vor.u32 %v1497, %v1498
        %v1501 = vsel %vm566, %v1493, %v1500
        %v1502 = vrot.slane %v1497, 4
        %v1504 = vshrl.u32 %v544, 16
        %v1506 = vrot.slane %v1504, 7
        %v1507 = vshll.u32 %v544, 16
        %v1509 = vor.u32 %v1506, %v1507
        %v1510 = vsel %vm566, %v1502, %v1509
        %v1511 = vrot.slane %v1506, 4
        %v1513 = vshrl.u32 %v545, 16
        %v1515 = vrot.slane %v1513, 7
        %v1516 = vshll.u32 %v545, 16
        %v1518 = vor.u32 %v1515, %v1516
        %v1519 = vrot.slane %v1515, 4
        %v1521 = vshrl.u32 %v546, 16
        %v1523 = vrot.slane %v1521, 7
        %v1524 = vshll.u32 %v546, 16
        %v1526 = vor.u32 %v1523, %v1524
        %v1527 = vsel %vm566, %v1519, %v1526
        %v1528 = vrot.slane %v1523, 4
        %v1530 = vshrl.u32 %v547, 16
        %v1532 = vrot.slane %v1530, 7
        %v1533 = vshll.u32 %v547, 16
        %v1535 = vor.u32 %v1532, %v1533
        %v1536 = vsel %vm566, %v1528, %v1535
        %v1537 = vrot.slane %v1532, 4
        %v1539 = vshrl.u32 %v548, 16
        %v1541 = vrot.slane %v1539, 7
        %v1542 = vshll.u32 %v548, 16
        %v1544 = vor.u32 %v1541, %v1542
        %v1545 = vsel %vm566, %v1537, %v1544
        %v1546 = vrot.slane %v1541, 4
        %v1548 = vshrl.u32 %v549, 16
        %v1550 = vrot.slane %v1548, 7
        %v1551 = vshll.u32 %v549, 16
        %v1553 = vor.u32 %v1550, %v1551
        %v1554 = vrot.slane %v1550, 4
        %v1556 = vshrl.u32 %v550, 16
        %v1558 = vrot.slane %v1556, 7
        %v1559 = vshll.u32 %v550, 16
        %v1561 = vor.u32 %v1558, %v1559
        %v1562 = vsel %vm566, %v1554, %v1561
        %v1563 = vrot.slane %v1558, 4
        %v1565 = vshrl.u32 %v551, 16
        %v1567 = vrot.slane %v1565, 7
        %v1568 = vshll.u32 %v551, 16
        %v1570 = vor.u32 %v1567, %v1568
        %v1571 = vsel %vm566, %v1563, %v1570
        %v1572 = vrot.slane %v1567, 4
        %v1574 = vshrl.u32 %v552, 16
        %v1576 = vrot.slane %v1574, 7
        %v1577 = vshll.u32 %v552, 16
        %v1579 = vor.u32 %v1576, %v1577
        %v1580 = vsel %vm566, %v1572, %v1579
        %v1581 = vrot.slane %v1576, 4
        %v1583 = vshrl.u32 %v553, 16
        %v1585 = vrot.slane %v1583, 7
        %v1586 = vshll.u32 %v553, 16
        %v1588 = vor.u32 %v1585, %v1586
        %v1589 = vrot.slane %v1585, 4
        %v1591 = vshrl.u32 %v554, 16
        %v1593 = vrot.slane %v1591, 7
        %v1594 = vshll.u32 %v554, 16
        %v1596 = vor.u32 %v1593, %v1594
        %v1597 = vsel %vm566, %v1589, %v1596
        %v1598 = vrot.slane %v1593, 4
        %v1600 = vshrl.u32 %v555, 16
        %v1602 = vrot.slane %v1600, 7
        %v1603 = vshll.u32 %v555, 16
        %v1605 = vor.u32 %v1602, %v1603
        %v1606 = vsel %vm566, %v1598, %v1605
        %v1607 = vrot.slane %v1602, 4
        %v1609 = vshrl.u32 %v556, 16
        %v1611 = vrot.slane %v1609, 7
        %v1612 = vshll.u32 %v556, 16
        %v1614 = vor.u32 %v1611, %v1612
        %v1615 = vsel %vm566, %v1607, %v1614
        %v1616 = vrot.slane %v1611, 4
        %v1618 = vshrl.u32 %v557, 16
        %v1620 = vrot.slane %v1618, 7
        %v1621 = vshll.u32 %v557, 16
        %v1623 = vor.u32 %v1620, %v1621
        %v1624 = vrot.slane %v1620, 4
        %v1626 = vshrl.u32 %v558, 16
        %v1628 = vrot.slane %v1626, 7
        %v1629 = vshll.u32 %v558, 16
        %v1631 = vor.u32 %v1628, %v1629
        %v1632 = vsel %vm566, %v1624, %v1631
        %v1633 = vrot.slane %v1628, 4
        %v1635 = vshrl.u32 %v559, 16
        %v1637 = vrot.slane %v1635, 7
        %v1638 = vshll.u32 %v559, 16
        %v1640 = vor.u32 %v1637, %v1638
        %v1641 = vsel %vm566, %v1633, %v1640
        %v1642 = vrot.slane %v1637, 4
        %v1644 = vshrl.u32 %v560, 16
        %v1646 = vrot.slane %v1644, 7
        %v1647 = vshll.u32 %v560, 16
        %v1649 = vor.u32 %v1646, %v1647
        %v1650 = vsel %vm566, %v1642, %v1649
        %v1651 = vrot.slane %v1646, 4
        %v1653 = vshrl.u32 %v561, 16
        %v1655 = vrot.slane %v1653, 7
        %v1656 = vshll.u32 %v561, 16
        %v1658 = vor.u32 %v1655, %v1656
        %v1659 = vrot.slane %v1655, 4
        %v1661 = vshrl.u32 %v562, 16
        %v1663 = vrot.slane %v1661, 7
        %v1664 = vshll.u32 %v562, 16
        %v1666 = vor.u32 %v1663, %v1664
        %v1667 = vsel %vm566, %v1659, %v1666
        %v1668 = vrot.slane %v1663, 4
        %v1670 = vshrl.u32 %v563, 16
        %v1672 = vrot.slane %v1670, 7
        %v1673 = vshll.u32 %v563, 16
        %v1675 = vor.u32 %v1672, %v1673
        %v1676 = vsel %vm566, %v1668, %v1675
        %v1677 = vrot.slane %v1672, 4
        %v1679 = vshrl.u32 %v564, 16
        %v1681 = vrot.slane %v1679, 7
        %v1682 = vshll.u32 %v564, 16
        %v1684 = vor.u32 %v1681, %v1682
        %v1685 = vsel %vm566, %v1677, %v1684
        %v1686 = vrot.slane %v1681, 4
        %s1847 = scalar_lea.vmem [#allocation2], 20
        %vm1848 = vcmask 19456
        %vm1849 = vmand %vm1848, %vm333
        %v1850 = vld [vmem:[%s1847] sm:$0xf]
        %v1851 = vsel %vm1849, %v573, %v1850
        %1852 = vst [vmem:[%s1847] sm:$0xf] %v1851
        %1853 = vst.msk [vmem:[%s1847 + $0x4] sm:$0xf] %vm215, %v582
        %1854 = vst.msk [vmem:[%s1847 + $0x8] sm:$0xf] %vm215, %v591
        %1855 = vst.msk [vmem:[%s1847 + $0xc] sm:$0xf] %vm215, %v600
        %v1856 = vld [vmem:[%s1847 + $0x10] sm:$0x1]
        %v1857 = vsel %vm230, %v601, %v1856
        %1858 = vst [vmem:[%s1847 + $0x10] sm:$0x1] %v1857
        %v1859 = vld [vmem:[%s1847 + $0x14] sm:$0xf]
        %v1860 = vsel %vm1849, %v608, %v1859
        %1861 = vst [vmem:[%s1847 + $0x14] sm:$0xf] %v1860
        %1862 = vst.msk [vmem:[%s1847 + $0x18] sm:$0xf] %vm215, %v617
        %1863 = vst.msk [vmem:[%s1847 + $0x1c] sm:$0xf] %vm215, %v626
        %1864 = vst.msk [vmem:[%s1847 + $0x20] sm:$0xf] %vm215, %v635
        %v1865 = vld [vmem:[%s1847 + $0x24] sm:$0x1]
        %v1866 = vsel %vm230, %v636, %v1865
        %1867 = vst [vmem:[%s1847 + $0x24] sm:$0x1] %v1866
        %v1868 = vld [vmem:[%s1847 + $0x28] sm:$0xf]
        %v1869 = vsel %vm1849, %v643, %v1868
        %1870 = vst [vmem:[%s1847 + $0x28] sm:$0xf] %v1869
        %1871 = vst.msk [vmem:[%s1847 + $0x2c] sm:$0xf] %vm215, %v652
        %1872 = vst.msk [vmem:[%s1847 + $0x30] sm:$0xf] %vm215, %v661
        %1873 = vst.msk [vmem:[%s1847 + $0x34] sm:$0xf] %vm215, %v670
        %v1874 = vld [vmem:[%s1847 + $0x38] sm:$0x1]
        %v1875 = vsel %vm230, %v671, %v1874
        %1876 = vst [vmem:[%s1847 + $0x38] sm:$0x1] %v1875
        %v1877 = vld [vmem:[%s1847 + $0x3c] sm:$0xf]
        %v1878 = vsel %vm1849, %v678, %v1877
        %1879 = vst [vmem:[%s1847 + $0x3c] sm:$0xf] %v1878
        %1880 = vst.msk [vmem:[%s1847 + $0x40] sm:$0xf] %vm215, %v687
        %1881 = vst.msk [vmem:[%s1847 + $0x44] sm:$0xf] %vm215, %v696
        %1882 = vst.msk [vmem:[%s1847 + $0x48] sm:$0xf] %vm215, %v705
        %v1883 = vld [vmem:[%s1847 + $0x4c] sm:$0x1]
        %v1884 = vsel %vm230, %v706, %v1883
        %1885 = vst [vmem:[%s1847 + $0x4c] sm:$0x1] %v1884
        %v1886 = vld [vmem:[%s1847 + $0x50] sm:$0xf]
        %v1887 = vsel %vm1849, %v713, %v1886
        %1888 = vst [vmem:[%s1847 + $0x50] sm:$0xf] %v1887
        %1889 = vst.msk [vmem:[%s1847 + $0x54] sm:$0xf] %vm215, %v722
        %1890 = vst.msk [vmem:[%s1847 + $0x58] sm:$0xf] %vm215, %v731
        %1891 = vst.msk [vmem:[%s1847 + $0x5c] sm:$0xf] %vm215, %v740
        %v1892 = vld [vmem:[%s1847 + $0x60] sm:$0x1]
        %v1893 = vsel %vm230, %v741, %v1892
        %1894 = vst [vmem:[%s1847 + $0x60] sm:$0x1] %v1893
        %v1895 = vld [vmem:[%s1847 + $0x64] sm:$0xf]
        %v1896 = vsel %vm1849, %v748, %v1895
        %1897 = vst [vmem:[%s1847 + $0x64] sm:$0xf] %v1896
        %1898 = vst.msk [vmem:[%s1847 + $0x68] sm:$0xf] %vm215, %v757
        %1899 = vst.msk [vmem:[%s1847 + $0x6c] sm:$0xf] %vm215, %v766
        %1900 = vst.msk [vmem:[%s1847 + $0x70] sm:$0xf] %vm215, %v775
        %v1901 = vld [vmem:[%s1847 + $0x74] sm:$0x1]
        %v1902 = vsel %vm230, %v776, %v1901
        %1903 = vst [vmem:[%s1847 + $0x74] sm:$0x1] %v1902
        %v1904 = vld [vmem:[%s1847 + $0x78] sm:$0xf]
        %v1905 = vsel %vm1849, %v783, %v1904
        %1906 = vst [vmem:[%s1847 + $0x78] sm:$0xf] %v1905
        %1907 = vst.msk [vmem:[%s1847 + $0x7c] sm:$0xf] %vm215, %v792
        %1908 = vst.msk [vmem:[%s1847 + $0x80] sm:$0xf] %vm215, %v801
        %1909 = vst.msk [vmem:[%s1847 + $0x84] sm:$0xf] %vm215, %v810
        %v1910 = vld [vmem:[%s1847 + $0x88] sm:$0x1]
        %v1911 = vsel %vm230, %v811, %v1910
        %1912 = vst [vmem:[%s1847 + $0x88] sm:$0x1] %v1911
        %v1913 = vld [vmem:[%s1847 + $0x8c] sm:$0xf]
        %v1914 = vsel %vm1849, %v818, %v1913
        %1915 = vst [vmem:[%s1847 + $0x8c] sm:$0xf] %v1914
        %1916 = vst.msk [vmem:[%s1847 + $0x90] sm:$0xf] %vm215, %v827
        %1917 = vst.msk [vmem:[%s1847 + $0x94] sm:$0xf] %vm215, %v836
        %1918 = vst.msk [vmem:[%s1847 + $0x98] sm:$0xf] %vm215, %v845
        %v1919 = vld [vmem:[%s1847 + $0x9c] sm:$0x1]
        %v1920 = vsel %vm230, %v846, %v1919
        %1921 = vst [vmem:[%s1847 + $0x9c] sm:$0x1] %v1920
        %v1922 = vld [vmem:[%s1847 + $0xa0] sm:$0xf]
        %v1923 = vsel %vm1849, %v853, %v1922
        %1924 = vst [vmem:[%s1847 + $0xa0] sm:$0xf] %v1923
        %1925 = vst.msk [vmem:[%s1847 + $0xa4] sm:$0xf] %vm215, %v862
        %1926 = vst.msk [vmem:[%s1847 + $0xa8] sm:$0xf] %vm215, %v871
        %1927 = vst.msk [vmem:[%s1847 + $0xac] sm:$0xf] %vm215, %v880
        %v1928 = vld [vmem:[%s1847 + $0xb0] sm:$0x1]
        %v1929 = vsel %vm230, %v881, %v1928
        %1930 = vst [vmem:[%s1847 + $0xb0] sm:$0x1] %v1929
        %v1931 = vld [vmem:[%s1847 + $0xb4] sm:$0xf]
        %v1932 = vsel %vm1849, %v888, %v1931
        %1933 = vst [vmem:[%s1847 + $0xb4] sm:$0xf] %v1932
        %1934 = vst.msk [vmem:[%s1847 + $0xb8] sm:$0xf] %vm215, %v897
        %1935 = vst.msk [vmem:[%s1847 + $0xbc] sm:$0xf] %vm215, %v906
        %1936 = vst.msk [vmem:[%s1847 + $0xc0] sm:$0xf] %vm215, %v915
        %v1937 = vld [vmem:[%s1847 + $0xc4] sm:$0x1]
        %v1938 = vsel %vm230, %v916, %v1937
        %1939 = vst [vmem:[%s1847 + $0xc4] sm:$0x1] %v1938
        %v1940 = vld [vmem:[%s1847 + $0xc8] sm:$0xf]
        %v1941 = vsel %vm1849, %v923, %v1940
        %1942 = vst [vmem:[%s1847 + $0xc8] sm:$0xf] %v1941
        %1943 = vst.msk [vmem:[%s1847 + $0xcc] sm:$0xf] %vm215, %v932
        %1944 = vst.msk [vmem:[%s1847 + $0xd0] sm:$0xf] %vm215, %v941
        %1945 = vst.msk [vmem:[%s1847 + $0xd4] sm:$0xf] %vm215, %v950
        %v1946 = vld [vmem:[%s1847 + $0xd8] sm:$0x1]
        %v1947 = vsel %vm230, %v951, %v1946
        %1948 = vst [vmem:[%s1847 + $0xd8] sm:$0x1] %v1947
        %v1949 = vld [vmem:[%s1847 + $0xdc] sm:$0xf]
        %v1950 = vsel %vm1849, %v958, %v1949
        %1951 = vst [vmem:[%s1847 + $0xdc] sm:$0xf] %v1950
        %1952 = vst.msk [vmem:[%s1847 + $0xe0] sm:$0xf] %vm215, %v967
        %1953 = vst.msk [vmem:[%s1847 + $0xe4] sm:$0xf] %vm215, %v976
        %1954 = vst.msk [vmem:[%s1847 + $0xe8] sm:$0xf] %vm215, %v985
        %v1955 = vld [vmem:[%s1847 + $0xec] sm:$0x1]
        %v1956 = vsel %vm230, %v986, %v1955
        %1957 = vst [vmem:[%s1847 + $0xec] sm:$0x1] %v1956
        %v1958 = vld [vmem:[%s1847 + $0xf0] sm:$0xf]
        %v1959 = vsel %vm1849, %v993, %v1958
        %1960 = vst [vmem:[%s1847 + $0xf0] sm:$0xf] %v1959
        %1961 = vst.msk [vmem:[%s1847 + $0xf4] sm:$0xf] %vm215, %v1002
        %1962 = vst.msk [vmem:[%s1847 + $0xf8] sm:$0xf] %vm215, %v1011
        %1963 = vst.msk [vmem:[%s1847 + $0xfc] sm:$0xf] %vm215, %v1020
        %v1964 = vld [vmem:[%s1847 + $0x100] sm:$0x1]
        %v1965 = vsel %vm230, %v1021, %v1964
        %1966 = vst [vmem:[%s1847 + $0x100] sm:$0x1] %v1965
        %v1967 = vld [vmem:[%s1847 + $0x104] sm:$0xf]
        %v1968 = vsel %vm1849, %v1028, %v1967
        %1969 = vst [vmem:[%s1847 + $0x104] sm:$0xf] %v1968
        %1970 = vst.msk [vmem:[%s1847 + $0x108] sm:$0xf] %vm215, %v1037
        %1971 = vst.msk [vmem:[%s1847 + $0x10c] sm:$0xf] %vm215, %v1046
        %1972 = vst.msk [vmem:[%s1847 + $0x110] sm:$0xf] %vm215, %v1055
        %v1973 = vld [vmem:[%s1847 + $0x114] sm:$0x1]
        %v1974 = vsel %vm230, %v1056, %v1973
        %1975 = vst [vmem:[%s1847 + $0x114] sm:$0x1] %v1974
        %v1976 = vld [vmem:[%s1847 + $0x118] sm:$0xf]
        %v1977 = vsel %vm1849, %v1063, %v1976
        %1978 = vst [vmem:[%s1847 + $0x118] sm:$0xf] %v1977
        %1979 = vst.msk [vmem:[%s1847 + $0x11c] sm:$0xf] %vm215, %v1072
        %1980 = vst.msk [vmem:[%s1847 + $0x120] sm:$0xf] %vm215, %v1081
        %1981 = vst.msk [vmem:[%s1847 + $0x124] sm:$0xf] %vm215, %v1090
        %v1982 = vld [vmem:[%s1847 + $0x128] sm:$0x1]
        %v1983 = vsel %vm230, %v1091, %v1982
        %1984 = vst [vmem:[%s1847 + $0x128] sm:$0x1] %v1983
        %v1985 = vld [vmem:[%s1847 + $0x12c] sm:$0xf]
        %v1986 = vsel %vm1849, %v1098, %v1985
        %1987 = vst [vmem:[%s1847 + $0x12c] sm:$0xf] %v1986
        %1988 = vst.msk [vmem:[%s1847 + $0x130] sm:$0xf] %vm215, %v1107
        %1989 = vst.msk [vmem:[%s1847 + $0x134] sm:$0xf] %vm215, %v1116
        %1990 = vst.msk [vmem:[%s1847 + $0x138] sm:$0xf] %vm215, %v1125
        %v1991 = vld [vmem:[%s1847 + $0x13c] sm:$0x1]
        %v1992 = vsel %vm230, %v1126, %v1991
        %1993 = vst [vmem:[%s1847 + $0x13c] sm:$0x1] %v1992
        %v1994 = vld [vmem:[%s1847 + $0x140] sm:$0xf]
        %v1995 = vsel %vm1849, %v1133, %v1994
        %1996 = vst [vmem:[%s1847 + $0x140] sm:$0xf] %v1995
        %1997 = vst.msk [vmem:[%s1847 + $0x144] sm:$0xf] %vm215, %v1142
        %1998 = vst.msk [vmem:[%s1847 + $0x148] sm:$0xf] %vm215, %v1151
        %1999 = vst.msk [vmem:[%s1847 + $0x14c] sm:$0xf] %vm215, %v1160
        %v2000 = vld [vmem:[%s1847 + $0x150] sm:$0x1]
        %v2001 = vsel %vm230, %v1161, %v2000
        %2002 = vst [vmem:[%s1847 + $0x150] sm:$0x1] %v2001
        %v2003 = vld [vmem:[%s1847 + $0x154] sm:$0xf]
        %v2004 = vsel %vm1849, %v1168, %v2003
        %2005 = vst [vmem:[%s1847 + $0x154] sm:$0xf] %v2004
        %2006 = vst.msk [vmem:[%s1847 + $0x158] sm:$0xf] %vm215, %v1177
        %2007 = vst.msk [vmem:[%s1847 + $0x15c] sm:$0xf] %vm215, %v1186
        %2008 = vst.msk [vmem:[%s1847 + $0x160] sm:$0xf] %vm215, %v1195
        %v2009 = vld [vmem:[%s1847 + $0x164] sm:$0x1]
        %v2010 = vsel %vm230, %v1196, %v2009
        %2011 = vst [vmem:[%s1847 + $0x164] sm:$0x1] %v2010
        %v2012 = vld [vmem:[%s1847 + $0x168] sm:$0xf]
        %v2013 = vsel %vm1849, %v1203, %v2012
        %2014 = vst [vmem:[%s1847 + $0x168] sm:$0xf] %v2013
        %2015 = vst.msk [vmem:[%s1847 + $0x16c] sm:$0xf] %vm215, %v1212
        %2016 = vst.msk [vmem:[%s1847 + $0x170] sm:$0xf] %vm215, %v1221
        %2017 = vst.msk [vmem:[%s1847 + $0x174] sm:$0xf] %vm215, %v1230
        %v2018 = vld [vmem:[%s1847 + $0x178] sm:$0x1]
        %v2019 = vsel %vm230, %v1231, %v2018
        %2020 = vst [vmem:[%s1847 + $0x178] sm:$0x1] %v2019
        %v2021 = vld [vmem:[%s1847 + $0x17c] sm:$0xf]
        %v2022 = vsel %vm1849, %v1238, %v2021
        %2023 = vst [vmem:[%s1847 + $0x17c] sm:$0xf] %v2022
        %2024 = vst.msk [vmem:[%s1847 + $0x180] sm:$0xf] %vm215, %v1247
        %2025 = vst.msk [vmem:[%s1847 + $0x184] sm:$0xf] %vm215, %v1256
        %2026 = vst.msk [vmem:[%s1847 + $0x188] sm:$0xf] %vm215, %v1265
        %v2027 = vld [vmem:[%s1847 + $0x18c] sm:$0x1]
        %v2028 = vsel %vm230, %v1266, %v2027
        %2029 = vst [vmem:[%s1847 + $0x18c] sm:$0x1] %v2028
        %v2030 = vld [vmem:[%s1847 + $0x190] sm:$0xf]
        %v2031 = vsel %vm1849, %v1273, %v2030
        %2032 = vst [vmem:[%s1847 + $0x190] sm:$0xf] %v2031
        %2033 = vst.msk [vmem:[%s1847 + $0x194] sm:$0xf] %vm215, %v1282
        %2034 = vst.msk [vmem:[%s1847 + $0x198] sm:$0xf] %vm215, %v1291
        %2035 = vst.msk [vmem:[%s1847 + $0x19c] sm:$0xf] %vm215, %v1300
        %v2036 = vld [vmem:[%s1847 + $0x1a0] sm:$0x1]
        %v2037 = vsel %vm230, %v1301, %v2036
        %2038 = vst [vmem:[%s1847 + $0x1a0] sm:$0x1] %v2037
        %v2039 = vld [vmem:[%s1847 + $0x1a4] sm:$0xf]
        %v2040 = vsel %vm1849, %v1308, %v2039
        %2041 = vst [vmem:[%s1847 + $0x1a4] sm:$0xf] %v2040
        %2042 = vst.msk [vmem:[%s1847 + $0x1a8] sm:$0xf] %vm215, %v1317
        %2043 = vst.msk [vmem:[%s1847 + $0x1ac] sm:$0xf] %vm215, %v1326
        %2044 = vst.msk [vmem:[%s1847 + $0x1b0] sm:$0xf] %vm215, %v1335
        %v2045 = vld [vmem:[%s1847 + $0x1b4] sm:$0x1]
        %v2046 = vsel %vm230, %v1336, %v2045
        %2047 = vst [vmem:[%s1847 + $0x1b4] sm:$0x1] %v2046
        %v2048 = vld [vmem:[%s1847 + $0x1b8] sm:$0xf]
        %v2049 = vsel %vm1849, %v1343, %v2048
        %2050 = vst [vmem:[%s1847 + $0x1b8] sm:$0xf] %v2049
        %2051 = vst.msk [vmem:[%s1847 + $0x1bc] sm:$0xf] %vm215, %v1352
        %2052 = vst.msk [vmem:[%s1847 + $0x1c0] sm:$0xf] %vm215, %v1361
        %2053 = vst.msk [vmem:[%s1847 + $0x1c4] sm:$0xf] %vm215, %v1370
        %v2054 = vld [vmem:[%s1847 + $0x1c8] sm:$0x1]
        %v2055 = vsel %vm230, %v1371, %v2054
        %2056 = vst [vmem:[%s1847 + $0x1c8] sm:$0x1] %v2055
        %v2057 = vld [vmem:[%s1847 + $0x1cc] sm:$0xf]
        %v2058 = vsel %vm1849, %v1378, %v2057
        %2059 = vst [vmem:[%s1847 + $0x1cc] sm:$0xf] %v2058
        %2060 = vst.msk [vmem:[%s1847 + $0x1d0] sm:$0xf] %vm215, %v1387
        %2061 = vst.msk [vmem:[%s1847 + $0x1d4] sm:$0xf] %vm215, %v1396
        %2062 = vst.msk [vmem:[%s1847 + $0x1d8] sm:$0xf] %vm215, %v1405
        %v2063 = vld [vmem:[%s1847 + $0x1dc] sm:$0x1]
        %v2064 = vsel %vm230, %v1406, %v2063
        %2065 = vst [vmem:[%s1847 + $0x1dc] sm:$0x1] %v2064
        %v2066 = vld [vmem:[%s1847 + $0x1e0] sm:$0xf]
        %v2067 = vsel %vm1849, %v1413, %v2066
        %2068 = vst [vmem:[%s1847 + $0x1e0] sm:$0xf] %v2067
        %2069 = vst.msk [vmem:[%s1847 + $0x1e4] sm:$0xf] %vm215, %v1422
        %2070 = vst.msk [vmem:[%s1847 + $0x1e8] sm:$0xf] %vm215, %v1431
        %2071 = vst.msk [vmem:[%s1847 + $0x1ec] sm:$0xf] %vm215, %v1440
        %v2072 = vld [vmem:[%s1847 + $0x1f0] sm:$0x1]
        %v2073 = vsel %vm230, %v1441, %v2072
        %2074 = vst [vmem:[%s1847 + $0x1f0] sm:$0x1] %v2073
        %v2075 = vld [vmem:[%s1847 + $0x1f4] sm:$0xf]
        %v2076 = vsel %vm1849, %v1448, %v2075
        %2077 = vst [vmem:[%s1847 + $0x1f4] sm:$0xf] %v2076
        %2078 = vst.msk [vmem:[%s1847 + $0x1f8] sm:$0xf] %vm215, %v1457
        %2079 = vst.msk [vmem:[%s1847 + $0x1fc] sm:$0xf] %vm215, %v1466
        %2080 = vst.msk [vmem:[%s1847 + $0x200] sm:$0xf] %vm215, %v1475
        %v2081 = vld [vmem:[%s1847 + $0x204] sm:$0x1]
        %v2082 = vsel %vm230, %v1476, %v2081
        %2083 = vst [vmem:[%s1847 + $0x204] sm:$0x1] %v2082
        %v2084 = vld [vmem:[%s1847 + $0x208] sm:$0xf]
        %v2085 = vsel %vm1849, %v1483, %v2084
        %2086 = vst [vmem:[%s1847 + $0x208] sm:$0xf] %v2085
        %2087 = vst.msk [vmem:[%s1847 + $0x20c] sm:$0xf] %vm215, %v1492
        %2088 = vst.msk [vmem:[%s1847 + $0x210] sm:$0xf] %vm215, %v1501
        %2089 = vst.msk [vmem:[%s1847 + $0x214] sm:$0xf] %vm215, %v1510
        %v2090 = vld [vmem:[%s1847 + $0x218] sm:$0x1]
        %v2091 = vsel %vm230, %v1511, %v2090
        %2092 = vst [vmem:[%s1847 + $0x218] sm:$0x1] %v2091
        %v2093 = vld [vmem:[%s1847 + $0x21c] sm:$0xf]
        %v2094 = vsel %vm1849, %v1518, %v2093
        %2095 = vst [vmem:[%s1847 + $0x21c] sm:$0xf] %v2094
        %2096 = vst.msk [vmem:[%s1847 + $0x220] sm:$0xf] %vm215, %v1527
        %2097 = vst.msk [vmem:[%s1847 + $0x224] sm:$0xf] %vm215, %v1536
        %2098 = vst.msk [vmem:[%s1847 + $0x228] sm:$0xf] %vm215, %v1545
        %v2099 = vld [vmem:[%s1847 + $0x22c] sm:$0x1]
        %v2100 = vsel %vm230, %v1546, %v2099
        %2101 = vst [vmem:[%s1847 + $0x22c] sm:$0x1] %v2100
        %v2102 = vld [vmem:[%s1847 + $0x230] sm:$0xf]
        %v2103 = vsel %vm1849, %v1553, %v2102
        %2104 = vst [vmem:[%s1847 + $0x230] sm:$0xf] %v2103
        %2105 = vst.msk [vmem:[%s1847 + $0x234] sm:$0xf] %vm215, %v1562
        %2106 = vst.msk [vmem:[%s1847 + $0x238] sm:$0xf] %vm215, %v1571
        %2107 = vst.msk [vmem:[%s1847 + $0x23c] sm:$0xf] %vm215, %v1580
        %v2108 = vld [vmem:[%s1847 + $0x240] sm:$0x1]
        %v2109 = vsel %vm230, %v1581, %v2108
        %2110 = vst [vmem:[%s1847 + $0x240] sm:$0x1] %v2109
        %v2111 = vld [vmem:[%s1847 + $0x244] sm:$0xf]
        %v2112 = vsel %vm1849, %v1588, %v2111
        %2113 = vst [vmem:[%s1847 + $0x244] sm:$0xf] %v2112
        %2114 = vst.msk [vmem:[%s1847 + $0x248] sm:$0xf] %vm215, %v1597
        %2115 = vst.msk [vmem:[%s1847 + $0x24c] sm:$0xf] %vm215, %v1606
        %2116 = vst.msk [vmem:[%s1847 + $0x250] sm:$0xf] %vm215, %v1615
        %v2117 = vld [vmem:[%s1847 + $0x254] sm:$0x1]
        %v2118 = vsel %vm230, %v1616, %v2117
        %2119 = vst [vmem:[%s1847 + $0x254] sm:$0x1] %v2118
        %v2120 = vld [vmem:[%s1847 + $0x258] sm:$0xf]
        %v2121 = vsel %vm1849, %v1623, %v2120
        %2122 = vst [vmem:[%s1847 + $0x258] sm:$0xf] %v2121
        %2123 = vst.msk [vmem:[%s1847 + $0x25c] sm:$0xf] %vm215, %v1632
        %2124 = vst.msk [vmem:[%s1847 + $0x260] sm:$0xf] %vm215, %v1641
        %2125 = vst.msk [vmem:[%s1847 + $0x264] sm:$0xf] %vm215, %v1650
        %v2126 = vld [vmem:[%s1847 + $0x268] sm:$0x1]
        %v2127 = vsel %vm230, %v1651, %v2126
        %2128 = vst [vmem:[%s1847 + $0x268] sm:$0x1] %v2127
        %v2129 = vld [vmem:[%s1847 + $0x26c] sm:$0xf]
        %v2130 = vsel %vm1849, %v1658, %v2129
        %2131 = vst [vmem:[%s1847 + $0x26c] sm:$0xf] %v2130
        %2132 = vst.msk [vmem:[%s1847 + $0x270] sm:$0xf] %vm215, %v1667
        %2133 = vst.msk [vmem:[%s1847 + $0x274] sm:$0xf] %vm215, %v1676
        %2134 = vst.msk [vmem:[%s1847 + $0x278] sm:$0xf] %vm215, %v1685
        %v2135 = vld [vmem:[%s1847 + $0x27c] sm:$0x1]
        %v2136 = vsel %vm230, %v1686, %v2135
        %2137 = vst [vmem:[%s1847 + $0x27c] sm:$0x1] %v2136
        %v2138 = vld [vmem:[%s213] sm:$0x1]
        %v2139 = vld [vmem:[#allocation2] sm:$0xf]
        %v2140 = vld [vmem:[#allocation2 + $0x4] sm:$0xf]
        %v2141 = vld [vmem:[#allocation2 + $0x8] sm:$0xf]
        %v2142 = vld [vmem:[#allocation2 + $0xc] sm:$0xf]
        %v2143 = vld [vmem:[#allocation2 + $0x14] sm:$0xf]
        %v2144 = vld [vmem:[#allocation2 + $0x18] sm:$0xf]
        %v2145 = vld [vmem:[#allocation2 + $0x1c] sm:$0xf]
        %v2146 = vld [vmem:[#allocation2 + $0x20] sm:$0xf]
        %v2147 = vld [vmem:[#allocation2 + $0x28] sm:$0xf]
        %v2148 = vld [vmem:[#allocation2 + $0x2c] sm:$0xf]
        %v2149 = vld [vmem:[#allocation2 + $0x30] sm:$0xf]
        %v2150 = vld [vmem:[#allocation2 + $0x34] sm:$0xf]
        %v2151 = vld [vmem:[#allocation2 + $0x3c] sm:$0xf]
        %v2152 = vld [vmem:[#allocation2 + $0x40] sm:$0xf]
        %v2153 = vld [vmem:[#allocation2 + $0x44] sm:$0xf]
        %v2154 = vld [vmem:[#allocation2 + $0x48] sm:$0xf]
        %v2155 = vld [vmem:[#allocation2 + $0x50] sm:$0xf]
        %v2156 = vld [vmem:[#allocation2 + $0x54] sm:$0xf]
        %v2157 = vld [vmem:[#allocation2 + $0x58] sm:$0xf]
        %v2158 = vld [vmem:[#allocation2 + $0x5c] sm:$0xf]
        %v2159 = vld [vmem:[#allocation2 + $0x64] sm:$0xf]
        %v2160 = vld [vmem:[#allocation2 + $0x68] sm:$0xf]
        %v2161 = vld [vmem:[#allocation2 + $0x6c] sm:$0xf]
        %v2162 = vld [vmem:[#allocation2 + $0x70] sm:$0xf]
        %v2163 = vld [vmem:[#allocation2 + $0x78] sm:$0xf]
        %v2164 = vld [vmem:[#allocation2 + $0x7c] sm:$0xf]
        %v2165 = vld [vmem:[#allocation2 + $0x80] sm:$0xf]
        %v2166 = vld [vmem:[#allocation2 + $0x84] sm:$0xf]
        %v2167 = vld [vmem:[#allocation2 + $0x8c] sm:$0xf]
        %v2168 = vld [vmem:[#allocation2 + $0x90] sm:$0xf]
        %v2169 = vld [vmem:[#allocation2 + $0x94] sm:$0xf]
        %v2170 = vld [vmem:[#allocation2 + $0x98] sm:$0xf]
        %v2171 = vld [vmem:[#allocation2 + $0xa0] sm:$0xf]
        %v2172 = vld [vmem:[#allocation2 + $0xa4] sm:$0xf]
        %v2173 = vld [vmem:[#allocation2 + $0xa8] sm:$0xf]
        %v2174 = vld [vmem:[#allocation2 + $0xac] sm:$0xf]
        %v2175 = vld [vmem:[#allocation2 + $0xb4] sm:$0xf]
        %v2176 = vld [vmem:[#allocation2 + $0xb8] sm:$0xf]
        %v2177 = vld [vmem:[#allocation2 + $0xbc] sm:$0xf]
        %v2178 = vld [vmem:[#allocation2 + $0xc0] sm:$0xf]
        %v2179 = vld [vmem:[#allocation2 + $0xc8] sm:$0xf]
        %v2180 = vld [vmem:[#allocation2 + $0xcc] sm:$0xf]
        %v2181 = vld [vmem:[#allocation2 + $0xd0] sm:$0xf]
        %v2182 = vld [vmem:[#allocation2 + $0xd4] sm:$0xf]
        %v2183 = vld [vmem:[#allocation2 + $0xdc] sm:$0xf]
        %v2184 = vld [vmem:[#allocation2 + $0xe0] sm:$0xf]
        %v2185 = vld [vmem:[#allocation2 + $0xe4] sm:$0xf]
        %v2186 = vld [vmem:[#allocation2 + $0xe8] sm:$0xf]
        %v2187 = vld [vmem:[#allocation2 + $0xf0] sm:$0xf]
        %v2188 = vld [vmem:[#allocation2 + $0xf4] sm:$0xf]
        %v2189 = vld [vmem:[#allocation2 + $0xf8] sm:$0xf]
        %v2190 = vld [vmem:[#allocation2 + $0xfc] sm:$0xf]
        %v2191 = vld [vmem:[#allocation2 + $0x104] sm:$0xf]
        %v2192 = vld [vmem:[#allocation2 + $0x108] sm:$0xf]
        %v2193 = vld [vmem:[#allocation2 + $0x10c] sm:$0xf]
        %v2194 = vld [vmem:[#allocation2 + $0x110] sm:$0xf]
        %v2195 = vld [vmem:[#allocation2 + $0x118] sm:$0xf]
        %v2196 = vld [vmem:[#allocation2 + $0x11c] sm:$0xf]
        %v2197 = vld [vmem:[#allocation2 + $0x120] sm:$0xf]
        %v2198 = vld [vmem:[#allocation2 + $0x124] sm:$0xf]
        %v2199 = vld [vmem:[#allocation2 + $0x12c] sm:$0xf]
        %v2200 = vld [vmem:[#allocation2 + $0x130] sm:$0xf]
        %v2201 = vld [vmem:[#allocation2 + $0x134] sm:$0xf]
        %v2202 = vld [vmem:[#allocation2 + $0x138] sm:$0xf]
        %v2203 = vld [vmem:[#allocation2 + $0x140] sm:$0xf]
        %v2204 = vld [vmem:[#allocation2 + $0x144] sm:$0xf]
        %v2205 = vld [vmem:[#allocation2 + $0x148] sm:$0xf]
        %v2206 = vld [vmem:[#allocation2 + $0x14c] sm:$0xf]
        %v2207 = vld [vmem:[#allocation2 + $0x154] sm:$0xf]
        %v2208 = vld [vmem:[#allocation2 + $0x158] sm:$0xf]
        %v2209 = vld [vmem:[#allocation2 + $0x15c] sm:$0xf]
        %v2210 = vld [vmem:[#allocation2 + $0x160] sm:$0xf]
        %v2211 = vld [vmem:[#allocation2 + $0x168] sm:$0xf]
        %v2212 = vld [vmem:[#allocation2 + $0x16c] sm:$0xf]
        %v2213 = vld [vmem:[#allocation2 + $0x170] sm:$0xf]
        %v2214 = vld [vmem:[#allocation2 + $0x174] sm:$0xf]
        %v2215 = vld [vmem:[#allocation2 + $0x17c] sm:$0xf]
        %v2216 = vld [vmem:[#allocation2 + $0x180] sm:$0xf]
        %v2217 = vld [vmem:[#allocation2 + $0x184] sm:$0xf]
        %v2218 = vld [vmem:[#allocation2 + $0x188] sm:$0xf]
        %v2219 = vld [vmem:[#allocation2 + $0x190] sm:$0xf]
        %v2220 = vld [vmem:[#allocation2 + $0x194] sm:$0xf]
        %v2221 = vld [vmem:[#allocation2 + $0x198] sm:$0xf]
        %v2222 = vld [vmem:[#allocation2 + $0x19c] sm:$0xf]
        %v2223 = vld [vmem:[#allocation2 + $0x1a4] sm:$0xf]
        %v2224 = vld [vmem:[#allocation2 + $0x1a8] sm:$0xf]
        %v2225 = vld [vmem:[#allocation2 + $0x1ac] sm:$0xf]
        %v2226 = vld [vmem:[#allocation2 + $0x1b0] sm:$0xf]
        %v2227 = vld [vmem:[#allocation2 + $0x1b8] sm:$0xf]
        %v2228 = vld [vmem:[#allocation2 + $0x1bc] sm:$0xf]
        %v2229 = vld [vmem:[#allocation2 + $0x1c0] sm:$0xf]
        %v2230 = vld [vmem:[#allocation2 + $0x1c4] sm:$0xf]
        %v2231 = vld [vmem:[#allocation2 + $0x1cc] sm:$0xf]
        %v2232 = vld [vmem:[#allocation2 + $0x1d0] sm:$0xf]
        %v2233 = vld [vmem:[#allocation2 + $0x1d4] sm:$0xf]
        %v2234 = vld [vmem:[#allocation2 + $0x1d8] sm:$0xf]
        %v2235 = vld [vmem:[#allocation2 + $0x1e0] sm:$0xf]
        %v2236 = vld [vmem:[#allocation2 + $0x1e4] sm:$0xf]
        %v2237 = vld [vmem:[#allocation2 + $0x1e8] sm:$0xf]
        %v2238 = vld [vmem:[#allocation2 + $0x1ec] sm:$0xf]
        %v2239 = vld [vmem:[#allocation2 + $0x1f4] sm:$0xf]
        %v2240 = vld [vmem:[#allocation2 + $0x1f8] sm:$0xf]
        %v2241 = vld [vmem:[#allocation2 + $0x1fc] sm:$0xf]
        %v2242 = vld [vmem:[#allocation2 + $0x200] sm:$0xf]
        %v2243 = vld [vmem:[#allocation2 + $0x208] sm:$0xf]
        %v2244 = vld [vmem:[#allocation2 + $0x20c] sm:$0xf]
        %v2245 = vld [vmem:[#allocation2 + $0x210] sm:$0xf]
        %v2246 = vld [vmem:[#allocation2 + $0x214] sm:$0xf]
        %v2247 = vld [vmem:[#allocation2 + $0x21c] sm:$0xf]
        %v2248 = vld [vmem:[#allocation2 + $0x220] sm:$0xf]
        %v2249 = vld [vmem:[#allocation2 + $0x224] sm:$0xf]
        %v2250 = vld [vmem:[#allocation2 + $0x228] sm:$0xf]
        %v2251 = vld [vmem:[#allocation2 + $0x230] sm:$0xf]
        %v2252 = vld [vmem:[#allocation2 + $0x234] sm:$0xf]
        %v2253 = vld [vmem:[#allocation2 + $0x238] sm:$0xf]
        %v2254 = vld [vmem:[#allocation2 + $0x23c] sm:$0xf]
        %v2255 = vld [vmem:[#allocation2 + $0x244] sm:$0xf]
        %v2256 = vld [vmem:[#allocation2 + $0x248] sm:$0xf]
        %v2257 = vld [vmem:[#allocation2 + $0x24c] sm:$0xf]
        %v2258 = vld [vmem:[#allocation2 + $0x250] sm:$0xf]
        %v2259 = vld [vmem:[#allocation2 + $0x258] sm:$0xf]
        %v2260 = vld [vmem:[#allocation2 + $0x25c] sm:$0xf]
        %v2261 = vld [vmem:[#allocation2 + $0x260] sm:$0xf]
        %v2262 = vld [vmem:[#allocation2 + $0x264] sm:$0xf]
        %v2263 = vld [vmem:[#allocation2 + $0x26c] sm:$0xf]
        %v2264 = vld [vmem:[#allocation2 + $0x270] sm:$0xf]
        %v2265 = vld [vmem:[#allocation2 + $0x274] sm:$0xf]
        %v2266 = vld [vmem:[#allocation2 + $0x278] sm:$0xf]
        %v2267 = vld [vmem:[#allocation2 + $0x280] sm:$0xf]
        %v2268 = vld [vmem:[#allocation2 + $0x284] sm:$0xf]
        %v2269 = vld [vmem:[#allocation2 + $0x288] sm:$0xf]
        %v2270 = vld [vmem:[#allocation2 + $0x28c] sm:$0xf]
        %v2271 = vld [vmem:[#allocation2 + $0x294] sm:$0xf]
        %v2272 = vld [vmem:[#allocation2 + $0x298] sm:$0xf]
        %v2273 = vld [vmem:[#allocation2 + $0x29c] sm:$0xf]
        %v2274 = vld [vmem:[#allocation2 + $0x2a0] sm:$0xf]
        %v2275 = vld [vmem:[#allocation2 + $0x10] sm:$0x1]
        %v2276 = vld [vmem:[#allocation2 + $0x24] sm:$0x1]
        %v2277 = vld [vmem:[#allocation2 + $0x38] sm:$0x1]
        %v2278 = vld [vmem:[#allocation2 + $0x4c] sm:$0x1]
        %v2279 = vld [vmem:[#allocation2 + $0x60] sm:$0x1]
        %v2280 = vld [vmem:[#allocation2 + $0x74] sm:$0x1]
        %v2281 = vld [vmem:[#allocation2 + $0x88] sm:$0x1]
        %v2282 = vld [vmem:[#allocation2 + $0x9c] sm:$0x1]
        %v2283 = vld [vmem:[#allocation2 + $0xb0] sm:$0x1]
        %v2284 = vld [vmem:[#allocation2 + $0xc4] sm:$0x1]
        %v2285 = vld [vmem:[#allocation2 + $0xd8] sm:$0x1]
        %v2286 = vld [vmem:[#allocation2 + $0xec] sm:$0x1]
        %v2287 = vld [vmem:[#allocation2 + $0x100] sm:$0x1]
        %v2288 = vld [vmem:[#allocation2 + $0x114] sm:$0x1]
        %v2289 = vld [vmem:[#allocation2 + $0x128] sm:$0x1]
        %v2290 = vld [vmem:[#allocation2 + $0x13c] sm:$0x1]
        %v2291 = vld [vmem:[#allocation2 + $0x150] sm:$0x1]
        %v2292 = vld [vmem:[#allocation2 + $0x164] sm:$0x1]
        %v2293 = vld [vmem:[#allocation2 + $0x178] sm:$0x1]
        %v2294 = vld [vmem:[#allocation2 + $0x18c] sm:$0x1]
        %v2295 = vld [vmem:[#allocation2 + $0x1a0] sm:$0x1]
        %v2296 = vld [vmem:[#allocation2 + $0x1b4] sm:$0x1]
        %v2297 = vld [vmem:[#allocation2 + $0x1c8] sm:$0x1]
        %v2298 = vld [vmem:[#allocation2 + $0x1dc] sm:$0x1]
        %v2299 = vld [vmem:[#allocation2 + $0x1f0] sm:$0x1]
        %v2300 = vld [vmem:[#allocation2 + $0x204] sm:$0x1]
        %v2301 = vld [vmem:[#allocation2 + $0x218] sm:$0x1]
        %v2302 = vld [vmem:[#allocation2 + $0x22c] sm:$0x1]
        %v2303 = vld [vmem:[#allocation2 + $0x240] sm:$0x1]
        %v2304 = vld [vmem:[#allocation2 + $0x254] sm:$0x1]
        %v2305 = vld [vmem:[#allocation2 + $0x268] sm:$0x1]
        %v2306 = vld [vmem:[#allocation2 + $0x27c] sm:$0x1]
        %v2307 = vld [vmem:[#allocation2 + $0x290] sm:$0x1]
        %v2308 = vld [vmem:[#allocation2 + $0x2a4] sm:$0x1]
        %v2309 = vld [vmem:[#allocation2] sm:$0xe]
        %v2310 = vld [vmem:[#allocation2 + $0x14] sm:$0xe]
        %v2311 = vld [vmem:[#allocation2 + $0x28] sm:$0xe]
        %v2312 = vld [vmem:[#allocation2 + $0x3c] sm:$0xe]
        %v2313 = vld [vmem:[#allocation2 + $0x50] sm:$0xe]
        %v2314 = vld [vmem:[#allocation2 + $0x64] sm:$0xe]
        %v2315 = vld [vmem:[#allocation2 + $0x78] sm:$0xe]
        %v2316 = vld [vmem:[#allocation2 + $0x8c] sm:$0xe]
        %v2317 = vld [vmem:[#allocation2 + $0xa0] sm:$0xe]
        %v2318 = vld [vmem:[#allocation2 + $0xb4] sm:$0xe]
        %v2319 = vld [vmem:[#allocation2 + $0xc8] sm:$0xe]
        %v2320 = vld [vmem:[#allocation2 + $0xdc] sm:$0xe]
        %v2321 = vld [vmem:[#allocation2 + $0xf0] sm:$0xe]
        %v2322 = vld [vmem:[#allocation2 + $0x104] sm:$0xe]
        %v2323 = vld [vmem:[#allocation2 + $0x118] sm:$0xe]
        %v2324 = vld [vmem:[#allocation2 + $0x12c] sm:$0xe]
        %v2325 = vld [vmem:[#allocation2 + $0x140] sm:$0xe]
        %v2326 = vld [vmem:[#allocation2 + $0x154] sm:$0xe]
        %v2327 = vld [vmem:[#allocation2 + $0x168] sm:$0xe]
        %v2328 = vld [vmem:[#allocation2 + $0x17c] sm:$0xe]
        %v2329 = vld [vmem:[#allocation2 + $0x190] sm:$0xe]
        %v2330 = vld [vmem:[#allocation2 + $0x1a4] sm:$0xe]
        %v2331 = vld [vmem:[#allocation2 + $0x1b8] sm:$0xe]
        %v2332 = vld [vmem:[#allocation2 + $0x1cc] sm:$0xe]
        %v2333 = vld [vmem:[#allocation2 + $0x1e0] sm:$0xe]
        %v2334 = vld [vmem:[#allocation2 + $0x1f4] sm:$0xe]
        %v2335 = vld [vmem:[#allocation2 + $0x208] sm:$0xe]
        %v2336 = vld [vmem:[#allocation2 + $0x21c] sm:$0xe]
        %v2337 = vld [vmem:[#allocation2 + $0x230] sm:$0xe]
        %v2338 = vld [vmem:[#allocation2 + $0x244] sm:$0xe]
        %v2339 = vld [vmem:[#allocation2 + $0x258] sm:$0xe]
        %v2340 = vld [vmem:[#allocation2 + $0x26c] sm:$0xe]
        %v2341 = vld [vmem:[#allocation2 + $0x280] sm:$0xe]
        %v2342 = vld [vmem:[#allocation2 + $0x294] sm:$0xe]
        %v2343 = vld [vmem:[%s210] sm:$0x3]
        %vm2344 = vsmask.f32 3328
        %vm2345 = vsmask.f32 7440
        %vm2346 = vmor %vm2344, %vm2345
        %v2348 = vshrl.u32 %v2139, 16
        %v2350 = vrot.slane %v2348, 4
        %v2351 = vshll.u32 %v2139, 16
        %v2353 = vrot.slane %v2351, 5
        %v2354 = vor.u32 %v2350, %v2353
        %v2355 = vrot.slane %v2354, 4
        %v2357 = vshll.u32 %v2140, 16
        %v2359 = vrot.slane %v2357, 5
        %v2360 = vsel %vm2346, %v2355, %v2359
        %v2361 = vshrl.u32 %v2140, 16
        %v2363 = vrot.slane %v2361, 4
        %v2364 = vor.u32 %v2363, %v2359
        %v2365 = vrot.slane %v2364, 4
        %v2367 = vshll.u32 %v2141, 16
        %v2369 = vrot.slane %v2367, 5
        %v2370 = vsel %vm2346, %v2365, %v2369
        %v2371 = vshrl.u32 %v2141, 16
        %v2373 = vrot.slane %v2371, 4
        %v2374 = vor.u32 %v2373, %v2369
        %v2375 = vrot.slane %v2374, 4
        %v2377 = vshll.u32 %v2142, 16
        %v2379 = vrot.slane %v2377, 5
        %v2380 = vsel %vm2346, %v2375, %v2379
        %v2381 = vshrl.u32 %v2142, 16
        %v2383 = vrot.slane %v2381, 4
        %v2384 = vor.u32 %v2383, %v2379
        %v2385 = vrot.slane %v2384, 4
        %v2387 = vshll.u32 %v2275, 16
        %v2389 = vrot.slane %v2387, 5
        %v2390 = vsel %vm2346, %v2385, %v2389
        %v2392 = vshrl.u32 %v2143, 16
        %v2394 = vrot.slane %v2392, 4
        %v2395 = vshll.u32 %v2143, 16
        %v2397 = vrot.slane %v2395, 5
        %v2398 = vor.u32 %v2394, %v2397
        %v2399 = vrot.slane %v2398, 4
        %v2401 = vshll.u32 %v2144, 16
        %v2403 = vrot.slane %v2401, 5
        %v2404 = vsel %vm2346, %v2399, %v2403
        %v2405 = vshrl.u32 %v2144, 16
        %v2407 = vrot.slane %v2405, 4
        %v2408 = vor.u32 %v2407, %v2403
        %v2409 = vrot.slane %v2408, 4
        %v2411 = vshll.u32 %v2145, 16
        %v2413 = vrot.slane %v2411, 5
        %v2414 = vsel %vm2346, %v2409, %v2413
        %v2415 = vshrl.u32 %v2145, 16
        %v2417 = vrot.slane %v2415, 4
        %v2418 = vor.u32 %v2417, %v2413
        %v2419 = vrot.slane %v2418, 4
        %v2421 = vshll.u32 %v2146, 16
        %v2423 = vrot.slane %v2421, 5
        %v2424 = vsel %vm2346, %v2419, %v2423
        %v2425 = vshrl.u32 %v2146, 16
        %v2427 = vrot.slane %v2425, 4
        %v2428 = vor.u32 %v2427, %v2423
        %v2429 = vrot.slane %v2428, 4
        %v2431 = vshll.u32 %v2276, 16
        %v2433 = vrot.slane %v2431, 5
        %v2434 = vsel %vm2346, %v2429, %v2433
        %v2436 = vshrl.u32 %v2147, 16
        %v2438 = vrot.slane %v2436, 4
        %v2439 = vshll.u32 %v2147, 16
        %v2441 = vrot.slane %v2439, 5
        %v2442 = vor.u32 %v2438, %v2441
        %v2443 = vrot.slane %v2442, 4
        %v2445 = vshll.u32 %v2148, 16
        %v2447 = vrot.slane %v2445, 5
        %v2448 = vsel %vm2346, %v2443, %v2447
        %v2449 = vshrl.u32 %v2148, 16
        %v2451 = vrot.slane %v2449, 4
        %v2452 = vor.u32 %v2451, %v2447
        %v2453 = vrot.slane %v2452, 4
        %v2455 = vshll.u32 %v2149, 16
        %v2457 = vrot.slane %v2455, 5
        %v2458 = vsel %vm2346, %v2453, %v2457
        %v2459 = vshrl.u32 %v2149, 16
        %v2461 = vrot.slane %v2459, 4
        %v2462 = vor.u32 %v2461, %v2457
        %v2463 = vrot.slane %v2462, 4
        %v2465 = vshll.u32 %v2150, 16
        %v2467 = vrot.slane %v2465, 5
        %v2468 = vsel %vm2346, %v2463, %v2467
        %v2469 = vshrl.u32 %v2150, 16
        %v2471 = vrot.slane %v2469, 4
        %v2472 = vor.u32 %v2471, %v2467
        %v2473 = vrot.slane %v2472, 4
        %v2475 = vshll.u32 %v2277, 16
        %v2477 = vrot.slane %v2475, 5
        %v2478 = vsel %vm2346, %v2473, %v2477
        %v2480 = vshrl.u32 %v2151, 16
        %v2482 = vrot.slane %v2480, 4
        %v2483 = vshll.u32 %v2151, 16
        %v2485 = vrot.slane %v2483, 5
        %v2486 = vor.u32 %v2482, %v2485
        %v2487 = vrot.slane %v2486, 4
        %v2489 = vshll.u32 %v2152, 16
        %v2491 = vrot.slane %v2489, 5
        %v2492 = vsel %vm2346, %v2487, %v2491
        %v2493 = vshrl.u32 %v2152, 16
        %v2495 = vrot.slane %v2493, 4
        %v2496 = vor.u32 %v2495, %v2491
        %v2497 = vrot.slane %v2496, 4
        %v2499 = vshll.u32 %v2153, 16
        %v2501 = vrot.slane %v2499, 5
        %v2502 = vsel %vm2346, %v2497, %v2501
        %v2503 = vshrl.u32 %v2153, 16
        %v2505 = vrot.slane %v2503, 4
        %v2506 = vor.u32 %v2505, %v2501
        %v2507 = vrot.slane %v2506, 4
        %v2509 = vshll.u32 %v2154, 16
        %v2511 = vrot.slane %v2509, 5
        %v2512 = vsel %vm2346, %v2507, %v2511
        %v2513 = vshrl.u32 %v2154, 16
        %v2515 = vrot.slane %v2513, 4
        %v2516 = vor.u32 %v2515, %v2511
        %v2517 = vrot.slane %v2516, 4
        %v2519 = vshll.u32 %v2278, 16
        %v2521 = vrot.slane %v2519, 5
        %v2522 = vsel %vm2346, %v2517, %v2521
        %v2524 = vshrl.u32 %v2155, 16
        %v2526 = vrot.slane %v2524, 4
        %v2527 = vshll.u32 %v2155, 16
        %v2529 = vrot.slane %v2527, 5
        %v2530 = vor.u32 %v2526, %v2529
        %v2531 = vrot.slane %v2530, 4
        %v2533 = vshll.u32 %v2156, 16
        %v2535 = vrot.slane %v2533, 5
        %v2536 = vsel %vm2346, %v2531, %v2535
        %v2537 = vshrl.u32 %v2156, 16
        %v2539 = vrot.slane %v2537, 4
        %v2540 = vor.u32 %v2539, %v2535
        %v2541 = vrot.slane %v2540, 4
        %v2543 = vshll.u32 %v2157, 16
        %v2545 = vrot.slane %v2543, 5
        %v2546 = vsel %vm2346, %v2541, %v2545
        %v2547 = vshrl.u32 %v2157, 16
        %v2549 = vrot.slane %v2547, 4
        %v2550 = vor.u32 %v2549, %v2545
        %v2551 = vrot.slane %v2550, 4
        %v2553 = vshll.u32 %v2158, 16
        %v2555 = vrot.slane %v2553, 5
        %v2556 = vsel %vm2346, %v2551, %v2555
        %v2557 = vshrl.u32 %v2158, 16
        %v2559 = vrot.slane %v2557, 4
        %v2560 = vor.u32 %v2559, %v2555
        %v2561 = vrot.slane %v2560, 4
        %v2563 = vshll.u32 %v2279, 16
        %v2565 = vrot.slane %v2563, 5
        %v2566 = vsel %vm2346, %v2561, %v2565
        %v2568 = vshrl.u32 %v2159, 16
        %v2570 = vrot.slane %v2568, 4
        %v2571 = vshll.u32 %v2159, 16
        %v2573 = vrot.slane %v2571, 5
        %v2574 = vor.u32 %v2570, %v2573
        %v2575 = vrot.slane %v2574, 4
        %v2577 = vshll.u32 %v2160, 16
        %v2579 = vrot.slane %v2577, 5
        %v2580 = vsel %vm2346, %v2575, %v2579
        %v2581 = vshrl.u32 %v2160, 16
        %v2583 = vrot.slane %v2581, 4
        %v2584 = vor.u32 %v2583, %v2579
        %v2585 = vrot.slane %v2584, 4
        %v2587 = vshll.u32 %v2161, 16
        %v2589 = vrot.slane %v2587, 5
        %v2590 = vsel %vm2346, %v2585, %v2589
        %v2591 = vshrl.u32 %v2161, 16
        %v2593 = vrot.slane %v2591, 4
        %v2594 = vor.u32 %v2593, %v2589
        %v2595 = vrot.slane %v2594, 4
        %v2597 = vshll.u32 %v2162, 16
        %v2599 = vrot.slane %v2597, 5
        %v2600 = vsel %vm2346, %v2595, %v2599
        %v2601 = vshrl.u32 %v2162, 16
        %v2603 = vrot.slane %v2601, 4
        %v2604 = vor.u32 %v2603, %v2599
        %v2605 = vrot.slane %v2604, 4
        %v2607 = vshll.u32 %v2280, 16
        %v2609 = vrot.slane %v2607, 5
        %v2610 = vsel %vm2346, %v2605, %v2609
        %v2612 = vshrl.u32 %v2163, 16
        %v2614 = vrot.slane %v2612, 4
        %v2615 = vshll.u32 %v2163, 16
        %v2617 = vrot.slane %v2615, 5
        %v2618 = vor.u32 %v2614, %v2617
        %v2619 = vrot.slane %v2618, 4
        %v2621 = vshll.u32 %v2164, 16
        %v2623 = vrot.slane %v2621, 5
        %v2624 = vsel %vm2346, %v2619, %v2623
        %v2625 = vshrl.u32 %v2164, 16
        %v2627 = vrot.slane %v2625, 4
        %v2628 = vor.u32 %v2627, %v2623
        %v2629 = vrot.slane %v2628, 4
        %v2631 = vshll.u32 %v2165, 16
        %v2633 = vrot.slane %v2631, 5
        %v2634 = vsel %vm2346, %v2629, %v2633
        %v2635 = vshrl.u32 %v2165, 16
        %v2637 = vrot.slane %v2635, 4
        %v2638 = vor.u32 %v2637, %v2633
        %v2639 = vrot.slane %v2638, 4
        %v2641 = vshll.u32 %v2166, 16
        %v2643 = vrot.slane %v2641, 5
        %v2644 = vsel %vm2346, %v2639, %v2643
        %v2645 = vshrl.u32 %v2166, 16
        %v2647 = vrot.slane %v2645, 4
        %v2648 = vor.u32 %v2647, %v2643
        %v2649 = vrot.slane %v2648, 4
        %v2651 = vshll.u32 %v2281, 16
        %v2653 = vrot.slane %v2651, 5
        %v2654 = vsel %vm2346, %v2649, %v2653
        %v2656 = vshrl.u32 %v2167, 16
        %v2658 = vrot.slane %v2656, 4
        %v2659 = vshll.u32 %v2167, 16
        %v2661 = vrot.slane %v2659, 5
        %v2662 = vor.u32 %v2658, %v2661
        %v2663 = vrot.slane %v2662, 4
        %v2665 = vshll.u32 %v2168, 16
        %v2667 = vrot.slane %v2665, 5
        %v2668 = vsel %vm2346, %v2663, %v2667
        %v2669 = vshrl.u32 %v2168, 16
        %v2671 = vrot.slane %v2669, 4
        %v2672 = vor.u32 %v2671, %v2667
        %v2673 = vrot.slane %v2672, 4
        %v2675 = vshll.u32 %v2169, 16
        %v2677 = vrot.slane %v2675, 5
        %v2678 = vsel %vm2346, %v2673, %v2677
        %v2679 = vshrl.u32 %v2169, 16
        %v2681 = vrot.slane %v2679, 4
        %v2682 = vor.u32 %v2681, %v2677
        %v2683 = vrot.slane %v2682, 4
        %v2685 = vshll.u32 %v2170, 16
        %v2687 = vrot.slane %v2685, 5
        %v2688 = vsel %vm2346, %v2683, %v2687
        %v2689 = vshrl.u32 %v2170, 16
        %v2691 = vrot.slane %v2689, 4
        %v2692 = vor.u32 %v2691, %v2687
        %v2693 = vrot.slane %v2692, 4
        %v2695 = vshll.u32 %v2282, 16
        %v2697 = vrot.slane %v2695, 5
        %v2698 = vsel %vm2346, %v2693, %v2697
        %v2700 = vshrl.u32 %v2171, 16
        %v2702 = vrot.slane %v2700, 4
        %v2703 = vshll.u32 %v2171, 16
        %v2705 = vrot.slane %v2703, 5
        %v2706 = vor.u32 %v2702, %v2705
        %v2707 = vrot.slane %v2706, 4
        %v2709 = vshll.u32 %v2172, 16
        %v2711 = vrot.slane %v2709, 5
        %v2712 = vsel %vm2346, %v2707, %v2711
        %v2713 = vshrl.u32 %v2172, 16
        %v2715 = vrot.slane %v2713, 4
        %v2716 = vor.u32 %v2715, %v2711
        %v2717 = vrot.slane %v2716, 4
        %v2719 = vshll.u32 %v2173, 16
        %v2721 = vrot.slane %v2719, 5
        %v2722 = vsel %vm2346, %v2717, %v2721
        %v2723 = vshrl.u32 %v2173, 16
        %v2725 = vrot.slane %v2723, 4
        %v2726 = vor.u32 %v2725, %v2721
        %v2727 = vrot.slane %v2726, 4
        %v2729 = vshll.u32 %v2174, 16
        %v2731 = vrot.slane %v2729, 5
        %v2732 = vsel %vm2346, %v2727, %v2731
        %v2733 = vshrl.u32 %v2174, 16
        %v2735 = vrot.slane %v2733, 4
        %v2736 = vor.u32 %v2735, %v2731
        %v2737 = vrot.slane %v2736, 4
        %v2739 = vshll.u32 %v2283, 16
        %v2741 = vrot.slane %v2739, 5
        %v2742 = vsel %vm2346, %v2737, %v2741
        %v2744 = vshrl.u32 %v2175, 16
        %v2746 = vrot.slane %v2744, 4
        %v2747 = vshll.u32 %v2175, 16
        %v2749 = vrot.slane %v2747, 5
        %v2750 = vor.u32 %v2746, %v2749
        %v2751 = vrot.slane %v2750, 4
        %v2753 = vshll.u32 %v2176, 16
        %v2755 = vrot.slane %v2753, 5
        %v2756 = vsel %vm2346, %v2751, %v2755
        %v2757 = vshrl.u32 %v2176, 16
        %v2759 = vrot.slane %v2757, 4
        %v2760 = vor.u32 %v2759, %v2755
        %v2761 = vrot.slane %v2760, 4
        %v2763 = vshll.u32 %v2177, 16
        %v2765 = vrot.slane %v2763, 5
        %v2766 = vsel %vm2346, %v2761, %v2765
        %v2767 = vshrl.u32 %v2177, 16
        %v2769 = vrot.slane %v2767, 4
        %v2770 = vor.u32 %v2769, %v2765
        %v2771 = vrot.slane %v2770, 4
        %v2773 = vshll.u32 %v2178, 16
        %v2775 = vrot.slane %v2773, 5
        %v2776 = vsel %vm2346, %v2771, %v2775
        %v2777 = vshrl.u32 %v2178, 16
        %v2779 = vrot.slane %v2777, 4
        %v2780 = vor.u32 %v2779, %v2775
        %v2781 = vrot.slane %v2780, 4
        %v2783 = vshll.u32 %v2284, 16
        %v2785 = vrot.slane %v2783, 5
        %v2786 = vsel %vm2346, %v2781, %v2785
        %v2788 = vshrl.u32 %v2179, 16
        %v2790 = vrot.slane %v2788, 4
        %v2791 = vshll.u32 %v2179, 16
        %v2793 = vrot.slane %v2791, 5
        %v2794 = vor.u32 %v2790, %v2793
        %v2795 = vrot.slane %v2794, 4
        %v2797 = vshll.u32 %v2180, 16
        %v2799 = vrot.slane %v2797, 5
        %v2800 = vsel %vm2346, %v2795, %v2799
        %v2801 = vshrl.u32 %v2180, 16
        %v2803 = vrot.slane %v2801, 4
        %v2804 = vor.u32 %v2803, %v2799
        %v2805 = vrot.slane %v2804, 4
        %v2807 = vshll.u32 %v2181, 16
        %v2809 = vrot.slane %v2807, 5
        %v2810 = vsel %vm2346, %v2805, %v2809
        %v2811 = vshrl.u32 %v2181, 16
        %v2813 = vrot.slane %v2811, 4
        %v2814 = vor.u32 %v2813, %v2809
        %v2815 = vrot.slane %v2814, 4
        %v2817 = vshll.u32 %v2182, 16
        %v2819 = vrot.slane %v2817, 5
        %v2820 = vsel %vm2346, %v2815, %v2819
        %v2821 = vshrl.u32 %v2182, 16
        %v2823 = vrot.slane %v2821, 4
        %v2824 = vor.u32 %v2823, %v2819
        %v2825 = vrot.slane %v2824, 4
        %v2827 = vshll.u32 %v2285, 16
        %v2829 = vrot.slane %v2827, 5
        %v2830 = vsel %vm2346, %v2825, %v2829
        %v2832 = vshrl.u32 %v2183, 16
        %v2834 = vrot.slane %v2832, 4
        %v2835 = vshll.u32 %v2183, 16
        %v2837 = vrot.slane %v2835, 5
        %v2838 = vor.u32 %v2834, %v2837
        %v2839 = vrot.slane %v2838, 4
        %v2841 = vshll.u32 %v2184, 16
        %v2843 = vrot.slane %v2841, 5
        %v2844 = vsel %vm2346, %v2839, %v2843
        %v2845 = vshrl.u32 %v2184, 16
        %v2847 = vrot.slane %v2845, 4
        %v2848 = vor.u32 %v2847, %v2843
        %v2849 = vrot.slane %v2848, 4
        %v2851 = vshll.u32 %v2185, 16
        %v2853 = vrot.slane %v2851, 5
        %v2854 = vsel %vm2346, %v2849, %v2853
        %v2855 = vshrl.u32 %v2185, 16
        %v2857 = vrot.slane %v2855, 4
        %v2858 = vor.u32 %v2857, %v2853
        %v2859 = vrot.slane %v2858, 4
        %v2861 = vshll.u32 %v2186, 16
        %v2863 = vrot.slane %v2861, 5
        %v2864 = vsel %vm2346, %v2859, %v2863
        %v2865 = vshrl.u32 %v2186, 16
        %v2867 = vrot.slane %v2865, 4
        %v2868 = vor.u32 %v2867, %v2863
        %v2869 = vrot.slane %v2868, 4
        %v2871 = vshll.u32 %v2286, 16
        %v2873 = vrot.slane %v2871, 5
        %v2874 = vsel %vm2346, %v2869, %v2873
        %v2876 = vshrl.u32 %v2187, 16
        %v2878 = vrot.slane %v2876, 4
        %v2879 = vshll.u32 %v2187, 16
        %v2881 = vrot.slane %v2879, 5
        %v2882 = vor.u32 %v2878, %v2881
        %v2883 = vrot.slane %v2882, 4
        %v2885 = vshll.u32 %v2188, 16
        %v2887 = vrot.slane %v2885, 5
        %v2888 = vsel %vm2346, %v2883, %v2887
        %v2889 = vshrl.u32 %v2188, 16
        %v2891 = vrot.slane %v2889, 4
        %v2892 = vor.u32 %v2891, %v2887
        %v2893 = vrot.slane %v2892, 4
        %v2895 = vshll.u32 %v2189, 16
        %v2897 = vrot.slane %v2895, 5
        %v2898 = vsel %vm2346, %v2893, %v2897
        %v2899 = vshrl.u32 %v2189, 16
        %v2901 = vrot.slane %v2899, 4
        %v2902 = vor.u32 %v2901, %v2897
        %v2903 = vrot.slane %v2902, 4
        %v2905 = vshll.u32 %v2190, 16
        %v2907 = vrot.slane %v2905, 5
        %v2908 = vsel %vm2346, %v2903, %v2907
        %v2909 = vshrl.u32 %v2190, 16
        %v2911 = vrot.slane %v2909, 4
        %v2912 = vor.u32 %v2911, %v2907
        %v2913 = vrot.slane %v2912, 4
        %v2915 = vshll.u32 %v2287, 16
        %v2917 = vrot.slane %v2915, 5
        %v2918 = vsel %vm2346, %v2913, %v2917
        %v2920 = vshrl.u32 %v2191, 16
        %v2922 = vrot.slane %v2920, 4
        %v2923 = vshll.u32 %v2191, 16
        %v2925 = vrot.slane %v2923, 5
        %v2926 = vor.u32 %v2922, %v2925
        %v2927 = vrot.slane %v2926, 4
        %v2929 = vshll.u32 %v2192, 16
        %v2931 = vrot.slane %v2929, 5
        %v2932 = vsel %vm2346, %v2927, %v2931
        %v2933 = vshrl.u32 %v2192, 16
        %v2935 = vrot.slane %v2933, 4
        %v2936 = vor.u32 %v2935, %v2931
        %v2937 = vrot.slane %v2936, 4
        %v2939 = vshll.u32 %v2193, 16
        %v2941 = vrot.slane %v2939, 5
        %v2942 = vsel %vm2346, %v2937, %v2941
        %v2943 = vshrl.u32 %v2193, 16
        %v2945 = vrot.slane %v2943, 4
        %v2946 = vor.u32 %v2945, %v2941
        %v2947 = vrot.slane %v2946, 4
        %v2949 = vshll.u32 %v2194, 16
        %v2951 = vrot.slane %v2949, 5
        %v2952 = vsel %vm2346, %v2947, %v2951
        %v2953 = vshrl.u32 %v2194, 16
        %v2955 = vrot.slane %v2953, 4
        %v2956 = vor.u32 %v2955, %v2951
        %v2957 = vrot.slane %v2956, 4
        %v2959 = vshll.u32 %v2288, 16
        %v2961 = vrot.slane %v2959, 5
        %v2962 = vsel %vm2346, %v2957, %v2961
        %v2964 = vshrl.u32 %v2195, 16
        %v2966 = vrot.slane %v2964, 4
        %v2967 = vshll.u32 %v2195, 16
        %v2969 = vrot.slane %v2967, 5
        %v2970 = vor.u32 %v2966, %v2969
        %v2971 = vrot.slane %v2970, 4
        %v2973 = vshll.u32 %v2196, 16
        %v2975 = vrot.slane %v2973, 5
        %v2976 = vsel %vm2346, %v2971, %v2975
        %v2977 = vshrl.u32 %v2196, 16
        %v2979 = vrot.slane %v2977, 4
        %v2980 = vor.u32 %v2979, %v2975
        %v2981 = vrot.slane %v2980, 4
        %v2983 = vshll.u32 %v2197, 16
        %v2985 = vrot.slane %v2983, 5
        %v2986 = vsel %vm2346, %v2981, %v2985
        %v2987 = vshrl.u32 %v2197, 16
        %v2989 = vrot.slane %v2987, 4
        %v2990 = vor.u32 %v2989, %v2985
        %v2991 = vrot.slane %v2990, 4
        %v2993 = vshll.u32 %v2198, 16
        %v2995 = vrot.slane %v2993, 5
        %v2996 = vsel %vm2346, %v2991, %v2995
        %v2997 = vshrl.u32 %v2198, 16
        %v2999 = vrot.slane %v2997, 4
        %v3000 = vor.u32 %v2999, %v2995
        %v3001 = vrot.slane %v3000, 4
        %v3003 = vshll.u32 %v2289, 16
        %v3005 = vrot.slane %v3003, 5
        %v3006 = vsel %vm2346, %v3001, %v3005
        %v3008 = vshrl.u32 %v2199, 16
        %v3010 = vrot.slane %v3008, 4
        %v3011 = vshll.u32 %v2199, 16
        %v3013 = vrot.slane %v3011, 5
        %v3014 = vor.u32 %v3010, %v3013
        %v3015 = vrot.slane %v3014, 4
        %v3017 = vshll.u32 %v2200, 16
        %v3019 = vrot.slane %v3017, 5
        %v3020 = vsel %vm2346, %v3015, %v3019
        %v3021 = vshrl.u32 %v2200, 16
        %v3023 = vrot.slane %v3021, 4
        %v3024 = vor.u32 %v3023, %v3019
        %v3025 = vrot.slane %v3024, 4
        %v3027 = vshll.u32 %v2201, 16
        %v3029 = vrot.slane %v3027, 5
        %v3030 = vsel %vm2346, %v3025, %v3029
        %v3031 = vshrl.u32 %v2201, 16
        %v3033 = vrot.slane %v3031, 4
        %v3034 = vor.u32 %v3033, %v3029
        %v3035 = vrot.slane %v3034, 4
        %v3037 = vshll.u32 %v2202, 16
        %v3039 = vrot.slane %v3037, 5
        %v3040 = vsel %vm2346, %v3035, %v3039
        %v3041 = vshrl.u32 %v2202, 16
        %v3043 = vrot.slane %v3041, 4
        %v3044 = vor.u32 %v3043, %v3039
        %v3045 = vrot.slane %v3044, 4
        %v3047 = vshll.u32 %v2290, 16
        %v3049 = vrot.slane %v3047, 5
        %v3050 = vsel %vm2346, %v3045, %v3049
        %v3052 = vshrl.u32 %v2203, 16
        %v3054 = vrot.slane %v3052, 4
        %v3055 = vshll.u32 %v2203, 16
        %v3057 = vrot.slane %v3055, 5
        %v3058 = vor.u32 %v3054, %v3057
        %v3059 = vrot.slane %v3058, 4
        %v3061 = vshll.u32 %v2204, 16
        %v3063 = vrot.slane %v3061, 5
        %v3064 = vsel %vm2346, %v3059, %v3063
        %v3065 = vshrl.u32 %v2204, 16
        %v3067 = vrot.slane %v3065, 4
        %v3068 = vor.u32 %v3067, %v3063
        %v3069 = vrot.slane %v3068, 4
        %v3071 = vshll.u32 %v2205, 16
        %v3073 = vrot.slane %v3071, 5
        %v3074 = vsel %vm2346, %v3069, %v3073
        %v3075 = vshrl.u32 %v2205, 16
        %v3077 = vrot.slane %v3075, 4
        %v3078 = vor.u32 %v3077, %v3073
        %v3079 = vrot.slane %v3078, 4
        %v3081 = vshll.u32 %v2206, 16
        %v3083 = vrot.slane %v3081, 5
        %v3084 = vsel %vm2346, %v3079, %v3083
        %v3085 = vshrl.u32 %v2206, 16
        %v3087 = vrot.slane %v3085, 4
        %v3088 = vor.u32 %v3087, %v3083
        %v3089 = vrot.slane %v3088, 4
        %v3091 = vshll.u32 %v2291, 16
        %v3093 = vrot.slane %v3091, 5
        %v3094 = vsel %vm2346, %v3089, %v3093
        %v3096 = vshrl.u32 %v2207, 16
        %v3098 = vrot.slane %v3096, 4
        %v3099 = vshll.u32 %v2207, 16
        %v3101 = vrot.slane %v3099, 5
        %v3102 = vor.u32 %v3098, %v3101
        %v3103 = vrot.slane %v3102, 4
        %v3105 = vshll.u32 %v2208, 16
        %v3107 = vrot.slane %v3105, 5
        %v3108 = vsel %vm2346, %v3103, %v3107
        %v3109 = vshrl.u32 %v2208, 16
        %v3111 = vrot.slane %v3109, 4
        %v3112 = vor.u32 %v3111, %v3107
        %v3113 = vrot.slane %v3112, 4
        %v3115 = vshll.u32 %v2209, 16
        %v3117 = vrot.slane %v3115, 5
        %v3118 = vsel %vm2346, %v3113, %v3117
        %v3119 = vshrl.u32 %v2209, 16
        %v3121 = vrot.slane %v3119, 4
        %v3122 = vor.u32 %v3121, %v3117
        %v3123 = vrot.slane %v3122, 4
        %v3125 = vshll.u32 %v2210, 16
        %v3127 = vrot.slane %v3125, 5
        %v3128 = vsel %vm2346, %v3123, %v3127
        %v3129 = vshrl.u32 %v2210, 16
        %v3131 = vrot.slane %v3129, 4
        %v3132 = vor.u32 %v3131, %v3127
        %v3133 = vrot.slane %v3132, 4
        %v3135 = vshll.u32 %v2292, 16
        %v3137 = vrot.slane %v3135, 5
        %v3138 = vsel %vm2346, %v3133, %v3137
        %v3140 = vshrl.u32 %v2211, 16
        %v3142 = vrot.slane %v3140, 4
        %v3143 = vshll.u32 %v2211, 16
        %v3145 = vrot.slane %v3143, 5
        %v3146 = vor.u32 %v3142, %v3145
        %v3147 = vrot.slane %v3146, 4
        %v3149 = vshll.u32 %v2212, 16
        %v3151 = vrot.slane %v3149, 5
        %v3152 = vsel %vm2346, %v3147, %v3151
        %v3153 = vshrl.u32 %v2212, 16
        %v3155 = vrot.slane %v3153, 4
        %v3156 = vor.u32 %v3155, %v3151
        %v3157 = vrot.slane %v3156, 4
        %v3159 = vshll.u32 %v2213, 16
        %v3161 = vrot.slane %v3159, 5
        %v3162 = vsel %vm2346, %v3157, %v3161
        %v3163 = vshrl.u32 %v2213, 16
        %v3165 = vrot.slane %v3163, 4
        %v3166 = vor.u32 %v3165, %v3161
        %v3167 = vrot.slane %v3166, 4
        %v3169 = vshll.u32 %v2214, 16
        %v3171 = vrot.slane %v3169, 5
        %v3172 = vsel %vm2346, %v3167, %v3171
        %v3173 = vshrl.u32 %v2214, 16
        %v3175 = vrot.slane %v3173, 4
        %v3176 = vor.u32 %v3175, %v3171
        %v3177 = vrot.slane %v3176, 4
        %v3179 = vshll.u32 %v2293, 16
        %v3181 = vrot.slane %v3179, 5
        %v3182 = vsel %vm2346, %v3177, %v3181
        %v3184 = vshrl.u32 %v2215, 16
        %v3186 = vrot.slane %v3184, 4
        %v3187 = vshll.u32 %v2215, 16
        %v3189 = vrot.slane %v3187, 5
        %v3190 = vor.u32 %v3186, %v3189
        %v3191 = vrot.slane %v3190, 4
        %v3193 = vshll.u32 %v2216, 16
        %v3195 = vrot.slane %v3193, 5
        %v3196 = vsel %vm2346, %v3191, %v3195
        %v3197 = vshrl.u32 %v2216, 16
        %v3199 = vrot.slane %v3197, 4
        %v3200 = vor.u32 %v3199, %v3195
        %v3201 = vrot.slane %v3200, 4
        %v3203 = vshll.u32 %v2217, 16
        %v3205 = vrot.slane %v3203, 5
        %v3206 = vsel %vm2346, %v3201, %v3205
        %v3207 = vshrl.u32 %v2217, 16
        %v3209 = vrot.slane %v3207, 4
        %v3210 = vor.u32 %v3209, %v3205
        %v3211 = vrot.slane %v3210, 4
        %v3213 = vshll.u32 %v2218, 16
        %v3215 = vrot.slane %v3213, 5
        %v3216 = vsel %vm2346, %v3211, %v3215
        %v3217 = vshrl.u32 %v2218, 16
        %v3219 = vrot.slane %v3217, 4
        %v3220 = vor.u32 %v3219, %v3215
        %v3221 = vrot.slane %v3220, 4
        %v3223 = vshll.u32 %v2294, 16
        %v3225 = vrot.slane %v3223, 5
        %v3226 = vsel %vm2346, %v3221, %v3225
        %v3228 = vshrl.u32 %v2219, 16
        %v3230 = vrot.slane %v3228, 4
        %v3231 = vshll.u32 %v2219, 16
        %v3233 = vrot.slane %v3231, 5
        %v3234 = vor.u32 %v3230, %v3233
        %v3235 = vrot.slane %v3234, 4
        %v3237 = vshll.u32 %v2220, 16
        %v3239 = vrot.slane %v3237, 5
        %v3240 = vsel %vm2346, %v3235, %v3239
        %v3241 = vshrl.u32 %v2220, 16
        %v3243 = vrot.slane %v3241, 4
        %v3244 = vor.u32 %v3243, %v3239
        %v3245 = vrot.slane %v3244, 4
        %v3247 = vshll.u32 %v2221, 16
        %v3249 = vrot.slane %v3247, 5
        %v3250 = vsel %vm2346, %v3245, %v3249
        %v3251 = vshrl.u32 %v2221, 16
        %v3253 = vrot.slane %v3251, 4
        %v3254 = vor.u32 %v3253, %v3249
        %v3255 = vrot.slane %v3254, 4
        %v3257 = vshll.u32 %v2222, 16
        %v3259 = vrot.slane %v3257, 5
        %v3260 = vsel %vm2346, %v3255, %v3259
        %v3261 = vshrl.u32 %v2222, 16
        %v3263 = vrot.slane %v3261, 4
        %v3264 = vor.u32 %v3263, %v3259
        %v3265 = vrot.slane %v3264, 4
        %v3267 = vshll.u32 %v2295, 16
        %v3269 = vrot.slane %v3267, 5
        %v3270 = vsel %vm2346, %v3265, %v3269
        %v3272 = vshrl.u32 %v2223, 16
        %v3274 = vrot.slane %v3272, 4
        %v3275 = vshll.u32 %v2223, 16
        %v3277 = vrot.slane %v3275, 5
        %v3278 = vor.u32 %v3274, %v3277
        %v3279 = vrot.slane %v3278, 4
        %v3281 = vshll.u32 %v2224, 16
        %v3283 = vrot.slane %v3281, 5
        %v3284 = vsel %vm2346, %v3279, %v3283
        %v3285 = vshrl.u32 %v2224, 16
        %v3287 = vrot.slane %v3285, 4
        %v3288 = vor.u32 %v3287, %v3283
        %v3289 = vrot.slane %v3288, 4
        %v3291 = vshll.u32 %v2225, 16
        %v3293 = vrot.slane %v3291, 5
        %v3294 = vsel %vm2346, %v3289, %v3293
        %v3295 = vshrl.u32 %v2225, 16
        %v3297 = vrot.slane %v3295, 4
        %v3298 = vor.u32 %v3297, %v3293
        %v3299 = vrot.slane %v3298, 4
        %v3301 = vshll.u32 %v2226, 16
        %v3303 = vrot.slane %v3301, 5
        %v3304 = vsel %vm2346, %v3299, %v3303
        %v3305 = vshrl.u32 %v2226, 16
        %v3307 = vrot.slane %v3305, 4
        %v3308 = vor.u32 %v3307, %v3303
        %v3309 = vrot.slane %v3308, 4
        %v3311 = vshll.u32 %v2296, 16
        %v3313 = vrot.slane %v3311, 5
        %v3314 = vsel %vm2346, %v3309, %v3313
        %v3316 = vshrl.u32 %v2227, 16
        %v3318 = vrot.slane %v3316, 4
        %v3319 = vshll.u32 %v2227, 16
        %v3321 = vrot.slane %v3319, 5
        %v3322 = vor.u32 %v3318, %v3321
        %v3323 = vrot.slane %v3322, 4
        %v3325 = vshll.u32 %v2228, 16
        %v3327 = vrot.slane %v3325, 5
        %v3328 = vsel %vm2346, %v3323, %v3327
        %v3329 = vshrl.u32 %v2228, 16
        %v3331 = vrot.slane %v3329, 4
        %v3332 = vor.u32 %v3331, %v3327
        %v3333 = vrot.slane %v3332, 4
        %v3335 = vshll.u32 %v2229, 16
        %v3337 = vrot.slane %v3335, 5
        %v3338 = vsel %vm2346, %v3333, %v3337
        %v3339 = vshrl.u32 %v2229, 16
        %v3341 = vrot.slane %v3339, 4
        %v3342 = vor.u32 %v3341, %v3337
        %v3343 = vrot.slane %v3342, 4
        %v3345 = vshll.u32 %v2230, 16
        %v3347 = vrot.slane %v3345, 5
        %v3348 = vsel %vm2346, %v3343, %v3347
        %v3349 = vshrl.u32 %v2230, 16
        %v3351 = vrot.slane %v3349, 4
        %v3352 = vor.u32 %v3351, %v3347
        %v3353 = vrot.slane %v3352, 4
        %v3355 = vshll.u32 %v2297, 16
        %v3357 = vrot.slane %v3355, 5
        %v3358 = vsel %vm2346, %v3353, %v3357
        %v3360 = vshrl.u32 %v2231, 16
        %v3362 = vrot.slane %v3360, 4
        %v3363 = vshll.u32 %v2231, 16
        %v3365 = vrot.slane %v3363, 5
        %v3366 = vor.u32 %v3362, %v3365
        %v3367 = vrot.slane %v3366, 4
        %v3369 = vshll.u32 %v2232, 16
        %v3371 = vrot.slane %v3369, 5
        %v3372 = vsel %vm2346, %v3367, %v3371
        %v3373 = vshrl.u32 %v2232, 16
        %v3375 = vrot.slane %v3373, 4
        %v3376 = vor.u32 %v3375, %v3371
        %v3377 = vrot.slane %v3376, 4
        %v3379 = vshll.u32 %v2233, 16
        %v3381 = vrot.slane %v3379, 5
        %v3382 = vsel %vm2346, %v3377, %v3381
        %v3383 = vshrl.u32 %v2233, 16
        %v3385 = vrot.slane %v3383, 4
        %v3386 = vor.u32 %v3385, %v3381
        %v3387 = vrot.slane %v3386, 4
        %v3389 = vshll.u32 %v2234, 16
        %v3391 = vrot.slane %v3389, 5
        %v3392 = vsel %vm2346, %v3387, %v3391
        %v3393 = vshrl.u32 %v2234, 16
        %v3395 = vrot.slane %v3393, 4
        %v3396 = vor.u32 %v3395, %v3391
        %v3397 = vrot.slane %v3396, 4
        %v3399 = vshll.u32 %v2298, 16
        %v3401 = vrot.slane %v3399, 5
        %v3402 = vsel %vm2346, %v3397, %v3401
        %v3404 = vshrl.u32 %v2235, 16
        %v3406 = vrot.slane %v3404, 4
        %v3407 = vshll.u32 %v2235, 16
        %v3409 = vrot.slane %v3407, 5
        %v3410 = vor.u32 %v3406, %v3409
        %v3411 = vrot.slane %v3410, 4
        %v3413 = vshll.u32 %v2236, 16
        %v3415 = vrot.slane %v3413, 5
        %v3416 = vsel %vm2346, %v3411, %v3415
        %v3417 = vshrl.u32 %v2236, 16
        %v3419 = vrot.slane %v3417, 4
        %v3420 = vor.u32 %v3419, %v3415
        %v3421 = vrot.slane %v3420, 4
        %v3423 = vshll.u32 %v2237, 16
        %v3425 = vrot.slane %v3423, 5
        %v3426 = vsel %vm2346, %v3421, %v3425
        %v3427 = vshrl.u32 %v2237, 16
        %v3429 = vrot.slane %v3427, 4
        %v3430 = vor.u32 %v3429, %v3425
        %v3431 = vrot.slane %v3430, 4
        %v3433 = vshll.u32 %v2238, 16
        %v3435 = vrot.slane %v3433, 5
        %v3436 = vsel %vm2346, %v3431, %v3435
        %v3437 = vshrl.u32 %v2238, 16
        %v3439 = vrot.slane %v3437, 4
        %v3440 = vor.u32 %v3439, %v3435
        %v3441 = vrot.slane %v3440, 4
        %v3443 = vshll.u32 %v2299, 16
        %v3445 = vrot.slane %v3443, 5
        %v3446 = vsel %vm2346, %v3441, %v3445
        %v3448 = vshrl.u32 %v2239, 16
        %v3450 = vrot.slane %v3448, 4
        %v3451 = vshll.u32 %v2239, 16
        %v3453 = vrot.slane %v3451, 5
        %v3454 = vor.u32 %v3450, %v3453
        %v3455 = vrot.slane %v3454, 4
        %v3457 = vshll.u32 %v2240, 16
        %v3459 = vrot.slane %v3457, 5
        %v3460 = vsel %vm2346, %v3455, %v3459
        %v3461 = vshrl.u32 %v2240, 16
        %v3463 = vrot.slane %v3461, 4
        %v3464 = vor.u32 %v3463, %v3459
        %v3465 = vrot.slane %v3464, 4
        %v3467 = vshll.u32 %v2241, 16
        %v3469 = vrot.slane %v3467, 5
        %v3470 = vsel %vm2346, %v3465, %v3469
        %v3471 = vshrl.u32 %v2241, 16
        %v3473 = vrot.slane %v3471, 4
        %v3474 = vor.u32 %v3473, %v3469
        %v3475 = vrot.slane %v3474, 4
        %v3477 = vshll.u32 %v2242, 16
        %v3479 = vrot.slane %v3477, 5
        %v3480 = vsel %vm2346, %v3475, %v3479
        %v3481 = vshrl.u32 %v2242, 16
        %v3483 = vrot.slane %v3481, 4
        %v3484 = vor.u32 %v3483, %v3479
        %v3485 = vrot.slane %v3484, 4
        %v3487 = vshll.u32 %v2300, 16
        %v3489 = vrot.slane %v3487, 5
        %v3490 = vsel %vm2346, %v3485, %v3489
        %v3492 = vshrl.u32 %v2243, 16
        %v3494 = vrot.slane %v3492, 4
        %v3495 = vshll.u32 %v2243, 16
        %v3497 = vrot.slane %v3495, 5
        %v3498 = vor.u32 %v3494, %v3497
        %v3499 = vrot.slane %v3498, 4
        %v3501 = vshll.u32 %v2244, 16
        %v3503 = vrot.slane %v3501, 5
        %v3504 = vsel %vm2346, %v3499, %v3503
        %v3505 = vshrl.u32 %v2244, 16
        %v3507 = vrot.slane %v3505, 4
        %v3508 = vor.u32 %v3507, %v3503
        %v3509 = vrot.slane %v3508, 4
        %v3511 = vshll.u32 %v2245, 16
        %v3513 = vrot.slane %v3511, 5
        %v3514 = vsel %vm2346, %v3509, %v3513
        %v3515 = vshrl.u32 %v2245, 16
        %v3517 = vrot.slane %v3515, 4
        %v3518 = vor.u32 %v3517, %v3513
        %v3519 = vrot.slane %v3518, 4
        %v3521 = vshll.u32 %v2246, 16
        %v3523 = vrot.slane %v3521, 5
        %v3524 = vsel %vm2346, %v3519, %v3523
        %v3525 = vshrl.u32 %v2246, 16
        %v3527 = vrot.slane %v3525, 4
        %v3528 = vor.u32 %v3527, %v3523
        %v3529 = vrot.slane %v3528, 4
        %v3531 = vshll.u32 %v2301, 16
        %v3533 = vrot.slane %v3531, 5
        %v3534 = vsel %vm2346, %v3529, %v3533
        %v3536 = vshrl.u32 %v2247, 16
        %v3538 = vrot.slane %v3536, 4
        %v3539 = vshll.u32 %v2247, 16
        %v3541 = vrot.slane %v3539, 5
        %v3542 = vor.u32 %v3538, %v3541
        %v3543 = vrot.slane %v3542, 4
        %v3545 = vshll.u32 %v2248, 16
        %v3547 = vrot.slane %v3545, 5
        %v3548 = vsel %vm2346, %v3543, %v3547
        %v3549 = vshrl.u32 %v2248, 16
        %v3551 = vrot.slane %v3549, 4
        %v3552 = vor.u32 %v3551, %v3547
        %v3553 = vrot.slane %v3552, 4
        %v3555 = vshll.u32 %v2249, 16
        %v3557 = vrot.slane %v3555, 5
        %v3558 = vsel %vm2346, %v3553, %v3557
        %v3559 = vshrl.u32 %v2249, 16
        %v3561 = vrot.slane %v3559, 4
        %v3562 = vor.u32 %v3561, %v3557
        %v3563 = vrot.slane %v3562, 4
        %v3565 = vshll.u32 %v2250, 16
        %v3567 = vrot.slane %v3565, 5
        %v3568 = vsel %vm2346, %v3563, %v3567
        %v3569 = vshrl.u32 %v2250, 16
        %v3571 = vrot.slane %v3569, 4
        %v3572 = vor.u32 %v3571, %v3567
        %v3573 = vrot.slane %v3572, 4
        %v3575 = vshll.u32 %v2302, 16
        %v3577 = vrot.slane %v3575, 5
        %v3578 = vsel %vm2346, %v3573, %v3577
        %v3580 = vshrl.u32 %v2251, 16
        %v3582 = vrot.slane %v3580, 4
        %v3583 = vshll.u32 %v2251, 16
        %v3585 = vrot.slane %v3583, 5
        %v3586 = vor.u32 %v3582, %v3585
        %v3587 = vrot.slane %v3586, 4
        %v3589 = vshll.u32 %v2252, 16
        %v3591 = vrot.slane %v3589, 5
        %v3592 = vsel %vm2346, %v3587, %v3591
        %v3593 = vshrl.u32 %v2252, 16
        %v3595 = vrot.slane %v3593, 4
        %v3596 = vor.u32 %v3595, %v3591
        %v3597 = vrot.slane %v3596, 4
        %v3599 = vshll.u32 %v2253, 16
        %v3601 = vrot.slane %v3599, 5
        %v3602 = vsel %vm2346, %v3597, %v3601
        %v3603 = vshrl.u32 %v2253, 16
        %v3605 = vrot.slane %v3603, 4
        %v3606 = vor.u32 %v3605, %v3601
        %v3607 = vrot.slane %v3606, 4
        %v3609 = vshll.u32 %v2254, 16
        %v3611 = vrot.slane %v3609, 5
        %v3612 = vsel %vm2346, %v3607, %v3611
        %v3613 = vshrl.u32 %v2254, 16
        %v3615 = vrot.slane %v3613, 4
        %v3616 = vor.u32 %v3615, %v3611
        %v3617 = vrot.slane %v3616, 4
        %v3619 = vshll.u32 %v2303, 16
        %v3621 = vrot.slane %v3619, 5
        %v3622 = vsel %vm2346, %v3617, %v3621
        %v3624 = vshrl.u32 %v2255, 16
        %v3626 = vrot.slane %v3624, 4
        %v3627 = vshll.u32 %v2255, 16
        %v3629 = vrot.slane %v3627, 5
        %v3630 = vor.u32 %v3626, %v3629
        %v3631 = vrot.slane %v3630, 4
        %v3633 = vshll.u32 %v2256, 16
        %v3635 = vrot.slane %v3633, 5
        %v3636 = vsel %vm2346, %v3631, %v3635
        %v3637 = vshrl.u32 %v2256, 16
        %v3639 = vrot.slane %v3637, 4
        %v3640 = vor.u32 %v3639, %v3635
        %v3641 = vrot.slane %v3640, 4
        %v3643 = vshll.u32 %v2257, 16
        %v3645 = vrot.slane %v3643, 5
        %v3646 = vsel %vm2346, %v3641, %v3645
        %v3647 = vshrl.u32 %v2257, 16
        %v3649 = vrot.slane %v3647, 4
        %v3650 = vor.u32 %v3649, %v3645
        %v3651 = vrot.slane %v3650, 4
        %v3653 = vshll.u32 %v2258, 16
        %v3655 = vrot.slane %v3653, 5
        %v3656 = vsel %vm2346, %v3651, %v3655
        %v3657 = vshrl.u32 %v2258, 16
        %v3659 = vrot.slane %v3657, 4
        %v3660 = vor.u32 %v3659, %v3655
        %v3661 = vrot.slane %v3660, 4
        %v3663 = vshll.u32 %v2304, 16
        %v3665 = vrot.slane %v3663, 5
        %v3666 = vsel %vm2346, %v3661, %v3665
        %v3668 = vshrl.u32 %v2259, 16
        %v3670 = vrot.slane %v3668, 4
        %v3671 = vshll.u32 %v2259, 16
        %v3673 = vrot.slane %v3671, 5
        %v3674 = vor.u32 %v3670, %v3673
        %v3675 = vrot.slane %v3674, 4
        %v3677 = vshll.u32 %v2260, 16
        %v3679 = vrot.slane %v3677, 5
        %v3680 = vsel %vm2346, %v3675, %v3679
        %v3681 = vshrl.u32 %v2260, 16
        %v3683 = vrot.slane %v3681, 4
        %v3684 = vor.u32 %v3683, %v3679
        %v3685 = vrot.slane %v3684, 4
        %v3687 = vshll.u32 %v2261, 16
        %v3689 = vrot.slane %v3687, 5
        %v3690 = vsel %vm2346, %v3685, %v3689
        %v3691 = vshrl.u32 %v2261, 16
        %v3693 = vrot.slane %v3691, 4
        %v3694 = vor.u32 %v3693, %v3689
        %v3695 = vrot.slane %v3694, 4
        %v3697 = vshll.u32 %v2262, 16
        %v3699 = vrot.slane %v3697, 5
        %v3700 = vsel %vm2346, %v3695, %v3699
        %v3701 = vshrl.u32 %v2262, 16
        %v3703 = vrot.slane %v3701, 4
        %v3704 = vor.u32 %v3703, %v3699
        %v3705 = vrot.slane %v3704, 4
        %v3707 = vshll.u32 %v2305, 16
        %v3709 = vrot.slane %v3707, 5
        %v3710 = vsel %vm2346, %v3705, %v3709
        %v3712 = vshrl.u32 %v2263, 16
        %v3714 = vrot.slane %v3712, 4
        %v3715 = vshll.u32 %v2263, 16
        %v3717 = vrot.slane %v3715, 5
        %v3718 = vor.u32 %v3714, %v3717
        %v3719 = vrot.slane %v3718, 4
        %v3721 = vshll.u32 %v2264, 16
        %v3723 = vrot.slane %v3721, 5
        %v3724 = vsel %vm2346, %v3719, %v3723
        %v3725 = vshrl.u32 %v2264, 16
        %v3727 = vrot.slane %v3725, 4
        %v3728 = vor.u32 %v3727, %v3723
        %v3729 = vrot.slane %v3728, 4
        %v3731 = vshll.u32 %v2265, 16
        %v3733 = vrot.slane %v3731, 5
        %v3734 = vsel %vm2346, %v3729, %v3733
        %v3735 = vshrl.u32 %v2265, 16
        %v3737 = vrot.slane %v3735, 4
        %v3738 = vor.u32 %v3737, %v3733
        %v3739 = vrot.slane %v3738, 4
        %v3741 = vshll.u32 %v2266, 16
        %v3743 = vrot.slane %v3741, 5
        %v3744 = vsel %vm2346, %v3739, %v3743
        %v3745 = vshrl.u32 %v2266, 16
        %v3747 = vrot.slane %v3745, 4
        %v3748 = vor.u32 %v3747, %v3743
        %v3749 = vrot.slane %v3748, 4
        %v3751 = vshll.u32 %v2306, 16
        %v3753 = vrot.slane %v3751, 5
        %v3754 = vsel %vm2346, %v3749, %v3753
        %s3755 = scalar_lea.vmem %s210, 2
        %v3756 = vld [vmem:[%s3755] sm:$0x3]
        %v3757 = vunpack.c.l.b16 %v2360
        %v3758 = vunpack.c.l.b16 %v2370
        %v3759 = vunpack.c.l.b16 %v2380
        %v3760 = vunpack.c.l.b16 %v2390
        %v3761 = vunpack.c.l.b16 %v2404
        %v3762 = vunpack.c.l.b16 %v2414
        %v3763 = vunpack.c.l.b16 %v2424
        %v3764 = vunpack.c.l.b16 %v2434
        %v3765 = vunpack.c.l.b16 %v2448
        %v3766 = vunpack.c.l.b16 %v2458
        %v3767 = vunpack.c.l.b16 %v2468
        %v3768 = vunpack.c.l.b16 %v2478
        %v3769 = vunpack.c.l.b16 %v2492
        %v3770 = vunpack.c.l.b16 %v2502
        %v3771 = vunpack.c.l.b16 %v2512
        %v3772 = vunpack.c.l.b16 %v2522
        %v3773 = vunpack.c.l.b16 %v2536
        %v3774 = vunpack.c.l.b16 %v2546
        %v3775 = vunpack.c.l.b16 %v2556
        %v3776 = vunpack.c.l.b16 %v2566
        %v3777 = vunpack.c.l.b16 %v2580
        %v3778 = vunpack.c.l.b16 %v2590
        %v3779 = vunpack.c.l.b16 %v2600
        %v3780 = vunpack.c.l.b16 %v2610
        %v3781 = vunpack.c.l.b16 %v2624
        %v3782 = vunpack.c.l.b16 %v2634
        %v3783 = vunpack.c.l.b16 %v2644
        %v3784 = vunpack.c.l.b16 %v2654
        %v3785 = vunpack.c.l.b16 %v2668
        %v3786 = vunpack.c.l.b16 %v2678
        %v3787 = vunpack.c.l.b16 %v2688
        %v3788 = vunpack.c.l.b16 %v2698
        %v3789 = vunpack.c.l.b16 %v2712
        %v3790 = vunpack.c.l.b16 %v2722
        %v3791 = vunpack.c.l.b16 %v2732
        %v3792 = vunpack.c.l.b16 %v2742
        %v3793 = vunpack.c.l.b16 %v2756
        %v3794 = vunpack.c.l.b16 %v2766
        %v3795 = vunpack.c.l.b16 %v2776
        %v3796 = vunpack.c.l.b16 %v2786
        %v3797 = vunpack.c.l.b16 %v2800
        %v3798 = vunpack.c.l.b16 %v2810
        %v3799 = vunpack.c.l.b16 %v2820
        %v3800 = vunpack.c.l.b16 %v2830
        %v3801 = vunpack.c.l.b16 %v2844
        %v3802 = vunpack.c.l.b16 %v2854
        %v3803 = vunpack.c.l.b16 %v2864
        %v3804 = vunpack.c.l.b16 %v2874
        %v3805 = vunpack.c.l.b16 %v2888
        %v3806 = vunpack.c.l.b16 %v2898
        %v3807 = vunpack.c.l.b16 %v2908
        %v3808 = vunpack.c.l.b16 %v2918
        %v3809 = vunpack.c.l.b16 %v2932
        %v3810 = vunpack.c.l.b16 %v2942
        %v3811 = vunpack.c.l.b16 %v2952
        %v3812 = vunpack.c.l.b16 %v2962
        %v3813 = vunpack.c.l.b16 %v2976
        %v3814 = vunpack.c.l.b16 %v2986
        %v3815 = vunpack.c.l.b16 %v2996
        %v3816 = vunpack.c.l.b16 %v3006
        %v3817 = vunpack.c.l.b16 %v3020
        %v3818 = vunpack.c.l.b16 %v3030
        %v3819 = vunpack.c.l.b16 %v3040
        %v3820 = vunpack.c.l.b16 %v3050
        %v3821 = vunpack.c.l.b16 %v3064
        %v3822 = vunpack.c.l.b16 %v3074
        %v3823 = vunpack.c.l.b16 %v3084
        %v3824 = vunpack.c.l.b16 %v3094
        %v3825 = vunpack.c.l.b16 %v3108
        %v3826 = vunpack.c.l.b16 %v3118
        %v3827 = vunpack.c.l.b16 %v3128
        %v3828 = vunpack.c.l.b16 %v3138
        %v3829 = vunpack.c.l.b16 %v3152
        %v3830 = vunpack.c.l.b16 %v3162
        %v3831 = vunpack.c.l.b16 %v3172
        %v3832 = vunpack.c.l.b16 %v3182
        %v3833 = vunpack.c.l.b16 %v3196
        %v3834 = vunpack.c.l.b16 %v3206
        %v3835 = vunpack.c.l.b16 %v3216
        %v3836 = vunpack.c.l.b16 %v3226
        %v3837 = vunpack.c.l.b16 %v3240
        %v3838 = vunpack.c.l.b16 %v3250
        %v3839 = vunpack.c.l.b16 %v3260
        %v3840 = vunpack.c.l.b16 %v3270
        %v3841 = vunpack.c.l.b16 %v3284
        %v3842 = vunpack.c.l.b16 %v3294
        %v3843 = vunpack.c.l.b16 %v3304
        %v3844 = vunpack.c.l.b16 %v3314
        %v3845 = vunpack.c.l.b16 %v3328
        %v3846 = vunpack.c.l.b16 %v3338
        %v3847 = vunpack.c.l.b16 %v3348
        %v3848 = vunpack.c.l.b16 %v3358
        %v3849 = vunpack.c.l.b16 %v3372
        %v3850 = vunpack.c.l.b16 %v3382
        %v3851 = vunpack.c.l.b16 %v3392
        %v3852 = vunpack.c.l.b16 %v3402
        %v3853 = vunpack.c.l.b16 %v3416
        %v3854 = vunpack.c.l.b16 %v3426
        %v3855 = vunpack.c.l.b16 %v3436
        %v3856 = vunpack.c.l.b16 %v3446
        %v3857 = vunpack.c.l.b16 %v3460
        %v3858 = vunpack.c.l.b16 %v3470
        %v3859 = vunpack.c.l.b16 %v3480
        %v3860 = vunpack.c.l.b16 %v3490
        %v3861 = vunpack.c.l.b16 %v3504
        %v3862 = vunpack.c.l.b16 %v3514
        %v3863 = vunpack.c.l.b16 %v3524
        %v3864 = vunpack.c.l.b16 %v3534
        %v3865 = vunpack.c.l.b16 %v3548
        %v3866 = vunpack.c.l.b16 %v3558
        %v3867 = vunpack.c.l.b16 %v3568
        %v3868 = vunpack.c.l.b16 %v3578
        %v3869 = vunpack.c.l.b16 %v3592
        %v3870 = vunpack.c.l.b16 %v3602
        %v3871 = vunpack.c.l.b16 %v3612
        %v3872 = vunpack.c.l.b16 %v3622
        %v3873 = vunpack.c.l.b16 %v3636
        %v3874 = vunpack.c.l.b16 %v3646
        %v3875 = vunpack.c.l.b16 %v3656
        %v3876 = vunpack.c.l.b16 %v3666
        %v3877 = vunpack.c.l.b16 %v3680
        %v3878 = vunpack.c.l.b16 %v3690
        %v3879 = vunpack.c.l.b16 %v3700
        %v3880 = vunpack.c.l.b16 %v3710
        %v3881 = vunpack.c.l.b16 %v3724
        %v3882 = vunpack.c.l.b16 %v3734
        %v3883 = vunpack.c.l.b16 %v3744
        %v3884 = vunpack.c.l.b16 %v3754
        %v3885 = vpack.c.b16 %v3758, %v3757
        %v3886 = vpack.c.b16 %v3760, %v3759
        %v3887 = vpack.c.b16 %v3762, %v3761
        %v3888 = vpack.c.b16 %v3764, %v3763
        %v3889 = vpack.c.b16 %v3766, %v3765
        %v3890 = vpack.c.b16 %v3768, %v3767
        %v3891 = vpack.c.b16 %v3770, %v3769
        %v3892 = vpack.c.b16 %v3772, %v3771
        %v3893 = vpack.c.b16 %v3774, %v3773
        %v3894 = vpack.c.b16 %v3776, %v3775
        %v3895 = vpack.c.b16 %v3778, %v3777
        %v3896 = vpack.c.b16 %v3780, %v3779
        %v3897 = vpack.c.b16 %v3782, %v3781
        %v3898 = vpack.c.b16 %v3784, %v3783
        %v3899 = vpack.c.b16 %v3786, %v3785
        %v3900 = vpack.c.b16 %v3788, %v3787
        %v3901 = vpack.c.b16 %v3790, %v3789
        %v3902 = vpack.c.b16 %v3792, %v3791
        %v3903 = vpack.c.b16 %v3794, %v3793
        %v3904 = vpack.c.b16 %v3796, %v3795
        %v3905 = vpack.c.b16 %v3798, %v3797
        %v3906 = vpack.c.b16 %v3800, %v3799
        %v3907 = vpack.c.b16 %v3802, %v3801
        %v3908 = vpack.c.b16 %v3804, %v3803
        %v3909 = vpack.c.b16 %v3806, %v3805
        %v3910 = vpack.c.b16 %v3808, %v3807
        %v3911 = vpack.c.b16 %v3810, %v3809
        %v3912 = vpack.c.b16 %v3812, %v3811
        %v3913 = vpack.c.b16 %v3814, %v3813
        %v3914 = vpack.c.b16 %v3816, %v3815
        %v3915 = vpack.c.b16 %v3818, %v3817
        %v3916 = vpack.c.b16 %v3820, %v3819
        %v3917 = vpack.c.b16 %v3822, %v3821
        %v3918 = vpack.c.b16 %v3824, %v3823
        %v3919 = vpack.c.b16 %v3826, %v3825
        %v3920 = vpack.c.b16 %v3828, %v3827
        %v3921 = vpack.c.b16 %v3830, %v3829
        %v3922 = vpack.c.b16 %v3832, %v3831
        %v3923 = vpack.c.b16 %v3834, %v3833
        %v3924 = vpack.c.b16 %v3836, %v3835
        %v3925 = vpack.c.b16 %v3838, %v3837
        %v3926 = vpack.c.b16 %v3840, %v3839
        %v3927 = vpack.c.b16 %v3842, %v3841
        %v3928 = vpack.c.b16 %v3844, %v3843
        %v3929 = vpack.c.b16 %v3846, %v3845
        %v3930 = vpack.c.b16 %v3848, %v3847
        %v3931 = vpack.c.b16 %v3850, %v3849
        %v3932 = vpack.c.b16 %v3852, %v3851
        %v3933 = vpack.c.b16 %v3854, %v3853
        %v3934 = vpack.c.b16 %v3856, %v3855
        %v3935 = vpack.c.b16 %v3858, %v3857
        %v3936 = vpack.c.b16 %v3860, %v3859
        %v3937 = vpack.c.b16 %v3862, %v3861
        %v3938 = vpack.c.b16 %v3864, %v3863
        %v3939 = vpack.c.b16 %v3866, %v3865
        %v3940 = vpack.c.b16 %v3868, %v3867
        %v3941 = vpack.c.b16 %v3870, %v3869
        %v3942 = vpack.c.b16 %v3872, %v3871
        %v3943 = vpack.c.b16 %v3874, %v3873
        %v3944 = vpack.c.b16 %v3876, %v3875
        %v3945 = vpack.c.b16 %v3878, %v3877
        %v3946 = vpack.c.b16 %v3880, %v3879
        %v3947 = vpack.c.b16 %v3882, %v3881
        %v3948 = vpack.c.b16 %v3884, %v3883
        %vm3949 = vcmask 23552
        %v3951 = vsel %vm3949, %v3885, 0
        %v3954 = vsel %vm3949, %v3886, 0
        %v3957 = vsel %vm3949, %v3887, 0
        %v3960 = vsel %vm3949, %v3888, 0
        %v3963 = vsel %vm3949, %v3889, 0
        %v3966 = vsel %vm3949, %v3890, 0
        %v3969 = vsel %vm3949, %v3891, 0
        %v3972 = vsel %vm3949, %v3892, 0
        %v3975 = vsel %vm3949, %v3893, 0
        %v3978 = vsel %vm3949, %v3894, 0
        %v3981 = vsel %vm3949, %v3895, 0
        %v3984 = vsel %vm3949, %v3896, 0
        %v3987 = vsel %vm3949, %v3897, 0
        %v3990 = vsel %vm3949, %v3898, 0
        %v3993 = vsel %vm3949, %v3899, 0
        %v3996 = vsel %vm3949, %v3900, 0
        %v3999 = vsel %vm3949, %v3901, 0
        %v4002 = vsel %vm3949, %v3902, 0
        %v4005 = vsel %vm3949, %v3903, 0
        %v4008 = vsel %vm3949, %v3904, 0
        %v4011 = vsel %vm3949, %v3905, 0
        %v4014 = vsel %vm3949, %v3906, 0
        %v4017 = vsel %vm3949, %v3907, 0
        %v4020 = vsel %vm3949, %v3908, 0
        %v4023 = vsel %vm3949, %v3909, 0
        %v4026 = vsel %vm3949, %v3910, 0
        %v4029 = vsel %vm3949, %v3911, 0
        %v4032 = vsel %vm3949, %v3912, 0
        %v4035 = vsel %vm3949, %v3913, 0
        %v4038 = vsel %vm3949, %v3914, 0
        %v4041 = vsel %vm3949, %v3915, 0
        %v4044 = vsel %vm3949, %v3916, 0
        %v4047 = vsel %vm3949, %v3917, 0
        %v4050 = vsel %vm3949, %v3918, 0
        %v4053 = vsel %vm3949, %v3919, 0
        %v4056 = vsel %vm3949, %v3920, 0
        %v4059 = vsel %vm3949, %v3921, 0
        %v4062 = vsel %vm3949, %v3922, 0
        %v4065 = vsel %vm3949, %v3923, 0
        %v4068 = vsel %vm3949, %v3924, 0
        %v4071 = vsel %vm3949, %v3925, 0
        %v4074 = vsel %vm3949, %v3926, 0
        %v4077 = vsel %vm3949, %v3927, 0
        %v4080 = vsel %vm3949, %v3928, 0
        %v4083 = vsel %vm3949, %v3929, 0
        %v4086 = vsel %vm3949, %v3930, 0
        %v4089 = vsel %vm3949, %v3931, 0
        %v4092 = vsel %vm3949, %v3932, 0
        %v4095 = vsel %vm3949, %v3933, 0
        %v4098 = vsel %vm3949, %v3934, 0
        %v4101 = vsel %vm3949, %v3935, 0
        %v4104 = vsel %vm3949, %v3936, 0
        %v4107 = vsel %vm3949, %v3937, 0
        %v4110 = vsel %vm3949, %v3938, 0
        %v4113 = vsel %vm3949, %v3939, 0
        %v4116 = vsel %vm3949, %v3940, 0
        %v4119 = vsel %vm3949, %v3941, 0
        %v4122 = vsel %vm3949, %v3942, 0
        %v4125 = vsel %vm3949, %v3943, 0
        %v4128 = vsel %vm3949, %v3944, 0
        %v4131 = vsel %vm3949, %v3945, 0
        %v4134 = vsel %vm3949, %v3946, 0
        %v4137 = vsel %vm3949, %v3947, 0
        %v4140 = vsel %vm3949, %v3948, 0
        %vm4142 = vcmask 1040384
        %vm4143 = vcmask 1041408
        %v4144 = vsel %vm4142, 4294967295, 65535
        %v4145 = vsel %vm4143, %v4144, 0
        %v4147 = vand.u32 %v3756, %v4145
        %4149 = vmatprep.subr.bf16.mxu0 0
        %4150 = vmatpush1.bf16.msra.mxu0 %v4147
        %4151 = vmatprep.subr.bf16.mxu0 0
        %4152 = vmatpush1.bf16.msra.mxu0 0
        %4153 = vmatprep.subr.bf16.mxu0 0
        %4154 = vmatpush1.bf16.msra.mxu0 0
        %4155 = vmatprep.subr.bf16.mxu0 0
        %4156 = vmatpush1.bf16.msra.mxu0 0
        %4157 = vmatprep.subr.bf16.mxu0 0
        %4158 = vmatpush1.bf16.msra.mxu0 0
        %4159 = vmatprep.subr.bf16.mxu0 0
        %4160 = vmatpush1.bf16.msra.mxu0 0
        %4161 = vmatprep.subr.bf16.mxu0 0
        %4162 = vmatpush1.bf16.msra.mxu0 0
        %4163 = vmatprep.subr.bf16.mxu0 0
        %4164 = vmatpush1.bf16.msra.mxu0 0
        %4165 = vmatprep.subr.bf16.mxu0 0
        %4166 = vmatpush1.bf16.msra.mxu0 0
        %4167 = vmatprep.subr.bf16.mxu0 0
        %4168 = vmatpush1.bf16.msra.mxu0 0
        %4169 = vmatprep.subr.bf16.mxu0 0
        %4170 = vmatpush1.bf16.msra.mxu0 0
        %4171 = vmatprep.subr.bf16.mxu0 0
        %4172 = vmatpush1.bf16.msra.mxu0 0
        %4173 = vmatprep.subr.bf16.mxu0 0
        %4174 = vmatpush1.bf16.msra.mxu0 0
        %4175 = vmatprep.subr.bf16.mxu0 0
        %4176 = vmatpush1.bf16.msra.mxu0 0
        %4177 = vmatprep.subr.bf16.mxu0 0
        %4178 = vmatpush1.bf16.msra.mxu0 0
        %4179 = vmatprep.subr.bf16.mxu0 0
        %4180 = vmatpush1.bf16.msra.mxu0 0
        %4181 = vmatprep.mubr.bf16.mxu0 0
        %4182 = vmatmul.mubr.bf16.gmra.mrb[0].mxu0 %v3951
        %v4183 = vpop.f32.mrb[0].mxu0
        %v4184 = vadd.f32 0.0, %v4183
        %v4185 = vpop.f32.mrb[0].mxu0
        %v4186 = vpop.f32.mrb[0].mxu0
        %v4187 = vadd.f32 0.0, %v4186
        %v4188 = vpop.f32.mrb[0].mxu0
        %4189 = vmatprep.mubr.bf16.mxu0 0
        %4190 = vmatmul.mubr.bf16.gmra.mrb[0].mxu0 %v3954
        %v4191 = vpop.f32.mrb[0].mxu0
        %v4192 = vadd.f32 0.0, %v4191
        %v4193 = vpop.f32.mrb[0].mxu0
        %v4194 = vpop.f32.mrb[0].mxu0
        %v4195 = vadd.f32 0.0, %v4194
        %v4196 = vpop.f32.mrb[0].mxu0
        %4197 = vmatprep.mubr.bf16.mxu0 0
        %4198 = vmatmul.mubr.bf16.gmra.mrb[0].mxu0 %v3957
        %v4199 = vpop.f32.mrb[0].mxu0
        %v4200 = vadd.f32 0.0, %v4199
        %v4201 = vpop.f32.mrb[0].mxu0
        %v4202 = vpop.f32.mrb[0].mxu0
        %v4203 = vadd.f32 0.0, %v4202
        %v4204 = vpop.f32.mrb[0].mxu0
        %4205 = vmatprep.mubr.bf16.mxu0 0
        %4206 = vmatmul.mubr.bf16.gmra.mrb[0].mxu0 %v3960
        %v4207 = vpop.f32.mrb[0].mxu0
        %v4208 = vadd.f32 0.0, %v4207
        %v4209 = vpop.f32.mrb[0].mxu0
        %v4210 = vpop.f32.mrb[0].mxu0
        %v4211 = vadd.f32 0.0, %v4210
        %v4212 = vpop.f32.mrb[0].mxu0
        %4213 = vmatprep.mubr.bf16.mxu0 0
        %4214 = vmatmul.mubr.bf16.gmra.mrb[0].mxu0 %v3963
        %v4215 = vpop.f32.mrb[0].mxu0
        %v4216 = vadd.f32 0.0, %v4215
        %v4217 = vpop.f32.mrb[0].mxu0
        %v4218 = vpop.f32.mrb[0].mxu0
        %v4219 = vadd.f32 0.0, %v4218
        %v4220 = vpop.f32.mrb[0].mxu0
        %4221 = vmatprep.mubr.bf16.mxu0 0
        %4222 = vmatmul.mubr.bf16.gmra.mrb[0].mxu0 %v3966
        %v4223 = vpop.f32.mrb[0].mxu0
        %v4224 = vadd.f32 0.0, %v4223
        %v4225 = vpop.f32.mrb[0].mxu0
        %v4226 = vpop.f32.mrb[0].mxu0
        %v4227 = vadd.f32 0.0, %v4226
        %v4228 = vpop.f32.mrb[0].mxu0
        %4229 = vmatprep.mubr.bf16.mxu0 0
        %4230 = vmatmul.mubr.bf16.gmra.mrb[0].mxu0 %v3969
        %v4231 = vpop.f32.mrb[0].mxu0
        %v4232 = vadd.f32 0.0, %v4231
        %v4233 = vpop.f32.mrb[0].mxu0
        %v4234 = vpop.f32.mrb[0].mxu0
        %v4235 = vadd.f32 0.0, %v4234
        %v4236 = vpop.f32.mrb[0].mxu0
        %4237 = vmatprep.mubr.bf16.mxu0 0
        %4238 = vmatmul.mubr.bf16.gmra.mrb[0].mxu0 %v3972
        %v4239 = vpop.f32.mrb[0].mxu0
        %v4240 = vadd.f32 0.0, %v4239
        %v4241 = vpop.f32.mrb[0].mxu0
        %v4242 = vpop.f32.mrb[0].mxu0
        %v4243 = vadd.f32 0.0, %v4242
        %v4244 = vpop.f32.mrb[0].mxu0
        %4245 = vmatprep.mubr.bf16.mxu0 0
        %4246 = vmatmul.mubr.bf16.gmra.mrb[0].mxu0 %v3975
        %v4247 = vpop.f32.mrb[0].mxu0
        %v4248 = vadd.f32 0.0, %v4247
        %v4249 = vpop.f32.mrb[0].mxu0
        %v4250 = vpop.f32.mrb[0].mxu0
        %v4251 = vadd.f32 0.0, %v4250
        %v4252 = vpop.f32.mrb[0].mxu0
        %4253 = vmatprep.mubr.bf16.mxu0 0
        %4254 = vmatmul.mubr.bf16.gmra.mrb[0].mxu0 %v3978
        %v4255 = vpop.f32.mrb[0].mxu0
        %v4256 = vadd.f32 0.0, %v4255
        %v4257 = vpop.f32.mrb[0].mxu0
        %v4258 = vpop.f32.mrb[0].mxu0
        %v4259 = vadd.f32 0.0, %v4258
        %v4260 = vpop.f32.mrb[0].mxu0
        %4261 = vmatprep.mubr.bf16.mxu0 0
        %4262 = vmatmul.mubr.bf16.gmra.mrb[0].mxu0 %v3981
        %v4263 = vpop.f32.mrb[0].mxu0
        %v4264 = vadd.f32 0.0, %v4263
        %v4265 = vpop.f32.mrb[0].mxu0
        %v4266 = vpop.f32.mrb[0].mxu0
        %v4267 = vadd.f32 0.0, %v4266
        %v4268 = vpop.f32.mrb[0].mxu0
        %4269 = vmatprep.mubr.bf16.mxu0 0
        %4270 = vmatmul.mubr.bf16.gmra.mrb[0].mxu0 %v3984
        %v4271 = vpop.f32.mrb[0].mxu0
        %v4272 = vadd.f32 0.0, %v4271
        %v4273 = vpop.f32.mrb[0].mxu0
        %v4274 = vpop.f32.mrb[0].mxu0
        %v4275 = vadd.f32 0.0, %v4274
        %v4276 = vpop.f32.mrb[0].mxu0
        %4277 = vmatprep.mubr.bf16.mxu0 0
        %4278 = vmatmul.mubr.bf16.gmra.mrb[0].mxu0 %v3987
        %v4279 = vpop.f32.mrb[0].mxu0
        %v4280 = vadd.f32 0.0, %v4279
        %v4281 = vpop.f32.mrb[0].mxu0
        %v4282 = vpop.f32.mrb[0].mxu0
        %v4283 = vadd.f32 0.0, %v4282
        %v4284 = vpop.f32.mrb[0].mxu0
        %4285 = vmatprep.mubr.bf16.mxu0 0
        %4286 = vmatmul.mubr.bf16.gmra.mrb[0].mxu0 %v3990
        %v4287 = vpop.f32.mrb[0].mxu0
        %v4288 = vadd.f32 0.0, %v4287
        %v4289 = vpop.f32.mrb[0].mxu0
        %v4290 = vpop.f32.mrb[0].mxu0
        %v4291 = vadd.f32 0.0, %v4290
        %v4292 = vpop.f32.mrb[0].mxu0
        %4293 = vmatprep.mubr.bf16.mxu0 0
        %4294 = vmatmul.mubr.bf16.gmra.mrb[0].mxu0 %v3993
        %v4295 = vpop.f32.mrb[0].mxu0
        %v4296 = vadd.f32 0.0, %v4295
        %v4297 = vpop.f32.mrb[0].mxu0
        %v4298 = vpop.f32.mrb[0].mxu0
        %v4299 = vadd.f32 0.0, %v4298
        %v4300 = vpop.f32.mrb[0].mxu0
        %4301 = vmatprep.mubr.bf16.mxu0 0
        %4302 = vmatmul.mubr.bf16.gmra.mrb[0].mxu0 %v3996
        %v4303 = vpop.f32.mrb[0].mxu0
        %v4304 = vadd.f32 0.0, %v4303
        %v4305 = vpop.f32.mrb[0].mxu0
        %v4306 = vpop.f32.mrb[0].mxu0
        %v4307 = vadd.f32 0.0, %v4306
        %v4308 = vpop.f32.mrb[0].mxu0
        %4309 = vmatprep.mubr.bf16.mxu0 0
        %4310 = vmatmul.mubr.bf16.gmra.mrb[0].mxu0 %v3999
        %v4311 = vpop.f32.mrb[0].mxu0
        %v4312 = vadd.f32 0.0, %v4311
        %v4313 = vpop.f32.mrb[0].mxu0
        %v4314 = vpop.f32.mrb[0].mxu0
        %v4315 = vadd.f32 0.0, %v4314
        %v4316 = vpop.f32.mrb[0].mxu0
        %4317 = vmatprep.mubr.bf16.mxu0 0
        %4318 = vmatmul.mubr.bf16.gmra.mrb[0].mxu0 %v4002
        %v4319 = vpop.f32.mrb[0].mxu0
        %v4320 = vadd.f32 0.0, %v4319
        %v4321 = vpop.f32.mrb[0].mxu0
        %v4322 = vpop.f32.mrb[0].mxu0
        %v4323 = vadd.f32 0.0, %v4322
        %v4324 = vpop.f32.mrb[0].mxu0
        %4325 = vmatprep.mubr.bf16.mxu0 0
        %4326 = vmatmul.mubr.bf16.gmra.mrb[0].mxu0 %v4005
        %v4327 = vpop.f32.mrb[0].mxu0
        %v4328 = vadd.f32 0.0, %v4327
        %v4329 = vpop.f32.mrb[0].mxu0
        %v4330 = vpop.f32.mrb[0].mxu0
        %v4331 = vadd.f32 0.0, %v4330
        %v4332 = vpop.f32.mrb[0].mxu0
        %4333 = vmatprep.mubr.bf16.mxu0 0
        %4334 = vmatmul.mubr.bf16.gmra.mrb[0].mxu0 %v4008
        %v4335 = vpop.f32.mrb[0].mxu0
        %v4336 = vadd.f32 0.0, %v4335
        %v4337 = vpop.f32.mrb[0].mxu0
        %v4338 = vpop.f32.mrb[0].mxu0
        %v4339 = vadd.f32 0.0, %v4338
        %v4340 = vpop.f32.mrb[0].mxu0
        %4341 = vmatprep.mubr.bf16.mxu0 0
        %4342 = vmatmul.mubr.bf16.gmra.mrb[0].mxu0 %v4011
        %v4343 = vpop.f32.mrb[0].mxu0
        %v4344 = vadd.f32 0.0, %v4343
        %v4345 = vpop.f32.mrb[0].mxu0
        %v4346 = vpop.f32.mrb[0].mxu0
        %v4347 = vadd.f32 0.0, %v4346
        %v4348 = vpop.f32.mrb[0].mxu0
        %4349 = vmatprep.mubr.bf16.mxu0 0
        %4350 = vmatmul.mubr.bf16.gmra.mrb[0].mxu0 %v4014
        %v4351 = vpop.f32.mrb[0].mxu0
        %v4352 = vadd.f32 0.0, %v4351
        %v4353 = vpop.f32.mrb[0].mxu0
        %v4354 = vpop.f32.mrb[0].mxu0
        %v4355 = vadd.f32 0.0, %v4354
        %v4356 = vpop.f32.mrb[0].mxu0
        %4357 = vmatprep.mubr.bf16.mxu0 0
        %4358 = vmatmul.mubr.bf16.gmra.mrb[0].mxu0 %v4017
        %v4359 = vpop.f32.mrb[0].mxu0
        %v4360 = vadd.f32 0.0, %v4359
        %v4361 = vpop.f32.mrb[0].mxu0
        %v4362 = vpop.f32.mrb[0].mxu0
        %v4363 = vadd.f32 0.0, %v4362
        %v4364 = vpop.f32.mrb[0].mxu0
        %4365 = vmatprep.mubr.bf16.mxu0 0
        %4366 = vmatmul.mubr.bf16.gmra.mrb[0].mxu0 %v4020
        %v4367 = vpop.f32.mrb[0].mxu0
        %v4368 = vadd.f32 0.0, %v4367
        %v4369 = vpop.f32.mrb[0].mxu0
        %v4370 = vpop.f32.mrb[0].mxu0
        %v4371 = vadd.f32 0.0, %v4370
        %v4372 = vpop.f32.mrb[0].mxu0
        %4373 = vmatprep.mubr.bf16.mxu0 0
        %4374 = vmatmul.mubr.bf16.gmra.mrb[0].mxu0 %v4023
        %v4375 = vpop.f32.mrb[0].mxu0
        %v4376 = vadd.f32 0.0, %v4375
        %v4377 = vpop.f32.mrb[0].mxu0
        %v4378 = vpop.f32.mrb[0].mxu0
        %v4379 = vadd.f32 0.0, %v4378
        %v4380 = vpop.f32.mrb[0].mxu0
        %4381 = vmatprep.mubr.bf16.mxu0 0
        %4382 = vmatmul.mubr.bf16.gmra.mrb[0].mxu0 %v4026
        %v4383 = vpop.f32.mrb[0].mxu0
        %v4384 = vadd.f32 0.0, %v4383
        %v4385 = vpop.f32.mrb[0].mxu0
        %v4386 = vpop.f32.mrb[0].mxu0
        %v4387 = vadd.f32 0.0, %v4386
        %v4388 = vpop.f32.mrb[0].mxu0
        %4389 = vmatprep.mubr.bf16.mxu0 0
        %4390 = vmatmul.mubr.bf16.gmra.mrb[0].mxu0 %v4029
        %v4391 = vpop.f32.mrb[0].mxu0
        %v4392 = vadd.f32 0.0, %v4391
        %v4393 = vpop.f32.mrb[0].mxu0
        %v4394 = vpop.f32.mrb[0].mxu0
        %v4395 = vadd.f32 0.0, %v4394
        %v4396 = vpop.f32.mrb[0].mxu0
        %4397 = vmatprep.mubr.bf16.mxu0 0
        %4398 = vmatmul.mubr.bf16.gmra.mrb[0].mxu0 %v4032
        %v4399 = vpop.f32.mrb[0].mxu0
        %v4400 = vadd.f32 0.0, %v4399
        %v4401 = vpop.f32.mrb[0].mxu0
        %v4402 = vpop.f32.mrb[0].mxu0
        %v4403 = vadd.f32 0.0, %v4402
        %v4404 = vpop.f32.mrb[0].mxu0
        %4405 = vmatprep.mubr.bf16.mxu0 0
        %4406 = vmatmul.mubr.bf16.gmra.mrb[0].mxu0 %v4035
        %v4407 = vpop.f32.mrb[0].mxu0
        %v4408 = vadd.f32 0.0, %v4407
        %v4409 = vpop.f32.mrb[0].mxu0
        %v4410 = vpop.f32.mrb[0].mxu0
        %v4411 = vadd.f32 0.0, %v4410
        %v4412 = vpop.f32.mrb[0].mxu0
        %4413 = vmatprep.mubr.bf16.mxu0 0
        %4414 = vmatmul.mubr.bf16.gmra.mrb[0].mxu0 %v4038
        %v4415 = vpop.f32.mrb[0].mxu0
        %v4416 = vadd.f32 0.0, %v4415
        %v4417 = vpop.f32.mrb[0].mxu0
        %v4418 = vpop.f32.mrb[0].mxu0
        %v4419 = vadd.f32 0.0, %v4418
        %v4420 = vpop.f32.mrb[0].mxu0
        %4421 = vmatprep.mubr.bf16.mxu0 0
        %4422 = vmatmul.mubr.bf16.gmra.mrb[0].mxu0 %v4041
        %v4423 = vpop.f32.mrb[0].mxu0
        %v4424 = vadd.f32 0.0, %v4423
        %v4425 = vpop.f32.mrb[0].mxu0
        %v4426 = vpop.f32.mrb[0].mxu0
        %v4427 = vadd.f32 0.0, %v4426
        %v4428 = vpop.f32.mrb[0].mxu0
        %4429 = vmatprep.mubr.bf16.mxu0 0
        %4430 = vmatmul.mubr.bf16.gmra.mrb[0].mxu0 %v4044
        %v4431 = vpop.f32.mrb[0].mxu0
        %v4432 = vadd.f32 0.0, %v4431
        %v4433 = vpop.f32.mrb[0].mxu0
        %v4434 = vpop.f32.mrb[0].mxu0
        %v4435 = vadd.f32 0.0, %v4434
        %v4436 = vpop.f32.mrb[0].mxu0
        %4437 = vmatprep.mubr.bf16.mxu0 0
        %4438 = vmatmul.mubr.bf16.gmra.mrb[0].mxu0 %v4047
        %v4439 = vpop.f32.mrb[0].mxu0
        %v4440 = vadd.f32 0.0, %v4439
        %v4441 = vpop.f32.mrb[0].mxu0
        %v4442 = vpop.f32.mrb[0].mxu0
        %v4443 = vadd.f32 0.0, %v4442
        %v4444 = vpop.f32.mrb[0].mxu0
        %4445 = vmatprep.mubr.bf16.mxu0 0
        %4446 = vmatmul.mubr.bf16.gmra.mrb[0].mxu0 %v4050
        %v4447 = vpop.f32.mrb[0].mxu0
        %v4448 = vadd.f32 0.0, %v4447
        %v4449 = vpop.f32.mrb[0].mxu0
        %v4450 = vpop.f32.mrb[0].mxu0
        %v4451 = vadd.f32 0.0, %v4450
        %v4452 = vpop.f32.mrb[0].mxu0
        %4453 = vmatprep.mubr.bf16.mxu0 0
        %4454 = vmatmul.mubr.bf16.gmra.mrb[0].mxu0 %v4053
        %v4455 = vpop.f32.mrb[0].mxu0
        %v4456 = vadd.f32 0.0, %v4455
        %v4457 = vpop.f32.mrb[0].mxu0
        %v4458 = vpop.f32.mrb[0].mxu0
        %v4459 = vadd.f32 0.0, %v4458
        %v4460 = vpop.f32.mrb[0].mxu0
        %4461 = vmatprep.mubr.bf16.mxu0 0
        %4462 = vmatmul.mubr.bf16.gmra.mrb[0].mxu0 %v4056
        %v4463 = vpop.f32.mrb[0].mxu0
        %v4464 = vadd.f32 0.0, %v4463
        %v4465 = vpop.f32.mrb[0].mxu0
        %v4466 = vpop.f32.mrb[0].mxu0
        %v4467 = vadd.f32 0.0, %v4466
        %v4468 = vpop.f32.mrb[0].mxu0
        %4469 = vmatprep.mubr.bf16.mxu0 0
        %4470 = vmatmul.mubr.bf16.gmra.mrb[0].mxu0 %v4059
        %v4471 = vpop.f32.mrb[0].mxu0
        %v4472 = vadd.f32 0.0, %v4471
        %v4473 = vpop.f32.mrb[0].mxu0
        %v4474 = vpop.f32.mrb[0].mxu0
        %v4475 = vadd.f32 0.0, %v4474
        %v4476 = vpop.f32.mrb[0].mxu0
        %4477 = vmatprep.mubr.bf16.mxu0 0
        %4478 = vmatmul.mubr.bf16.gmra.mrb[0].mxu0 %v4062
        %v4479 = vpop.f32.mrb[0].mxu0
        %v4480 = vadd.f32 0.0, %v4479
        %v4481 = vpop.f32.mrb[0].mxu0
        %v4482 = vpop.f32.mrb[0].mxu0
        %v4483 = vadd.f32 0.0, %v4482
        %v4484 = vpop.f32.mrb[0].mxu0
        %4485 = vmatprep.mubr.bf16.mxu0 0
        %4486 = vmatmul.mubr.bf16.gmra.mrb[0].mxu0 %v4065
        %v4487 = vpop.f32.mrb[0].mxu0
        %v4488 = vadd.f32 0.0, %v4487
        %v4489 = vpop.f32.mrb[0].mxu0
        %v4490 = vpop.f32.mrb[0].mxu0
        %v4491 = vadd.f32 0.0, %v4490
        %v4492 = vpop.f32.mrb[0].mxu0
        %4493 = vmatprep.mubr.bf16.mxu0 0
        %4494 = vmatmul.mubr.bf16.gmra.mrb[0].mxu0 %v4068
        %v4495 = vpop.f32.mrb[0].mxu0
        %v4496 = vadd.f32 0.0, %v4495
        %v4497 = vpop.f32.mrb[0].mxu0
        %v4498 = vpop.f32.mrb[0].mxu0
        %v4499 = vadd.f32 0.0, %v4498
        %v4500 = vpop.f32.mrb[0].mxu0
        %4501 = vmatprep.mubr.bf16.mxu0 0
        %4502 = vmatmul.mubr.bf16.gmra.mrb[0].mxu0 %v4071
        %v4503 = vpop.f32.mrb[0].mxu0
        %v4504 = vadd.f32 0.0, %v4503
        %v4505 = vpop.f32.mrb[0].mxu0
        %v4506 = vpop.f32.mrb[0].mxu0
        %v4507 = vadd.f32 0.0, %v4506
        %v4508 = vpop.f32.mrb[0].mxu0
        %4509 = vmatprep.mubr.bf16.mxu0 0
        %4510 = vmatmul.mubr.bf16.gmra.mrb[0].mxu0 %v4074
        %v4511 = vpop.f32.mrb[0].mxu0
        %v4512 = vadd.f32 0.0, %v4511
        %v4513 = vpop.f32.mrb[0].mxu0
        %v4514 = vpop.f32.mrb[0].mxu0
        %v4515 = vadd.f32 0.0, %v4514
        %v4516 = vpop.f32.mrb[0].mxu0
        %4517 = vmatprep.mubr.bf16.mxu0 0
        %4518 = vmatmul.mubr.bf16.gmra.mrb[0].mxu0 %v4077
        %v4519 = vpop.f32.mrb[0].mxu0
        %v4520 = vadd.f32 0.0, %v4519
        %v4521 = vpop.f32.mrb[0].mxu0
        %v4522 = vpop.f32.mrb[0].mxu0
        %v4523 = vadd.f32 0.0, %v4522
        %v4524 = vpop.f32.mrb[0].mxu0
        %4525 = vmatprep.mubr.bf16.mxu0 0
        %4526 = vmatmul.mubr.bf16.gmra.mrb[0].mxu0 %v4080
        %v4527 = vpop.f32.mrb[0].mxu0
        %v4528 = vadd.f32 0.0, %v4527
        %v4529 = vpop.f32.mrb[0].mxu0
        %v4530 = vpop.f32.mrb[0].mxu0
        %v4531 = vadd.f32 0.0, %v4530
        %v4532 = vpop.f32.mrb[0].mxu0
        %4533 = vmatprep.mubr.bf16.mxu0 0
        %4534 = vmatmul.mubr.bf16.gmra.mrb[0].mxu0 %v4083
        %v4535 = vpop.f32.mrb[0].mxu0
        %v4536 = vadd.f32 0.0, %v4535
        %v4537 = vpop.f32.mrb[0].mxu0
        %v4538 = vpop.f32.mrb[0].mxu0
        %v4539 = vadd.f32 0.0, %v4538
        %v4540 = vpop.f32.mrb[0].mxu0
        %4541 = vmatprep.mubr.bf16.mxu0 0
        %4542 = vmatmul.mubr.bf16.gmra.mrb[0].mxu0 %v4086
        %v4543 = vpop.f32.mrb[0].mxu0
        %v4544 = vadd.f32 0.0, %v4543
        %v4545 = vpop.f32.mrb[0].mxu0
        %v4546 = vpop.f32.mrb[0].mxu0
        %v4547 = vadd.f32 0.0, %v4546
        %v4548 = vpop.f32.mrb[0].mxu0
        %4549 = vmatprep.mubr.bf16.mxu0 0
        %4550 = vmatmul.mubr.bf16.gmra.mrb[0].mxu0 %v4089
        %v4551 = vpop.f32.mrb[0].mxu0
        %v4552 = vadd.f32 0.0, %v4551
        %v4553 = vpop.f32.mrb[0].mxu0
        %v4554 = vpop.f32.mrb[0].mxu0
        %v4555 = vadd.f32 0.0, %v4554
        %v4556 = vpop.f32.mrb[0].mxu0
        %4557 = vmatprep.mubr.bf16.mxu0 0
        %4558 = vmatmul.mubr.bf16.gmra.mrb[0].mxu0 %v4092
        %v4559 = vpop.f32.mrb[0].mxu0
        %v4560 = vadd.f32 0.0, %v4559
        %v4561 = vpop.f32.mrb[0].mxu0
        %v4562 = vpop.f32.mrb[0].mxu0
        %v4563 = vadd.f32 0.0, %v4562
        %v4564 = vpop.f32.mrb[0].mxu0
        %4565 = vmatprep.mubr.bf16.mxu0 0
        %4566 = vmatmul.mubr.bf16.gmra.mrb[0].mxu0 %v4095
        %v4567 = vpop.f32.mrb[0].mxu0
        %v4568 = vadd.f32 0.0, %v4567
        %v4569 = vpop.f32.mrb[0].mxu0
        %v4570 = vpop.f32.mrb[0].mxu0
        %v4571 = vadd.f32 0.0, %v4570
        %v4572 = vpop.f32.mrb[0].mxu0
        %4573 = vmatprep.mubr.bf16.mxu0 0
        %4574 = vmatmul.mubr.bf16.gmra.mrb[0].mxu0 %v4098
        %v4575 = vpop.f32.mrb[0].mxu0
        %v4576 = vadd.f32 0.0, %v4575
        %v4577 = vpop.f32.mrb[0].mxu0
        %v4578 = vpop.f32.mrb[0].mxu0
        %v4579 = vadd.f32 0.0, %v4578
        %v4580 = vpop.f32.mrb[0].mxu0
        %4581 = vmatprep.mubr.bf16.mxu0 0
        %4582 = vmatmul.mubr.bf16.gmra.mrb[0].mxu0 %v4101
        %v4583 = vpop.f32.mrb[0].mxu0
        %v4584 = vadd.f32 0.0, %v4583
        %v4585 = vpop.f32.mrb[0].mxu0
        %v4586 = vpop.f32.mrb[0].mxu0
        %v4587 = vadd.f32 0.0, %v4586
        %v4588 = vpop.f32.mrb[0].mxu0
        %4589 = vmatprep.mubr.bf16.mxu0 0
        %4590 = vmatmul.mubr.bf16.gmra.mrb[0].mxu0 %v4104
        %v4591 = vpop.f32.mrb[0].mxu0
        %v4592 = vadd.f32 0.0, %v4591
        %v4593 = vpop.f32.mrb[0].mxu0
        %v4594 = vpop.f32.mrb[0].mxu0
        %v4595 = vadd.f32 0.0, %v4594
        %v4596 = vpop.f32.mrb[0].mxu0
        %4597 = vmatprep.mubr.bf16.mxu0 0
        %4598 = vmatmul.mubr.bf16.gmra.mrb[0].mxu0 %v4107
        %v4599 = vpop.f32.mrb[0].mxu0
        %v4600 = vadd.f32 0.0, %v4599
        %v4601 = vpop.f32.mrb[0].mxu0
        %v4602 = vpop.f32.mrb[0].mxu0
        %v4603 = vadd.f32 0.0, %v4602
        %v4604 = vpop.f32.mrb[0].mxu0
        %4605 = vmatprep.mubr.bf16.mxu0 0
        %4606 = vmatmul.mubr.bf16.gmra.mrb[0].mxu0 %v4110
        %v4607 = vpop.f32.mrb[0].mxu0
        %v4608 = vadd.f32 0.0, %v4607
        %v4609 = vpop.f32.mrb[0].mxu0
        %v4610 = vpop.f32.mrb[0].mxu0
        %v4611 = vadd.f32 0.0, %v4610
        %v4612 = vpop.f32.mrb[0].mxu0
        %4613 = vmatprep.mubr.bf16.mxu0 0
        %4614 = vmatmul.mubr.bf16.gmra.mrb[0].mxu0 %v4113
        %v4615 = vpop.f32.mrb[0].mxu0
        %v4616 = vadd.f32 0.0, %v4615
        %v4617 = vpop.f32.mrb[0].mxu0
        %v4618 = vpop.f32.mrb[0].mxu0
        %v4619 = vadd.f32 0.0, %v4618
        %v4620 = vpop.f32.mrb[0].mxu0
        %4621 = vmatprep.mubr.bf16.mxu0 0
        %4622 = vmatmul.mubr.bf16.gmra.mrb[0].mxu0 %v4116
        %v4623 = vpop.f32.mrb[0].mxu0
        %v4624 = vadd.f32 0.0, %v4623
        %v4625 = vpop.f32.mrb[0].mxu0
        %v4626 = vpop.f32.mrb[0].mxu0
        %v4627 = vadd.f32 0.0, %v4626
        %v4628 = vpop.f32.mrb[0].mxu0
        %4629 = vmatprep.mubr.bf16.mxu0 0
        %4630 = vmatmul.mubr.bf16.gmra.mrb[0].mxu0 %v4119
        %v4631 = vpop.f32.mrb[0].mxu0
        %v4632 = vadd.f32 0.0, %v4631
        %v4633 = vpop.f32.mrb[0].mxu0
        %v4634 = vpop.f32.mrb[0].mxu0
        %v4635 = vadd.f32 0.0, %v4634
        %v4636 = vpop.f32.mrb[0].mxu0
        %4637 = vmatprep.mubr.bf16.mxu0 0
        %4638 = vmatmul.mubr.bf16.gmra.mrb[0].mxu0 %v4122
        %v4639 = vpop.f32.mrb[0].mxu0
        %v4640 = vadd.f32 0.0, %v4639
        %v4641 = vpop.f32.mrb[0].mxu0
        %v4642 = vpop.f32.mrb[0].mxu0
        %v4643 = vadd.f32 0.0, %v4642
        %v4644 = vpop.f32.mrb[0].mxu0
        %4645 = vmatprep.mubr.bf16.mxu0 0
        %4646 = vmatmul.mubr.bf16.gmra.mrb[0].mxu0 %v4125
        %v4647 = vpop.f32.mrb[0].mxu0
        %v4648 = vadd.f32 0.0, %v4647
        %v4649 = vpop.f32.mrb[0].mxu0
        %v4650 = vpop.f32.mrb[0].mxu0
        %v4651 = vadd.f32 0.0, %v4650
        %v4652 = vpop.f32.mrb[0].mxu0
        %4653 = vmatprep.mubr.bf16.mxu0 0
        %4654 = vmatmul.mubr.bf16.gmra.mrb[0].mxu0 %v4128
        %v4655 = vpop.f32.mrb[0].mxu0
        %v4656 = vadd.f32 0.0, %v4655
        %v4657 = vpop.f32.mrb[0].mxu0
        %v4658 = vpop.f32.mrb[0].mxu0
        %v4659 = vadd.f32 0.0, %v4658
        %v4660 = vpop.f32.mrb[0].mxu0
        %4661 = vmatprep.mubr.bf16.mxu0 0
        %4662 = vmatmul.mubr.bf16.gmra.mrb[0].mxu0 %v4131
        %v4663 = vpop.f32.mrb[0].mxu0
        %v4664 = vadd.f32 0.0, %v4663
        %v4665 = vpop.f32.mrb[0].mxu0
        %v4666 = vpop.f32.mrb[0].mxu0
        %v4667 = vadd.f32 0.0, %v4666
        %v4668 = vpop.f32.mrb[0].mxu0
        %4669 = vmatprep.mubr.bf16.mxu0 0
        %4670 = vmatmul.mubr.bf16.gmra.mrb[0].mxu0 %v4134
        %v4671 = vpop.f32.mrb[0].mxu0
        %v4672 = vadd.f32 0.0, %v4671
        %v4673 = vpop.f32.mrb[0].mxu0
        %v4674 = vpop.f32.mrb[0].mxu0
        %v4675 = vadd.f32 0.0, %v4674
        %v4676 = vpop.f32.mrb[0].mxu0
        %4677 = vmatprep.mubr.bf16.mxu0 0
        %4678 = vmatmul.mubr.bf16.gmra.mrb[0].mxu0 %v4137
        %v4679 = vpop.f32.mrb[0].mxu0
        %v4680 = vadd.f32 0.0, %v4679
        %v4681 = vpop.f32.mrb[0].mxu0
        %v4682 = vpop.f32.mrb[0].mxu0
        %v4683 = vadd.f32 0.0, %v4682
        %v4684 = vpop.f32.mrb[0].mxu0
        %4685 = vmatprep.mubr.bf16.mxu0 0
        %4686 = vmatmul.mubr.bf16.gmra.mrb[0].mxu0 %v4140
        %v4687 = vpop.f32.mrb[0].mxu0
        %v4688 = vadd.f32 0.0, %v4687
        %v4689 = vpop.f32.mrb[0].mxu0
        %v4690 = vpop.f32.mrb[0].mxu0
        %v4691 = vadd.f32 0.0, %v4690
        %v4692 = vpop.f32.mrb[0].mxu0
        %4693 = vdwg.mxu0
        %v4822 = vunpack.c.l.b16 %v2139
        %v4823 = vunpack.c.l.b16 %v2140
        %v4824 = vunpack.c.l.b16 %v2141
        %v4825 = vunpack.c.l.b16 %v2142
        %v4826 = vunpack.c.l.b16 %v2143
        %v4827 = vunpack.c.l.b16 %v2144
        %v4828 = vunpack.c.l.b16 %v2145
        %v4829 = vunpack.c.l.b16 %v2146
        %v4830 = vunpack.c.l.b16 %v2147
        %v4831 = vunpack.c.l.b16 %v2148
        %v4832 = vunpack.c.l.b16 %v2149
        %v4833 = vunpack.c.l.b16 %v2150
        %v4834 = vunpack.c.l.b16 %v2151
        %v4835 = vunpack.c.l.b16 %v2152
        %v4836 = vunpack.c.l.b16 %v2153
        %v4837 = vunpack.c.l.b16 %v2154
        %v4838 = vunpack.c.l.b16 %v2155
        %v4839 = vunpack.c.l.b16 %v2156
        %v4840 = vunpack.c.l.b16 %v2157
        %v4841 = vunpack.c.l.b16 %v2158
        %v4842 = vunpack.c.l.b16 %v2159
        %v4843 = vunpack.c.l.b16 %v2160
        %v4844 = vunpack.c.l.b16 %v2161
        %v4845 = vunpack.c.l.b16 %v2162
        %v4846 = vunpack.c.l.b16 %v2163
        %v4847 = vunpack.c.l.b16 %v2164
        %v4848 = vunpack.c.l.b16 %v2165
        %v4849 = vunpack.c.l.b16 %v2166
        %v4850 = vunpack.c.l.b16 %v2167
        %v4851 = vunpack.c.l.b16 %v2168
        %v4852 = vunpack.c.l.b16 %v2169
        %v4853 = vunpack.c.l.b16 %v2170
        %v4854 = vunpack.c.l.b16 %v2171
        %v4855 = vunpack.c.l.b16 %v2172
        %v4856 = vunpack.c.l.b16 %v2173
        %v4857 = vunpack.c.l.b16 %v2174
        %v4858 = vunpack.c.l.b16 %v2175
        %v4859 = vunpack.c.l.b16 %v2176
        %v4860 = vunpack.c.l.b16 %v2177
        %v4861 = vunpack.c.l.b16 %v2178
        %v4862 = vunpack.c.l.b16 %v2179
        %v4863 = vunpack.c.l.b16 %v2180
        %v4864 = vunpack.c.l.b16 %v2181
        %v4865 = vunpack.c.l.b16 %v2182
        %v4866 = vunpack.c.l.b16 %v2183
        %v4867 = vunpack.c.l.b16 %v2184
        %v4868 = vunpack.c.l.b16 %v2185
        %v4869 = vunpack.c.l.b16 %v2186
        %v4870 = vunpack.c.l.b16 %v2187
        %v4871 = vunpack.c.l.b16 %v2188
        %v4872 = vunpack.c.l.b16 %v2189
        %v4873 = vunpack.c.l.b16 %v2190
        %v4874 = vunpack.c.l.b16 %v2191
        %v4875 = vunpack.c.l.b16 %v2192
        %v4876 = vunpack.c.l.b16 %v2193
        %v4877 = vunpack.c.l.b16 %v2194
        %v4878 = vunpack.c.l.b16 %v2195
        %v4879 = vunpack.c.l.b16 %v2196
        %v4880 = vunpack.c.l.b16 %v2197
        %v4881 = vunpack.c.l.b16 %v2198
        %v4882 = vunpack.c.l.b16 %v2199
        %v4883 = vunpack.c.l.b16 %v2200
        %v4884 = vunpack.c.l.b16 %v2201
        %v4885 = vunpack.c.l.b16 %v2202
        %v4886 = vunpack.c.l.b16 %v2203
        %v4887 = vunpack.c.l.b16 %v2204
        %v4888 = vunpack.c.l.b16 %v2205
        %v4889 = vunpack.c.l.b16 %v2206
        %v4890 = vunpack.c.l.b16 %v2207
        %v4891 = vunpack.c.l.b16 %v2208
        %v4892 = vunpack.c.l.b16 %v2209
        %v4893 = vunpack.c.l.b16 %v2210
        %v4894 = vunpack.c.l.b16 %v2211
        %v4895 = vunpack.c.l.b16 %v2212
        %v4896 = vunpack.c.l.b16 %v2213
        %v4897 = vunpack.c.l.b16 %v2214
        %v4898 = vunpack.c.l.b16 %v2215
        %v4899 = vunpack.c.l.b16 %v2216
        %v4900 = vunpack.c.l.b16 %v2217
        %v4901 = vunpack.c.l.b16 %v2218
        %v4902 = vunpack.c.l.b16 %v2219
        %v4903 = vunpack.c.l.b16 %v2220
        %v4904 = vunpack.c.l.b16 %v2221
        %v4905 = vunpack.c.l.b16 %v2222
        %v4906 = vunpack.c.l.b16 %v2223
        %v4907 = vunpack.c.l.b16 %v2224
        %v4908 = vunpack.c.l.b16 %v2225
        %v4909 = vunpack.c.l.b16 %v2226
        %v4910 = vunpack.c.l.b16 %v2227
        %v4911 = vunpack.c.l.b16 %v2228
        %v4912 = vunpack.c.l.b16 %v2229
        %v4913 = vunpack.c.l.b16 %v2230
        %v4914 = vunpack.c.l.b16 %v2231
        %v4915 = vunpack.c.l.b16 %v2232
        %v4916 = vunpack.c.l.b16 %v2233
        %v4917 = vunpack.c.l.b16 %v2234
        %v4918 = vunpack.c.l.b16 %v2235
        %v4919 = vunpack.c.l.b16 %v2236
        %v4920 = vunpack.c.l.b16 %v2237
        %v4921 = vunpack.c.l.b16 %v2238
        %v4922 = vunpack.c.l.b16 %v2239
        %v4923 = vunpack.c.l.b16 %v2240
        %v4924 = vunpack.c.l.b16 %v2241
        %v4925 = vunpack.c.l.b16 %v2242
        %v4926 = vunpack.c.l.b16 %v2243
        %v4927 = vunpack.c.l.b16 %v2244
        %v4928 = vunpack.c.l.b16 %v2245
        %v4929 = vunpack.c.l.b16 %v2246
        %v4930 = vunpack.c.l.b16 %v2247
        %v4931 = vunpack.c.l.b16 %v2248
        %v4932 = vunpack.c.l.b16 %v2249
        %v4933 = vunpack.c.l.b16 %v2250
        %v4934 = vunpack.c.l.b16 %v2251
        %v4935 = vunpack.c.l.b16 %v2252
        %v4936 = vunpack.c.l.b16 %v2253
        %v4937 = vunpack.c.l.b16 %v2254
        %v4938 = vunpack.c.l.b16 %v2255
        %v4939 = vunpack.c.l.b16 %v2256
        %v4940 = vunpack.c.l.b16 %v2257
        %v4941 = vunpack.c.l.b16 %v2258
        %v4942 = vunpack.c.l.b16 %v2259
        %v4943 = vunpack.c.l.b16 %v2260
        %v4944 = vunpack.c.l.b16 %v2261
        %v4945 = vunpack.c.l.b16 %v2262
        %v4946 = vunpack.c.l.b16 %v2263
        %v4947 = vunpack.c.l.b16 %v2264
        %v4948 = vunpack.c.l.b16 %v2265
        %v4949 = vunpack.c.l.b16 %v2266
        %v4950 = vpack.c.b16 %v4823, %v4822
        %v4951 = vpack.c.b16 %v4825, %v4824
        %v4952 = vpack.c.b16 %v4827, %v4826
        %v4953 = vpack.c.b16 %v4829, %v4828
        %v4954 = vpack.c.b16 %v4831, %v4830
        %v4955 = vpack.c.b16 %v4833, %v4832
        %v4956 = vpack.c.b16 %v4835, %v4834
        %v4957 = vpack.c.b16 %v4837, %v4836
        %v4958 = vpack.c.b16 %v4839, %v4838
        %v4959 = vpack.c.b16 %v4841, %v4840
        %v4960 = vpack.c.b16 %v4843, %v4842
        %v4961 = vpack.c.b16 %v4845, %v4844
        %v4962 = vpack.c.b16 %v4847, %v4846
        %v4963 = vpack.c.b16 %v4849, %v4848
        %v4964 = vpack.c.b16 %v4851, %v4850
        %v4965 = vpack.c.b16 %v4853, %v4852
        %v4966 = vpack.c.b16 %v4855, %v4854
        %v4967 = vpack.c.b16 %v4857, %v4856
        %v4968 = vpack.c.b16 %v4859, %v4858
        %v4969 = vpack.c.b16 %v4861, %v4860
        %v4970 = vpack.c.b16 %v4863, %v4862
        %v4971 = vpack.c.b16 %v4865, %v4864
        %v4972 = vpack.c.b16 %v4867, %v4866
        %v4973 = vpack.c.b16 %v4869, %v4868
        %v4974 = vpack.c.b16 %v4871, %v4870
        %v4975 = vpack.c.b16 %v4873, %v4872
        %v4976 = vpack.c.b16 %v4875, %v4874
        %v4977 = vpack.c.b16 %v4877, %v4876
        %v4978 = vpack.c.b16 %v4879, %v4878
        %v4979 = vpack.c.b16 %v4881, %v4880
        %v4980 = vpack.c.b16 %v4883, %v4882
        %v4981 = vpack.c.b16 %v4885, %v4884
        %v4982 = vpack.c.b16 %v4887, %v4886
        %v4983 = vpack.c.b16 %v4889, %v4888
        %v4984 = vpack.c.b16 %v4891, %v4890
        %v4985 = vpack.c.b16 %v4893, %v4892
        %v4986 = vpack.c.b16 %v4895, %v4894
        %v4987 = vpack.c.b16 %v4897, %v4896
        %v4988 = vpack.c.b16 %v4899, %v4898
        %v4989 = vpack.c.b16 %v4901, %v4900
        %v4990 = vpack.c.b16 %v4903, %v4902
        %v4991 = vpack.c.b16 %v4905, %v4904
        %v4992 = vpack.c.b16 %v4907, %v4906
        %v4993 = vpack.c.b16 %v4909, %v4908
        %v4994 = vpack.c.b16 %v4911, %v4910
        %v4995 = vpack.c.b16 %v4913, %v4912
        %v4996 = vpack.c.b16 %v4915, %v4914
        %v4997 = vpack.c.b16 %v4917, %v4916
        %v4998 = vpack.c.b16 %v4919, %v4918
        %v4999 = vpack.c.b16 %v4921, %v4920
        %v5000 = vpack.c.b16 %v4923, %v4922
        %v5001 = vpack.c.b16 %v4925, %v4924
        %v5002 = vpack.c.b16 %v4927, %v4926
        %v5003 = vpack.c.b16 %v4929, %v4928
        %v5004 = vpack.c.b16 %v4931, %v4930
        %v5005 = vpack.c.b16 %v4933, %v4932
        %v5006 = vpack.c.b16 %v4935, %v4934
        %v5007 = vpack.c.b16 %v4937, %v4936
        %v5008 = vpack.c.b16 %v4939, %v4938
        %v5009 = vpack.c.b16 %v4941, %v4940
        %v5010 = vpack.c.b16 %v4943, %v4942
        %v5011 = vpack.c.b16 %v4945, %v4944
        %v5012 = vpack.c.b16 %v4947, %v4946
        %v5013 = vpack.c.b16 %v4949, %v4948
        %v5015 = vsel %vm3949, %v4950, 0
        %v5018 = vsel %vm3949, %v4951, 0
        %v5021 = vsel %vm3949, %v4952, 0
        %v5024 = vsel %vm3949, %v4953, 0
        %v5027 = vsel %vm3949, %v4954, 0
        %v5030 = vsel %vm3949, %v4955, 0
        %v5033 = vsel %vm3949, %v4956, 0
        %v5036 = vsel %vm3949, %v4957, 0
        %v5039 = vsel %vm3949, %v4958, 0
        %v5042 = vsel %vm3949, %v4959, 0
        %v5045 = vsel %vm3949, %v4960, 0
        %v5048 = vsel %vm3949, %v4961, 0
        %v5051 = vsel %vm3949, %v4962, 0
        %v5054 = vsel %vm3949, %v4963, 0
        %v5057 = vsel %vm3949, %v4964, 0
        %v5060 = vsel %vm3949, %v4965, 0
        %v5063 = vsel %vm3949, %v4966, 0
        %v5066 = vsel %vm3949, %v4967, 0
        %v5069 = vsel %vm3949, %v4968, 0
        %v5072 = vsel %vm3949, %v4969, 0
        %v5075 = vsel %vm3949, %v4970, 0
        %v5078 = vsel %vm3949, %v4971, 0
        %v5081 = vsel %vm3949, %v4972, 0
        %v5084 = vsel %vm3949, %v4973, 0
        %v5087 = vsel %vm3949, %v4974, 0
        %v5090 = vsel %vm3949, %v4975, 0
        %v5093 = vsel %vm3949, %v4976, 0
        %v5096 = vsel %vm3949, %v4977, 0
        %v5099 = vsel %vm3949, %v4978, 0
        %v5102 = vsel %vm3949, %v4979, 0
        %v5105 = vsel %vm3949, %v4980, 0
        %v5108 = vsel %vm3949, %v4981, 0
        %v5111 = vsel %vm3949, %v4982, 0
        %v5114 = vsel %vm3949, %v4983, 0
        %v5117 = vsel %vm3949, %v4984, 0
        %v5120 = vsel %vm3949, %v4985, 0
        %v5123 = vsel %vm3949, %v4986, 0
        %v5126 = vsel %vm3949, %v4987, 0
        %v5129 = vsel %vm3949, %v4988, 0
        %v5132 = vsel %vm3949, %v4989, 0
        %v5135 = vsel %vm3949, %v4990, 0
        %v5138 = vsel %vm3949, %v4991, 0
        %v5141 = vsel %vm3949, %v4992, 0
        %v5144 = vsel %vm3949, %v4993, 0
        %v5147 = vsel %vm3949, %v4994, 0
        %v5150 = vsel %vm3949, %v4995, 0
        %v5153 = vsel %vm3949, %v4996, 0
        %v5156 = vsel %vm3949, %v4997, 0
        %v5159 = vsel %vm3949, %v4998, 0
        %v5162 = vsel %vm3949, %v4999, 0
        %v5165 = vsel %vm3949, %v5000, 0
        %v5168 = vsel %vm3949, %v5001, 0
        %v5171 = vsel %vm3949, %v5002, 0
        %v5174 = vsel %vm3949, %v5003, 0
        %v5177 = vsel %vm3949, %v5004, 0
        %v5180 = vsel %vm3949, %v5005, 0
        %v5183 = vsel %vm3949, %v5006, 0
        %v5186 = vsel %vm3949, %v5007, 0
        %v5189 = vsel %vm3949, %v5008, 0
        %v5192 = vsel %vm3949, %v5009, 0
        %v5195 = vsel %vm3949, %v5010, 0
        %v5198 = vsel %vm3949, %v5011, 0
        %v5201 = vsel %vm3949, %v5012, 0
        %v5204 = vsel %vm3949, %v5013, 0
        %v5207 = vand.u32 %v2343, %v4145
        %5209 = vmatprep.subr.bf16.mxu0 0
        %5210 = vmatpush1.bf16.msra.mxu0 %v5207
        %5211 = vmatprep.subr.bf16.mxu0 0
        %5212 = vmatpush1.bf16.msra.mxu0 0
        %5213 = vmatprep.subr.bf16.mxu0 0
        %5214 = vmatpush1.bf16.msra.mxu0 0
        %5215 = vmatprep.subr.bf16.mxu0 0
        %5216 = vmatpush1.bf16.msra.mxu0 0
        %5217 = vmatprep.subr.bf16.mxu0 0
        %5218 = vmatpush1.bf16.msra.mxu0 0
        %5219 = vmatprep.subr.bf16.mxu0 0
        %5220 = vmatpush1.bf16.msra.mxu0 0
        %5221 = vmatprep.subr.bf16.mxu0 0
        %5222 = vmatpush1.bf16.msra.mxu0 0
        %5223 = vmatprep.subr.bf16.mxu0 0
        %5224 = vmatpush1.bf16.msra.mxu0 0
        %5225 = vmatprep.subr.bf16.mxu0 0
        %5226 = vmatpush1.bf16.msra.mxu0 0
        %5227 = vmatprep.subr.bf16.mxu0 0
        %5228 = vmatpush1.bf16.msra.mxu0 0
        %5229 = vmatprep.subr.bf16.mxu0 0
        %5230 = vmatpush1.bf16.msra.mxu0 0
        %5231 = vmatprep.subr.bf16.mxu0 0
        %5232 = vmatpush1.bf16.msra.mxu0 0
        %5233 = vmatprep.subr.bf16.mxu0 0
        %5234 = vmatpush1.bf16.msra.mxu0 0
        %5235 = vmatprep.subr.bf16.mxu0 0
        %5236 = vmatpush1.bf16.msra.mxu0 0
        %5237 = vmatprep.subr.bf16.mxu0 0
        %5238 = vmatpush1.bf16.msra.mxu0 0
        %5239 = vmatprep.subr.bf16.mxu0 0
        %5240 = vmatpush1.bf16.msra.mxu0 0
        %5241 = vmatprep.mubr.bf16.mxu0 0
        %5242 = vmatmul.mubr.bf16.gmra.mrb[0].mxu0 %v5015
        %v5243 = vpop.f32.mrb[0].mxu0
        %v5244 = vadd.f32 %v4184, %v5243
        %v5245 = vpop.f32.mrb[0].mxu0
        %v5246 = vpop.f32.mrb[0].mxu0
        %v5247 = vadd.f32 %v4187, %v5246
        %v5248 = vpop.f32.mrb[0].mxu0
        %5249 = vmatprep.mubr.bf16.mxu0 0
        %5250 = vmatmul.mubr.bf16.gmra.mrb[0].mxu0 %v5018
        %v5251 = vpop.f32.mrb[0].mxu0
        %v5252 = vadd.f32 %v4192, %v5251
        %v5253 = vpop.f32.mrb[0].mxu0
        %v5254 = vpop.f32.mrb[0].mxu0
        %v5255 = vadd.f32 %v4195, %v5254
        %v5256 = vpop.f32.mrb[0].mxu0
        %5257 = vmatprep.mubr.bf16.mxu0 0
        %5258 = vmatmul.mubr.bf16.gmra.mrb[0].mxu0 %v5021
        %v5259 = vpop.f32.mrb[0].mxu0
        %v5260 = vadd.f32 %v4200, %v5259
        %v5261 = vpop.f32.mrb[0].mxu0
        %v5262 = vpop.f32.mrb[0].mxu0
        %v5263 = vadd.f32 %v4203, %v5262
        %v5264 = vpop.f32.mrb[0].mxu0
        %5265 = vmatprep.mubr.bf16.mxu0 0
        %5266 = vmatmul.mubr.bf16.gmra.mrb[0].mxu0 %v5024
        %v5267 = vpop.f32.mrb[0].mxu0
        %v5268 = vadd.f32 %v4208, %v5267
        %v5269 = vpop.f32.mrb[0].mxu0
        %v5270 = vpop.f32.mrb[0].mxu0
        %v5271 = vadd.f32 %v4211, %v5270
        %v5272 = vpop.f32.mrb[0].mxu0
        %5273 = vmatprep.mubr.bf16.mxu0 0
        %5274 = vmatmul.mubr.bf16.gmra.mrb[0].mxu0 %v5027
        %v5275 = vpop.f32.mrb[0].mxu0
        %v5276 = vadd.f32 %v4216, %v5275
        %v5277 = vpop.f32.mrb[0].mxu0
        %v5278 = vpop.f32.mrb[0].mxu0
        %v5279 = vadd.f32 %v4219, %v5278
        %v5280 = vpop.f32.mrb[0].mxu0
        %5281 = vmatprep.mubr.bf16.mxu0 0
        %5282 = vmatmul.mubr.bf16.gmra.mrb[0].mxu0 %v5030
        %v5283 = vpop.f32.mrb[0].mxu0
        %v5284 = vadd.f32 %v4224, %v5283
        %v5285 = vpop.f32.mrb[0].mxu0
        %v5286 = vpop.f32.mrb[0].mxu0
        %v5287 = vadd.f32 %v4227, %v5286
        %v5288 = vpop.f32.mrb[0].mxu0
        %5289 = vmatprep.mubr.bf16.mxu0 0
        %5290 = vmatmul.mubr.bf16.gmra.mrb[0].mxu0 %v5033
        %v5291 = vpop.f32.mrb[0].mxu0
        %v5292 = vadd.f32 %v4232, %v5291
        %v5293 = vpop.f32.mrb[0].mxu0
        %v5294 = vpop.f32.mrb[0].mxu0
        %v5295 = vadd.f32 %v4235, %v5294
        %v5296 = vpop.f32.mrb[0].mxu0
        %5297 = vmatprep.mubr.bf16.mxu0 0
        %5298 = vmatmul.mubr.bf16.gmra.mrb[0].mxu0 %v5036
        %v5299 = vpop.f32.mrb[0].mxu0
        %v5300 = vadd.f32 %v4240, %v5299
        %v5301 = vpop.f32.mrb[0].mxu0
        %v5302 = vpop.f32.mrb[0].mxu0
        %v5303 = vadd.f32 %v4243, %v5302
        %v5304 = vpop.f32.mrb[0].mxu0
        %5305 = vmatprep.mubr.bf16.mxu0 0
        %5306 = vmatmul.mubr.bf16.gmra.mrb[0].mxu0 %v5039
        %v5307 = vpop.f32.mrb[0].mxu0
        %v5308 = vadd.f32 %v4248, %v5307
        %v5309 = vpop.f32.mrb[0].mxu0
        %v5310 = vpop.f32.mrb[0].mxu0
        %v5311 = vadd.f32 %v4251, %v5310
        %v5312 = vpop.f32.mrb[0].mxu0
        %5313 = vmatprep.mubr.bf16.mxu0 0
        %5314 = vmatmul.mubr.bf16.gmra.mrb[0].mxu0 %v5042
        %v5315 = vpop.f32.mrb[0].mxu0
        %v5316 = vadd.f32 %v4256, %v5315
        %v5317 = vpop.f32.mrb[0].mxu0
        %v5318 = vpop.f32.mrb[0].mxu0
        %v5319 = vadd.f32 %v4259, %v5318
        %v5320 = vpop.f32.mrb[0].mxu0
        %5321 = vmatprep.mubr.bf16.mxu0 0
        %5322 = vmatmul.mubr.bf16.gmra.mrb[0].mxu0 %v5045
        %v5323 = vpop.f32.mrb[0].mxu0
        %v5324 = vadd.f32 %v4264, %v5323
        %v5325 = vpop.f32.mrb[0].mxu0
        %v5326 = vpop.f32.mrb[0].mxu0
        %v5327 = vadd.f32 %v4267, %v5326
        %v5328 = vpop.f32.mrb[0].mxu0
        %5329 = vmatprep.mubr.bf16.mxu0 0
        %5330 = vmatmul.mubr.bf16.gmra.mrb[0].mxu0 %v5048
        %v5331 = vpop.f32.mrb[0].mxu0
        %v5332 = vadd.f32 %v4272, %v5331
        %v5333 = vpop.f32.mrb[0].mxu0
        %v5334 = vpop.f32.mrb[0].mxu0
        %v5335 = vadd.f32 %v4275, %v5334
        %v5336 = vpop.f32.mrb[0].mxu0
        %5337 = vmatprep.mubr.bf16.mxu0 0
        %5338 = vmatmul.mubr.bf16.gmra.mrb[0].mxu0 %v5051
        %v5339 = vpop.f32.mrb[0].mxu0
        %v5340 = vadd.f32 %v4280, %v5339
        %v5341 = vpop.f32.mrb[0].mxu0
        %v5342 = vpop.f32.mrb[0].mxu0
        %v5343 = vadd.f32 %v4283, %v5342
        %v5344 = vpop.f32.mrb[0].mxu0
        %5345 = vmatprep.mubr.bf16.mxu0 0
        %5346 = vmatmul.mubr.bf16.gmra.mrb[0].mxu0 %v5054
        %v5347 = vpop.f32.mrb[0].mxu0
        %v5348 = vadd.f32 %v4288, %v5347
        %v5349 = vpop.f32.mrb[0].mxu0
        %v5350 = vpop.f32.mrb[0].mxu0
        %v5351 = vadd.f32 %v4291, %v5350
        %v5352 = vpop.f32.mrb[0].mxu0
        %5353 = vmatprep.mubr.bf16.mxu0 0
        %5354 = vmatmul.mubr.bf16.gmra.mrb[0].mxu0 %v5057
        %v5355 = vpop.f32.mrb[0].mxu0
        %v5356 = vadd.f32 %v4296, %v5355
        %v5357 = vpop.f32.mrb[0].mxu0
        %v5358 = vpop.f32.mrb[0].mxu0
        %v5359 = vadd.f32 %v4299, %v5358
        %v5360 = vpop.f32.mrb[0].mxu0
        %5361 = vmatprep.mubr.bf16.mxu0 0
        %5362 = vmatmul.mubr.bf16.gmra.mrb[0].mxu0 %v5060
        %v5363 = vpop.f32.mrb[0].mxu0
        %v5364 = vadd.f32 %v4304, %v5363
        %v5365 = vpop.f32.mrb[0].mxu0
        %v5366 = vpop.f32.mrb[0].mxu0
        %v5367 = vadd.f32 %v4307, %v5366
        %v5368 = vpop.f32.mrb[0].mxu0
        %5369 = vmatprep.mubr.bf16.mxu0 0
        %5370 = vmatmul.mubr.bf16.gmra.mrb[0].mxu0 %v5063
        %v5371 = vpop.f32.mrb[0].mxu0
        %v5372 = vadd.f32 %v4312, %v5371
        %v5373 = vpop.f32.mrb[0].mxu0
        %v5374 = vpop.f32.mrb[0].mxu0
        %v5375 = vadd.f32 %v4315, %v5374
        %v5376 = vpop.f32.mrb[0].mxu0
        %5377 = vmatprep.mubr.bf16.mxu0 0
        %5378 = vmatmul.mubr.bf16.gmra.mrb[0].mxu0 %v5066
        %v5379 = vpop.f32.mrb[0].mxu0
        %v5380 = vadd.f32 %v4320, %v5379
        %v5381 = vpop.f32.mrb[0].mxu0
        %v5382 = vpop.f32.mrb[0].mxu0
        %v5383 = vadd.f32 %v4323, %v5382
        %v5384 = vpop.f32.mrb[0].mxu0
        %5385 = vmatprep.mubr.bf16.mxu0 0
        %5386 = vmatmul.mubr.bf16.gmra.mrb[0].mxu0 %v5069
        %v5387 = vpop.f32.mrb[0].mxu0
        %v5388 = vadd.f32 %v4328, %v5387
        %v5389 = vpop.f32.mrb[0].mxu0
        %v5390 = vpop.f32.mrb[0].mxu0
        %v5391 = vadd.f32 %v4331, %v5390
        %v5392 = vpop.f32.mrb[0].mxu0
        %5393 = vmatprep.mubr.bf16.mxu0 0
        %5394 = vmatmul.mubr.bf16.gmra.mrb[0].mxu0 %v5072
        %v5395 = vpop.f32.mrb[0].mxu0
        %v5396 = vadd.f32 %v4336, %v5395
        %v5397 = vpop.f32.mrb[0].mxu0
        %v5398 = vpop.f32.mrb[0].mxu0
        %v5399 = vadd.f32 %v4339, %v5398
        %v5400 = vpop.f32.mrb[0].mxu0
        %5401 = vmatprep.mubr.bf16.mxu0 0
        %5402 = vmatmul.mubr.bf16.gmra.mrb[0].mxu0 %v5075
        %v5403 = vpop.f32.mrb[0].mxu0
        %v5404 = vadd.f32 %v4344, %v5403
        %v5405 = vpop.f32.mrb[0].mxu0
        %v5406 = vpop.f32.mrb[0].mxu0
        %v5407 = vadd.f32 %v4347, %v5406
        %v5408 = vpop.f32.mrb[0].mxu0
        %5409 = vmatprep.mubr.bf16.mxu0 0
        %5410 = vmatmul.mubr.bf16.gmra.mrb[0].mxu0 %v5078
        %v5411 = vpop.f32.mrb[0].mxu0
        %v5412 = vadd.f32 %v4352, %v5411
        %v5413 = vpop.f32.mrb[0].mxu0
        %v5414 = vpop.f32.mrb[0].mxu0
        %v5415 = vadd.f32 %v4355, %v5414
        %v5416 = vpop.f32.mrb[0].mxu0
        %5417 = vmatprep.mubr.bf16.mxu0 0
        %5418 = vmatmul.mubr.bf16.gmra.mrb[0].mxu0 %v5081
        %v5419 = vpop.f32.mrb[0].mxu0
        %v5420 = vadd.f32 %v4360, %v5419
        %v5421 = vpop.f32.mrb[0].mxu0
        %v5422 = vpop.f32.mrb[0].mxu0
        %v5423 = vadd.f32 %v4363, %v5422
        %v5424 = vpop.f32.mrb[0].mxu0
        %5425 = vmatprep.mubr.bf16.mxu0 0
        %5426 = vmatmul.mubr.bf16.gmra.mrb[0].mxu0 %v5084
        %v5427 = vpop.f32.mrb[0].mxu0
        %v5428 = vadd.f32 %v4368, %v5427
        %v5429 = vpop.f32.mrb[0].mxu0
        %v5430 = vpop.f32.mrb[0].mxu0
        %v5431 = vadd.f32 %v4371, %v5430
        %v5432 = vpop.f32.mrb[0].mxu0
        %5433 = vmatprep.mubr.bf16.mxu0 0
        %5434 = vmatmul.mubr.bf16.gmra.mrb[0].mxu0 %v5087
        %v5435 = vpop.f32.mrb[0].mxu0
        %v5436 = vadd.f32 %v4376, %v5435
        %v5437 = vpop.f32.mrb[0].mxu0
        %v5438 = vpop.f32.mrb[0].mxu0
        %v5439 = vadd.f32 %v4379, %v5438
        %v5440 = vpop.f32.mrb[0].mxu0
        %5441 = vmatprep.mubr.bf16.mxu0 0
        %5442 = vmatmul.mubr.bf16.gmra.mrb[0].mxu0 %v5090
        %v5443 = vpop.f32.mrb[0].mxu0
        %v5444 = vadd.f32 %v4384, %v5443
        %v5445 = vpop.f32.mrb[0].mxu0
        %v5446 = vpop.f32.mrb[0].mxu0
        %v5447 = vadd.f32 %v4387, %v5446
        %v5448 = vpop.f32.mrb[0].mxu0
        %5449 = vmatprep.mubr.bf16.mxu0 0
        %5450 = vmatmul.mubr.bf16.gmra.mrb[0].mxu0 %v5093
        %v5451 = vpop.f32.mrb[0].mxu0
        %v5452 = vadd.f32 %v4392, %v5451
        %v5453 = vpop.f32.mrb[0].mxu0
        %v5454 = vpop.f32.mrb[0].mxu0
        %v5455 = vadd.f32 %v4395, %v5454
        %v5456 = vpop.f32.mrb[0].mxu0
        %5457 = vmatprep.mubr.bf16.mxu0 0
        %5458 = vmatmul.mubr.bf16.gmra.mrb[0].mxu0 %v5096
        %v5459 = vpop.f32.mrb[0].mxu0
        %v5460 = vadd.f32 %v4400, %v5459
        %v5461 = vpop.f32.mrb[0].mxu0
        %v5462 = vpop.f32.mrb[0].mxu0
        %v5463 = vadd.f32 %v4403, %v5462
        %v5464 = vpop.f32.mrb[0].mxu0
        %5465 = vmatprep.mubr.bf16.mxu0 0
        %5466 = vmatmul.mubr.bf16.gmra.mrb[0].mxu0 %v5099
        %v5467 = vpop.f32.mrb[0].mxu0
        %v5468 = vadd.f32 %v4408, %v5467
        %v5469 = vpop.f32.mrb[0].mxu0
        %v5470 = vpop.f32.mrb[0].mxu0
        %v5471 = vadd.f32 %v4411, %v5470
        %v5472 = vpop.f32.mrb[0].mxu0
        %5473 = vmatprep.mubr.bf16.mxu0 0
        %5474 = vmatmul.mubr.bf16.gmra.mrb[0].mxu0 %v5102
        %v5475 = vpop.f32.mrb[0].mxu0
        %v5476 = vadd.f32 %v4416, %v5475
        %v5477 = vpop.f32.mrb[0].mxu0
        %v5478 = vpop.f32.mrb[0].mxu0
        %v5479 = vadd.f32 %v4419, %v5478
        %v5480 = vpop.f32.mrb[0].mxu0
        %5481 = vmatprep.mubr.bf16.mxu0 0
        %5482 = vmatmul.mubr.bf16.gmra.mrb[0].mxu0 %v5105
        %v5483 = vpop.f32.mrb[0].mxu0
        %v5484 = vadd.f32 %v4424, %v5483
        %v5485 = vpop.f32.mrb[0].mxu0
        %v5486 = vpop.f32.mrb[0].mxu0
        %v5487 = vadd.f32 %v4427, %v5486
        %v5488 = vpop.f32.mrb[0].mxu0
        %5489 = vmatprep.mubr.bf16.mxu0 0
        %5490 = vmatmul.mubr.bf16.gmra.mrb[0].mxu0 %v5108
        %v5491 = vpop.f32.mrb[0].mxu0
        %v5492 = vadd.f32 %v4432, %v5491
        %v5493 = vpop.f32.mrb[0].mxu0
        %v5494 = vpop.f32.mrb[0].mxu0
        %v5495 = vadd.f32 %v4435, %v5494
        %v5496 = vpop.f32.mrb[0].mxu0
        %5497 = vmatprep.mubr.bf16.mxu0 0
        %5498 = vmatmul.mubr.bf16.gmra.mrb[0].mxu0 %v5111
        %v5499 = vpop.f32.mrb[0].mxu0
        %v5500 = vadd.f32 %v4440, %v5499
        %v5501 = vpop.f32.mrb[0].mxu0
        %v5502 = vpop.f32.mrb[0].mxu0
        %v5503 = vadd.f32 %v4443, %v5502
        %v5504 = vpop.f32.mrb[0].mxu0
        %5505 = vmatprep.mubr.bf16.mxu0 0
        %5506 = vmatmul.mubr.bf16.gmra.mrb[0].mxu0 %v5114
        %v5507 = vpop.f32.mrb[0].mxu0
        %v5508 = vadd.f32 %v4448, %v5507
        %v5509 = vpop.f32.mrb[0].mxu0
        %v5510 = vpop.f32.mrb[0].mxu0
        %v5511 = vadd.f32 %v4451, %v5510
        %v5512 = vpop.f32.mrb[0].mxu0
        %5513 = vmatprep.mubr.bf16.mxu0 0
        %5514 = vmatmul.mubr.bf16.gmra.mrb[0].mxu0 %v5117
        %v5515 = vpop.f32.mrb[0].mxu0
        %v5516 = vadd.f32 %v4456, %v5515
        %v5517 = vpop.f32.mrb[0].mxu0
        %v5518 = vpop.f32.mrb[0].mxu0
        %v5519 = vadd.f32 %v4459, %v5518
        %v5520 = vpop.f32.mrb[0].mxu0
        %5521 = vmatprep.mubr.bf16.mxu0 0
        %5522 = vmatmul.mubr.bf16.gmra.mrb[0].mxu0 %v5120
        %v5523 = vpop.f32.mrb[0].mxu0
        %v5524 = vadd.f32 %v4464, %v5523
        %v5525 = vpop.f32.mrb[0].mxu0
        %v5526 = vpop.f32.mrb[0].mxu0
        %v5527 = vadd.f32 %v4467, %v5526
        %v5528 = vpop.f32.mrb[0].mxu0
        %5529 = vmatprep.mubr.bf16.mxu0 0
        %5530 = vmatmul.mubr.bf16.gmra.mrb[0].mxu0 %v5123
        %v5531 = vpop.f32.mrb[0].mxu0
        %v5532 = vadd.f32 %v4472, %v5531
        %v5533 = vpop.f32.mrb[0].mxu0
        %v5534 = vpop.f32.mrb[0].mxu0
        %v5535 = vadd.f32 %v4475, %v5534
        %v5536 = vpop.f32.mrb[0].mxu0
        %5537 = vmatprep.mubr.bf16.mxu0 0
        %5538 = vmatmul.mubr.bf16.gmra.mrb[0].mxu0 %v5126
        %v5539 = vpop.f32.mrb[0].mxu0
        %v5540 = vadd.f32 %v4480, %v5539
        %v5541 = vpop.f32.mrb[0].mxu0
        %v5542 = vpop.f32.mrb[0].mxu0
        %v5543 = vadd.f32 %v4483, %v5542
        %v5544 = vpop.f32.mrb[0].mxu0
        %5545 = vmatprep.mubr.bf16.mxu0 0
        %5546 = vmatmul.mubr.bf16.gmra.mrb[0].mxu0 %v5129
        %v5547 = vpop.f32.mrb[0].mxu0
        %v5548 = vadd.f32 %v4488, %v5547
        %v5549 = vpop.f32.mrb[0].mxu0
        %v5550 = vpop.f32.mrb[0].mxu0
        %v5551 = vadd.f32 %v4491, %v5550
        %v5552 = vpop.f32.mrb[0].mxu0
        %5553 = vmatprep.mubr.bf16.mxu0 0
        %5554 = vmatmul.mubr.bf16.gmra.mrb[0].mxu0 %v5132
        %v5555 = vpop.f32.mrb[0].mxu0
        %v5556 = vadd.f32 %v4496, %v5555
        %v5557 = vpop.f32.mrb[0].mxu0
        %v5558 = vpop.f32.mrb[0].mxu0
        %v5559 = vadd.f32 %v4499, %v5558
        %v5560 = vpop.f32.mrb[0].mxu0
        %5561 = vmatprep.mubr.bf16.mxu0 0
        %5562 = vmatmul.mubr.bf16.gmra.mrb[0].mxu0 %v5135
        %v5563 = vpop.f32.mrb[0].mxu0
        %v5564 = vadd.f32 %v4504, %v5563
        %v5565 = vpop.f32.mrb[0].mxu0
        %v5566 = vpop.f32.mrb[0].mxu0
        %v5567 = vadd.f32 %v4507, %v5566
        %v5568 = vpop.f32.mrb[0].mxu0
        %5569 = vmatprep.mubr.bf16.mxu0 0
        %5570 = vmatmul.mubr.bf16.gmra.mrb[0].mxu0 %v5138
        %v5571 = vpop.f32.mrb[0].mxu0
        %v5572 = vadd.f32 %v4512, %v5571
        %v5573 = vpop.f32.mrb[0].mxu0
        %v5574 = vpop.f32.mrb[0].mxu0
        %v5575 = vadd.f32 %v4515, %v5574
        %v5576 = vpop.f32.mrb[0].mxu0
        %5577 = vmatprep.mubr.bf16.mxu0 0
        %5578 = vmatmul.mubr.bf16.gmra.mrb[0].mxu0 %v5141
        %v5579 = vpop.f32.mrb[0].mxu0
        %v5580 = vadd.f32 %v4520, %v5579
        %v5581 = vpop.f32.mrb[0].mxu0
        %v5582 = vpop.f32.mrb[0].mxu0
        %v5583 = vadd.f32 %v4523, %v5582
        %v5584 = vpop.f32.mrb[0].mxu0
        %5585 = vmatprep.mubr.bf16.mxu0 0
        %5586 = vmatmul.mubr.bf16.gmra.mrb[0].mxu0 %v5144
        %v5587 = vpop.f32.mrb[0].mxu0
        %v5588 = vadd.f32 %v4528, %v5587
        %v5589 = vpop.f32.mrb[0].mxu0
        %v5590 = vpop.f32.mrb[0].mxu0
        %v5591 = vadd.f32 %v4531, %v5590
        %v5592 = vpop.f32.mrb[0].mxu0
        %5593 = vmatprep.mubr.bf16.mxu0 0
        %5594 = vmatmul.mubr.bf16.gmra.mrb[0].mxu0 %v5147
        %v5595 = vpop.f32.mrb[0].mxu0
        %v5596 = vadd.f32 %v4536, %v5595
        %v5597 = vpop.f32.mrb[0].mxu0
        %v5598 = vpop.f32.mrb[0].mxu0
        %v5599 = vadd.f32 %v4539, %v5598
        %v5600 = vpop.f32.mrb[0].mxu0
        %5601 = vmatprep.mubr.bf16.mxu0 0
        %5602 = vmatmul.mubr.bf16.gmra.mrb[0].mxu0 %v5150
        %v5603 = vpop.f32.mrb[0].mxu0
        %v5604 = vadd.f32 %v4544, %v5603
        %v5605 = vpop.f32.mrb[0].mxu0
        %v5606 = vpop.f32.mrb[0].mxu0
        %v5607 = vadd.f32 %v4547, %v5606
        %v5608 = vpop.f32.mrb[0].mxu0
        %5609 = vmatprep.mubr.bf16.mxu0 0
        %5610 = vmatmul.mubr.bf16.gmra.mrb[0].mxu0 %v5153
        %v5611 = vpop.f32.mrb[0].mxu0
        %v5612 = vadd.f32 %v4552, %v5611
        %v5613 = vpop.f32.mrb[0].mxu0
        %v5614 = vpop.f32.mrb[0].mxu0
        %v5615 = vadd.f32 %v4555, %v5614
        %v5616 = vpop.f32.mrb[0].mxu0
        %5617 = vmatprep.mubr.bf16.mxu0 0
        %5618 = vmatmul.mubr.bf16.gmra.mrb[0].mxu0 %v5156
        %v5619 = vpop.f32.mrb[0].mxu0
        %v5620 = vadd.f32 %v4560, %v5619
        %v5621 = vpop.f32.mrb[0].mxu0
        %v5622 = vpop.f32.mrb[0].mxu0
        %v5623 = vadd.f32 %v4563, %v5622
        %v5624 = vpop.f32.mrb[0].mxu0
        %5625 = vmatprep.mubr.bf16.mxu0 0
        %5626 = vmatmul.mubr.bf16.gmra.mrb[0].mxu0 %v5159
        %v5627 = vpop.f32.mrb[0].mxu0
        %v5628 = vadd.f32 %v4568, %v5627
        %v5629 = vpop.f32.mrb[0].mxu0
        %v5630 = vpop.f32.mrb[0].mxu0
        %v5631 = vadd.f32 %v4571, %v5630
        %v5632 = vpop.f32.mrb[0].mxu0
        %5633 = vmatprep.mubr.bf16.mxu0 0
        %5634 = vmatmul.mubr.bf16.gmra.mrb[0].mxu0 %v5162
        %v5635 = vpop.f32.mrb[0].mxu0
        %v5636 = vadd.f32 %v4576, %v5635
        %v5637 = vpop.f32.mrb[0].mxu0
        %v5638 = vpop.f32.mrb[0].mxu0
        %v5639 = vadd.f32 %v4579, %v5638
        %v5640 = vpop.f32.mrb[0].mxu0
        %5641 = vmatprep.mubr.bf16.mxu0 0
        %5642 = vmatmul.mubr.bf16.gmra.mrb[0].mxu0 %v5165
        %v5643 = vpop.f32.mrb[0].mxu0
        %v5644 = vadd.f32 %v4584, %v5643
        %v5645 = vpop.f32.mrb[0].mxu0
        %v5646 = vpop.f32.mrb[0].mxu0
        %v5647 = vadd.f32 %v4587, %v5646
        %v5648 = vpop.f32.mrb[0].mxu0
        %5649 = vmatprep.mubr.bf16.mxu0 0
        %5650 = vmatmul.mubr.bf16.gmra.mrb[0].mxu0 %v5168
        %v5651 = vpop.f32.mrb[0].mxu0
        %v5652 = vadd.f32 %v4592, %v5651
        %v5653 = vpop.f32.mrb[0].mxu0
        %v5654 = vpop.f32.mrb[0].mxu0
        %v5655 = vadd.f32 %v4595, %v5654
        %v5656 = vpop.f32.mrb[0].mxu0
        %5657 = vmatprep.mubr.bf16.mxu0 0
        %5658 = vmatmul.mubr.bf16.gmra.mrb[0].mxu0 %v5171
        %v5659 = vpop.f32.mrb[0].mxu0
        %v5660 = vadd.f32 %v4600, %v5659
        %v5661 = vpop.f32.mrb[0].mxu0
        %v5662 = vpop.f32.mrb[0].mxu0
        %v5663 = vadd.f32 %v4603, %v5662
        %v5664 = vpop.f32.mrb[0].mxu0
        %5665 = vmatprep.mubr.bf16.mxu0 0
        %5666 = vmatmul.mubr.bf16.gmra.mrb[0].mxu0 %v5174
        %v5667 = vpop.f32.mrb[0].mxu0
        %v5668 = vadd.f32 %v4608, %v5667
        %v5669 = vpop.f32.mrb[0].mxu0
        %v5670 = vpop.f32.mrb[0].mxu0
        %v5671 = vadd.f32 %v4611, %v5670
        %v5672 = vpop.f32.mrb[0].mxu0
        %5673 = vmatprep.mubr.bf16.mxu0 0
        %5674 = vmatmul.mubr.bf16.gmra.mrb[0].mxu0 %v5177
        %v5675 = vpop.f32.mrb[0].mxu0
        %v5676 = vadd.f32 %v4616, %v5675
        %v5677 = vpop.f32.mrb[0].mxu0
        %v5678 = vpop.f32.mrb[0].mxu0
        %v5679 = vadd.f32 %v4619, %v5678
        %v5680 = vpop.f32.mrb[0].mxu0
        %5681 = vmatprep.mubr.bf16.mxu0 0
        %5682 = vmatmul.mubr.bf16.gmra.mrb[0].mxu0 %v5180
        %v5683 = vpop.f32.mrb[0].mxu0
        %v5684 = vadd.f32 %v4624, %v5683
        %v5685 = vpop.f32.mrb[0].mxu0
        %v5686 = vpop.f32.mrb[0].mxu0
        %v5687 = vadd.f32 %v4627, %v5686
        %v5688 = vpop.f32.mrb[0].mxu0
        %5689 = vmatprep.mubr.bf16.mxu0 0
        %5690 = vmatmul.mubr.bf16.gmra.mrb[0].mxu0 %v5183
        %v5691 = vpop.f32.mrb[0].mxu0
        %v5692 = vadd.f32 %v4632, %v5691
        %v5693 = vpop.f32.mrb[0].mxu0
        %v5694 = vpop.f32.mrb[0].mxu0
        %v5695 = vadd.f32 %v4635, %v5694
        %v5696 = vpop.f32.mrb[0].mxu0
        %5697 = vmatprep.mubr.bf16.mxu0 0
        %5698 = vmatmul.mubr.bf16.gmra.mrb[0].mxu0 %v5186
        %v5699 = vpop.f32.mrb[0].mxu0
        %v5700 = vadd.f32 %v4640, %v5699
        %v5701 = vpop.f32.mrb[0].mxu0
        %v5702 = vpop.f32.mrb[0].mxu0
        %v5703 = vadd.f32 %v4643, %v5702
        %v5704 = vpop.f32.mrb[0].mxu0
        %5705 = vmatprep.mubr.bf16.mxu0 0
        %5706 = vmatmul.mubr.bf16.gmra.mrb[0].mxu0 %v5189
        %v5707 = vpop.f32.mrb[0].mxu0
        %v5708 = vadd.f32 %v4648, %v5707
        %v5709 = vpop.f32.mrb[0].mxu0
        %v5710 = vpop.f32.mrb[0].mxu0
        %v5711 = vadd.f32 %v4651, %v5710
        %v5712 = vpop.f32.mrb[0].mxu0
        %5713 = vmatprep.mubr.bf16.mxu0 0
        %5714 = vmatmul.mubr.bf16.gmra.mrb[0].mxu0 %v5192
        %v5715 = vpop.f32.mrb[0].mxu0
        %v5716 = vadd.f32 %v4656, %v5715
        %v5717 = vpop.f32.mrb[0].mxu0
        %v5718 = vpop.f32.mrb[0].mxu0
        %v5719 = vadd.f32 %v4659, %v5718
        %v5720 = vpop.f32.mrb[0].mxu0
        %5721 = vmatprep.mubr.bf16.mxu0 0
        %5722 = vmatmul.mubr.bf16.gmra.mrb[0].mxu0 %v5195
        %v5723 = vpop.f32.mrb[0].mxu0
        %v5724 = vadd.f32 %v4664, %v5723
        %v5725 = vpop.f32.mrb[0].mxu0
        %v5726 = vpop.f32.mrb[0].mxu0
        %v5727 = vadd.f32 %v4667, %v5726
        %v5728 = vpop.f32.mrb[0].mxu0
        %5729 = vmatprep.mubr.bf16.mxu0 0
        %5730 = vmatmul.mubr.bf16.gmra.mrb[0].mxu0 %v5198
        %v5731 = vpop.f32.mrb[0].mxu0
        %v5732 = vadd.f32 %v4672, %v5731
        %v5733 = vpop.f32.mrb[0].mxu0
        %v5734 = vpop.f32.mrb[0].mxu0
        %v5735 = vadd.f32 %v4675, %v5734
        %v5736 = vpop.f32.mrb[0].mxu0
        %5737 = vmatprep.mubr.bf16.mxu0 0
        %5738 = vmatmul.mubr.bf16.gmra.mrb[0].mxu0 %v5201
        %v5739 = vpop.f32.mrb[0].mxu0
        %v5740 = vadd.f32 %v4680, %v5739
        %v5741 = vpop.f32.mrb[0].mxu0
        %v5742 = vpop.f32.mrb[0].mxu0
        %v5743 = vadd.f32 %v4683, %v5742
        %v5744 = vpop.f32.mrb[0].mxu0
        %5745 = vmatprep.mubr.bf16.mxu0 0
        %5746 = vmatmul.mubr.bf16.gmra.mrb[0].mxu0 %v5204
        %v5747 = vpop.f32.mrb[0].mxu0
        %v5748 = vadd.f32 %v4688, %v5747
        %v5749 = vpop.f32.mrb[0].mxu0
        %v5750 = vpop.f32.mrb[0].mxu0
        %v5751 = vadd.f32 %v4691, %v5750
        %v5752 = vpop.f32.mrb[0].mxu0
        %5753 = vdwg.mxu0
        %vm5818 = vcmask 1042432
        %vm5819 = vcmask 1046532
        %vm5820 = vmor %vm5818, %vm5819
        %v5821 = vrot.slane %v2309, 5
        %v5822 = vrot.slane %v5821, 4
        %v5823 = vrot.slane %v2140, 5
        %v5824 = vsel %vm5820, %v5822, %v5823
        %v5825 = vrot.slane %v5823, 4
        %v5826 = vrot.slane %v2141, 5
        %v5827 = vsel %vm5820, %v5825, %v5826
        %v5828 = vrot.slane %v5826, 4
        %v5829 = vrot.slane %v2142, 5
        %v5830 = vsel %vm5820, %v5828, %v5829
        %v5831 = vrot.slane %v5829, 4
        %v5832 = vrot.slane %v2275, 5
        %v5833 = vsel %vm5820, %v5831, %v5832
        %v5834 = vrot.slane %v2310, 5
        %v5835 = vrot.slane %v5834, 4
        %v5836 = vrot.slane %v2144, 5
        %v5837 = vsel %vm5820, %v5835, %v5836
        %v5838 = vrot.slane %v5836, 4
        %v5839 = vrot.slane %v2145, 5
        %v5840 = vsel %vm5820, %v5838, %v5839
        %v5841 = vrot.slane %v5839, 4
        %v5842 = vrot.slane %v2146, 5
        %v5843 = vsel %vm5820, %v5841, %v5842
        %v5844 = vrot.slane %v5842, 4
        %v5845 = vrot.slane %v2276, 5
        %v5846 = vsel %vm5820, %v5844, %v5845
        %v5847 = vrot.slane %v2311, 5
        %v5848 = vrot.slane %v5847, 4
        %v5849 = vrot.slane %v2148, 5
        %v5850 = vsel %vm5820, %v5848, %v5849
        %v5851 = vrot.slane %v5849, 4
        %v5852 = vrot.slane %v2149, 5
        %v5853 = vsel %vm5820, %v5851, %v5852
        %v5854 = vrot.slane %v5852, 4
        %v5855 = vrot.slane %v2150, 5
        %v5856 = vsel %vm5820, %v5854, %v5855
        %v5857 = vrot.slane %v5855, 4
        %v5858 = vrot.slane %v2277, 5
        %v5859 = vsel %vm5820, %v5857, %v5858
        %v5860 = vrot.slane %v2312, 5
        %v5861 = vrot.slane %v5860, 4
        %v5862 = vrot.slane %v2152, 5
        %v5863 = vsel %vm5820, %v5861, %v5862
        %v5864 = vrot.slane %v5862, 4
        %v5865 = vrot.slane %v2153, 5
        %v5866 = vsel %vm5820, %v5864, %v5865
        %v5867 = vrot.slane %v5865, 4
        %v5868 = vrot.slane %v2154, 5
        %v5869 = vsel %vm5820, %v5867, %v5868
        %v5870 = vrot.slane %v5868, 4
        %v5871 = vrot.slane %v2278, 5
        %v5872 = vsel %vm5820, %v5870, %v5871
        %v5873 = vrot.slane %v2313, 5
        %v5874 = vrot.slane %v5873, 4
        %v5875 = vrot.slane %v2156, 5
        %v5876 = vsel %vm5820, %v5874, %v5875
        %v5877 = vrot.slane %v5875, 4
        %v5878 = vrot.slane %v2157, 5
        %v5879 = vsel %vm5820, %v5877, %v5878
        %v5880 = vrot.slane %v5878, 4
        %v5881 = vrot.slane %v2158, 5
        %v5882 = vsel %vm5820, %v5880, %v5881
        %v5883 = vrot.slane %v5881, 4
        %v5884 = vrot.slane %v2279, 5
        %v5885 = vsel %vm5820, %v5883, %v5884
        %v5886 = vrot.slane %v2314, 5
        %v5887 = vrot.slane %v5886, 4
        %v5888 = vrot.slane %v2160, 5
        %v5889 = vsel %vm5820, %v5887, %v5888
        %v5890 = vrot.slane %v5888, 4
        %v5891 = vrot.slane %v2161, 5
        %v5892 = vsel %vm5820, %v5890, %v5891
        %v5893 = vrot.slane %v5891, 4
        %v5894 = vrot.slane %v2162, 5
        %v5895 = vsel %vm5820, %v5893, %v5894
        %v5896 = vrot.slane %v5894, 4
        %v5897 = vrot.slane %v2280, 5
        %v5898 = vsel %vm5820, %v5896, %v5897
        %v5899 = vrot.slane %v2315, 5
        %v5900 = vrot.slane %v5899, 4
        %v5901 = vrot.slane %v2164, 5
        %v5902 = vsel %vm5820, %v5900, %v5901
        %v5903 = vrot.slane %v5901, 4
        %v5904 = vrot.slane %v2165, 5
        %v5905 = vsel %vm5820, %v5903, %v5904
        %v5906 = vrot.slane %v5904, 4
        %v5907 = vrot.slane %v2166, 5
        %v5908 = vsel %vm5820, %v5906, %v5907
        %v5909 = vrot.slane %v5907, 4
        %v5910 = vrot.slane %v2281, 5
        %v5911 = vsel %vm5820, %v5909, %v5910
        %v5912 = vrot.slane %v2316, 5
        %v5913 = vrot.slane %v5912, 4
        %v5914 = vrot.slane %v2168, 5
        %v5915 = vsel %vm5820, %v5913, %v5914
        %v5916 = vrot.slane %v5914, 4
        %v5917 = vrot.slane %v2169, 5
        %v5918 = vsel %vm5820, %v5916, %v5917
        %v5919 = vrot.slane %v5917, 4
        %v5920 = vrot.slane %v2170, 5
        %v5921 = vsel %vm5820, %v5919, %v5920
        %v5922 = vrot.slane %v5920, 4
        %v5923 = vrot.slane %v2282, 5
        %v5924 = vsel %vm5820, %v5922, %v5923
        %v5925 = vrot.slane %v2317, 5
        %v5926 = vrot.slane %v5925, 4
        %v5927 = vrot.slane %v2172, 5
        %v5928 = vsel %vm5820, %v5926, %v5927
        %v5929 = vrot.slane %v5927, 4
        %v5930 = vrot.slane %v2173, 5
        %v5931 = vsel %vm5820, %v5929, %v5930
        %v5932 = vrot.slane %v5930, 4
        %v5933 = vrot.slane %v2174, 5
        %v5934 = vsel %vm5820, %v5932, %v5933
        %v5935 = vrot.slane %v5933, 4
        %v5936 = vrot.slane %v2283, 5
        %v5937 = vsel %vm5820, %v5935, %v5936
        %v5938 = vrot.slane %v2318, 5
        %v5939 = vrot.slane %v5938, 4
        %v5940 = vrot.slane %v2176, 5
        %v5941 = vsel %vm5820, %v5939, %v5940
        %v5942 = vrot.slane %v5940, 4
        %v5943 = vrot.slane %v2177, 5
        %v5944 = vsel %vm5820, %v5942, %v5943
        %v5945 = vrot.slane %v5943, 4
        %v5946 = vrot.slane %v2178, 5
        %v5947 = vsel %vm5820, %v5945, %v5946
        %v5948 = vrot.slane %v5946, 4
        %v5949 = vrot.slane %v2284, 5
        %v5950 = vsel %vm5820, %v5948, %v5949
        %v5951 = vrot.slane %v2319, 5
        %v5952 = vrot.slane %v5951, 4
        %v5953 = vrot.slane %v2180, 5
        %v5954 = vsel %vm5820, %v5952, %v5953
        %v5955 = vrot.slane %v5953, 4
        %v5956 = vrot.slane %v2181, 5
        %v5957 = vsel %vm5820, %v5955, %v5956
        %v5958 = vrot.slane %v5956, 4
        %v5959 = vrot.slane %v2182, 5
        %v5960 = vsel %vm5820, %v5958, %v5959
        %v5961 = vrot.slane %v5959, 4
        %v5962 = vrot.slane %v2285, 5
        %v5963 = vsel %vm5820, %v5961, %v5962
        %v5964 = vrot.slane %v2320, 5
        %v5965 = vrot.slane %v5964, 4
        %v5966 = vrot.slane %v2184, 5
        %v5967 = vsel %vm5820, %v5965, %v5966
        %v5968 = vrot.slane %v5966, 4
        %v5969 = vrot.slane %v2185, 5
        %v5970 = vsel %vm5820, %v5968, %v5969
        %v5971 = vrot.slane %v5969, 4
        %v5972 = vrot.slane %v2186, 5
        %v5973 = vsel %vm5820, %v5971, %v5972
        %v5974 = vrot.slane %v5972, 4
        %v5975 = vrot.slane %v2286, 5
        %v5976 = vsel %vm5820, %v5974, %v5975
        %v5977 = vrot.slane %v2321, 5
        %v5978 = vrot.slane %v5977, 4
        %v5979 = vrot.slane %v2188, 5
        %v5980 = vsel %vm5820, %v5978, %v5979
        %v5981 = vrot.slane %v5979, 4
        %v5982 = vrot.slane %v2189, 5
        %v5983 = vsel %vm5820, %v5981, %v5982
        %v5984 = vrot.slane %v5982, 4
        %v5985 = vrot.slane %v2190, 5
        %v5986 = vsel %vm5820, %v5984, %v5985
        %v5987 = vrot.slane %v5985, 4
        %v5988 = vrot.slane %v2287, 5
        %v5989 = vsel %vm5820, %v5987, %v5988
        %v5990 = vrot.slane %v2322, 5
        %v5991 = vrot.slane %v5990, 4
        %v5992 = vrot.slane %v2192, 5
        %v5993 = vsel %vm5820, %v5991, %v5992
        %v5994 = vrot.slane %v5992, 4
        %v5995 = vrot.slane %v2193, 5
        %v5996 = vsel %vm5820, %v5994, %v5995
        %v5997 = vrot.slane %v5995, 4
        %v5998 = vrot.slane %v2194, 5
        %v5999 = vsel %vm5820, %v5997, %v5998
        %v6000 = vrot.slane %v5998, 4
        %v6001 = vrot.slane %v2288, 5
        %v6002 = vsel %vm5820, %v6000, %v6001
        %v6003 = vrot.slane %v2323, 5
        %v6004 = vrot.slane %v6003, 4
        %v6005 = vrot.slane %v2196, 5
        %v6006 = vsel %vm5820, %v6004, %v6005
        %v6007 = vrot.slane %v6005, 4
        %v6008 = vrot.slane %v2197, 5
        %v6009 = vsel %vm5820, %v6007, %v6008
        %v6010 = vrot.slane %v6008, 4
        %v6011 = vrot.slane %v2198, 5
        %v6012 = vsel %vm5820, %v6010, %v6011
        %v6013 = vrot.slane %v6011, 4
        %v6014 = vrot.slane %v2289, 5
        %v6015 = vsel %vm5820, %v6013, %v6014
        %v6016 = vrot.slane %v2324, 5
        %v6017 = vrot.slane %v6016, 4
        %v6018 = vrot.slane %v2200, 5
        %v6019 = vsel %vm5820, %v6017, %v6018
        %v6020 = vrot.slane %v6018, 4
        %v6021 = vrot.slane %v2201, 5
        %v6022 = vsel %vm5820, %v6020, %v6021
        %v6023 = vrot.slane %v6021, 4
        %v6024 = vrot.slane %v2202, 5
        %v6025 = vsel %vm5820, %v6023, %v6024
        %v6026 = vrot.slane %v6024, 4
        %v6027 = vrot.slane %v2290, 5
        %v6028 = vsel %vm5820, %v6026, %v6027
        %v6029 = vrot.slane %v2325, 5
        %v6030 = vrot.slane %v6029, 4
        %v6031 = vrot.slane %v2204, 5
        %v6032 = vsel %vm5820, %v6030, %v6031
        %v6033 = vrot.slane %v6031, 4
        %v6034 = vrot.slane %v2205, 5
        %v6035 = vsel %vm5820, %v6033, %v6034
        %v6036 = vrot.slane %v6034, 4
        %v6037 = vrot.slane %v2206, 5
        %v6038 = vsel %vm5820, %v6036, %v6037
        %v6039 = vrot.slane %v6037, 4
        %v6040 = vrot.slane %v2291, 5
        %v6041 = vsel %vm5820, %v6039, %v6040
        %v6042 = vrot.slane %v2326, 5
        %v6043 = vrot.slane %v6042, 4
        %v6044 = vrot.slane %v2208, 5
        %v6045 = vsel %vm5820, %v6043, %v6044
        %v6046 = vrot.slane %v6044, 4
        %v6047 = vrot.slane %v2209, 5
        %v6048 = vsel %vm5820, %v6046, %v6047
        %v6049 = vrot.slane %v6047, 4
        %v6050 = vrot.slane %v2210, 5
        %v6051 = vsel %vm5820, %v6049, %v6050
        %v6052 = vrot.slane %v6050, 4
        %v6053 = vrot.slane %v2292, 5
        %v6054 = vsel %vm5820, %v6052, %v6053
        %v6055 = vrot.slane %v2327, 5
        %v6056 = vrot.slane %v6055, 4
        %v6057 = vrot.slane %v2212, 5
        %v6058 = vsel %vm5820, %v6056, %v6057
        %v6059 = vrot.slane %v6057, 4
        %v6060 = vrot.slane %v2213, 5
        %v6061 = vsel %vm5820, %v6059, %v6060
        %v6062 = vrot.slane %v6060, 4
        %v6063 = vrot.slane %v2214, 5
        %v6064 = vsel %vm5820, %v6062, %v6063
        %v6065 = vrot.slane %v6063, 4
        %v6066 = vrot.slane %v2293, 5
        %v6067 = vsel %vm5820, %v6065, %v6066
        %v6068 = vrot.slane %v2328, 5
        %v6069 = vrot.slane %v6068, 4
        %v6070 = vrot.slane %v2216, 5
        %v6071 = vsel %vm5820, %v6069, %v6070
        %v6072 = vrot.slane %v6070, 4
        %v6073 = vrot.slane %v2217, 5
        %v6074 = vsel %vm5820, %v6072, %v6073
        %v6075 = vrot.slane %v6073, 4
        %v6076 = vrot.slane %v2218, 5
        %v6077 = vsel %vm5820, %v6075, %v6076
        %v6078 = vrot.slane %v6076, 4
        %v6079 = vrot.slane %v2294, 5
        %v6080 = vsel %vm5820, %v6078, %v6079
        %v6081 = vrot.slane %v2329, 5
        %v6082 = vrot.slane %v6081, 4
        %v6083 = vrot.slane %v2220, 5
        %v6084 = vsel %vm5820, %v6082, %v6083
        %v6085 = vrot.slane %v6083, 4
        %v6086 = vrot.slane %v2221, 5
        %v6087 = vsel %vm5820, %v6085, %v6086
        %v6088 = vrot.slane %v6086, 4
        %v6089 = vrot.slane %v2222, 5
        %v6090 = vsel %vm5820, %v6088, %v6089
        %v6091 = vrot.slane %v6089, 4
        %v6092 = vrot.slane %v2295, 5
        %v6093 = vsel %vm5820, %v6091, %v6092
        %v6094 = vrot.slane %v2330, 5
        %v6095 = vrot.slane %v6094, 4
        %v6096 = vrot.slane %v2224, 5
        %v6097 = vsel %vm5820, %v6095, %v6096
        %v6098 = vrot.slane %v6096, 4
        %v6099 = vrot.slane %v2225, 5
        %v6100 = vsel %vm5820, %v6098, %v6099
        %v6101 = vrot.slane %v6099, 4
        %v6102 = vrot.slane %v2226, 5
        %v6103 = vsel %vm5820, %v6101, %v6102
        %v6104 = vrot.slane %v6102, 4
        %v6105 = vrot.slane %v2296, 5
        %v6106 = vsel %vm5820, %v6104, %v6105
        %v6107 = vrot.slane %v2331, 5
        %v6108 = vrot.slane %v6107, 4
        %v6109 = vrot.slane %v2228, 5
        %v6110 = vsel %vm5820, %v6108, %v6109
        %v6111 = vrot.slane %v6109, 4
        %v6112 = vrot.slane %v2229, 5
        %v6113 = vsel %vm5820, %v6111, %v6112
        %v6114 = vrot.slane %v6112, 4
        %v6115 = vrot.slane %v2230, 5
        %v6116 = vsel %vm5820, %v6114, %v6115
        %v6117 = vrot.slane %v6115, 4
        %v6118 = vrot.slane %v2297, 5
        %v6119 = vsel %vm5820, %v6117, %v6118
        %v6120 = vrot.slane %v2332, 5
        %v6121 = vrot.slane %v6120, 4
        %v6122 = vrot.slane %v2232, 5
        %v6123 = vsel %vm5820, %v6121, %v6122
        %v6124 = vrot.slane %v6122, 4
        %v6125 = vrot.slane %v2233, 5
        %v6126 = vsel %vm5820, %v6124, %v6125
        %v6127 = vrot.slane %v6125, 4
        %v6128 = vrot.slane %v2234, 5
        %v6129 = vsel %vm5820, %v6127, %v6128
        %v6130 = vrot.slane %v6128, 4
        %v6131 = vrot.slane %v2298, 5
        %v6132 = vsel %vm5820, %v6130, %v6131
        %v6133 = vrot.slane %v2333, 5
        %v6134 = vrot.slane %v6133, 4
        %v6135 = vrot.slane %v2236, 5
        %v6136 = vsel %vm5820, %v6134, %v6135
        %v6137 = vrot.slane %v6135, 4
        %v6138 = vrot.slane %v2237, 5
        %v6139 = vsel %vm5820, %v6137, %v6138
        %v6140 = vrot.slane %v6138, 4
        %v6141 = vrot.slane %v2238, 5
        %v6142 = vsel %vm5820, %v6140, %v6141
        %v6143 = vrot.slane %v6141, 4
        %v6144 = vrot.slane %v2299, 5
        %v6145 = vsel %vm5820, %v6143, %v6144
        %v6146 = vrot.slane %v2334, 5
        %v6147 = vrot.slane %v6146, 4
        %v6148 = vrot.slane %v2240, 5
        %v6149 = vsel %vm5820, %v6147, %v6148
        %v6150 = vrot.slane %v6148, 4
        %v6151 = vrot.slane %v2241, 5
        %v6152 = vsel %vm5820, %v6150, %v6151
        %v6153 = vrot.slane %v6151, 4
        %v6154 = vrot.slane %v2242, 5
        %v6155 = vsel %vm5820, %v6153, %v6154
        %v6156 = vrot.slane %v6154, 4
        %v6157 = vrot.slane %v2300, 5
        %v6158 = vsel %vm5820, %v6156, %v6157
        %v6159 = vrot.slane %v2335, 5
        %v6160 = vrot.slane %v6159, 4
        %v6161 = vrot.slane %v2244, 5
        %v6162 = vsel %vm5820, %v6160, %v6161
        %v6163 = vrot.slane %v6161, 4
        %v6164 = vrot.slane %v2245, 5
        %v6165 = vsel %vm5820, %v6163, %v6164
        %v6166 = vrot.slane %v6164, 4
        %v6167 = vrot.slane %v2246, 5
        %v6168 = vsel %vm5820, %v6166, %v6167
        %v6169 = vrot.slane %v6167, 4
        %v6170 = vrot.slane %v2301, 5
        %v6171 = vsel %vm5820, %v6169, %v6170
        %v6172 = vrot.slane %v2336, 5
        %v6173 = vrot.slane %v6172, 4
        %v6174 = vrot.slane %v2248, 5
        %v6175 = vsel %vm5820, %v6173, %v6174
        %v6176 = vrot.slane %v6174, 4
        %v6177 = vrot.slane %v2249, 5
        %v6178 = vsel %vm5820, %v6176, %v6177
        %v6179 = vrot.slane %v6177, 4
        %v6180 = vrot.slane %v2250, 5
        %v6181 = vsel %vm5820, %v6179, %v6180
        %v6182 = vrot.slane %v6180, 4
        %v6183 = vrot.slane %v2302, 5
        %v6184 = vsel %vm5820, %v6182, %v6183
        %v6185 = vrot.slane %v2337, 5
        %v6186 = vrot.slane %v6185, 4
        %v6187 = vrot.slane %v2252, 5
        %v6188 = vsel %vm5820, %v6186, %v6187
        %v6189 = vrot.slane %v6187, 4
        %v6190 = vrot.slane %v2253, 5
        %v6191 = vsel %vm5820, %v6189, %v6190
        %v6192 = vrot.slane %v6190, 4
        %v6193 = vrot.slane %v2254, 5
        %v6194 = vsel %vm5820, %v6192, %v6193
        %v6195 = vrot.slane %v6193, 4
        %v6196 = vrot.slane %v2303, 5
        %v6197 = vsel %vm5820, %v6195, %v6196
        %v6198 = vrot.slane %v2338, 5
        %v6199 = vrot.slane %v6198, 4
        %v6200 = vrot.slane %v2256, 5
        %v6201 = vsel %vm5820, %v6199, %v6200
        %v6202 = vrot.slane %v6200, 4
        %v6203 = vrot.slane %v2257, 5
        %v6204 = vsel %vm5820, %v6202, %v6203
        %v6205 = vrot.slane %v6203, 4
        %v6206 = vrot.slane %v2258, 5
        %v6207 = vsel %vm5820, %v6205, %v6206
        %v6208 = vrot.slane %v6206, 4
        %v6209 = vrot.slane %v2304, 5
        %v6210 = vsel %vm5820, %v6208, %v6209
        %v6211 = vrot.slane %v2339, 5
        %v6212 = vrot.slane %v6211, 4
        %v6213 = vrot.slane %v2260, 5
        %v6214 = vsel %vm5820, %v6212, %v6213
        %v6215 = vrot.slane %v6213, 4
        %v6216 = vrot.slane %v2261, 5
        %v6217 = vsel %vm5820, %v6215, %v6216
        %v6218 = vrot.slane %v6216, 4
        %v6219 = vrot.slane %v2262, 5
        %v6220 = vsel %vm5820, %v6218, %v6219
        %v6221 = vrot.slane %v6219, 4
        %v6222 = vrot.slane %v2305, 5
        %v6223 = vsel %vm5820, %v6221, %v6222
        %v6224 = vrot.slane %v2340, 5
        %v6225 = vrot.slane %v6224, 4
        %v6226 = vrot.slane %v2264, 5
        %v6227 = vsel %vm5820, %v6225, %v6226
        %v6228 = vrot.slane %v6226, 4
        %v6229 = vrot.slane %v2265, 5
        %v6230 = vsel %vm5820, %v6228, %v6229
        %v6231 = vrot.slane %v6229, 4
        %v6232 = vrot.slane %v2266, 5
        %v6233 = vsel %vm5820, %v6231, %v6232
        %v6234 = vrot.slane %v6232, 4
        %v6235 = vrot.slane %v2306, 5
        %v6236 = vsel %vm5820, %v6234, %v6235
        %s6237 = scalar_lea.vmem %s210, 4
        %v6238 = vld [vmem:[%s6237] sm:$0x3]
        %v6239 = vunpack.c.l.b16 %v5824
        %v6240 = vunpack.c.l.b16 %v5827
        %v6241 = vunpack.c.l.b16 %v5830
        %v6242 = vunpack.c.l.b16 %v5833
        %v6243 = vunpack.c.l.b16 %v5837
        %v6244 = vunpack.c.l.b16 %v5840
        %v6245 = vunpack.c.l.b16 %v5843
        %v6246 = vunpack.c.l.b16 %v5846
        %v6247 = vunpack.c.l.b16 %v5850
        %v6248 = vunpack.c.l.b16 %v5853
        %v6249 = vunpack.c.l.b16 %v5856
        %v6250 = vunpack.c.l.b16 %v5859
        %v6251 = vunpack.c.l.b16 %v5863
        %v6252 = vunpack.c.l.b16 %v5866
        %v6253 = vunpack.c.l.b16 %v5869
        %v6254 = vunpack.c.l.b16 %v5872
        %v6255 = vunpack.c.l.b16 %v5876
        %v6256 = vunpack.c.l.b16 %v5879
        %v6257 = vunpack.c.l.b16 %v5882
        %v6258 = vunpack.c.l.b16 %v5885
        %v6259 = vunpack.c.l.b16 %v5889
        %v6260 = vunpack.c.l.b16 %v5892
        %v6261 = vunpack.c.l.b16 %v5895
        %v6262 = vunpack.c.l.b16 %v5898
        %v6263 = vunpack.c.l.b16 %v5902
        %v6264 = vunpack.c.l.b16 %v5905
        %v6265 = vunpack.c.l.b16 %v5908
        %v6266 = vunpack.c.l.b16 %v5911
        %v6267 = vunpack.c.l.b16 %v5915
        %v6268 = vunpack.c.l.b16 %v5918
        %v6269 = vunpack.c.l.b16 %v5921
        %v6270 = vunpack.c.l.b16 %v5924
        %v6271 = vunpack.c.l.b16 %v5928
        %v6272 = vunpack.c.l.b16 %v5931
        %v6273 = vunpack.c.l.b16 %v5934
        %v6274 = vunpack.c.l.b16 %v5937
        %v6275 = vunpack.c.l.b16 %v5941
        %v6276 = vunpack.c.l.b16 %v5944
        %v6277 = vunpack.c.l.b16 %v5947
        %v6278 = vunpack.c.l.b16 %v5950
        %v6279 = vunpack.c.l.b16 %v5954
        %v6280 = vunpack.c.l.b16 %v5957
        %v6281 = vunpack.c.l.b16 %v5960
        %v6282 = vunpack.c.l.b16 %v5963
        %v6283 = vunpack.c.l.b16 %v5967
        %v6284 = vunpack.c.l.b16 %v5970
        %v6285 = vunpack.c.l.b16 %v5973
        %v6286 = vunpack.c.l.b16 %v5976
        %v6287 = vunpack.c.l.b16 %v5980
        %v6288 = vunpack.c.l.b16 %v5983
        %v6289 = vunpack.c.l.b16 %v5986
        %v6290 = vunpack.c.l.b16 %v5989
        %v6291 = vunpack.c.l.b16 %v5993
        %v6292 = vunpack.c.l.b16 %v5996
        %v6293 = vunpack.c.l.b16 %v5999
        %v6294 = vunpack.c.l.b16 %v6002
        %v6295 = vunpack.c.l.b16 %v6006
        %v6296 = vunpack.c.l.b16 %v6009
        %v6297 = vunpack.c.l.b16 %v6012
        %v6298 = vunpack.c.l.b16 %v6015
        %v6299 = vunpack.c.l.b16 %v6019
        %v6300 = vunpack.c.l.b16 %v6022
        %v6301 = vunpack.c.l.b16 %v6025
        %v6302 = vunpack.c.l.b16 %v6028
        %v6303 = vunpack.c.l.b16 %v6032
        %v6304 = vunpack.c.l.b16 %v6035
        %v6305 = vunpack.c.l.b16 %v6038
        %v6306 = vunpack.c.l.b16 %v6041
        %v6307 = vunpack.c.l.b16 %v6045
        %v6308 = vunpack.c.l.b16 %v6048
        %v6309 = vunpack.c.l.b16 %v6051
        %v6310 = vunpack.c.l.b16 %v6054
        %v6311 = vunpack.c.l.b16 %v6058
        %v6312 = vunpack.c.l.b16 %v6061
        %v6313 = vunpack.c.l.b16 %v6064
        %v6314 = vunpack.c.l.b16 %v6067
        %v6315 = vunpack.c.l.b16 %v6071
        %v6316 = vunpack.c.l.b16 %v6074
        %v6317 = vunpack.c.l.b16 %v6077
        %v6318 = vunpack.c.l.b16 %v6080
        %v6319 = vunpack.c.l.b16 %v6084
        %v6320 = vunpack.c.l.b16 %v6087
        %v6321 = vunpack.c.l.b16 %v6090
        %v6322 = vunpack.c.l.b16 %v6093
        %v6323 = vunpack.c.l.b16 %v6097
        %v6324 = vunpack.c.l.b16 %v6100
        %v6325 = vunpack.c.l.b16 %v6103
        %v6326 = vunpack.c.l.b16 %v6106
        %v6327 = vunpack.c.l.b16 %v6110
        %v6328 = vunpack.c.l.b16 %v6113
        %v6329 = vunpack.c.l.b16 %v6116
        %v6330 = vunpack.c.l.b16 %v6119
        %v6331 = vunpack.c.l.b16 %v6123
        %v6332 = vunpack.c.l.b16 %v6126
        %v6333 = vunpack.c.l.b16 %v6129
        %v6334 = vunpack.c.l.b16 %v6132
        %v6335 = vunpack.c.l.b16 %v6136
        %v6336 = vunpack.c.l.b16 %v6139
        %v6337 = vunpack.c.l.b16 %v6142
        %v6338 = vunpack.c.l.b16 %v6145
        %v6339 = vunpack.c.l.b16 %v6149
        %v6340 = vunpack.c.l.b16 %v6152
        %v6341 = vunpack.c.l.b16 %v6155
        %v6342 = vunpack.c.l.b16 %v6158
        %v6343 = vunpack.c.l.b16 %v6162
        %v6344 = vunpack.c.l.b16 %v6165
        %v6345 = vunpack.c.l.b16 %v6168
        %v6346 = vunpack.c.l.b16 %v6171
        %v6347 = vunpack.c.l.b16 %v6175
        %v6348 = vunpack.c.l.b16 %v6178
        %v6349 = vunpack.c.l.b16 %v6181
        %v6350 = vunpack.c.l.b16 %v6184
        %v6351 = vunpack.c.l.b16 %v6188
        %v6352 = vunpack.c.l.b16 %v6191
        %v6353 = vunpack.c.l.b16 %v6194
        %v6354 = vunpack.c.l.b16 %v6197
        %v6355 = vunpack.c.l.b16 %v6201
        %v6356 = vunpack.c.l.b16 %v6204
        %v6357 = vunpack.c.l.b16 %v6207
        %v6358 = vunpack.c.l.b16 %v6210
        %v6359 = vunpack.c.l.b16 %v6214
        %v6360 = vunpack.c.l.b16 %v6217
        %v6361 = vunpack.c.l.b16 %v6220
        %v6362 = vunpack.c.l.b16 %v6223
        %v6363 = vunpack.c.l.b16 %v6227
        %v6364 = vunpack.c.l.b16 %v6230
        %v6365 = vunpack.c.l.b16 %v6233
        %v6366 = vunpack.c.l.b16 %v6236
        %v6367 = vpack.c.b16 %v6240, %v6239
        %v6368 = vpack.c.b16 %v6242, %v6241
        %v6369 = vpack.c.b16 %v6244, %v6243
        %v6370 = vpack.c.b16 %v6246, %v6245
        %v6371 = vpack.c.b16 %v6248, %v6247
        %v6372 = vpack.c.b16 %v6250, %v6249
        %v6373 = vpack.c.b16 %v6252, %v6251
        %v6374 = vpack.c.b16 %v6254, %v6253
        %v6375 = vpack.c.b16 %v6256, %v6255
        %v6376 = vpack.c.b16 %v6258, %v6257
        %v6377 = vpack.c.b16 %v6260, %v6259
        %v6378 = vpack.c.b16 %v6262, %v6261
        %v6379 = vpack.c.b16 %v6264, %v6263
        %v6380 = vpack.c.b16 %v6266, %v6265
        %v6381 = vpack.c.b16 %v6268, %v6267
        %v6382 = vpack.c.b16 %v6270, %v6269
        %v6383 = vpack.c.b16 %v6272, %v6271
        %v6384 = vpack.c.b16 %v6274, %v6273
        %v6385 = vpack.c.b16 %v6276, %v6275
        %v6386 = vpack.c.b16 %v6278, %v6277
        %v6387 = vpack.c.b16 %v6280, %v6279
        %v6388 = vpack.c.b16 %v6282, %v6281
        %v6389 = vpack.c.b16 %v6284, %v6283
        %v6390 = vpack.c.b16 %v6286, %v6285
        %v6391 = vpack.c.b16 %v6288, %v6287
        %v6392 = vpack.c.b16 %v6290, %v6289
        %v6393 = vpack.c.b16 %v6292, %v6291
        %v6394 = vpack.c.b16 %v6294, %v6293
        %v6395 = vpack.c.b16 %v6296, %v6295
        %v6396 = vpack.c.b16 %v6298, %v6297
        %v6397 = vpack.c.b16 %v6300, %v6299
        %v6398 = vpack.c.b16 %v6302, %v6301
        %v6399 = vpack.c.b16 %v6304, %v6303
        %v6400 = vpack.c.b16 %v6306, %v6305
        %v6401 = vpack.c.b16 %v6308, %v6307
        %v6402 = vpack.c.b16 %v6310, %v6309
        %v6403 = vpack.c.b16 %v6312, %v6311
        %v6404 = vpack.c.b16 %v6314, %v6313
        %v6405 = vpack.c.b16 %v6316, %v6315
        %v6406 = vpack.c.b16 %v6318, %v6317
        %v6407 = vpack.c.b16 %v6320, %v6319
        %v6408 = vpack.c.b16 %v6322, %v6321
        %v6409 = vpack.c.b16 %v6324, %v6323
        %v6410 = vpack.c.b16 %v6326, %v6325
        %v6411 = vpack.c.b16 %v6328, %v6327
        %v6412 = vpack.c.b16 %v6330, %v6329
        %v6413 = vpack.c.b16 %v6332, %v6331
        %v6414 = vpack.c.b16 %v6334, %v6333
        %v6415 = vpack.c.b16 %v6336, %v6335
        %v6416 = vpack.c.b16 %v6338, %v6337
        %v6417 = vpack.c.b16 %v6340, %v6339
        %v6418 = vpack.c.b16 %v6342, %v6341
        %v6419 = vpack.c.b16 %v6344, %v6343
        %v6420 = vpack.c.b16 %v6346, %v6345
        %v6421 = vpack.c.b16 %v6348, %v6347
        %v6422 = vpack.c.b16 %v6350, %v6349
        %v6423 = vpack.c.b16 %v6352, %v6351
        %v6424 = vpack.c.b16 %v6354, %v6353
        %v6425 = vpack.c.b16 %v6356, %v6355
        %v6426 = vpack.c.b16 %v6358, %v6357
        %v6427 = vpack.c.b16 %v6360, %v6359
        %v6428 = vpack.c.b16 %v6362, %v6361
        %v6429 = vpack.c.b16 %v6364, %v6363
        %v6430 = vpack.c.b16 %v6366, %v6365
        %v6432 = vsel %vm3949, %v6367, 0
        %v6435 = vsel %vm3949, %v6368, 0
        %v6438 = vsel %vm3949, %v6369, 0
        %v6441 = vsel %vm3949, %v6370, 0
        %v6444 = vsel %vm3949, %v6371, 0
        %v6447 = vsel %vm3949, %v6372, 0
        %v6450 = vsel %vm3949, %v6373, 0
        %v6453 = vsel %vm3949, %v6374, 0
        %v6456 = vsel %vm3949, %v6375, 0
        %v6459 = vsel %vm3949, %v6376, 0
        %v6462 = vsel %vm3949, %v6377, 0
        %v6465 = vsel %vm3949, %v6378, 0
        %v6468 = vsel %vm3949, %v6379, 0
        %v6471 = vsel %vm3949, %v6380, 0
        %v6474 = vsel %vm3949, %v6381, 0
        %v6477 = vsel %vm3949, %v6382, 0
        %v6480 = vsel %vm3949, %v6383, 0
        %v6483 = vsel %vm3949, %v6384, 0
        %v6486 = vsel %vm3949, %v6385, 0
        %v6489 = vsel %vm3949, %v6386, 0
        %v6492 = vsel %vm3949, %v6387, 0
        %v6495 = vsel %vm3949, %v6388, 0
        %v6498 = vsel %vm3949, %v6389, 0
        %v6501 = vsel %vm3949, %v6390, 0
        %v6504 = vsel %vm3949, %v6391, 0
        %v6507 = vsel %vm3949, %v6392, 0
        %v6510 = vsel %vm3949, %v6393, 0
        %v6513 = vsel %vm3949, %v6394, 0
        %v6516 = vsel %vm3949, %v6395, 0
        %v6519 = vsel %vm3949, %v6396, 0
        %v6522 = vsel %vm3949, %v6397, 0
        %v6525 = vsel %vm3949, %v6398, 0
        %v6528 = vsel %vm3949, %v6399, 0
        %v6531 = vsel %vm3949, %v6400, 0
        %v6534 = vsel %vm3949, %v6401, 0
        %v6537 = vsel %vm3949, %v6402, 0
        %v6540 = vsel %vm3949, %v6403, 0
        %v6543 = vsel %vm3949, %v6404, 0
        %v6546 = vsel %vm3949, %v6405, 0
        %v6549 = vsel %vm3949, %v6406, 0
        %v6552 = vsel %vm3949, %v6407, 0
        %v6555 = vsel %vm3949, %v6408, 0
        %v6558 = vsel %vm3949, %v6409, 0
        %v6561 = vsel %vm3949, %v6410, 0
        %v6564 = vsel %vm3949, %v6411, 0
        %v6567 = vsel %vm3949, %v6412, 0
        %v6570 = vsel %vm3949, %v6413, 0
        %v6573 = vsel %vm3949, %v6414, 0
        %v6576 = vsel %vm3949, %v6415, 0
        %v6579 = vsel %vm3949, %v6416, 0
        %v6582 = vsel %vm3949, %v6417, 0
        %v6585 = vsel %vm3949, %v6418, 0
        %v6588 = vsel %vm3949, %v6419, 0
        %v6591 = vsel %vm3949, %v6420, 0
        %v6594 = vsel %vm3949, %v6421, 0
        %v6597 = vsel %vm3949, %v6422, 0
        %v6600 = vsel %vm3949, %v6423, 0
        %v6603 = vsel %vm3949, %v6424, 0
        %v6606 = vsel %vm3949, %v6425, 0
        %v6609 = vsel %vm3949, %v6426, 0
        %v6612 = vsel %vm3949, %v6427, 0
        %v6615 = vsel %vm3949, %v6428, 0
        %v6618 = vsel %vm3949, %v6429, 0
        %v6621 = vsel %vm3949, %v6430, 0
        %v6624 = vand.u32 %v6238, %v4145
        %6626 = vmatprep.subr.bf16.mxu0 0
        %6627 = vmatpush1.bf16.msra.mxu0 %v6624
        %6628 = vmatprep.subr.bf16.mxu0 0
        %6629 = vmatpush1.bf16.msra.mxu0 0
        %6630 = vmatprep.subr.bf16.mxu0 0
        %6631 = vmatpush1.bf16.msra.mxu0 0
        %6632 = vmatprep.subr.bf16.mxu0 0
        %6633 = vmatpush1.bf16.msra.mxu0 0
        %6634 = vmatprep.subr.bf16.mxu0 0
        %6635 = vmatpush1.bf16.msra.mxu0 0
        %6636 = vmatprep.subr.bf16.mxu0 0
        %6637 = vmatpush1.bf16.msra.mxu0 0
        %6638 = vmatprep.subr.bf16.mxu0 0
        %6639 = vmatpush1.bf16.msra.mxu0 0
        %6640 = vmatprep.subr.bf16.mxu0 0
        %6641 = vmatpush1.bf16.msra.mxu0 0
        %6642 = vmatprep.subr.bf16.mxu0 0
        %6643 = vmatpush1.bf16.msra.mxu0 0
        %6644 = vmatprep.subr.bf16.mxu0 0
        %6645 = vmatpush1.bf16.msra.mxu0 0
        %6646 = vmatprep.subr.bf16.mxu0 0
        %6647 = vmatpush1.bf16.msra.mxu0 0
        %6648 = vmatprep.subr.bf16.mxu0 0
        %6649 = vmatpush1.bf16.msra.mxu0 0
        %6650 = vmatprep.subr.bf16.mxu0 0
        %6651 = vmatpush1.bf16.msra.mxu0 0
        %6652 = vmatprep.subr.bf16.mxu0 0
        %6653 = vmatpush1.bf16.msra.mxu0 0
        %6654 = vmatprep.subr.bf16.mxu0 0
        %6655 = vmatpush1.bf16.msra.mxu0 0
        %6656 = vmatprep.subr.bf16.mxu0 0
        %6657 = vmatpush1.bf16.msra.mxu0 0
        %6658 = vmatprep.mubr.bf16.mxu0 0
        %6659 = vmatmul.mubr.bf16.gmra.mrb[0].mxu0 %v6432
        %v6660 = vpop.f32.mrb[0].mxu0
        %v6661 = vadd.f32 0.0, %v6660
        %v6662 = vpop.f32.mrb[0].mxu0
        %v6663 = vpop.f32.mrb[0].mxu0
        %v6664 = vadd.f32 0.0, %v6663
        %v6665 = vpop.f32.mrb[0].mxu0
        %6666 = vmatprep.mubr.bf16.mxu0 0
        %6667 = vmatmul.mubr.bf16.gmra.mrb[0].mxu0 %v6435
        %v6668 = vpop.f32.mrb[0].mxu0
        %v6669 = vadd.f32 0.0, %v6668
        %v6670 = vpop.f32.mrb[0].mxu0
        %v6671 = vpop.f32.mrb[0].mxu0
        %v6672 = vadd.f32 0.0, %v6671
        %v6673 = vpop.f32.mrb[0].mxu0
        %6674 = vmatprep.mubr.bf16.mxu0 0
        %6675 = vmatmul.mubr.bf16.gmra.mrb[0].mxu0 %v6438
        %v6676 = vpop.f32.mrb[0].mxu0
        %v6677 = vadd.f32 0.0, %v6676
        %v6678 = vpop.f32.mrb[0].mxu0
        %v6679 = vpop.f32.mrb[0].mxu0
        %v6680 = vadd.f32 0.0, %v6679
        %v6681 = vpop.f32.mrb[0].mxu0
        %6682 = vmatprep.mubr.bf16.mxu0 0
        %6683 = vmatmul.mubr.bf16.gmra.mrb[0].mxu0 %v6441
        %v6684 = vpop.f32.mrb[0].mxu0
        %v6685 = vadd.f32 0.0, %v6684
        %v6686 = vpop.f32.mrb[0].mxu0
        %v6687 = vpop.f32.mrb[0].mxu0
        %v6688 = vadd.f32 0.0, %v6687
        %v6689 = vpop.f32.mrb[0].mxu0
        %6690 = vmatprep.mubr.bf16.mxu0 0
        %6691 = vmatmul.mubr.bf16.gmra.mrb[0].mxu0 %v6444
        %v6692 = vpop.f32.mrb[0].mxu0
        %v6693 = vadd.f32 0.0, %v6692
        %v6694 = vpop.f32.mrb[0].mxu0
        %v6695 = vpop.f32.mrb[0].mxu0
        %v6696 = vadd.f32 0.0, %v6695
        %v6697 = vpop.f32.mrb[0].mxu0
        %6698 = vmatprep.mubr.bf16.mxu0 0
        %6699 = vmatmul.mubr.bf16.gmra.mrb[0].mxu0 %v6447
        %v6700 = vpop.f32.mrb[0].mxu0
        %v6701 = vadd.f32 0.0, %v6700
        %v6702 = vpop.f32.mrb[0].mxu0
        %v6703 = vpop.f32.mrb[0].mxu0
        %v6704 = vadd.f32 0.0, %v6703
        %v6705 = vpop.f32.mrb[0].mxu0
        %6706 = vmatprep.mubr.bf16.mxu0 0
        %6707 = vmatmul.mubr.bf16.gmra.mrb[0].mxu0 %v6450
        %v6708 = vpop.f32.mrb[0].mxu0
        %v6709 = vadd.f32 0.0, %v6708
        %v6710 = vpop.f32.mrb[0].mxu0
        %v6711 = vpop.f32.mrb[0].mxu0
        %v6712 = vadd.f32 0.0, %v6711
        %v6713 = vpop.f32.mrb[0].mxu0
        %6714 = vmatprep.mubr.bf16.mxu0 0
        %6715 = vmatmul.mubr.bf16.gmra.mrb[0].mxu0 %v6453
        %v6716 = vpop.f32.mrb[0].mxu0
        %v6717 = vadd.f32 0.0, %v6716
        %v6718 = vpop.f32.mrb[0].mxu0
        %v6719 = vpop.f32.mrb[0].mxu0
        %v6720 = vadd.f32 0.0, %v6719
        %v6721 = vpop.f32.mrb[0].mxu0
        %6722 = vmatprep.mubr.bf16.mxu0 0
        %6723 = vmatmul.mubr.bf16.gmra.mrb[0].mxu0 %v6456
        %v6724 = vpop.f32.mrb[0].mxu0
        %v6725 = vadd.f32 0.0, %v6724
        %v6726 = vpop.f32.mrb[0].mxu0
        %v6727 = vpop.f32.mrb[0].mxu0
        %v6728 = vadd.f32 0.0, %v6727
        %v6729 = vpop.f32.mrb[0].mxu0
        %6730 = vmatprep.mubr.bf16.mxu0 0
        %6731 = vmatmul.mubr.bf16.gmra.mrb[0].mxu0 %v6459
        %v6732 = vpop.f32.mrb[0].mxu0
        %v6733 = vadd.f32 0.0, %v6732
        %v6734 = vpop.f32.mrb[0].mxu0
        %v6735 = vpop.f32.mrb[0].mxu0
        %v6736 = vadd.f32 0.0, %v6735
        %v6737 = vpop.f32.mrb[0].mxu0
        %6738 = vmatprep.mubr.bf16.mxu0 0
        %6739 = vmatmul.mubr.bf16.gmra.mrb[0].mxu0 %v6462
        %v6740 = vpop.f32.mrb[0].mxu0
        %v6741 = vadd.f32 0.0, %v6740
        %v6742 = vpop.f32.mrb[0].mxu0
        %v6743 = vpop.f32.mrb[0].mxu0
        %v6744 = vadd.f32 0.0, %v6743
        %v6745 = vpop.f32.mrb[0].mxu0
        %6746 = vmatprep.mubr.bf16.mxu0 0
        %6747 = vmatmul.mubr.bf16.gmra.mrb[0].mxu0 %v6465
        %v6748 = vpop.f32.mrb[0].mxu0
        %v6749 = vadd.f32 0.0, %v6748
        %v6750 = vpop.f32.mrb[0].mxu0
        %v6751 = vpop.f32.mrb[0].mxu0
        %v6752 = vadd.f32 0.0, %v6751
        %v6753 = vpop.f32.mrb[0].mxu0
        %6754 = vmatprep.mubr.bf16.mxu0 0
        %6755 = vmatmul.mubr.bf16.gmra.mrb[0].mxu0 %v6468
        %v6756 = vpop.f32.mrb[0].mxu0
        %v6757 = vadd.f32 0.0, %v6756
        %v6758 = vpop.f32.mrb[0].mxu0
        %v6759 = vpop.f32.mrb[0].mxu0
        %v6760 = vadd.f32 0.0, %v6759
        %v6761 = vpop.f32.mrb[0].mxu0
        %6762 = vmatprep.mubr.bf16.mxu0 0
        %6763 = vmatmul.mubr.bf16.gmra.mrb[0].mxu0 %v6471
        %v6764 = vpop.f32.mrb[0].mxu0
        %v6765 = vadd.f32 0.0, %v6764
        %v6766 = vpop.f32.mrb[0].mxu0
        %v6767 = vpop.f32.mrb[0].mxu0
        %v6768 = vadd.f32 0.0, %v6767
        %v6769 = vpop.f32.mrb[0].mxu0
        %6770 = vmatprep.mubr.bf16.mxu0 0
        %6771 = vmatmul.mubr.bf16.gmra.mrb[0].mxu0 %v6474
        %v6772 = vpop.f32.mrb[0].mxu0
        %v6773 = vadd.f32 0.0, %v6772
        %v6774 = vpop.f32.mrb[0].mxu0
        %v6775 = vpop.f32.mrb[0].mxu0
        %v6776 = vadd.f32 0.0, %v6775
        %v6777 = vpop.f32.mrb[0].mxu0
        %6778 = vmatprep.mubr.bf16.mxu0 0
        %6779 = vmatmul.mubr.bf16.gmra.mrb[0].mxu0 %v6477
        %v6780 = vpop.f32.mrb[0].mxu0
        %v6781 = vadd.f32 0.0, %v6780
        %v6782 = vpop.f32.mrb[0].mxu0
        %v6783 = vpop.f32.mrb[0].mxu0
        %v6784 = vadd.f32 0.0, %v6783
        %v6785 = vpop.f32.mrb[0].mxu0
        %6786 = vmatprep.mubr.bf16.mxu0 0
        %6787 = vmatmul.mubr.bf16.gmra.mrb[0].mxu0 %v6480
        %v6788 = vpop.f32.mrb[0].mxu0
        %v6789 = vadd.f32 0.0, %v6788
        %v6790 = vpop.f32.mrb[0].mxu0
        %v6791 = vpop.f32.mrb[0].mxu0
        %v6792 = vadd.f32 0.0, %v6791
        %v6793 = vpop.f32.mrb[0].mxu0
        %6794 = vmatprep.mubr.bf16.mxu0 0
        %6795 = vmatmul.mubr.bf16.gmra.mrb[0].mxu0 %v6483
        %v6796 = vpop.f32.mrb[0].mxu0
        %v6797 = vadd.f32 0.0, %v6796
        %v6798 = vpop.f32.mrb[0].mxu0
        %v6799 = vpop.f32.mrb[0].mxu0
        %v6800 = vadd.f32 0.0, %v6799
        %v6801 = vpop.f32.mrb[0].mxu0
        %6802 = vmatprep.mubr.bf16.mxu0 0
        %6803 = vmatmul.mubr.bf16.gmra.mrb[0].mxu0 %v6486
        %v6804 = vpop.f32.mrb[0].mxu0
        %v6805 = vadd.f32 0.0, %v6804
        %v6806 = vpop.f32.mrb[0].mxu0
        %v6807 = vpop.f32.mrb[0].mxu0
        %v6808 = vadd.f32 0.0, %v6807
        %v6809 = vpop.f32.mrb[0].mxu0
        %6810 = vmatprep.mubr.bf16.mxu0 0
        %6811 = vmatmul.mubr.bf16.gmra.mrb[0].mxu0 %v6489
        %v6812 = vpop.f32.mrb[0].mxu0
        %v6813 = vadd.f32 0.0, %v6812
        %v6814 = vpop.f32.mrb[0].mxu0
        %v6815 = vpop.f32.mrb[0].mxu0
        %v6816 = vadd.f32 0.0, %v6815
        %v6817 = vpop.f32.mrb[0].mxu0
        %6818 = vmatprep.mubr.bf16.mxu0 0
        %6819 = vmatmul.mubr.bf16.gmra.mrb[0].mxu0 %v6492
        %v6820 = vpop.f32.mrb[0].mxu0
        %v6821 = vadd.f32 0.0, %v6820
        %v6822 = vpop.f32.mrb[0].mxu0
        %v6823 = vpop.f32.mrb[0].mxu0
        %v6824 = vadd.f32 0.0, %v6823
        %v6825 = vpop.f32.mrb[0].mxu0
        %6826 = vmatprep.mubr.bf16.mxu0 0
        %6827 = vmatmul.mubr.bf16.gmra.mrb[0].mxu0 %v6495
        %v6828 = vpop.f32.mrb[0].mxu0
        %v6829 = vadd.f32 0.0, %v6828
        %v6830 = vpop.f32.mrb[0].mxu0
        %v6831 = vpop.f32.mrb[0].mxu0
        %v6832 = vadd.f32 0.0, %v6831
        %v6833 = vpop.f32.mrb[0].mxu0
        %6834 = vmatprep.mubr.bf16.mxu0 0
        %6835 = vmatmul.mubr.bf16.gmra.mrb[0].mxu0 %v6498
        %v6836 = vpop.f32.mrb[0].mxu0
        %v6837 = vadd.f32 0.0, %v6836
        %v6838 = vpop.f32.mrb[0].mxu0
        %v6839 = vpop.f32.mrb[0].mxu0
        %v6840 = vadd.f32 0.0, %v6839
        %v6841 = vpop.f32.mrb[0].mxu0
        %6842 = vmatprep.mubr.bf16.mxu0 0
        %6843 = vmatmul.mubr.bf16.gmra.mrb[0].mxu0 %v6501
        %v6844 = vpop.f32.mrb[0].mxu0
        %v6845 = vadd.f32 0.0, %v6844
        %v6846 = vpop.f32.mrb[0].mxu0
        %v6847 = vpop.f32.mrb[0].mxu0
        %v6848 = vadd.f32 0.0, %v6847
        %v6849 = vpop.f32.mrb[0].mxu0
        %6850 = vmatprep.mubr.bf16.mxu0 0
        %6851 = vmatmul.mubr.bf16.gmra.mrb[0].mxu0 %v6504
        %v6852 = vpop.f32.mrb[0].mxu0
        %v6853 = vadd.f32 0.0, %v6852
        %v6854 = vpop.f32.mrb[0].mxu0
        %v6855 = vpop.f32.mrb[0].mxu0
        %v6856 = vadd.f32 0.0, %v6855
        %v6857 = vpop.f32.mrb[0].mxu0
        %6858 = vmatprep.mubr.bf16.mxu0 0
        %6859 = vmatmul.mubr.bf16.gmra.mrb[0].mxu0 %v6507
        %v6860 = vpop.f32.mrb[0].mxu0
        %v6861 = vadd.f32 0.0, %v6860
        %v6862 = vpop.f32.mrb[0].mxu0
        %v6863 = vpop.f32.mrb[0].mxu0
        %v6864 = vadd.f32 0.0, %v6863
        %v6865 = vpop.f32.mrb[0].mxu0
        %6866 = vmatprep.mubr.bf16.mxu0 0
        %6867 = vmatmul.mubr.bf16.gmra.mrb[0].mxu0 %v6510
        %v6868 = vpop.f32.mrb[0].mxu0
        %v6869 = vadd.f32 0.0, %v6868
        %v6870 = vpop.f32.mrb[0].mxu0
        %v6871 = vpop.f32.mrb[0].mxu0
        %v6872 = vadd.f32 0.0, %v6871
        %v6873 = vpop.f32.mrb[0].mxu0
        %6874 = vmatprep.mubr.bf16.mxu0 0
        %6875 = vmatmul.mubr.bf16.gmra.mrb[0].mxu0 %v6513
        %v6876 = vpop.f32.mrb[0].mxu0
        %v6877 = vadd.f32 0.0, %v6876
        %v6878 = vpop.f32.mrb[0].mxu0
        %v6879 = vpop.f32.mrb[0].mxu0
        %v6880 = vadd.f32 0.0, %v6879
        %v6881 = vpop.f32.mrb[0].mxu0
        %6882 = vmatprep.mubr.bf16.mxu0 0
        %6883 = vmatmul.mubr.bf16.gmra.mrb[0].mxu0 %v6516
        %v6884 = vpop.f32.mrb[0].mxu0
        %v6885 = vadd.f32 0.0, %v6884
        %v6886 = vpop.f32.mrb[0].mxu0
        %v6887 = vpop.f32.mrb[0].mxu0
        %v6888 = vadd.f32 0.0, %v6887
        %v6889 = vpop.f32.mrb[0].mxu0
        %6890 = vmatprep.mubr.bf16.mxu0 0
        %6891 = vmatmul.mubr.bf16.gmra.mrb[0].mxu0 %v6519
        %v6892 = vpop.f32.mrb[0].mxu0
        %v6893 = vadd.f32 0.0, %v6892
        %v6894 = vpop.f32.mrb[0].mxu0
        %v6895 = vpop.f32.mrb[0].mxu0
        %v6896 = vadd.f32 0.0, %v6895
        %v6897 = vpop.f32.mrb[0].mxu0
        %6898 = vmatprep.mubr.bf16.mxu0 0
        %6899 = vmatmul.mubr.bf16.gmra.mrb[0].mxu0 %v6522
        %v6900 = vpop.f32.mrb[0].mxu0
        %v6901 = vadd.f32 0.0, %v6900
        %v6902 = vpop.f32.mrb[0].mxu0
        %v6903 = vpop.f32.mrb[0].mxu0
        %v6904 = vadd.f32 0.0, %v6903
        %v6905 = vpop.f32.mrb[0].mxu0
        %6906 = vmatprep.mubr.bf16.mxu0 0
        %6907 = vmatmul.mubr.bf16.gmra.mrb[0].mxu0 %v6525
        %v6908 = vpop.f32.mrb[0].mxu0
        %v6909 = vadd.f32 0.0, %v6908
        %v6910 = vpop.f32.mrb[0].mxu0
        %v6911 = vpop.f32.mrb[0].mxu0
        %v6912 = vadd.f32 0.0, %v6911
        %v6913 = vpop.f32.mrb[0].mxu0
        %6914 = vmatprep.mubr.bf16.mxu0 0
        %6915 = vmatmul.mubr.bf16.gmra.mrb[0].mxu0 %v6528
        %v6916 = vpop.f32.mrb[0].mxu0
        %v6917 = vadd.f32 0.0, %v6916
        %v6918 = vpop.f32.mrb[0].mxu0
        %v6919 = vpop.f32.mrb[0].mxu0
        %v6920 = vadd.f32 0.0, %v6919
        %v6921 = vpop.f32.mrb[0].mxu0
        %6922 = vmatprep.mubr.bf16.mxu0 0
        %6923 = vmatmul.mubr.bf16.gmra.mrb[0].mxu0 %v6531
        %v6924 = vpop.f32.mrb[0].mxu0
        %v6925 = vadd.f32 0.0, %v6924
        %v6926 = vpop.f32.mrb[0].mxu0
        %v6927 = vpop.f32.mrb[0].mxu0
        %v6928 = vadd.f32 0.0, %v6927
        %v6929 = vpop.f32.mrb[0].mxu0
        %6930 = vmatprep.mubr.bf16.mxu0 0
        %6931 = vmatmul.mubr.bf16.gmra.mrb[0].mxu0 %v6534
        %v6932 = vpop.f32.mrb[0].mxu0
        %v6933 = vadd.f32 0.0, %v6932
        %v6934 = vpop.f32.mrb[0].mxu0
        %v6935 = vpop.f32.mrb[0].mxu0
        %v6936 = vadd.f32 0.0, %v6935
        %v6937 = vpop.f32.mrb[0].mxu0
        %6938 = vmatprep.mubr.bf16.mxu0 0
        %6939 = vmatmul.mubr.bf16.gmra.mrb[0].mxu0 %v6537
        %v6940 = vpop.f32.mrb[0].mxu0
        %v6941 = vadd.f32 0.0, %v6940
        %v6942 = vpop.f32.mrb[0].mxu0
        %v6943 = vpop.f32.mrb[0].mxu0
        %v6944 = vadd.f32 0.0, %v6943
        %v6945 = vpop.f32.mrb[0].mxu0
        %6946 = vmatprep.mubr.bf16.mxu0 0
        %6947 = vmatmul.mubr.bf16.gmra.mrb[0].mxu0 %v6540
        %v6948 = vpop.f32.mrb[0].mxu0
        %v6949 = vadd.f32 0.0, %v6948
        %v6950 = vpop.f32.mrb[0].mxu0
        %v6951 = vpop.f32.mrb[0].mxu0
        %v6952 = vadd.f32 0.0, %v6951
        %v6953 = vpop.f32.mrb[0].mxu0
        %6954 = vmatprep.mubr.bf16.mxu0 0
        %6955 = vmatmul.mubr.bf16.gmra.mrb[0].mxu0 %v6543
        %v6956 = vpop.f32.mrb[0].mxu0
        %v6957 = vadd.f32 0.0, %v6956
        %v6958 = vpop.f32.mrb[0].mxu0
        %v6959 = vpop.f32.mrb[0].mxu0
        %v6960 = vadd.f32 0.0, %v6959
        %v6961 = vpop.f32.mrb[0].mxu0
        %6962 = vmatprep.mubr.bf16.mxu0 0
        %6963 = vmatmul.mubr.bf16.gmra.mrb[0].mxu0 %v6546
        %v6964 = vpop.f32.mrb[0].mxu0
        %v6965 = vadd.f32 0.0, %v6964
        %v6966 = vpop.f32.mrb[0].mxu0
        %v6967 = vpop.f32.mrb[0].mxu0
        %v6968 = vadd.f32 0.0, %v6967
        %v6969 = vpop.f32.mrb[0].mxu0
        %6970 = vmatprep.mubr.bf16.mxu0 0
        %6971 = vmatmul.mubr.bf16.gmra.mrb[0].mxu0 %v6549
        %v6972 = vpop.f32.mrb[0].mxu0
        %v6973 = vadd.f32 0.0, %v6972
        %v6974 = vpop.f32.mrb[0].mxu0
        %v6975 = vpop.f32.mrb[0].mxu0
        %v6976 = vadd.f32 0.0, %v6975
        %v6977 = vpop.f32.mrb[0].mxu0
        %6978 = vmatprep.mubr.bf16.mxu0 0
        %6979 = vmatmul.mubr.bf16.gmra.mrb[0].mxu0 %v6552
        %v6980 = vpop.f32.mrb[0].mxu0
        %v6981 = vadd.f32 0.0, %v6980
        %v6982 = vpop.f32.mrb[0].mxu0
        %v6983 = vpop.f32.mrb[0].mxu0
        %v6984 = vadd.f32 0.0, %v6983
        %v6985 = vpop.f32.mrb[0].mxu0
        %6986 = vmatprep.mubr.bf16.mxu0 0
        %6987 = vmatmul.mubr.bf16.gmra.mrb[0].mxu0 %v6555
        %v6988 = vpop.f32.mrb[0].mxu0
        %v6989 = vadd.f32 0.0, %v6988
        %v6990 = vpop.f32.mrb[0].mxu0
        %v6991 = vpop.f32.mrb[0].mxu0
        %v6992 = vadd.f32 0.0, %v6991
        %v6993 = vpop.f32.mrb[0].mxu0
        %6994 = vmatprep.mubr.bf16.mxu0 0
        %6995 = vmatmul.mubr.bf16.gmra.mrb[0].mxu0 %v6558
        %v6996 = vpop.f32.mrb[0].mxu0
        %v6997 = vadd.f32 0.0, %v6996
        %v6998 = vpop.f32.mrb[0].mxu0
        %v6999 = vpop.f32.mrb[0].mxu0
        %v7000 = vadd.f32 0.0, %v6999
        %v7001 = vpop.f32.mrb[0].mxu0
        %7002 = vmatprep.mubr.bf16.mxu0 0
        %7003 = vmatmul.mubr.bf16.gmra.mrb[0].mxu0 %v6561
        %v7004 = vpop.f32.mrb[0].mxu0
        %v7005 = vadd.f32 0.0, %v7004
        %v7006 = vpop.f32.mrb[0].mxu0
        %v7007 = vpop.f32.mrb[0].mxu0
        %v7008 = vadd.f32 0.0, %v7007
        %v7009 = vpop.f32.mrb[0].mxu0
        %7010 = vmatprep.mubr.bf16.mxu0 0
        %7011 = vmatmul.mubr.bf16.gmra.mrb[0].mxu0 %v6564
        %v7012 = vpop.f32.mrb[0].mxu0
        %v7013 = vadd.f32 0.0, %v7012
        %v7014 = vpop.f32.mrb[0].mxu0
        %v7015 = vpop.f32.mrb[0].mxu0
        %v7016 = vadd.f32 0.0, %v7015
        %v7017 = vpop.f32.mrb[0].mxu0
        %7018 = vmatprep.mubr.bf16.mxu0 0
        %7019 = vmatmul.mubr.bf16.gmra.mrb[0].mxu0 %v6567
        %v7020 = vpop.f32.mrb[0].mxu0
        %v7021 = vadd.f32 0.0, %v7020
        %v7022 = vpop.f32.mrb[0].mxu0
        %v7023 = vpop.f32.mrb[0].mxu0
        %v7024 = vadd.f32 0.0, %v7023
        %v7025 = vpop.f32.mrb[0].mxu0
        %7026 = vmatprep.mubr.bf16.mxu0 0
        %7027 = vmatmul.mubr.bf16.gmra.mrb[0].mxu0 %v6570
        %v7028 = vpop.f32.mrb[0].mxu0
        %v7029 = vadd.f32 0.0, %v7028
        %v7030 = vpop.f32.mrb[0].mxu0
        %v7031 = vpop.f32.mrb[0].mxu0
        %v7032 = vadd.f32 0.0, %v7031
        %v7033 = vpop.f32.mrb[0].mxu0
        %7034 = vmatprep.mubr.bf16.mxu0 0
        %7035 = vmatmul.mubr.bf16.gmra.mrb[0].mxu0 %v6573
        %v7036 = vpop.f32.mrb[0].mxu0
        %v7037 = vadd.f32 0.0, %v7036
        %v7038 = vpop.f32.mrb[0].mxu0
        %v7039 = vpop.f32.mrb[0].mxu0
        %v7040 = vadd.f32 0.0, %v7039
        %v7041 = vpop.f32.mrb[0].mxu0
        %7042 = vmatprep.mubr.bf16.mxu0 0
        %7043 = vmatmul.mubr.bf16.gmra.mrb[0].mxu0 %v6576
        %v7044 = vpop.f32.mrb[0].mxu0
        %v7045 = vadd.f32 0.0, %v7044
        %v7046 = vpop.f32.mrb[0].mxu0
        %v7047 = vpop.f32.mrb[0].mxu0
        %v7048 = vadd.f32 0.0, %v7047
        %v7049 = vpop.f32.mrb[0].mxu0
        %7050 = vmatprep.mubr.bf16.mxu0 0
        %7051 = vmatmul.mubr.bf16.gmra.mrb[0].mxu0 %v6579
        %v7052 = vpop.f32.mrb[0].mxu0
        %v7053 = vadd.f32 0.0, %v7052
        %v7054 = vpop.f32.mrb[0].mxu0
        %v7055 = vpop.f32.mrb[0].mxu0
        %v7056 = vadd.f32 0.0, %v7055
        %v7057 = vpop.f32.mrb[0].mxu0
        %7058 = vmatprep.mubr.bf16.mxu0 0
        %7059 = vmatmul.mubr.bf16.gmra.mrb[0].mxu0 %v6582
        %v7060 = vpop.f32.mrb[0].mxu0
        %v7061 = vadd.f32 0.0, %v7060
        %v7062 = vpop.f32.mrb[0].mxu0
        %v7063 = vpop.f32.mrb[0].mxu0
        %v7064 = vadd.f32 0.0, %v7063
        %v7065 = vpop.f32.mrb[0].mxu0
        %7066 = vmatprep.mubr.bf16.mxu0 0
        %7067 = vmatmul.mubr.bf16.gmra.mrb[0].mxu0 %v6585
        %v7068 = vpop.f32.mrb[0].mxu0
        %v7069 = vadd.f32 0.0, %v7068
        %v7070 = vpop.f32.mrb[0].mxu0
        %v7071 = vpop.f32.mrb[0].mxu0
        %v7072 = vadd.f32 0.0, %v7071
        %v7073 = vpop.f32.mrb[0].mxu0
        %7074 = vmatprep.mubr.bf16.mxu0 0
        %7075 = vmatmul.mubr.bf16.gmra.mrb[0].mxu0 %v6588
        %v7076 = vpop.f32.mrb[0].mxu0
        %v7077 = vadd.f32 0.0, %v7076
        %v7078 = vpop.f32.mrb[0].mxu0
        %v7079 = vpop.f32.mrb[0].mxu0
        %v7080 = vadd.f32 0.0, %v7079
        %v7081 = vpop.f32.mrb[0].mxu0
        %7082 = vmatprep.mubr.bf16.mxu0 0
        %7083 = vmatmul.mubr.bf16.gmra.mrb[0].mxu0 %v6591
        %v7084 = vpop.f32.mrb[0].mxu0
        %v7085 = vadd.f32 0.0, %v7084
        %v7086 = vpop.f32.mrb[0].mxu0
        %v7087 = vpop.f32.mrb[0].mxu0
        %v7088 = vadd.f32 0.0, %v7087
        %v7089 = vpop.f32.mrb[0].mxu0
        %7090 = vmatprep.mubr.bf16.mxu0 0
        %7091 = vmatmul.mubr.bf16.gmra.mrb[0].mxu0 %v6594
        %v7092 = vpop.f32.mrb[0].mxu0
        %v7093 = vadd.f32 0.0, %v7092
        %v7094 = vpop.f32.mrb[0].mxu0
        %v7095 = vpop.f32.mrb[0].mxu0
        %v7096 = vadd.f32 0.0, %v7095
        %v7097 = vpop.f32.mrb[0].mxu0
        %7098 = vmatprep.mubr.bf16.mxu0 0
        %7099 = vmatmul.mubr.bf16.gmra.mrb[0].mxu0 %v6597
        %v7100 = vpop.f32.mrb[0].mxu0
        %v7101 = vadd.f32 0.0, %v7100
        %v7102 = vpop.f32.mrb[0].mxu0
        %v7103 = vpop.f32.mrb[0].mxu0
        %v7104 = vadd.f32 0.0, %v7103
        %v7105 = vpop.f32.mrb[0].mxu0
        %7106 = vmatprep.mubr.bf16.mxu0 0
        %7107 = vmatmul.mubr.bf16.gmra.mrb[0].mxu0 %v6600
        %v7108 = vpop.f32.mrb[0].mxu0
        %v7109 = vadd.f32 0.0, %v7108
        %v7110 = vpop.f32.mrb[0].mxu0
        %v7111 = vpop.f32.mrb[0].mxu0
        %v7112 = vadd.f32 0.0, %v7111
        %v7113 = vpop.f32.mrb[0].mxu0
        %7114 = vmatprep.mubr.bf16.mxu0 0
        %7115 = vmatmul.mubr.bf16.gmra.mrb[0].mxu0 %v6603
        %v7116 = vpop.f32.mrb[0].mxu0
        %v7117 = vadd.f32 0.0, %v7116
        %v7118 = vpop.f32.mrb[0].mxu0
        %v7119 = vpop.f32.mrb[0].mxu0
        %v7120 = vadd.f32 0.0, %v7119
        %v7121 = vpop.f32.mrb[0].mxu0
        %7122 = vmatprep.mubr.bf16.mxu0 0
        %7123 = vmatmul.mubr.bf16.gmra.mrb[0].mxu0 %v6606
        %v7124 = vpop.f32.mrb[0].mxu0
        %v7125 = vadd.f32 0.0, %v7124
        %v7126 = vpop.f32.mrb[0].mxu0
        %v7127 = vpop.f32.mrb[0].mxu0
        %v7128 = vadd.f32 0.0, %v7127
        %v7129 = vpop.f32.mrb[0].mxu0
        %7130 = vmatprep.mubr.bf16.mxu0 0
        %7131 = vmatmul.mubr.bf16.gmra.mrb[0].mxu0 %v6609
        %v7132 = vpop.f32.mrb[0].mxu0
        %v7133 = vadd.f32 0.0, %v7132
        %v7134 = vpop.f32.mrb[0].mxu0
        %v7135 = vpop.f32.mrb[0].mxu0
        %v7136 = vadd.f32 0.0, %v7135
        %v7137 = vpop.f32.mrb[0].mxu0
        %7138 = vmatprep.mubr.bf16.mxu0 0
        %7139 = vmatmul.mubr.bf16.gmra.mrb[0].mxu0 %v6612
        %v7140 = vpop.f32.mrb[0].mxu0
        %v7141 = vadd.f32 0.0, %v7140
        %v7142 = vpop.f32.mrb[0].mxu0
        %v7143 = vpop.f32.mrb[0].mxu0
        %v7144 = vadd.f32 0.0, %v7143
        %v7145 = vpop.f32.mrb[0].mxu0
        %7146 = vmatprep.mubr.bf16.mxu0 0
        %7147 = vmatmul.mubr.bf16.gmra.mrb[0].mxu0 %v6615
        %v7148 = vpop.f32.mrb[0].mxu0
        %v7149 = vadd.f32 0.0, %v7148
        %v7150 = vpop.f32.mrb[0].mxu0
        %v7151 = vpop.f32.mrb[0].mxu0
        %v7152 = vadd.f32 0.0, %v7151
        %v7153 = vpop.f32.mrb[0].mxu0
        %7154 = vmatprep.mubr.bf16.mxu0 0
        %7155 = vmatmul.mubr.bf16.gmra.mrb[0].mxu0 %v6618
        %v7156 = vpop.f32.mrb[0].mxu0
        %v7157 = vadd.f32 0.0, %v7156
        %v7158 = vpop.f32.mrb[0].mxu0
        %v7159 = vpop.f32.mrb[0].mxu0
        %v7160 = vadd.f32 0.0, %v7159
        %v7161 = vpop.f32.mrb[0].mxu0
        %7162 = vmatprep.mubr.bf16.mxu0 0
        %7163 = vmatmul.mubr.bf16.gmra.mrb[0].mxu0 %v6621
        %v7164 = vpop.f32.mrb[0].mxu0
        %v7165 = vadd.f32 0.0, %v7164
        %v7166 = vpop.f32.mrb[0].mxu0
        %v7167 = vpop.f32.mrb[0].mxu0
        %v7168 = vadd.f32 0.0, %v7167
        %v7169 = vpop.f32.mrb[0].mxu0
        %7170 = vdwg.mxu0
        %v7171 = vadd.f32 %v5244, %v6661
        %v7172 = vadd.f32 %v5247, %v6664
        %v7173 = vadd.f32 %v5252, %v6669
        %v7174 = vadd.f32 %v5255, %v6672
        %v7175 = vadd.f32 %v5260, %v6677
        %v7176 = vadd.f32 %v5263, %v6680
        %v7177 = vadd.f32 %v5268, %v6685
        %v7178 = vadd.f32 %v5271, %v6688
        %v7179 = vadd.f32 %v5276, %v6693
        %v7180 = vadd.f32 %v5279, %v6696
        %v7181 = vadd.f32 %v5284, %v6701
        %v7182 = vadd.f32 %v5287, %v6704
        %v7183 = vadd.f32 %v5292, %v6709
        %v7184 = vadd.f32 %v5295, %v6712
        %v7185 = vadd.f32 %v5300, %v6717
        %v7186 = vadd.f32 %v5303, %v6720
        %v7187 = vadd.f32 %v5308, %v6725
        %v7188 = vadd.f32 %v5311, %v6728
        %v7189 = vadd.f32 %v5316, %v6733
        %v7190 = vadd.f32 %v5319, %v6736
        %v7191 = vadd.f32 %v5324, %v6741
        %v7192 = vadd.f32 %v5327, %v6744
        %v7193 = vadd.f32 %v5332, %v6749
        %v7194 = vadd.f32 %v5335, %v6752
        %v7195 = vadd.f32 %v5340, %v6757
        %v7196 = vadd.f32 %v5343, %v6760
        %v7197 = vadd.f32 %v5348, %v6765
        %v7198 = vadd.f32 %v5351, %v6768
        %v7199 = vadd.f32 %v5356, %v6773
        %v7200 = vadd.f32 %v5359, %v6776
        %v7201 = vadd.f32 %v5364, %v6781
        %v7202 = vadd.f32 %v5367, %v6784
        %v7203 = vadd.f32 %v5372, %v6789
        %v7204 = vadd.f32 %v5375, %v6792
        %v7205 = vadd.f32 %v5380, %v6797
        %v7206 = vadd.f32 %v5383, %v6800
        %v7207 = vadd.f32 %v5388, %v6805
        %v7208 = vadd.f32 %v5391, %v6808
        %v7209 = vadd.f32 %v5396, %v6813
        %v7210 = vadd.f32 %v5399, %v6816
        %v7211 = vadd.f32 %v5404, %v6821
        %v7212 = vadd.f32 %v5407, %v6824
        %v7213 = vadd.f32 %v5412, %v6829
        %v7214 = vadd.f32 %v5415, %v6832
        %v7215 = vadd.f32 %v5420, %v6837
        %v7216 = vadd.f32 %v5423, %v6840
        %v7217 = vadd.f32 %v5428, %v6845
        %v7218 = vadd.f32 %v5431, %v6848
        %v7219 = vadd.f32 %v5436, %v6853
        %v7220 = vadd.f32 %v5439, %v6856
        %v7221 = vadd.f32 %v5444, %v6861
        %v7222 = vadd.f32 %v5447, %v6864
        %v7223 = vadd.f32 %v5452, %v6869
        %v7224 = vadd.f32 %v5455, %v6872
        %v7225 = vadd.f32 %v5460, %v6877
        %v7226 = vadd.f32 %v5463, %v6880
        %v7227 = vadd.f32 %v5468, %v6885
        %v7228 = vadd.f32 %v5471, %v6888
        %v7229 = vadd.f32 %v5476, %v6893
        %v7230 = vadd.f32 %v5479, %v6896
        %v7231 = vadd.f32 %v5484, %v6901
        %v7232 = vadd.f32 %v5487, %v6904
        %v7233 = vadd.f32 %v5492, %v6909
        %v7234 = vadd.f32 %v5495, %v6912
        %v7235 = vadd.f32 %v5500, %v6917
        %v7236 = vadd.f32 %v5503, %v6920
        %v7237 = vadd.f32 %v5508, %v6925
        %v7238 = vadd.f32 %v5511, %v6928
        %v7239 = vadd.f32 %v5516, %v6933
        %v7240 = vadd.f32 %v5519, %v6936
        %v7241 = vadd.f32 %v5524, %v6941
        %v7242 = vadd.f32 %v5527, %v6944
        %v7243 = vadd.f32 %v5532, %v6949
        %v7244 = vadd.f32 %v5535, %v6952
        %v7245 = vadd.f32 %v5540, %v6957
        %v7246 = vadd.f32 %v5543, %v6960
        %v7247 = vadd.f32 %v5548, %v6965
        %v7248 = vadd.f32 %v5551, %v6968
        %v7249 = vadd.f32 %v5556, %v6973
        %v7250 = vadd.f32 %v5559, %v6976
        %v7251 = vadd.f32 %v5564, %v6981
        %v7252 = vadd.f32 %v5567, %v6984
        %v7253 = vadd.f32 %v5572, %v6989
        %v7254 = vadd.f32 %v5575, %v6992
        %v7255 = vadd.f32 %v5580, %v6997
        %v7256 = vadd.f32 %v5583, %v7000
        %v7257 = vadd.f32 %v5588, %v7005
        %v7258 = vadd.f32 %v5591, %v7008
        %v7259 = vadd.f32 %v5596, %v7013
        %v7260 = vadd.f32 %v5599, %v7016
        %v7261 = vadd.f32 %v5604, %v7021
        %v7262 = vadd.f32 %v5607, %v7024
        %v7263 = vadd.f32 %v5612, %v7029
        %v7264 = vadd.f32 %v5615, %v7032
        %v7265 = vadd.f32 %v5620, %v7037
        %v7266 = vadd.f32 %v5623, %v7040
        %v7267 = vadd.f32 %v5628, %v7045
        %v7268 = vadd.f32 %v5631, %v7048
        %v7269 = vadd.f32 %v5636, %v7053
        %v7270 = vadd.f32 %v5639, %v7056
        %v7271 = vadd.f32 %v5644, %v7061
        %v7272 = vadd.f32 %v5647, %v7064
        %v7273 = vadd.f32 %v5652, %v7069
        %v7274 = vadd.f32 %v5655, %v7072
        %v7275 = vadd.f32 %v5660, %v7077
        %v7276 = vadd.f32 %v5663, %v7080
        %v7277 = vadd.f32 %v5668, %v7085
        %v7278 = vadd.f32 %v5671, %v7088
        %v7279 = vadd.f32 %v5676, %v7093
        %v7280 = vadd.f32 %v5679, %v7096
        %v7281 = vadd.f32 %v5684, %v7101
        %v7282 = vadd.f32 %v5687, %v7104
        %v7283 = vadd.f32 %v5692, %v7109
        %v7284 = vadd.f32 %v5695, %v7112
        %v7285 = vadd.f32 %v5700, %v7117
        %v7286 = vadd.f32 %v5703, %v7120
        %v7287 = vadd.f32 %v5708, %v7125
        %v7288 = vadd.f32 %v5711, %v7128
        %v7289 = vadd.f32 %v5716, %v7133
        %v7290 = vadd.f32 %v5719, %v7136
        %v7291 = vadd.f32 %v5724, %v7141
        %v7292 = vadd.f32 %v5727, %v7144
        %v7293 = vadd.f32 %v5732, %v7149
        %v7294 = vadd.f32 %v5735, %v7152
        %v7295 = vadd.f32 %v5740, %v7157
        %v7296 = vadd.f32 %v5743, %v7160
        %v7297 = vadd.f32 %v5748, %v7165
        %v7298 = vadd.f32 %v5751, %v7168
        %s7299 = scalar_lea.vmem %s210, 6
        %v7300 = vld [vmem:[%s7299] sm:$0x3]
        %v7305 = vunpack.c.l.b16 %v2267
        %v7306 = vunpack.c.l.b16 %v2268
        %v7307 = vunpack.c.l.b16 %v2269
        %v7308 = vunpack.c.l.b16 %v2270
        %v7309 = vpack.c.b16 %v7306, %v7305
        %v7310 = vpack.c.b16 %v7308, %v7307
        %v7312 = vsel %vm3949, %v7309, 0
        %v7315 = vsel %vm3949, %v7310, 0
        %v7318 = vand.u32 %v7300, %v4145
        %7320 = vmatprep.subr.bf16.mxu0 0
        %7321 = vmatpush1.bf16.msra.mxu0 %v7318
        %7322 = vmatprep.subr.bf16.mxu0 0
        %7323 = vmatpush1.bf16.msra.mxu0 0
        %7324 = vmatprep.subr.bf16.mxu0 0
        %7325 = vmatpush1.bf16.msra.mxu0 0
        %7326 = vmatprep.subr.bf16.mxu0 0
        %7327 = vmatpush1.bf16.msra.mxu0 0
        %7328 = vmatprep.subr.bf16.mxu0 0
        %7329 = vmatpush1.bf16.msra.mxu0 0
        %7330 = vmatprep.subr.bf16.mxu0 0
        %7331 = vmatpush1.bf16.msra.mxu0 0
        %7332 = vmatprep.subr.bf16.mxu0 0
        %7333 = vmatpush1.bf16.msra.mxu0 0
        %7334 = vmatprep.subr.bf16.mxu0 0
        %7335 = vmatpush1.bf16.msra.mxu0 0
        %7336 = vmatprep.subr.bf16.mxu0 0
        %7337 = vmatpush1.bf16.msra.mxu0 0
        %7338 = vmatprep.subr.bf16.mxu0 0
        %7339 = vmatpush1.bf16.msra.mxu0 0
        %7340 = vmatprep.subr.bf16.mxu0 0
        %7341 = vmatpush1.bf16.msra.mxu0 0
        %7342 = vmatprep.subr.bf16.mxu0 0
        %7343 = vmatpush1.bf16.msra.mxu0 0
        %7344 = vmatprep.subr.bf16.mxu0 0
        %7345 = vmatpush1.bf16.msra.mxu0 0
        %7346 = vmatprep.subr.bf16.mxu0 0
        %7347 = vmatpush1.bf16.msra.mxu0 0
        %7348 = vmatprep.subr.bf16.mxu0 0
        %7349 = vmatpush1.bf16.msra.mxu0 0
        %7350 = vmatprep.subr.bf16.mxu0 0
        %7351 = vmatpush1.bf16.msra.mxu0 0
        %7352 = vmatprep.mubr.bf16.mxu0 0
        %7353 = vmatmul.mubr.bf16.gmra.mrb[0].mxu0 %v5021
        %v7354 = vpop.f32.mrb[0].mxu0
        %v7355 = vadd.f32 0.0, %v7354
        %v7356 = vpop.f32.mrb[0].mxu0
        %v7357 = vpop.f32.mrb[0].mxu0
        %v7358 = vadd.f32 0.0, %v7357
        %v7359 = vpop.f32.mrb[0].mxu0
        %7360 = vmatprep.mubr.bf16.mxu0 0
        %7361 = vmatmul.mubr.bf16.gmra.mrb[0].mxu0 %v5024
        %v7362 = vpop.f32.mrb[0].mxu0
        %v7363 = vadd.f32 0.0, %v7362
        %v7364 = vpop.f32.mrb[0].mxu0
        %v7365 = vpop.f32.mrb[0].mxu0
        %v7366 = vadd.f32 0.0, %v7365
        %v7367 = vpop.f32.mrb[0].mxu0
        %7368 = vmatprep.mubr.bf16.mxu0 0
        %7369 = vmatmul.mubr.bf16.gmra.mrb[0].mxu0 %v5027
        %v7370 = vpop.f32.mrb[0].mxu0
        %v7371 = vadd.f32 0.0, %v7370
        %v7372 = vpop.f32.mrb[0].mxu0
        %v7373 = vpop.f32.mrb[0].mxu0
        %v7374 = vadd.f32 0.0, %v7373
        %v7375 = vpop.f32.mrb[0].mxu0
        %7376 = vmatprep.mubr.bf16.mxu0 0
        %7377 = vmatmul.mubr.bf16.gmra.mrb[0].mxu0 %v5030
        %v7378 = vpop.f32.mrb[0].mxu0
        %v7379 = vadd.f32 0.0, %v7378
        %v7380 = vpop.f32.mrb[0].mxu0
        %v7381 = vpop.f32.mrb[0].mxu0
        %v7382 = vadd.f32 0.0, %v7381
        %v7383 = vpop.f32.mrb[0].mxu0
        %7384 = vmatprep.mubr.bf16.mxu0 0
        %7385 = vmatmul.mubr.bf16.gmra.mrb[0].mxu0 %v5033
        %v7386 = vpop.f32.mrb[0].mxu0
        %v7387 = vadd.f32 0.0, %v7386
        %v7388 = vpop.f32.mrb[0].mxu0
        %v7389 = vpop.f32.mrb[0].mxu0
        %v7390 = vadd.f32 0.0, %v7389
        %v7391 = vpop.f32.mrb[0].mxu0
        %7392 = vmatprep.mubr.bf16.mxu0 0
        %7393 = vmatmul.mubr.bf16.gmra.mrb[0].mxu0 %v5036
        %v7394 = vpop.f32.mrb[0].mxu0
        %v7395 = vadd.f32 0.0, %v7394
        %v7396 = vpop.f32.mrb[0].mxu0
        %v7397 = vpop.f32.mrb[0].mxu0
        %v7398 = vadd.f32 0.0, %v7397
        %v7399 = vpop.f32.mrb[0].mxu0
        %7400 = vmatprep.mubr.bf16.mxu0 0
        %7401 = vmatmul.mubr.bf16.gmra.mrb[0].mxu0 %v5039
        %v7402 = vpop.f32.mrb[0].mxu0
        %v7403 = vadd.f32 0.0, %v7402
        %v7404 = vpop.f32.mrb[0].mxu0
        %v7405 = vpop.f32.mrb[0].mxu0
        %v7406 = vadd.f32 0.0, %v7405
        %v7407 = vpop.f32.mrb[0].mxu0
        %7408 = vmatprep.mubr.bf16.mxu0 0
        %7409 = vmatmul.mubr.bf16.gmra.mrb[0].mxu0 %v5042
        %v7410 = vpop.f32.mrb[0].mxu0
        %v7411 = vadd.f32 0.0, %v7410
        %v7412 = vpop.f32.mrb[0].mxu0
        %v7413 = vpop.f32.mrb[0].mxu0
        %v7414 = vadd.f32 0.0, %v7413
        %v7415 = vpop.f32.mrb[0].mxu0
        %7416 = vmatprep.mubr.bf16.mxu0 0
        %7417 = vmatmul.mubr.bf16.gmra.mrb[0].mxu0 %v5045
        %v7418 = vpop.f32.mrb[0].mxu0
        %v7419 = vadd.f32 0.0, %v7418
        %v7420 = vpop.f32.mrb[0].mxu0
        %v7421 = vpop.f32.mrb[0].mxu0
        %v7422 = vadd.f32 0.0, %v7421
        %v7423 = vpop.f32.mrb[0].mxu0
        %7424 = vmatprep.mubr.bf16.mxu0 0
        %7425 = vmatmul.mubr.bf16.gmra.mrb[0].mxu0 %v5048
        %v7426 = vpop.f32.mrb[0].mxu0
        %v7427 = vadd.f32 0.0, %v7426
        %v7428 = vpop.f32.mrb[0].mxu0
        %v7429 = vpop.f32.mrb[0].mxu0
        %v7430 = vadd.f32 0.0, %v7429
        %v7431 = vpop.f32.mrb[0].mxu0
        %7432 = vmatprep.mubr.bf16.mxu0 0
        %7433 = vmatmul.mubr.bf16.gmra.mrb[0].mxu0 %v5051
        %v7434 = vpop.f32.mrb[0].mxu0
        %v7435 = vadd.f32 0.0, %v7434
        %v7436 = vpop.f32.mrb[0].mxu0
        %v7437 = vpop.f32.mrb[0].mxu0
        %v7438 = vadd.f32 0.0, %v7437
        %v7439 = vpop.f32.mrb[0].mxu0
        %7440 = vmatprep.mubr.bf16.mxu0 0
        %7441 = vmatmul.mubr.bf16.gmra.mrb[0].mxu0 %v5054
        %v7442 = vpop.f32.mrb[0].mxu0
        %v7443 = vadd.f32 0.0, %v7442
        %v7444 = vpop.f32.mrb[0].mxu0
        %v7445 = vpop.f32.mrb[0].mxu0
        %v7446 = vadd.f32 0.0, %v7445
        %v7447 = vpop.f32.mrb[0].mxu0
        %7448 = vmatprep.mubr.bf16.mxu0 0
        %7449 = vmatmul.mubr.bf16.gmra.mrb[0].mxu0 %v5057
        %v7450 = vpop.f32.mrb[0].mxu0
        %v7451 = vadd.f32 0.0, %v7450
        %v7452 = vpop.f32.mrb[0].mxu0
        %v7453 = vpop.f32.mrb[0].mxu0
        %v7454 = vadd.f32 0.0, %v7453
        %v7455 = vpop.f32.mrb[0].mxu0
        %7456 = vmatprep.mubr.bf16.mxu0 0
        %7457 = vmatmul.mubr.bf16.gmra.mrb[0].mxu0 %v5060
        %v7458 = vpop.f32.mrb[0].mxu0
        %v7459 = vadd.f32 0.0, %v7458
        %v7460 = vpop.f32.mrb[0].mxu0
        %v7461 = vpop.f32.mrb[0].mxu0
        %v7462 = vadd.f32 0.0, %v7461
        %v7463 = vpop.f32.mrb[0].mxu0
        %7464 = vmatprep.mubr.bf16.mxu0 0
        %7465 = vmatmul.mubr.bf16.gmra.mrb[0].mxu0 %v5063
        %v7466 = vpop.f32.mrb[0].mxu0
        %v7467 = vadd.f32 0.0, %v7466
        %v7468 = vpop.f32.mrb[0].mxu0
        %v7469 = vpop.f32.mrb[0].mxu0
        %v7470 = vadd.f32 0.0, %v7469
        %v7471 = vpop.f32.mrb[0].mxu0
        %7472 = vmatprep.mubr.bf16.mxu0 0
        %7473 = vmatmul.mubr.bf16.gmra.mrb[0].mxu0 %v5066
        %v7474 = vpop.f32.mrb[0].mxu0
        %v7475 = vadd.f32 0.0, %v7474
        %v7476 = vpop.f32.mrb[0].mxu0
        %v7477 = vpop.f32.mrb[0].mxu0
        %v7478 = vadd.f32 0.0, %v7477
        %v7479 = vpop.f32.mrb[0].mxu0
        %7480 = vmatprep.mubr.bf16.mxu0 0
        %7481 = vmatmul.mubr.bf16.gmra.mrb[0].mxu0 %v5069
        %v7482 = vpop.f32.mrb[0].mxu0
        %v7483 = vadd.f32 0.0, %v7482
        %v7484 = vpop.f32.mrb[0].mxu0
        %v7485 = vpop.f32.mrb[0].mxu0
        %v7486 = vadd.f32 0.0, %v7485
        %v7487 = vpop.f32.mrb[0].mxu0
        %7488 = vmatprep.mubr.bf16.mxu0 0
        %7489 = vmatmul.mubr.bf16.gmra.mrb[0].mxu0 %v5072
        %v7490 = vpop.f32.mrb[0].mxu0
        %v7491 = vadd.f32 0.0, %v7490
        %v7492 = vpop.f32.mrb[0].mxu0
        %v7493 = vpop.f32.mrb[0].mxu0
        %v7494 = vadd.f32 0.0, %v7493
        %v7495 = vpop.f32.mrb[0].mxu0
        %7496 = vmatprep.mubr.bf16.mxu0 0
        %7497 = vmatmul.mubr.bf16.gmra.mrb[0].mxu0 %v5075
        %v7498 = vpop.f32.mrb[0].mxu0
        %v7499 = vadd.f32 0.0, %v7498
        %v7500 = vpop.f32.mrb[0].mxu0
        %v7501 = vpop.f32.mrb[0].mxu0
        %v7502 = vadd.f32 0.0, %v7501
        %v7503 = vpop.f32.mrb[0].mxu0
        %7504 = vmatprep.mubr.bf16.mxu0 0
        %7505 = vmatmul.mubr.bf16.gmra.mrb[0].mxu0 %v5078
        %v7506 = vpop.f32.mrb[0].mxu0
        %v7507 = vadd.f32 0.0, %v7506
        %v7508 = vpop.f32.mrb[0].mxu0
        %v7509 = vpop.f32.mrb[0].mxu0
        %v7510 = vadd.f32 0.0, %v7509
        %v7511 = vpop.f32.mrb[0].mxu0
        %7512 = vmatprep.mubr.bf16.mxu0 0
        %7513 = vmatmul.mubr.bf16.gmra.mrb[0].mxu0 %v5081
        %v7514 = vpop.f32.mrb[0].mxu0
        %v7515 = vadd.f32 0.0, %v7514
        %v7516 = vpop.f32.mrb[0].mxu0
        %v7517 = vpop.f32.mrb[0].mxu0
        %v7518 = vadd.f32 0.0, %v7517
        %v7519 = vpop.f32.mrb[0].mxu0
        %7520 = vmatprep.mubr.bf16.mxu0 0
        %7521 = vmatmul.mubr.bf16.gmra.mrb[0].mxu0 %v5084
        %v7522 = vpop.f32.mrb[0].mxu0
        %v7523 = vadd.f32 0.0, %v7522
        %v7524 = vpop.f32.mrb[0].mxu0
        %v7525 = vpop.f32.mrb[0].mxu0
        %v7526 = vadd.f32 0.0, %v7525
        %v7527 = vpop.f32.mrb[0].mxu0
        %7528 = vmatprep.mubr.bf16.mxu0 0
        %7529 = vmatmul.mubr.bf16.gmra.mrb[0].mxu0 %v5087
        %v7530 = vpop.f32.mrb[0].mxu0
        %v7531 = vadd.f32 0.0, %v7530
        %v7532 = vpop.f32.mrb[0].mxu0
        %v7533 = vpop.f32.mrb[0].mxu0
        %v7534 = vadd.f32 0.0, %v7533
        %v7535 = vpop.f32.mrb[0].mxu0
        %7536 = vmatprep.mubr.bf16.mxu0 0
        %7537 = vmatmul.mubr.bf16.gmra.mrb[0].mxu0 %v5090
        %v7538 = vpop.f32.mrb[0].mxu0
        %v7539 = vadd.f32 0.0, %v7538
        %v7540 = vpop.f32.mrb[0].mxu0
        %v7541 = vpop.f32.mrb[0].mxu0
        %v7542 = vadd.f32 0.0, %v7541
        %v7543 = vpop.f32.mrb[0].mxu0
        %7544 = vmatprep.mubr.bf16.mxu0 0
        %7545 = vmatmul.mubr.bf16.gmra.mrb[0].mxu0 %v5093
        %v7546 = vpop.f32.mrb[0].mxu0
        %v7547 = vadd.f32 0.0, %v7546
        %v7548 = vpop.f32.mrb[0].mxu0
        %v7549 = vpop.f32.mrb[0].mxu0
        %v7550 = vadd.f32 0.0, %v7549
        %v7551 = vpop.f32.mrb[0].mxu0
        %7552 = vmatprep.mubr.bf16.mxu0 0
        %7553 = vmatmul.mubr.bf16.gmra.mrb[0].mxu0 %v5096
        %v7554 = vpop.f32.mrb[0].mxu0
        %v7555 = vadd.f32 0.0, %v7554
        %v7556 = vpop.f32.mrb[0].mxu0
        %v7557 = vpop.f32.mrb[0].mxu0
        %v7558 = vadd.f32 0.0, %v7557
        %v7559 = vpop.f32.mrb[0].mxu0
        %7560 = vmatprep.mubr.bf16.mxu0 0
        %7561 = vmatmul.mubr.bf16.gmra.mrb[0].mxu0 %v5099
        %v7562 = vpop.f32.mrb[0].mxu0
        %v7563 = vadd.f32 0.0, %v7562
        %v7564 = vpop.f32.mrb[0].mxu0
        %v7565 = vpop.f32.mrb[0].mxu0
        %v7566 = vadd.f32 0.0, %v7565
        %v7567 = vpop.f32.mrb[0].mxu0
        %7568 = vmatprep.mubr.bf16.mxu0 0
        %7569 = vmatmul.mubr.bf16.gmra.mrb[0].mxu0 %v5102
        %v7570 = vpop.f32.mrb[0].mxu0
        %v7571 = vadd.f32 0.0, %v7570
        %v7572 = vpop.f32.mrb[0].mxu0
        %v7573 = vpop.f32.mrb[0].mxu0
        %v7574 = vadd.f32 0.0, %v7573
        %v7575 = vpop.f32.mrb[0].mxu0
        %7576 = vmatprep.mubr.bf16.mxu0 0
        %7577 = vmatmul.mubr.bf16.gmra.mrb[0].mxu0 %v5105
        %v7578 = vpop.f32.mrb[0].mxu0
        %v7579 = vadd.f32 0.0, %v7578
        %v7580 = vpop.f32.mrb[0].mxu0
        %v7581 = vpop.f32.mrb[0].mxu0
        %v7582 = vadd.f32 0.0, %v7581
        %v7583 = vpop.f32.mrb[0].mxu0
        %7584 = vmatprep.mubr.bf16.mxu0 0
        %7585 = vmatmul.mubr.bf16.gmra.mrb[0].mxu0 %v5108
        %v7586 = vpop.f32.mrb[0].mxu0
        %v7587 = vadd.f32 0.0, %v7586
        %v7588 = vpop.f32.mrb[0].mxu0
        %v7589 = vpop.f32.mrb[0].mxu0
        %v7590 = vadd.f32 0.0, %v7589
        %v7591 = vpop.f32.mrb[0].mxu0
        %7592 = vmatprep.mubr.bf16.mxu0 0
        %7593 = vmatmul.mubr.bf16.gmra.mrb[0].mxu0 %v5111
        %v7594 = vpop.f32.mrb[0].mxu0
        %v7595 = vadd.f32 0.0, %v7594
        %v7596 = vpop.f32.mrb[0].mxu0
        %v7597 = vpop.f32.mrb[0].mxu0
        %v7598 = vadd.f32 0.0, %v7597
        %v7599 = vpop.f32.mrb[0].mxu0
        %7600 = vmatprep.mubr.bf16.mxu0 0
        %7601 = vmatmul.mubr.bf16.gmra.mrb[0].mxu0 %v5114
        %v7602 = vpop.f32.mrb[0].mxu0
        %v7603 = vadd.f32 0.0, %v7602
        %v7604 = vpop.f32.mrb[0].mxu0
        %v7605 = vpop.f32.mrb[0].mxu0
        %v7606 = vadd.f32 0.0, %v7605
        %v7607 = vpop.f32.mrb[0].mxu0
        %7608 = vmatprep.mubr.bf16.mxu0 0
        %7609 = vmatmul.mubr.bf16.gmra.mrb[0].mxu0 %v5117
        %v7610 = vpop.f32.mrb[0].mxu0
        %v7611 = vadd.f32 0.0, %v7610
        %v7612 = vpop.f32.mrb[0].mxu0
        %v7613 = vpop.f32.mrb[0].mxu0
        %v7614 = vadd.f32 0.0, %v7613
        %v7615 = vpop.f32.mrb[0].mxu0
        %7616 = vmatprep.mubr.bf16.mxu0 0
        %7617 = vmatmul.mubr.bf16.gmra.mrb[0].mxu0 %v5120
        %v7618 = vpop.f32.mrb[0].mxu0
        %v7619 = vadd.f32 0.0, %v7618
        %v7620 = vpop.f32.mrb[0].mxu0
        %v7621 = vpop.f32.mrb[0].mxu0
        %v7622 = vadd.f32 0.0, %v7621
        %v7623 = vpop.f32.mrb[0].mxu0
        %7624 = vmatprep.mubr.bf16.mxu0 0
        %7625 = vmatmul.mubr.bf16.gmra.mrb[0].mxu0 %v5123
        %v7626 = vpop.f32.mrb[0].mxu0
        %v7627 = vadd.f32 0.0, %v7626
        %v7628 = vpop.f32.mrb[0].mxu0
        %v7629 = vpop.f32.mrb[0].mxu0
        %v7630 = vadd.f32 0.0, %v7629
        %v7631 = vpop.f32.mrb[0].mxu0
        %7632 = vmatprep.mubr.bf16.mxu0 0
        %7633 = vmatmul.mubr.bf16.gmra.mrb[0].mxu0 %v5126
        %v7634 = vpop.f32.mrb[0].mxu0
        %v7635 = vadd.f32 0.0, %v7634
        %v7636 = vpop.f32.mrb[0].mxu0
        %v7637 = vpop.f32.mrb[0].mxu0
        %v7638 = vadd.f32 0.0, %v7637
        %v7639 = vpop.f32.mrb[0].mxu0
        %7640 = vmatprep.mubr.bf16.mxu0 0
        %7641 = vmatmul.mubr.bf16.gmra.mrb[0].mxu0 %v5129
        %v7642 = vpop.f32.mrb[0].mxu0
        %v7643 = vadd.f32 0.0, %v7642
        %v7644 = vpop.f32.mrb[0].mxu0
        %v7645 = vpop.f32.mrb[0].mxu0
        %v7646 = vadd.f32 0.0, %v7645
        %v7647 = vpop.f32.mrb[0].mxu0
        %7648 = vmatprep.mubr.bf16.mxu0 0
        %7649 = vmatmul.mubr.bf16.gmra.mrb[0].mxu0 %v5132
        %v7650 = vpop.f32.mrb[0].mxu0
        %v7651 = vadd.f32 0.0, %v7650
        %v7652 = vpop.f32.mrb[0].mxu0
        %v7653 = vpop.f32.mrb[0].mxu0
        %v7654 = vadd.f32 0.0, %v7653
        %v7655 = vpop.f32.mrb[0].mxu0
        %7656 = vmatprep.mubr.bf16.mxu0 0
        %7657 = vmatmul.mubr.bf16.gmra.mrb[0].mxu0 %v5135
        %v7658 = vpop.f32.mrb[0].mxu0
        %v7659 = vadd.f32 0.0, %v7658
        %v7660 = vpop.f32.mrb[0].mxu0
        %v7661 = vpop.f32.mrb[0].mxu0
        %v7662 = vadd.f32 0.0, %v7661
        %v7663 = vpop.f32.mrb[0].mxu0
        %7664 = vmatprep.mubr.bf16.mxu0 0
        %7665 = vmatmul.mubr.bf16.gmra.mrb[0].mxu0 %v5138
        %v7666 = vpop.f32.mrb[0].mxu0
        %v7667 = vadd.f32 0.0, %v7666
        %v7668 = vpop.f32.mrb[0].mxu0
        %v7669 = vpop.f32.mrb[0].mxu0
        %v7670 = vadd.f32 0.0, %v7669
        %v7671 = vpop.f32.mrb[0].mxu0
        %7672 = vmatprep.mubr.bf16.mxu0 0
        %7673 = vmatmul.mubr.bf16.gmra.mrb[0].mxu0 %v5141
        %v7674 = vpop.f32.mrb[0].mxu0
        %v7675 = vadd.f32 0.0, %v7674
        %v7676 = vpop.f32.mrb[0].mxu0
        %v7677 = vpop.f32.mrb[0].mxu0
        %v7678 = vadd.f32 0.0, %v7677
        %v7679 = vpop.f32.mrb[0].mxu0
        %7680 = vmatprep.mubr.bf16.mxu0 0
        %7681 = vmatmul.mubr.bf16.gmra.mrb[0].mxu0 %v5144
        %v7682 = vpop.f32.mrb[0].mxu0
        %v7683 = vadd.f32 0.0, %v7682
        %v7684 = vpop.f32.mrb[0].mxu0
        %v7685 = vpop.f32.mrb[0].mxu0
        %v7686 = vadd.f32 0.0, %v7685
        %v7687 = vpop.f32.mrb[0].mxu0
        %7688 = vmatprep.mubr.bf16.mxu0 0
        %7689 = vmatmul.mubr.bf16.gmra.mrb[0].mxu0 %v5147
        %v7690 = vpop.f32.mrb[0].mxu0
        %v7691 = vadd.f32 0.0, %v7690
        %v7692 = vpop.f32.mrb[0].mxu0
        %v7693 = vpop.f32.mrb[0].mxu0
        %v7694 = vadd.f32 0.0, %v7693
        %v7695 = vpop.f32.mrb[0].mxu0
        %7696 = vmatprep.mubr.bf16.mxu0 0
        %7697 = vmatmul.mubr.bf16.gmra.mrb[0].mxu0 %v5150
        %v7698 = vpop.f32.mrb[0].mxu0
        %v7699 = vadd.f32 0.0, %v7698
        %v7700 = vpop.f32.mrb[0].mxu0
        %v7701 = vpop.f32.mrb[0].mxu0
        %v7702 = vadd.f32 0.0, %v7701
        %v7703 = vpop.f32.mrb[0].mxu0
        %7704 = vmatprep.mubr.bf16.mxu0 0
        %7705 = vmatmul.mubr.bf16.gmra.mrb[0].mxu0 %v5153
        %v7706 = vpop.f32.mrb[0].mxu0
        %v7707 = vadd.f32 0.0, %v7706
        %v7708 = vpop.f32.mrb[0].mxu0
        %v7709 = vpop.f32.mrb[0].mxu0
        %v7710 = vadd.f32 0.0, %v7709
        %v7711 = vpop.f32.mrb[0].mxu0
        %7712 = vmatprep.mubr.bf16.mxu0 0
        %7713 = vmatmul.mubr.bf16.gmra.mrb[0].mxu0 %v5156
        %v7714 = vpop.f32.mrb[0].mxu0
        %v7715 = vadd.f32 0.0, %v7714
        %v7716 = vpop.f32.mrb[0].mxu0
        %v7717 = vpop.f32.mrb[0].mxu0
        %v7718 = vadd.f32 0.0, %v7717
        %v7719 = vpop.f32.mrb[0].mxu0
        %7720 = vmatprep.mubr.bf16.mxu0 0
        %7721 = vmatmul.mubr.bf16.gmra.mrb[0].mxu0 %v5159
        %v7722 = vpop.f32.mrb[0].mxu0
        %v7723 = vadd.f32 0.0, %v7722
        %v7724 = vpop.f32.mrb[0].mxu0
        %v7725 = vpop.f32.mrb[0].mxu0
        %v7726 = vadd.f32 0.0, %v7725
        %v7727 = vpop.f32.mrb[0].mxu0
        %7728 = vmatprep.mubr.bf16.mxu0 0
        %7729 = vmatmul.mubr.bf16.gmra.mrb[0].mxu0 %v5162
        %v7730 = vpop.f32.mrb[0].mxu0
        %v7731 = vadd.f32 0.0, %v7730
        %v7732 = vpop.f32.mrb[0].mxu0
        %v7733 = vpop.f32.mrb[0].mxu0
        %v7734 = vadd.f32 0.0, %v7733
        %v7735 = vpop.f32.mrb[0].mxu0
        %7736 = vmatprep.mubr.bf16.mxu0 0
        %7737 = vmatmul.mubr.bf16.gmra.mrb[0].mxu0 %v5165
        %v7738 = vpop.f32.mrb[0].mxu0
        %v7739 = vadd.f32 0.0, %v7738
        %v7740 = vpop.f32.mrb[0].mxu0
        %v7741 = vpop.f32.mrb[0].mxu0
        %v7742 = vadd.f32 0.0, %v7741
        %v7743 = vpop.f32.mrb[0].mxu0
        %7744 = vmatprep.mubr.bf16.mxu0 0
        %7745 = vmatmul.mubr.bf16.gmra.mrb[0].mxu0 %v5168
        %v7746 = vpop.f32.mrb[0].mxu0
        %v7747 = vadd.f32 0.0, %v7746
        %v7748 = vpop.f32.mrb[0].mxu0
        %v7749 = vpop.f32.mrb[0].mxu0
        %v7750 = vadd.f32 0.0, %v7749
        %v7751 = vpop.f32.mrb[0].mxu0
        %7752 = vmatprep.mubr.bf16.mxu0 0
        %7753 = vmatmul.mubr.bf16.gmra.mrb[0].mxu0 %v5171
        %v7754 = vpop.f32.mrb[0].mxu0
        %v7755 = vadd.f32 0.0, %v7754
        %v7756 = vpop.f32.mrb[0].mxu0
        %v7757 = vpop.f32.mrb[0].mxu0
        %v7758 = vadd.f32 0.0, %v7757
        %v7759 = vpop.f32.mrb[0].mxu0
        %7760 = vmatprep.mubr.bf16.mxu0 0
        %7761 = vmatmul.mubr.bf16.gmra.mrb[0].mxu0 %v5174
        %v7762 = vpop.f32.mrb[0].mxu0
        %v7763 = vadd.f32 0.0, %v7762
        %v7764 = vpop.f32.mrb[0].mxu0
        %v7765 = vpop.f32.mrb[0].mxu0
        %v7766 = vadd.f32 0.0, %v7765
        %v7767 = vpop.f32.mrb[0].mxu0
        %7768 = vmatprep.mubr.bf16.mxu0 0
        %7769 = vmatmul.mubr.bf16.gmra.mrb[0].mxu0 %v5177
        %v7770 = vpop.f32.mrb[0].mxu0
        %v7771 = vadd.f32 0.0, %v7770
        %v7772 = vpop.f32.mrb[0].mxu0
        %v7773 = vpop.f32.mrb[0].mxu0
        %v7774 = vadd.f32 0.0, %v7773
        %v7775 = vpop.f32.mrb[0].mxu0
        %7776 = vmatprep.mubr.bf16.mxu0 0
        %7777 = vmatmul.mubr.bf16.gmra.mrb[0].mxu0 %v5180
        %v7778 = vpop.f32.mrb[0].mxu0
        %v7779 = vadd.f32 0.0, %v7778
        %v7780 = vpop.f32.mrb[0].mxu0
        %v7781 = vpop.f32.mrb[0].mxu0
        %v7782 = vadd.f32 0.0, %v7781
        %v7783 = vpop.f32.mrb[0].mxu0
        %7784 = vmatprep.mubr.bf16.mxu0 0
        %7785 = vmatmul.mubr.bf16.gmra.mrb[0].mxu0 %v5183
        %v7786 = vpop.f32.mrb[0].mxu0
        %v7787 = vadd.f32 0.0, %v7786
        %v7788 = vpop.f32.mrb[0].mxu0
        %v7789 = vpop.f32.mrb[0].mxu0
        %v7790 = vadd.f32 0.0, %v7789
        %v7791 = vpop.f32.mrb[0].mxu0
        %7792 = vmatprep.mubr.bf16.mxu0 0
        %7793 = vmatmul.mubr.bf16.gmra.mrb[0].mxu0 %v5186
        %v7794 = vpop.f32.mrb[0].mxu0
        %v7795 = vadd.f32 0.0, %v7794
        %v7796 = vpop.f32.mrb[0].mxu0
        %v7797 = vpop.f32.mrb[0].mxu0
        %v7798 = vadd.f32 0.0, %v7797
        %v7799 = vpop.f32.mrb[0].mxu0
        %7800 = vmatprep.mubr.bf16.mxu0 0
        %7801 = vmatmul.mubr.bf16.gmra.mrb[0].mxu0 %v5189
        %v7802 = vpop.f32.mrb[0].mxu0
        %v7803 = vadd.f32 0.0, %v7802
        %v7804 = vpop.f32.mrb[0].mxu0
        %v7805 = vpop.f32.mrb[0].mxu0
        %v7806 = vadd.f32 0.0, %v7805
        %v7807 = vpop.f32.mrb[0].mxu0
        %7808 = vmatprep.mubr.bf16.mxu0 0
        %7809 = vmatmul.mubr.bf16.gmra.mrb[0].mxu0 %v5192
        %v7810 = vpop.f32.mrb[0].mxu0
        %v7811 = vadd.f32 0.0, %v7810
        %v7812 = vpop.f32.mrb[0].mxu0
        %v7813 = vpop.f32.mrb[0].mxu0
        %v7814 = vadd.f32 0.0, %v7813
        %v7815 = vpop.f32.mrb[0].mxu0
        %7816 = vmatprep.mubr.bf16.mxu0 0
        %7817 = vmatmul.mubr.bf16.gmra.mrb[0].mxu0 %v5195
        %v7818 = vpop.f32.mrb[0].mxu0
        %v7819 = vadd.f32 0.0, %v7818
        %v7820 = vpop.f32.mrb[0].mxu0
        %v7821 = vpop.f32.mrb[0].mxu0
        %v7822 = vadd.f32 0.0, %v7821
        %v7823 = vpop.f32.mrb[0].mxu0
        %7824 = vmatprep.mubr.bf16.mxu0 0
        %7825 = vmatmul.mubr.bf16.gmra.mrb[0].mxu0 %v5198
        %v7826 = vpop.f32.mrb[0].mxu0
        %v7827 = vadd.f32 0.0, %v7826
        %v7828 = vpop.f32.mrb[0].mxu0
        %v7829 = vpop.f32.mrb[0].mxu0
        %v7830 = vadd.f32 0.0, %v7829
        %v7831 = vpop.f32.mrb[0].mxu0
        %7832 = vmatprep.mubr.bf16.mxu0 0
        %7833 = vmatmul.mubr.bf16.gmra.mrb[0].mxu0 %v5201
        %v7834 = vpop.f32.mrb[0].mxu0
        %v7835 = vadd.f32 0.0, %v7834
        %v7836 = vpop.f32.mrb[0].mxu0
        %v7837 = vpop.f32.mrb[0].mxu0
        %v7838 = vadd.f32 0.0, %v7837
        %v7839 = vpop.f32.mrb[0].mxu0
        %7840 = vmatprep.mubr.bf16.mxu0 0
        %7841 = vmatmul.mubr.bf16.gmra.mrb[0].mxu0 %v5204
        %v7842 = vpop.f32.mrb[0].mxu0
        %v7843 = vadd.f32 0.0, %v7842
        %v7844 = vpop.f32.mrb[0].mxu0
        %v7845 = vpop.f32.mrb[0].mxu0
        %v7846 = vadd.f32 0.0, %v7845
        %v7847 = vpop.f32.mrb[0].mxu0
        %7848 = vmatprep.mubr.bf16.mxu0 0
        %7849 = vmatmul.mubr.bf16.gmra.mrb[0].mxu0 %v7312
        %v7850 = vpop.f32.mrb[0].mxu0
        %v7851 = vadd.f32 0.0, %v7850
        %v7852 = vpop.f32.mrb[0].mxu0
        %v7853 = vpop.f32.mrb[0].mxu0
        %v7854 = vadd.f32 0.0, %v7853
        %v7855 = vpop.f32.mrb[0].mxu0
        %7856 = vmatprep.mubr.bf16.mxu0 0
        %7857 = vmatmul.mubr.bf16.gmra.mrb[0].mxu0 %v7315
        %v7858 = vpop.f32.mrb[0].mxu0
        %v7859 = vadd.f32 0.0, %v7858
        %v7860 = vpop.f32.mrb[0].mxu0
        %v7861 = vpop.f32.mrb[0].mxu0
        %v7862 = vadd.f32 0.0, %v7861
        %v7863 = vpop.f32.mrb[0].mxu0
        %7864 = vdwg.mxu0
        %v7865 = vadd.f32 %v7171, %v7355
        %v7866 = vadd.f32 %v7172, %v7358
        %v7867 = vadd.f32 %v7173, %v7363
        %v7868 = vadd.f32 %v7174, %v7366
        %v7869 = vadd.f32 %v7175, %v7371
        %v7870 = vadd.f32 %v7176, %v7374
        %v7871 = vadd.f32 %v7177, %v7379
        %v7872 = vadd.f32 %v7178, %v7382
        %v7873 = vadd.f32 %v7179, %v7387
        %v7874 = vadd.f32 %v7180, %v7390
        %v7875 = vadd.f32 %v7181, %v7395
        %v7876 = vadd.f32 %v7182, %v7398
        %v7877 = vadd.f32 %v7183, %v7403
        %v7878 = vadd.f32 %v7184, %v7406
        %v7879 = vadd.f32 %v7185, %v7411
        %v7880 = vadd.f32 %v7186, %v7414
        %v7881 = vadd.f32 %v7187, %v7419
        %v7882 = vadd.f32 %v7188, %v7422
        %v7883 = vadd.f32 %v7189, %v7427
        %v7884 = vadd.f32 %v7190, %v7430
        %v7885 = vadd.f32 %v7191, %v7435
        %v7886 = vadd.f32 %v7192, %v7438
        %v7887 = vadd.f32 %v7193, %v7443
        %v7888 = vadd.f32 %v7194, %v7446
        %v7889 = vadd.f32 %v7195, %v7451
        %v7890 = vadd.f32 %v7196, %v7454
        %v7891 = vadd.f32 %v7197, %v7459
        %v7892 = vadd.f32 %v7198, %v7462
        %v7893 = vadd.f32 %v7199, %v7467
        %v7894 = vadd.f32 %v7200, %v7470
        %v7895 = vadd.f32 %v7201, %v7475
        %v7896 = vadd.f32 %v7202, %v7478
        %v7897 = vadd.f32 %v7203, %v7483
        %v7898 = vadd.f32 %v7204, %v7486
        %v7899 = vadd.f32 %v7205, %v7491
        %v7900 = vadd.f32 %v7206, %v7494
        %v7901 = vadd.f32 %v7207, %v7499
        %v7902 = vadd.f32 %v7208, %v7502
        %v7903 = vadd.f32 %v7209, %v7507
        %v7904 = vadd.f32 %v7210, %v7510
        %v7905 = vadd.f32 %v7211, %v7515
        %v7906 = vadd.f32 %v7212, %v7518
        %v7907 = vadd.f32 %v7213, %v7523
        %v7908 = vadd.f32 %v7214, %v7526
        %v7909 = vadd.f32 %v7215, %v7531
        %v7910 = vadd.f32 %v7216, %v7534
        %v7911 = vadd.f32 %v7217, %v7539
        %v7912 = vadd.f32 %v7218, %v7542
        %v7913 = vadd.f32 %v7219, %v7547
        %v7914 = vadd.f32 %v7220, %v7550
        %v7915 = vadd.f32 %v7221, %v7555
        %v7916 = vadd.f32 %v7222, %v7558
        %v7917 = vadd.f32 %v7223, %v7563
        %v7918 = vadd.f32 %v7224, %v7566
        %v7919 = vadd.f32 %v7225, %v7571
        %v7920 = vadd.f32 %v7226, %v7574
        %v7921 = vadd.f32 %v7227, %v7579
        %v7922 = vadd.f32 %v7228, %v7582
        %v7923 = vadd.f32 %v7229, %v7587
        %v7924 = vadd.f32 %v7230, %v7590
        %v7925 = vadd.f32 %v7231, %v7595
        %v7926 = vadd.f32 %v7232, %v7598
        %v7927 = vadd.f32 %v7233, %v7603
        %v7928 = vadd.f32 %v7234, %v7606
        %v7929 = vadd.f32 %v7235, %v7611
        %v7930 = vadd.f32 %v7236, %v7614
        %v7931 = vadd.f32 %v7237, %v7619
        %v7932 = vadd.f32 %v7238, %v7622
        %v7933 = vadd.f32 %v7239, %v7627
        %v7934 = vadd.f32 %v7240, %v7630
        %v7935 = vadd.f32 %v7241, %v7635
        %v7936 = vadd.f32 %v7242, %v7638
        %v7937 = vadd.f32 %v7243, %v7643
        %v7938 = vadd.f32 %v7244, %v7646
        %v7939 = vadd.f32 %v7245, %v7651
        %v7940 = vadd.f32 %v7246, %v7654
        %v7941 = vadd.f32 %v7247, %v7659
        %v7942 = vadd.f32 %v7248, %v7662
        %v7943 = vadd.f32 %v7249, %v7667
        %v7944 = vadd.f32 %v7250, %v7670
        %v7945 = vadd.f32 %v7251, %v7675
        %v7946 = vadd.f32 %v7252, %v7678
        %v7947 = vadd.f32 %v7253, %v7683
        %v7948 = vadd.f32 %v7254, %v7686
        %v7949 = vadd.f32 %v7255, %v7691
        %v7950 = vadd.f32 %v7256, %v7694
        %v7951 = vadd.f32 %v7257, %v7699
        %v7952 = vadd.f32 %v7258, %v7702
        %v7953 = vadd.f32 %v7259, %v7707
        %v7954 = vadd.f32 %v7260, %v7710
        %v7955 = vadd.f32 %v7261, %v7715
        %v7956 = vadd.f32 %v7262, %v7718
        %v7957 = vadd.f32 %v7263, %v7723
        %v7958 = vadd.f32 %v7264, %v7726
        %v7959 = vadd.f32 %v7265, %v7731
        %v7960 = vadd.f32 %v7266, %v7734
        %v7961 = vadd.f32 %v7267, %v7739
        %v7962 = vadd.f32 %v7268, %v7742
        %v7963 = vadd.f32 %v7269, %v7747
        %v7964 = vadd.f32 %v7270, %v7750
        %v7965 = vadd.f32 %v7271, %v7755
        %v7966 = vadd.f32 %v7272, %v7758
        %v7967 = vadd.f32 %v7273, %v7763
        %v7968 = vadd.f32 %v7274, %v7766
        %v7969 = vadd.f32 %v7275, %v7771
        %v7970 = vadd.f32 %v7276, %v7774
        %v7971 = vadd.f32 %v7277, %v7779
        %v7972 = vadd.f32 %v7278, %v7782
        %v7973 = vadd.f32 %v7279, %v7787
        %v7974 = vadd.f32 %v7280, %v7790
        %v7975 = vadd.f32 %v7281, %v7795
        %v7976 = vadd.f32 %v7282, %v7798
        %v7977 = vadd.f32 %v7283, %v7803
        %v7978 = vadd.f32 %v7284, %v7806
        %v7979 = vadd.f32 %v7285, %v7811
        %v7980 = vadd.f32 %v7286, %v7814
        %v7981 = vadd.f32 %v7287, %v7819
        %v7982 = vadd.f32 %v7288, %v7822
        %v7983 = vadd.f32 %v7289, %v7827
        %v7984 = vadd.f32 %v7290, %v7830
        %v7985 = vadd.f32 %v7291, %v7835
        %v7986 = vadd.f32 %v7292, %v7838
        %v7987 = vadd.f32 %v7293, %v7843
        %v7988 = vadd.f32 %v7294, %v7846
        %v7989 = vadd.f32 %v7295, %v7851
        %v7990 = vadd.f32 %v7296, %v7854
        %v7991 = vadd.f32 %v7297, %v7859
        %v7992 = vadd.f32 %v7298, %v7862
        %v7994 = vshrl.u32 %v2267, 16
        %v7996 = vrot.slane %v7994, 4
        %v7997 = vshll.u32 %v2267, 16
        %v7999 = vrot.slane %v7997, 5
        %v8000 = vor.u32 %v7996, %v7999
        %v8001 = vrot.slane %v8000, 4
        %v8003 = vshll.u32 %v2268, 16
        %v8005 = vrot.slane %v8003, 5
        %v8006 = vsel %vm2346, %v8001, %v8005
        %v8007 = vshrl.u32 %v2268, 16
        %v8009 = vrot.slane %v8007, 4
        %v8010 = vor.u32 %v8009, %v8005
        %v8011 = vrot.slane %v8010, 4
        %v8013 = vshll.u32 %v2269, 16
        %v8015 = vrot.slane %v8013, 5
        %v8016 = vsel %vm2346, %v8011, %v8015
        %v8017 = vshrl.u32 %v2269, 16
        %v8019 = vrot.slane %v8017, 4
        %v8020 = vor.u32 %v8019, %v8015
        %v8021 = vrot.slane %v8020, 4
        %v8023 = vshll.u32 %v2270, 16
        %v8025 = vrot.slane %v8023, 5
        %v8026 = vsel %vm2346, %v8021, %v8025
        %v8027 = vshrl.u32 %v2270, 16
        %v8029 = vrot.slane %v8027, 4
        %v8030 = vor.u32 %v8029, %v8025
        %v8031 = vrot.slane %v8030, 4
        %v8033 = vshll.u32 %v2307, 16
        %v8035 = vrot.slane %v8033, 5
        %v8036 = vsel %vm2346, %v8031, %v8035
        %s8037 = scalar_lea.vmem %s210, 8
        %v8038 = vld [vmem:[%s8037] sm:$0x3]
        %v8039 = vunpack.c.l.b16 %v8006
        %v8040 = vunpack.c.l.b16 %v8016
        %v8041 = vunpack.c.l.b16 %v8026
        %v8042 = vunpack.c.l.b16 %v8036
        %v8043 = vpack.c.b16 %v8040, %v8039
        %v8044 = vpack.c.b16 %v8042, %v8041
        %v8046 = vsel %vm3949, %v8043, 0
        %v8049 = vsel %vm3949, %v8044, 0
        %v8052 = vand.u32 %v8038, %v4145
        %8054 = vmatprep.subr.bf16.mxu0 0
        %8055 = vmatpush1.bf16.msra.mxu0 %v8052
        %8056 = vmatprep.subr.bf16.mxu0 0
        %8057 = vmatpush1.bf16.msra.mxu0 0
        %8058 = vmatprep.subr.bf16.mxu0 0
        %8059 = vmatpush1.bf16.msra.mxu0 0
        %8060 = vmatprep.subr.bf16.mxu0 0
        %8061 = vmatpush1.bf16.msra.mxu0 0
        %8062 = vmatprep.subr.bf16.mxu0 0
        %8063 = vmatpush1.bf16.msra.mxu0 0
        %8064 = vmatprep.subr.bf16.mxu0 0
        %8065 = vmatpush1.bf16.msra.mxu0 0
        %8066 = vmatprep.subr.bf16.mxu0 0
        %8067 = vmatpush1.bf16.msra.mxu0 0
        %8068 = vmatprep.subr.bf16.mxu0 0
        %8069 = vmatpush1.bf16.msra.mxu0 0
        %8070 = vmatprep.subr.bf16.mxu0 0
        %8071 = vmatpush1.bf16.msra.mxu0 0
        %8072 = vmatprep.subr.bf16.mxu0 0
        %8073 = vmatpush1.bf16.msra.mxu0 0
        %8074 = vmatprep.subr.bf16.mxu0 0
        %8075 = vmatpush1.bf16.msra.mxu0 0
        %8076 = vmatprep.subr.bf16.mxu0 0
        %8077 = vmatpush1.bf16.msra.mxu0 0
        %8078 = vmatprep.subr.bf16.mxu0 0
        %8079 = vmatpush1.bf16.msra.mxu0 0
        %8080 = vmatprep.subr.bf16.mxu0 0
        %8081 = vmatpush1.bf16.msra.mxu0 0
        %8082 = vmatprep.subr.bf16.mxu0 0
        %8083 = vmatpush1.bf16.msra.mxu0 0
        %8084 = vmatprep.subr.bf16.mxu0 0
        %8085 = vmatpush1.bf16.msra.mxu0 0
        %8086 = vmatprep.mubr.bf16.mxu0 0
        %8087 = vmatmul.mubr.bf16.gmra.mrb[0].mxu0 %v3957
        %v8088 = vpop.f32.mrb[0].mxu0
        %v8089 = vadd.f32 0.0, %v8088
        %v8090 = vpop.f32.mrb[0].mxu0
        %v8091 = vpop.f32.mrb[0].mxu0
        %v8092 = vadd.f32 0.0, %v8091
        %v8093 = vpop.f32.mrb[0].mxu0
        %8094 = vmatprep.mubr.bf16.mxu0 0
        %8095 = vmatmul.mubr.bf16.gmra.mrb[0].mxu0 %v3960
        %v8096 = vpop.f32.mrb[0].mxu0
        %v8097 = vadd.f32 0.0, %v8096
        %v8098 = vpop.f32.mrb[0].mxu0
        %v8099 = vpop.f32.mrb[0].mxu0
        %v8100 = vadd.f32 0.0, %v8099
        %v8101 = vpop.f32.mrb[0].mxu0
        %8102 = vmatprep.mubr.bf16.mxu0 0
        %8103 = vmatmul.mubr.bf16.gmra.mrb[0].mxu0 %v3963
        %v8104 = vpop.f32.mrb[0].mxu0
        %v8105 = vadd.f32 0.0, %v8104
        %v8106 = vpop.f32.mrb[0].mxu0
        %v8107 = vpop.f32.mrb[0].mxu0
        %v8108 = vadd.f32 0.0, %v8107
        %v8109 = vpop.f32.mrb[0].mxu0
        %8110 = vmatprep.mubr.bf16.mxu0 0
        %8111 = vmatmul.mubr.bf16.gmra.mrb[0].mxu0 %v3966
        %v8112 = vpop.f32.mrb[0].mxu0
        %v8113 = vadd.f32 0.0, %v8112
        %v8114 = vpop.f32.mrb[0].mxu0
        %v8115 = vpop.f32.mrb[0].mxu0
        %v8116 = vadd.f32 0.0, %v8115
        %v8117 = vpop.f32.mrb[0].mxu0
        %8118 = vmatprep.mubr.bf16.mxu0 0
        %8119 = vmatmul.mubr.bf16.gmra.mrb[0].mxu0 %v3969
        %v8120 = vpop.f32.mrb[0].mxu0
        %v8121 = vadd.f32 0.0, %v8120
        %v8122 = vpop.f32.mrb[0].mxu0
        %v8123 = vpop.f32.mrb[0].mxu0
        %v8124 = vadd.f32 0.0, %v8123
        %v8125 = vpop.f32.mrb[0].mxu0
        %8126 = vmatprep.mubr.bf16.mxu0 0
        %8127 = vmatmul.mubr.bf16.gmra.mrb[0].mxu0 %v3972
        %v8128 = vpop.f32.mrb[0].mxu0
        %v8129 = vadd.f32 0.0, %v8128
        %v8130 = vpop.f32.mrb[0].mxu0
        %v8131 = vpop.f32.mrb[0].mxu0
        %v8132 = vadd.f32 0.0, %v8131
        %v8133 = vpop.f32.mrb[0].mxu0
        %8134 = vmatprep.mubr.bf16.mxu0 0
        %8135 = vmatmul.mubr.bf16.gmra.mrb[0].mxu0 %v3975
        %v8136 = vpop.f32.mrb[0].mxu0
        %v8137 = vadd.f32 0.0, %v8136
        %v8138 = vpop.f32.mrb[0].mxu0
        %v8139 = vpop.f32.mrb[0].mxu0
        %v8140 = vadd.f32 0.0, %v8139
        %v8141 = vpop.f32.mrb[0].mxu0
        %8142 = vmatprep.mubr.bf16.mxu0 0
        %8143 = vmatmul.mubr.bf16.gmra.mrb[0].mxu0 %v3978
        %v8144 = vpop.f32.mrb[0].mxu0
        %v8145 = vadd.f32 0.0, %v8144
        %v8146 = vpop.f32.mrb[0].mxu0
        %v8147 = vpop.f32.mrb[0].mxu0
        %v8148 = vadd.f32 0.0, %v8147
        %v8149 = vpop.f32.mrb[0].mxu0
        %8150 = vmatprep.mubr.bf16.mxu0 0
        %8151 = vmatmul.mubr.bf16.gmra.mrb[0].mxu0 %v3981
        %v8152 = vpop.f32.mrb[0].mxu0
        %v8153 = vadd.f32 0.0, %v8152
        %v8154 = vpop.f32.mrb[0].mxu0
        %v8155 = vpop.f32.mrb[0].mxu0
        %v8156 = vadd.f32 0.0, %v8155
        %v8157 = vpop.f32.mrb[0].mxu0
        %8158 = vmatprep.mubr.bf16.mxu0 0
        %8159 = vmatmul.mubr.bf16.gmra.mrb[0].mxu0 %v3984
        %v8160 = vpop.f32.mrb[0].mxu0
        %v8161 = vadd.f32 0.0, %v8160
        %v8162 = vpop.f32.mrb[0].mxu0
        %v8163 = vpop.f32.mrb[0].mxu0
        %v8164 = vadd.f32 0.0, %v8163
        %v8165 = vpop.f32.mrb[0].mxu0
        %8166 = vmatprep.mubr.bf16.mxu0 0
        %8167 = vmatmul.mubr.bf16.gmra.mrb[0].mxu0 %v3987
        %v8168 = vpop.f32.mrb[0].mxu0
        %v8169 = vadd.f32 0.0, %v8168
        %v8170 = vpop.f32.mrb[0].mxu0
        %v8171 = vpop.f32.mrb[0].mxu0
        %v8172 = vadd.f32 0.0, %v8171
        %v8173 = vpop.f32.mrb[0].mxu0
        %8174 = vmatprep.mubr.bf16.mxu0 0
        %8175 = vmatmul.mubr.bf16.gmra.mrb[0].mxu0 %v3990
        %v8176 = vpop.f32.mrb[0].mxu0
        %v8177 = vadd.f32 0.0, %v8176
        %v8178 = vpop.f32.mrb[0].mxu0
        %v8179 = vpop.f32.mrb[0].mxu0
        %v8180 = vadd.f32 0.0, %v8179
        %v8181 = vpop.f32.mrb[0].mxu0
        %8182 = vmatprep.mubr.bf16.mxu0 0
        %8183 = vmatmul.mubr.bf16.gmra.mrb[0].mxu0 %v3993
        %v8184 = vpop.f32.mrb[0].mxu0
        %v8185 = vadd.f32 0.0, %v8184
        %v8186 = vpop.f32.mrb[0].mxu0
        %v8187 = vpop.f32.mrb[0].mxu0
        %v8188 = vadd.f32 0.0, %v8187
        %v8189 = vpop.f32.mrb[0].mxu0
        %8190 = vmatprep.mubr.bf16.mxu0 0
        %8191 = vmatmul.mubr.bf16.gmra.mrb[0].mxu0 %v3996
        %v8192 = vpop.f32.mrb[0].mxu0
        %v8193 = vadd.f32 0.0, %v8192
        %v8194 = vpop.f32.mrb[0].mxu0
        %v8195 = vpop.f32.mrb[0].mxu0
        %v8196 = vadd.f32 0.0, %v8195
        %v8197 = vpop.f32.mrb[0].mxu0
        %8198 = vmatprep.mubr.bf16.mxu0 0
        %8199 = vmatmul.mubr.bf16.gmra.mrb[0].mxu0 %v3999
        %v8200 = vpop.f32.mrb[0].mxu0
        %v8201 = vadd.f32 0.0, %v8200
        %v8202 = vpop.f32.mrb[0].mxu0
        %v8203 = vpop.f32.mrb[0].mxu0
        %v8204 = vadd.f32 0.0, %v8203
        %v8205 = vpop.f32.mrb[0].mxu0
        %8206 = vmatprep.mubr.bf16.mxu0 0
        %8207 = vmatmul.mubr.bf16.gmra.mrb[0].mxu0 %v4002
        %v8208 = vpop.f32.mrb[0].mxu0
        %v8209 = vadd.f32 0.0, %v8208
        %v8210 = vpop.f32.mrb[0].mxu0
        %v8211 = vpop.f32.mrb[0].mxu0
        %v8212 = vadd.f32 0.0, %v8211
        %v8213 = vpop.f32.mrb[0].mxu0
        %8214 = vmatprep.mubr.bf16.mxu0 0
        %8215 = vmatmul.mubr.bf16.gmra.mrb[0].mxu0 %v4005
        %v8216 = vpop.f32.mrb[0].mxu0
        %v8217 = vadd.f32 0.0, %v8216
        %v8218 = vpop.f32.mrb[0].mxu0
        %v8219 = vpop.f32.mrb[0].mxu0
        %v8220 = vadd.f32 0.0, %v8219
        %v8221 = vpop.f32.mrb[0].mxu0
        %8222 = vmatprep.mubr.bf16.mxu0 0
        %8223 = vmatmul.mubr.bf16.gmra.mrb[0].mxu0 %v4008
        %v8224 = vpop.f32.mrb[0].mxu0
        %v8225 = vadd.f32 0.0, %v8224
        %v8226 = vpop.f32.mrb[0].mxu0
        %v8227 = vpop.f32.mrb[0].mxu0
        %v8228 = vadd.f32 0.0, %v8227
        %v8229 = vpop.f32.mrb[0].mxu0
        %8230 = vmatprep.mubr.bf16.mxu0 0
        %8231 = vmatmul.mubr.bf16.gmra.mrb[0].mxu0 %v4011
        %v8232 = vpop.f32.mrb[0].mxu0
        %v8233 = vadd.f32 0.0, %v8232
        %v8234 = vpop.f32.mrb[0].mxu0
        %v8235 = vpop.f32.mrb[0].mxu0
        %v8236 = vadd.f32 0.0, %v8235
        %v8237 = vpop.f32.mrb[0].mxu0
        %8238 = vmatprep.mubr.bf16.mxu0 0
        %8239 = vmatmul.mubr.bf16.gmra.mrb[0].mxu0 %v4014
        %v8240 = vpop.f32.mrb[0].mxu0
        %v8241 = vadd.f32 0.0, %v8240
        %v8242 = vpop.f32.mrb[0].mxu0
        %v8243 = vpop.f32.mrb[0].mxu0
        %v8244 = vadd.f32 0.0, %v8243
        %v8245 = vpop.f32.mrb[0].mxu0
        %8246 = vmatprep.mubr.bf16.mxu0 0
        %8247 = vmatmul.mubr.bf16.gmra.mrb[0].mxu0 %v4017
        %v8248 = vpop.f32.mrb[0].mxu0
        %v8249 = vadd.f32 0.0, %v8248
        %v8250 = vpop.f32.mrb[0].mxu0
        %v8251 = vpop.f32.mrb[0].mxu0
        %v8252 = vadd.f32 0.0, %v8251
        %v8253 = vpop.f32.mrb[0].mxu0
        %8254 = vmatprep.mubr.bf16.mxu0 0
        %8255 = vmatmul.mubr.bf16.gmra.mrb[0].mxu0 %v4020
        %v8256 = vpop.f32.mrb[0].mxu0
        %v8257 = vadd.f32 0.0, %v8256
        %v8258 = vpop.f32.mrb[0].mxu0
        %v8259 = vpop.f32.mrb[0].mxu0
        %v8260 = vadd.f32 0.0, %v8259
        %v8261 = vpop.f32.mrb[0].mxu0
        %8262 = vmatprep.mubr.bf16.mxu0 0
        %8263 = vmatmul.mubr.bf16.gmra.mrb[0].mxu0 %v4023
        %v8264 = vpop.f32.mrb[0].mxu0
        %v8265 = vadd.f32 0.0, %v8264
        %v8266 = vpop.f32.mrb[0].mxu0
        %v8267 = vpop.f32.mrb[0].mxu0
        %v8268 = vadd.f32 0.0, %v8267
        %v8269 = vpop.f32.mrb[0].mxu0
        %8270 = vmatprep.mubr.bf16.mxu0 0
        %8271 = vmatmul.mubr.bf16.gmra.mrb[0].mxu0 %v4026
        %v8272 = vpop.f32.mrb[0].mxu0
        %v8273 = vadd.f32 0.0, %v8272
        %v8274 = vpop.f32.mrb[0].mxu0
        %v8275 = vpop.f32.mrb[0].mxu0
        %v8276 = vadd.f32 0.0, %v8275
        %v8277 = vpop.f32.mrb[0].mxu0
        %8278 = vmatprep.mubr.bf16.mxu0 0
        %8279 = vmatmul.mubr.bf16.gmra.mrb[0].mxu0 %v4029
        %v8280 = vpop.f32.mrb[0].mxu0
        %v8281 = vadd.f32 0.0, %v8280
        %v8282 = vpop.f32.mrb[0].mxu0
        %v8283 = vpop.f32.mrb[0].mxu0
        %v8284 = vadd.f32 0.0, %v8283
        %v8285 = vpop.f32.mrb[0].mxu0
        %8286 = vmatprep.mubr.bf16.mxu0 0
        %8287 = vmatmul.mubr.bf16.gmra.mrb[0].mxu0 %v4032
        %v8288 = vpop.f32.mrb[0].mxu0
        %v8289 = vadd.f32 0.0, %v8288
        %v8290 = vpop.f32.mrb[0].mxu0
        %v8291 = vpop.f32.mrb[0].mxu0
        %v8292 = vadd.f32 0.0, %v8291
        %v8293 = vpop.f32.mrb[0].mxu0
        %8294 = vmatprep.mubr.bf16.mxu0 0
        %8295 = vmatmul.mubr.bf16.gmra.mrb[0].mxu0 %v4035
        %v8296 = vpop.f32.mrb[0].mxu0
        %v8297 = vadd.f32 0.0, %v8296
        %v8298 = vpop.f32.mrb[0].mxu0
        %v8299 = vpop.f32.mrb[0].mxu0
        %v8300 = vadd.f32 0.0, %v8299
        %v8301 = vpop.f32.mrb[0].mxu0
        %8302 = vmatprep.mubr.bf16.mxu0 0
        %8303 = vmatmul.mubr.bf16.gmra.mrb[0].mxu0 %v4038
        %v8304 = vpop.f32.mrb[0].mxu0
        %v8305 = vadd.f32 0.0, %v8304
        %v8306 = vpop.f32.mrb[0].mxu0
        %v8307 = vpop.f32.mrb[0].mxu0
        %v8308 = vadd.f32 0.0, %v8307
        %v8309 = vpop.f32.mrb[0].mxu0
        %8310 = vmatprep.mubr.bf16.mxu0 0
        %8311 = vmatmul.mubr.bf16.gmra.mrb[0].mxu0 %v4041
        %v8312 = vpop.f32.mrb[0].mxu0
        %v8313 = vadd.f32 0.0, %v8312
        %v8314 = vpop.f32.mrb[0].mxu0
        %v8315 = vpop.f32.mrb[0].mxu0
        %v8316 = vadd.f32 0.0, %v8315
        %v8317 = vpop.f32.mrb[0].mxu0
        %8318 = vmatprep.mubr.bf16.mxu0 0
        %8319 = vmatmul.mubr.bf16.gmra.mrb[0].mxu0 %v4044
        %v8320 = vpop.f32.mrb[0].mxu0
        %v8321 = vadd.f32 0.0, %v8320
        %v8322 = vpop.f32.mrb[0].mxu0
        %v8323 = vpop.f32.mrb[0].mxu0
        %v8324 = vadd.f32 0.0, %v8323
        %v8325 = vpop.f32.mrb[0].mxu0
        %8326 = vmatprep.mubr.bf16.mxu0 0
        %8327 = vmatmul.mubr.bf16.gmra.mrb[0].mxu0 %v4047
        %v8328 = vpop.f32.mrb[0].mxu0
        %v8329 = vadd.f32 0.0, %v8328
        %v8330 = vpop.f32.mrb[0].mxu0
        %v8331 = vpop.f32.mrb[0].mxu0
        %v8332 = vadd.f32 0.0, %v8331
        %v8333 = vpop.f32.mrb[0].mxu0
        %8334 = vmatprep.mubr.bf16.mxu0 0
        %8335 = vmatmul.mubr.bf16.gmra.mrb[0].mxu0 %v4050
        %v8336 = vpop.f32.mrb[0].mxu0
        %v8337 = vadd.f32 0.0, %v8336
        %v8338 = vpop.f32.mrb[0].mxu0
        %v8339 = vpop.f32.mrb[0].mxu0
        %v8340 = vadd.f32 0.0, %v8339
        %v8341 = vpop.f32.mrb[0].mxu0
        %8342 = vmatprep.mubr.bf16.mxu0 0
        %8343 = vmatmul.mubr.bf16.gmra.mrb[0].mxu0 %v4053
        %v8344 = vpop.f32.mrb[0].mxu0
        %v8345 = vadd.f32 0.0, %v8344
        %v8346 = vpop.f32.mrb[0].mxu0
        %v8347 = vpop.f32.mrb[0].mxu0
        %v8348 = vadd.f32 0.0, %v8347
        %v8349 = vpop.f32.mrb[0].mxu0
        %8350 = vmatprep.mubr.bf16.mxu0 0
        %8351 = vmatmul.mubr.bf16.gmra.mrb[0].mxu0 %v4056
        %v8352 = vpop.f32.mrb[0].mxu0
        %v8353 = vadd.f32 0.0, %v8352
        %v8354 = vpop.f32.mrb[0].mxu0
        %v8355 = vpop.f32.mrb[0].mxu0
        %v8356 = vadd.f32 0.0, %v8355
        %v8357 = vpop.f32.mrb[0].mxu0
        %8358 = vmatprep.mubr.bf16.mxu0 0
        %8359 = vmatmul.mubr.bf16.gmra.mrb[0].mxu0 %v4059
        %v8360 = vpop.f32.mrb[0].mxu0
        %v8361 = vadd.f32 0.0, %v8360
        %v8362 = vpop.f32.mrb[0].mxu0
        %v8363 = vpop.f32.mrb[0].mxu0
        %v8364 = vadd.f32 0.0, %v8363
        %v8365 = vpop.f32.mrb[0].mxu0
        %8366 = vmatprep.mubr.bf16.mxu0 0
        %8367 = vmatmul.mubr.bf16.gmra.mrb[0].mxu0 %v4062
        %v8368 = vpop.f32.mrb[0].mxu0
        %v8369 = vadd.f32 0.0, %v8368
        %v8370 = vpop.f32.mrb[0].mxu0
        %v8371 = vpop.f32.mrb[0].mxu0
        %v8372 = vadd.f32 0.0, %v8371
        %v8373 = vpop.f32.mrb[0].mxu0
        %8374 = vmatprep.mubr.bf16.mxu0 0
        %8375 = vmatmul.mubr.bf16.gmra.mrb[0].mxu0 %v4065
        %v8376 = vpop.f32.mrb[0].mxu0
        %v8377 = vadd.f32 0.0, %v8376
        %v8378 = vpop.f32.mrb[0].mxu0
        %v8379 = vpop.f32.mrb[0].mxu0
        %v8380 = vadd.f32 0.0, %v8379
        %v8381 = vpop.f32.mrb[0].mxu0
        %8382 = vmatprep.mubr.bf16.mxu0 0
        %8383 = vmatmul.mubr.bf16.gmra.mrb[0].mxu0 %v4068
        %v8384 = vpop.f32.mrb[0].mxu0
        %v8385 = vadd.f32 0.0, %v8384
        %v8386 = vpop.f32.mrb[0].mxu0
        %v8387 = vpop.f32.mrb[0].mxu0
        %v8388 = vadd.f32 0.0, %v8387
        %v8389 = vpop.f32.mrb[0].mxu0
        %8390 = vmatprep.mubr.bf16.mxu0 0
        %8391 = vmatmul.mubr.bf16.gmra.mrb[0].mxu0 %v4071
        %v8392 = vpop.f32.mrb[0].mxu0
        %v8393 = vadd.f32 0.0, %v8392
        %v8394 = vpop.f32.mrb[0].mxu0
        %v8395 = vpop.f32.mrb[0].mxu0
        %v8396 = vadd.f32 0.0, %v8395
        %v8397 = vpop.f32.mrb[0].mxu0
        %8398 = vmatprep.mubr.bf16.mxu0 0
        %8399 = vmatmul.mubr.bf16.gmra.mrb[0].mxu0 %v4074
        %v8400 = vpop.f32.mrb[0].mxu0
        %v8401 = vadd.f32 0.0, %v8400
        %v8402 = vpop.f32.mrb[0].mxu0
        %v8403 = vpop.f32.mrb[0].mxu0
        %v8404 = vadd.f32 0.0, %v8403
        %v8405 = vpop.f32.mrb[0].mxu0
        %8406 = vmatprep.mubr.bf16.mxu0 0
        %8407 = vmatmul.mubr.bf16.gmra.mrb[0].mxu0 %v4077
        %v8408 = vpop.f32.mrb[0].mxu0
        %v8409 = vadd.f32 0.0, %v8408
        %v8410 = vpop.f32.mrb[0].mxu0
        %v8411 = vpop.f32.mrb[0].mxu0
        %v8412 = vadd.f32 0.0, %v8411
        %v8413 = vpop.f32.mrb[0].mxu0
        %8414 = vmatprep.mubr.bf16.mxu0 0
        %8415 = vmatmul.mubr.bf16.gmra.mrb[0].mxu0 %v4080
        %v8416 = vpop.f32.mrb[0].mxu0
        %v8417 = vadd.f32 0.0, %v8416
        %v8418 = vpop.f32.mrb[0].mxu0
        %v8419 = vpop.f32.mrb[0].mxu0
        %v8420 = vadd.f32 0.0, %v8419
        %v8421 = vpop.f32.mrb[0].mxu0
        %8422 = vmatprep.mubr.bf16.mxu0 0
        %8423 = vmatmul.mubr.bf16.gmra.mrb[0].mxu0 %v4083
        %v8424 = vpop.f32.mrb[0].mxu0
        %v8425 = vadd.f32 0.0, %v8424
        %v8426 = vpop.f32.mrb[0].mxu0
        %v8427 = vpop.f32.mrb[0].mxu0
        %v8428 = vadd.f32 0.0, %v8427
        %v8429 = vpop.f32.mrb[0].mxu0
        %8430 = vmatprep.mubr.bf16.mxu0 0
        %8431 = vmatmul.mubr.bf16.gmra.mrb[0].mxu0 %v4086
        %v8432 = vpop.f32.mrb[0].mxu0
        %v8433 = vadd.f32 0.0, %v8432
        %v8434 = vpop.f32.mrb[0].mxu0
        %v8435 = vpop.f32.mrb[0].mxu0
        %v8436 = vadd.f32 0.0, %v8435
        %v8437 = vpop.f32.mrb[0].mxu0
        %8438 = vmatprep.mubr.bf16.mxu0 0
        %8439 = vmatmul.mubr.bf16.gmra.mrb[0].mxu0 %v4089
        %v8440 = vpop.f32.mrb[0].mxu0
        %v8441 = vadd.f32 0.0, %v8440
        %v8442 = vpop.f32.mrb[0].mxu0
        %v8443 = vpop.f32.mrb[0].mxu0
        %v8444 = vadd.f32 0.0, %v8443
        %v8445 = vpop.f32.mrb[0].mxu0
        %8446 = vmatprep.mubr.bf16.mxu0 0
        %8447 = vmatmul.mubr.bf16.gmra.mrb[0].mxu0 %v4092
        %v8448 = vpop.f32.mrb[0].mxu0
        %v8449 = vadd.f32 0.0, %v8448
        %v8450 = vpop.f32.mrb[0].mxu0
        %v8451 = vpop.f32.mrb[0].mxu0
        %v8452 = vadd.f32 0.0, %v8451
        %v8453 = vpop.f32.mrb[0].mxu0
        %8454 = vmatprep.mubr.bf16.mxu0 0
        %8455 = vmatmul.mubr.bf16.gmra.mrb[0].mxu0 %v4095
        %v8456 = vpop.f32.mrb[0].mxu0
        %v8457 = vadd.f32 0.0, %v8456
        %v8458 = vpop.f32.mrb[0].mxu0
        %v8459 = vpop.f32.mrb[0].mxu0
        %v8460 = vadd.f32 0.0, %v8459
        %v8461 = vpop.f32.mrb[0].mxu0
        %8462 = vmatprep.mubr.bf16.mxu0 0
        %8463 = vmatmul.mubr.bf16.gmra.mrb[0].mxu0 %v4098
        %v8464 = vpop.f32.mrb[0].mxu0
        %v8465 = vadd.f32 0.0, %v8464
        %v8466 = vpop.f32.mrb[0].mxu0
        %v8467 = vpop.f32.mrb[0].mxu0
        %v8468 = vadd.f32 0.0, %v8467
        %v8469 = vpop.f32.mrb[0].mxu0
        %8470 = vmatprep.mubr.bf16.mxu0 0
        %8471 = vmatmul.mubr.bf16.gmra.mrb[0].mxu0 %v4101
        %v8472 = vpop.f32.mrb[0].mxu0
        %v8473 = vadd.f32 0.0, %v8472
        %v8474 = vpop.f32.mrb[0].mxu0
        %v8475 = vpop.f32.mrb[0].mxu0
        %v8476 = vadd.f32 0.0, %v8475
        %v8477 = vpop.f32.mrb[0].mxu0
        %8478 = vmatprep.mubr.bf16.mxu0 0
        %8479 = vmatmul.mubr.bf16.gmra.mrb[0].mxu0 %v4104
        %v8480 = vpop.f32.mrb[0].mxu0
        %v8481 = vadd.f32 0.0, %v8480
        %v8482 = vpop.f32.mrb[0].mxu0
        %v8483 = vpop.f32.mrb[0].mxu0
        %v8484 = vadd.f32 0.0, %v8483
        %v8485 = vpop.f32.mrb[0].mxu0
        %8486 = vmatprep.mubr.bf16.mxu0 0
        %8487 = vmatmul.mubr.bf16.gmra.mrb[0].mxu0 %v4107
        %v8488 = vpop.f32.mrb[0].mxu0
        %v8489 = vadd.f32 0.0, %v8488
        %v8490 = vpop.f32.mrb[0].mxu0
        %v8491 = vpop.f32.mrb[0].mxu0
        %v8492 = vadd.f32 0.0, %v8491
        %v8493 = vpop.f32.mrb[0].mxu0
        %8494 = vmatprep.mubr.bf16.mxu0 0
        %8495 = vmatmul.mubr.bf16.gmra.mrb[0].mxu0 %v4110
        %v8496 = vpop.f32.mrb[0].mxu0
        %v8497 = vadd.f32 0.0, %v8496
        %v8498 = vpop.f32.mrb[0].mxu0
        %v8499 = vpop.f32.mrb[0].mxu0
        %v8500 = vadd.f32 0.0, %v8499
        %v8501 = vpop.f32.mrb[0].mxu0
        %8502 = vmatprep.mubr.bf16.mxu0 0
        %8503 = vmatmul.mubr.bf16.gmra.mrb[0].mxu0 %v4113
        %v8504 = vpop.f32.mrb[0].mxu0
        %v8505 = vadd.f32 0.0, %v8504
        %v8506 = vpop.f32.mrb[0].mxu0
        %v8507 = vpop.f32.mrb[0].mxu0
        %v8508 = vadd.f32 0.0, %v8507
        %v8509 = vpop.f32.mrb[0].mxu0
        %8510 = vmatprep.mubr.bf16.mxu0 0
        %8511 = vmatmul.mubr.bf16.gmra.mrb[0].mxu0 %v4116
        %v8512 = vpop.f32.mrb[0].mxu0
        %v8513 = vadd.f32 0.0, %v8512
        %v8514 = vpop.f32.mrb[0].mxu0
        %v8515 = vpop.f32.mrb[0].mxu0
        %v8516 = vadd.f32 0.0, %v8515
        %v8517 = vpop.f32.mrb[0].mxu0
        %8518 = vmatprep.mubr.bf16.mxu0 0
        %8519 = vmatmul.mubr.bf16.gmra.mrb[0].mxu0 %v4119
        %v8520 = vpop.f32.mrb[0].mxu0
        %v8521 = vadd.f32 0.0, %v8520
        %v8522 = vpop.f32.mrb[0].mxu0
        %v8523 = vpop.f32.mrb[0].mxu0
        %v8524 = vadd.f32 0.0, %v8523
        %v8525 = vpop.f32.mrb[0].mxu0
        %8526 = vmatprep.mubr.bf16.mxu0 0
        %8527 = vmatmul.mubr.bf16.gmra.mrb[0].mxu0 %v4122
        %v8528 = vpop.f32.mrb[0].mxu0
        %v8529 = vadd.f32 0.0, %v8528
        %v8530 = vpop.f32.mrb[0].mxu0
        %v8531 = vpop.f32.mrb[0].mxu0
        %v8532 = vadd.f32 0.0, %v8531
        %v8533 = vpop.f32.mrb[0].mxu0
        %8534 = vmatprep.mubr.bf16.mxu0 0
        %8535 = vmatmul.mubr.bf16.gmra.mrb[0].mxu0 %v4125
        %v8536 = vpop.f32.mrb[0].mxu0
        %v8537 = vadd.f32 0.0, %v8536
        %v8538 = vpop.f32.mrb[0].mxu0
        %v8539 = vpop.f32.mrb[0].mxu0
        %v8540 = vadd.f32 0.0, %v8539
        %v8541 = vpop.f32.mrb[0].mxu0
        %8542 = vmatprep.mubr.bf16.mxu0 0
        %8543 = vmatmul.mubr.bf16.gmra.mrb[0].mxu0 %v4128
        %v8544 = vpop.f32.mrb[0].mxu0
        %v8545 = vadd.f32 0.0, %v8544
        %v8546 = vpop.f32.mrb[0].mxu0
        %v8547 = vpop.f32.mrb[0].mxu0
        %v8548 = vadd.f32 0.0, %v8547
        %v8549 = vpop.f32.mrb[0].mxu0
        %8550 = vmatprep.mubr.bf16.mxu0 0
        %8551 = vmatmul.mubr.bf16.gmra.mrb[0].mxu0 %v4131
        %v8552 = vpop.f32.mrb[0].mxu0
        %v8553 = vadd.f32 0.0, %v8552
        %v8554 = vpop.f32.mrb[0].mxu0
        %v8555 = vpop.f32.mrb[0].mxu0
        %v8556 = vadd.f32 0.0, %v8555
        %v8557 = vpop.f32.mrb[0].mxu0
        %8558 = vmatprep.mubr.bf16.mxu0 0
        %8559 = vmatmul.mubr.bf16.gmra.mrb[0].mxu0 %v4134
        %v8560 = vpop.f32.mrb[0].mxu0
        %v8561 = vadd.f32 0.0, %v8560
        %v8562 = vpop.f32.mrb[0].mxu0
        %v8563 = vpop.f32.mrb[0].mxu0
        %v8564 = vadd.f32 0.0, %v8563
        %v8565 = vpop.f32.mrb[0].mxu0
        %8566 = vmatprep.mubr.bf16.mxu0 0
        %8567 = vmatmul.mubr.bf16.gmra.mrb[0].mxu0 %v4137
        %v8568 = vpop.f32.mrb[0].mxu0
        %v8569 = vadd.f32 0.0, %v8568
        %v8570 = vpop.f32.mrb[0].mxu0
        %v8571 = vpop.f32.mrb[0].mxu0
        %v8572 = vadd.f32 0.0, %v8571
        %v8573 = vpop.f32.mrb[0].mxu0
        %8574 = vmatprep.mubr.bf16.mxu0 0
        %8575 = vmatmul.mubr.bf16.gmra.mrb[0].mxu0 %v4140
        %v8576 = vpop.f32.mrb[0].mxu0
        %v8577 = vadd.f32 0.0, %v8576
        %v8578 = vpop.f32.mrb[0].mxu0
        %v8579 = vpop.f32.mrb[0].mxu0
        %v8580 = vadd.f32 0.0, %v8579
        %v8581 = vpop.f32.mrb[0].mxu0
        %8582 = vmatprep.mubr.bf16.mxu0 0
        %8583 = vmatmul.mubr.bf16.gmra.mrb[0].mxu0 %v8046
        %v8584 = vpop.f32.mrb[0].mxu0
        %v8585 = vadd.f32 0.0, %v8584
        %v8586 = vpop.f32.mrb[0].mxu0
        %v8587 = vpop.f32.mrb[0].mxu0
        %v8588 = vadd.f32 0.0, %v8587
        %v8589 = vpop.f32.mrb[0].mxu0
        %8590 = vmatprep.mubr.bf16.mxu0 0
        %8591 = vmatmul.mubr.bf16.gmra.mrb[0].mxu0 %v8049
        %v8592 = vpop.f32.mrb[0].mxu0
        %v8593 = vadd.f32 0.0, %v8592
        %v8594 = vpop.f32.mrb[0].mxu0
        %v8595 = vpop.f32.mrb[0].mxu0
        %v8596 = vadd.f32 0.0, %v8595
        %v8597 = vpop.f32.mrb[0].mxu0
        %8598 = vdwg.mxu0
        %v8599 = vadd.f32 %v7865, %v8089
        %v8600 = vadd.f32 %v7866, %v8092
        %v8601 = vadd.f32 %v7867, %v8097
        %v8602 = vadd.f32 %v7868, %v8100
        %v8603 = vadd.f32 %v7869, %v8105
        %v8604 = vadd.f32 %v7870, %v8108
        %v8605 = vadd.f32 %v7871, %v8113
        %v8606 = vadd.f32 %v7872, %v8116
        %v8607 = vadd.f32 %v7873, %v8121
        %v8608 = vadd.f32 %v7874, %v8124
        %v8609 = vadd.f32 %v7875, %v8129
        %v8610 = vadd.f32 %v7876, %v8132
        %v8611 = vadd.f32 %v7877, %v8137
        %v8612 = vadd.f32 %v7878, %v8140
        %v8613 = vadd.f32 %v7879, %v8145
        %v8614 = vadd.f32 %v7880, %v8148
        %v8615 = vadd.f32 %v7881, %v8153
        %v8616 = vadd.f32 %v7882, %v8156
        %v8617 = vadd.f32 %v7883, %v8161
        %v8618 = vadd.f32 %v7884, %v8164
        %v8619 = vadd.f32 %v7885, %v8169
        %v8620 = vadd.f32 %v7886, %v8172
        %v8621 = vadd.f32 %v7887, %v8177
        %v8622 = vadd.f32 %v7888, %v8180
        %v8623 = vadd.f32 %v7889, %v8185
        %v8624 = vadd.f32 %v7890, %v8188
        %v8625 = vadd.f32 %v7891, %v8193
        %v8626 = vadd.f32 %v7892, %v8196
        %v8627 = vadd.f32 %v7893, %v8201
        %v8628 = vadd.f32 %v7894, %v8204
        %v8629 = vadd.f32 %v7895, %v8209
        %v8630 = vadd.f32 %v7896, %v8212
        %v8631 = vadd.f32 %v7897, %v8217
        %v8632 = vadd.f32 %v7898, %v8220
        %v8633 = vadd.f32 %v7899, %v8225
        %v8634 = vadd.f32 %v7900, %v8228
        %v8635 = vadd.f32 %v7901, %v8233
        %v8636 = vadd.f32 %v7902, %v8236
        %v8637 = vadd.f32 %v7903, %v8241
        %v8638 = vadd.f32 %v7904, %v8244
        %v8639 = vadd.f32 %v7905, %v8249
        %v8640 = vadd.f32 %v7906, %v8252
        %v8641 = vadd.f32 %v7907, %v8257
        %v8642 = vadd.f32 %v7908, %v8260
        %v8643 = vadd.f32 %v7909, %v8265
        %v8644 = vadd.f32 %v7910, %v8268
        %v8645 = vadd.f32 %v7911, %v8273
        %v8646 = vadd.f32 %v7912, %v8276
        %v8647 = vadd.f32 %v7913, %v8281
        %v8648 = vadd.f32 %v7914, %v8284
        %v8649 = vadd.f32 %v7915, %v8289
        %v8650 = vadd.f32 %v7916, %v8292
        %v8651 = vadd.f32 %v7917, %v8297
        %v8652 = vadd.f32 %v7918, %v8300
        %v8653 = vadd.f32 %v7919, %v8305
        %v8654 = vadd.f32 %v7920, %v8308
        %v8655 = vadd.f32 %v7921, %v8313
        %v8656 = vadd.f32 %v7922, %v8316
        %v8657 = vadd.f32 %v7923, %v8321
        %v8658 = vadd.f32 %v7924, %v8324
        %v8659 = vadd.f32 %v7925, %v8329
        %v8660 = vadd.f32 %v7926, %v8332
        %v8661 = vadd.f32 %v7927, %v8337
        %v8662 = vadd.f32 %v7928, %v8340
        %v8663 = vadd.f32 %v7929, %v8345
        %v8664 = vadd.f32 %v7930, %v8348
        %v8665 = vadd.f32 %v7931, %v8353
        %v8666 = vadd.f32 %v7932, %v8356
        %v8667 = vadd.f32 %v7933, %v8361
        %v8668 = vadd.f32 %v7934, %v8364
        %v8669 = vadd.f32 %v7935, %v8369
        %v8670 = vadd.f32 %v7936, %v8372
        %v8671 = vadd.f32 %v7937, %v8377
        %v8672 = vadd.f32 %v7938, %v8380
        %v8673 = vadd.f32 %v7939, %v8385
        %v8674 = vadd.f32 %v7940, %v8388
        %v8675 = vadd.f32 %v7941, %v8393
        %v8676 = vadd.f32 %v7942, %v8396
        %v8677 = vadd.f32 %v7943, %v8401
        %v8678 = vadd.f32 %v7944, %v8404
        %v8679 = vadd.f32 %v7945, %v8409
        %v8680 = vadd.f32 %v7946, %v8412
        %v8681 = vadd.f32 %v7947, %v8417
        %v8682 = vadd.f32 %v7948, %v8420
        %v8683 = vadd.f32 %v7949, %v8425
        %v8684 = vadd.f32 %v7950, %v8428
        %v8685 = vadd.f32 %v7951, %v8433
        %v8686 = vadd.f32 %v7952, %v8436
        %v8687 = vadd.f32 %v7953, %v8441
        %v8688 = vadd.f32 %v7954, %v8444
        %v8689 = vadd.f32 %v7955, %v8449
        %v8690 = vadd.f32 %v7956, %v8452
        %v8691 = vadd.f32 %v7957, %v8457
        %v8692 = vadd.f32 %v7958, %v8460
        %v8693 = vadd.f32 %v7959, %v8465
        %v8694 = vadd.f32 %v7960, %v8468
        %v8695 = vadd.f32 %v7961, %v8473
        %v8696 = vadd.f32 %v7962, %v8476
        %v8697 = vadd.f32 %v7963, %v8481
        %v8698 = vadd.f32 %v7964, %v8484
        %v8699 = vadd.f32 %v7965, %v8489
        %v8700 = vadd.f32 %v7966, %v8492
        %v8701 = vadd.f32 %v7967, %v8497
        %v8702 = vadd.f32 %v7968, %v8500
        %v8703 = vadd.f32 %v7969, %v8505
        %v8704 = vadd.f32 %v7970, %v8508
        %v8705 = vadd.f32 %v7971, %v8513
        %v8706 = vadd.f32 %v7972, %v8516
        %v8707 = vadd.f32 %v7973, %v8521
        %v8708 = vadd.f32 %v7974, %v8524
        %v8709 = vadd.f32 %v7975, %v8529
        %v8710 = vadd.f32 %v7976, %v8532
        %v8711 = vadd.f32 %v7977, %v8537
        %v8712 = vadd.f32 %v7978, %v8540
        %v8713 = vadd.f32 %v7979, %v8545
        %v8714 = vadd.f32 %v7980, %v8548
        %v8715 = vadd.f32 %v7981, %v8553
        %v8716 = vadd.f32 %v7982, %v8556
        %v8717 = vadd.f32 %v7983, %v8561
        %v8718 = vadd.f32 %v7984, %v8564
        %v8719 = vadd.f32 %v7985, %v8569
        %v8720 = vadd.f32 %v7986, %v8572
        %v8721 = vadd.f32 %v7987, %v8577
        %v8722 = vadd.f32 %v7988, %v8580
        %v8723 = vadd.f32 %v7989, %v8585
        %v8724 = vadd.f32 %v7990, %v8588
        %v8725 = vadd.f32 %v7991, %v8593
        %v8726 = vadd.f32 %v7992, %v8596
        %v8729 = vrot.slane %v2341, 5
        %v8730 = vrot.slane %v8729, 4
        %v8731 = vrot.slane %v2268, 5
        %v8732 = vsel %vm5820, %v8730, %v8731
        %v8733 = vrot.slane %v8731, 4
        %v8734 = vrot.slane %v2269, 5
        %v8735 = vsel %vm5820, %v8733, %v8734
        %v8736 = vrot.slane %v8734, 4
        %v8737 = vrot.slane %v2270, 5
        %v8738 = vsel %vm5820, %v8736, %v8737
        %v8739 = vrot.slane %v8737, 4
        %v8740 = vrot.slane %v2307, 5
        %v8741 = vsel %vm5820, %v8739, %v8740
        %s8742 = scalar_lea.vmem %s210, 10
        %v8743 = vld [vmem:[%s8742] sm:$0x3]
        %v8744 = vunpack.c.l.b16 %v8732
        %v8745 = vunpack.c.l.b16 %v8735
        %v8746 = vunpack.c.l.b16 %v8738
        %v8747 = vunpack.c.l.b16 %v8741
        %v8748 = vpack.c.b16 %v8745, %v8744
        %v8749 = vpack.c.b16 %v8747, %v8746
        %v8751 = vsel %vm3949, %v8748, 0
        %v8754 = vsel %vm3949, %v8749, 0
        %v8757 = vand.u32 %v8743, %v4145
        %8759 = vmatprep.subr.bf16.mxu0 0
        %8760 = vmatpush1.bf16.msra.mxu0 %v8757
        %8761 = vmatprep.subr.bf16.mxu0 0
        %8762 = vmatpush1.bf16.msra.mxu0 0
        %8763 = vmatprep.subr.bf16.mxu0 0
        %8764 = vmatpush1.bf16.msra.mxu0 0
        %8765 = vmatprep.subr.bf16.mxu0 0
        %8766 = vmatpush1.bf16.msra.mxu0 0
        %8767 = vmatprep.subr.bf16.mxu0 0
        %8768 = vmatpush1.bf16.msra.mxu0 0
        %8769 = vmatprep.subr.bf16.mxu0 0
        %8770 = vmatpush1.bf16.msra.mxu0 0
        %8771 = vmatprep.subr.bf16.mxu0 0
        %8772 = vmatpush1.bf16.msra.mxu0 0
        %8773 = vmatprep.subr.bf16.mxu0 0
        %8774 = vmatpush1.bf16.msra.mxu0 0
        %8775 = vmatprep.subr.bf16.mxu0 0
        %8776 = vmatpush1.bf16.msra.mxu0 0
        %8777 = vmatprep.subr.bf16.mxu0 0
        %8778 = vmatpush1.bf16.msra.mxu0 0
        %8779 = vmatprep.subr.bf16.mxu0 0
        %8780 = vmatpush1.bf16.msra.mxu0 0
        %8781 = vmatprep.subr.bf16.mxu0 0
        %8782 = vmatpush1.bf16.msra.mxu0 0
        %8783 = vmatprep.subr.bf16.mxu0 0
        %8784 = vmatpush1.bf16.msra.mxu0 0
        %8785 = vmatprep.subr.bf16.mxu0 0
        %8786 = vmatpush1.bf16.msra.mxu0 0
        %8787 = vmatprep.subr.bf16.mxu0 0
        %8788 = vmatpush1.bf16.msra.mxu0 0
        %8789 = vmatprep.subr.bf16.mxu0 0
        %8790 = vmatpush1.bf16.msra.mxu0 0
        %8791 = vmatprep.mubr.bf16.mxu0 0
        %8792 = vmatmul.mubr.bf16.gmra.mrb[0].mxu0 %v6438
        %v8793 = vpop.f32.mrb[0].mxu0
        %v8794 = vadd.f32 0.0, %v8793
        %v8795 = vpop.f32.mrb[0].mxu0
        %v8796 = vpop.f32.mrb[0].mxu0
        %v8797 = vadd.f32 0.0, %v8796
        %v8798 = vpop.f32.mrb[0].mxu0
        %8799 = vmatprep.mubr.bf16.mxu0 0
        %8800 = vmatmul.mubr.bf16.gmra.mrb[0].mxu0 %v6441
        %v8801 = vpop.f32.mrb[0].mxu0
        %v8802 = vadd.f32 0.0, %v8801
        %v8803 = vpop.f32.mrb[0].mxu0
        %v8804 = vpop.f32.mrb[0].mxu0
        %v8805 = vadd.f32 0.0, %v8804
        %v8806 = vpop.f32.mrb[0].mxu0
        %8807 = vmatprep.mubr.bf16.mxu0 0
        %8808 = vmatmul.mubr.bf16.gmra.mrb[0].mxu0 %v6444
        %v8809 = vpop.f32.mrb[0].mxu0
        %v8810 = vadd.f32 0.0, %v8809
        %v8811 = vpop.f32.mrb[0].mxu0
        %v8812 = vpop.f32.mrb[0].mxu0
        %v8813 = vadd.f32 0.0, %v8812
        %v8814 = vpop.f32.mrb[0].mxu0
        %8815 = vmatprep.mubr.bf16.mxu0 0
        %8816 = vmatmul.mubr.bf16.gmra.mrb[0].mxu0 %v6447
        %v8817 = vpop.f32.mrb[0].mxu0
        %v8818 = vadd.f32 0.0, %v8817
        %v8819 = vpop.f32.mrb[0].mxu0
        %v8820 = vpop.f32.mrb[0].mxu0
        %v8821 = vadd.f32 0.0, %v8820
        %v8822 = vpop.f32.mrb[0].mxu0
        %8823 = vmatprep.mubr.bf16.mxu0 0
        %8824 = vmatmul.mubr.bf16.gmra.mrb[0].mxu0 %v6450
        %v8825 = vpop.f32.mrb[0].mxu0
        %v8826 = vadd.f32 0.0, %v8825
        %v8827 = vpop.f32.mrb[0].mxu0
        %v8828 = vpop.f32.mrb[0].mxu0
        %v8829 = vadd.f32 0.0, %v8828
        %v8830 = vpop.f32.mrb[0].mxu0
        %8831 = vmatprep.mubr.bf16.mxu0 0
        %8832 = vmatmul.mubr.bf16.gmra.mrb[0].mxu0 %v6453
        %v8833 = vpop.f32.mrb[0].mxu0
        %v8834 = vadd.f32 0.0, %v8833
        %v8835 = vpop.f32.mrb[0].mxu0
        %v8836 = vpop.f32.mrb[0].mxu0
        %v8837 = vadd.f32 0.0, %v8836
        %v8838 = vpop.f32.mrb[0].mxu0
        %8839 = vmatprep.mubr.bf16.mxu0 0
        %8840 = vmatmul.mubr.bf16.gmra.mrb[0].mxu0 %v6456
        %v8841 = vpop.f32.mrb[0].mxu0
        %v8842 = vadd.f32 0.0, %v8841
        %v8843 = vpop.f32.mrb[0].mxu0
        %v8844 = vpop.f32.mrb[0].mxu0
        %v8845 = vadd.f32 0.0, %v8844
        %v8846 = vpop.f32.mrb[0].mxu0
        %8847 = vmatprep.mubr.bf16.mxu0 0
        %8848 = vmatmul.mubr.bf16.gmra.mrb[0].mxu0 %v6459
        %v8849 = vpop.f32.mrb[0].mxu0
        %v8850 = vadd.f32 0.0, %v8849
        %v8851 = vpop.f32.mrb[0].mxu0
        %v8852 = vpop.f32.mrb[0].mxu0
        %v8853 = vadd.f32 0.0, %v8852
        %v8854 = vpop.f32.mrb[0].mxu0
        %8855 = vmatprep.mubr.bf16.mxu0 0
        %8856 = vmatmul.mubr.bf16.gmra.mrb[0].mxu0 %v6462
        %v8857 = vpop.f32.mrb[0].mxu0
        %v8858 = vadd.f32 0.0, %v8857
        %v8859 = vpop.f32.mrb[0].mxu0
        %v8860 = vpop.f32.mrb[0].mxu0
        %v8861 = vadd.f32 0.0, %v8860
        %v8862 = vpop.f32.mrb[0].mxu0
        %8863 = vmatprep.mubr.bf16.mxu0 0
        %8864 = vmatmul.mubr.bf16.gmra.mrb[0].mxu0 %v6465
        %v8865 = vpop.f32.mrb[0].mxu0
        %v8866 = vadd.f32 0.0, %v8865
        %v8867 = vpop.f32.mrb[0].mxu0
        %v8868 = vpop.f32.mrb[0].mxu0
        %v8869 = vadd.f32 0.0, %v8868
        %v8870 = vpop.f32.mrb[0].mxu0
        %8871 = vmatprep.mubr.bf16.mxu0 0
        %8872 = vmatmul.mubr.bf16.gmra.mrb[0].mxu0 %v6468
        %v8873 = vpop.f32.mrb[0].mxu0
        %v8874 = vadd.f32 0.0, %v8873
        %v8875 = vpop.f32.mrb[0].mxu0
        %v8876 = vpop.f32.mrb[0].mxu0
        %v8877 = vadd.f32 0.0, %v8876
        %v8878 = vpop.f32.mrb[0].mxu0
        %8879 = vmatprep.mubr.bf16.mxu0 0
        %8880 = vmatmul.mubr.bf16.gmra.mrb[0].mxu0 %v6471
        %v8881 = vpop.f32.mrb[0].mxu0
        %v8882 = vadd.f32 0.0, %v8881
        %v8883 = vpop.f32.mrb[0].mxu0
        %v8884 = vpop.f32.mrb[0].mxu0
        %v8885 = vadd.f32 0.0, %v8884
        %v8886 = vpop.f32.mrb[0].mxu0
        %8887 = vmatprep.mubr.bf16.mxu0 0
        %8888 = vmatmul.mubr.bf16.gmra.mrb[0].mxu0 %v6474
        %v8889 = vpop.f32.mrb[0].mxu0
        %v8890 = vadd.f32 0.0, %v8889
        %v8891 = vpop.f32.mrb[0].mxu0
        %v8892 = vpop.f32.mrb[0].mxu0
        %v8893 = vadd.f32 0.0, %v8892
        %v8894 = vpop.f32.mrb[0].mxu0
        %8895 = vmatprep.mubr.bf16.mxu0 0
        %8896 = vmatmul.mubr.bf16.gmra.mrb[0].mxu0 %v6477
        %v8897 = vpop.f32.mrb[0].mxu0
        %v8898 = vadd.f32 0.0, %v8897
        %v8899 = vpop.f32.mrb[0].mxu0
        %v8900 = vpop.f32.mrb[0].mxu0
        %v8901 = vadd.f32 0.0, %v8900
        %v8902 = vpop.f32.mrb[0].mxu0
        %8903 = vmatprep.mubr.bf16.mxu0 0
        %8904 = vmatmul.mubr.bf16.gmra.mrb[0].mxu0 %v6480
        %v8905 = vpop.f32.mrb[0].mxu0
        %v8906 = vadd.f32 0.0, %v8905
        %v8907 = vpop.f32.mrb[0].mxu0
        %v8908 = vpop.f32.mrb[0].mxu0
        %v8909 = vadd.f32 0.0, %v8908
        %v8910 = vpop.f32.mrb[0].mxu0
        %8911 = vmatprep.mubr.bf16.mxu0 0
        %8912 = vmatmul.mubr.bf16.gmra.mrb[0].mxu0 %v6483
        %v8913 = vpop.f32.mrb[0].mxu0
        %v8914 = vadd.f32 0.0, %v8913
        %v8915 = vpop.f32.mrb[0].mxu0
        %v8916 = vpop.f32.mrb[0].mxu0
        %v8917 = vadd.f32 0.0, %v8916
        %v8918 = vpop.f32.mrb[0].mxu0
        %8919 = vmatprep.mubr.bf16.mxu0 0
        %8920 = vmatmul.mubr.bf16.gmra.mrb[0].mxu0 %v6486
        %v8921 = vpop.f32.mrb[0].mxu0
        %v8922 = vadd.f32 0.0, %v8921
        %v8923 = vpop.f32.mrb[0].mxu0
        %v8924 = vpop.f32.mrb[0].mxu0
        %v8925 = vadd.f32 0.0, %v8924
        %v8926 = vpop.f32.mrb[0].mxu0
        %8927 = vmatprep.mubr.bf16.mxu0 0
        %8928 = vmatmul.mubr.bf16.gmra.mrb[0].mxu0 %v6489
        %v8929 = vpop.f32.mrb[0].mxu0
        %v8930 = vadd.f32 0.0, %v8929
        %v8931 = vpop.f32.mrb[0].mxu0
        %v8932 = vpop.f32.mrb[0].mxu0
        %v8933 = vadd.f32 0.0, %v8932
        %v8934 = vpop.f32.mrb[0].mxu0
        %8935 = vmatprep.mubr.bf16.mxu0 0
        %8936 = vmatmul.mubr.bf16.gmra.mrb[0].mxu0 %v6492
        %v8937 = vpop.f32.mrb[0].mxu0
        %v8938 = vadd.f32 0.0, %v8937
        %v8939 = vpop.f32.mrb[0].mxu0
        %v8940 = vpop.f32.mrb[0].mxu0
        %v8941 = vadd.f32 0.0, %v8940
        %v8942 = vpop.f32.mrb[0].mxu0
        %8943 = vmatprep.mubr.bf16.mxu0 0
        %8944 = vmatmul.mubr.bf16.gmra.mrb[0].mxu0 %v6495
        %v8945 = vpop.f32.mrb[0].mxu0
        %v8946 = vadd.f32 0.0, %v8945
        %v8947 = vpop.f32.mrb[0].mxu0
        %v8948 = vpop.f32.mrb[0].mxu0
        %v8949 = vadd.f32 0.0, %v8948
        %v8950 = vpop.f32.mrb[0].mxu0
        %8951 = vmatprep.mubr.bf16.mxu0 0
        %8952 = vmatmul.mubr.bf16.gmra.mrb[0].mxu0 %v6498
        %v8953 = vpop.f32.mrb[0].mxu0
        %v8954 = vadd.f32 0.0, %v8953
        %v8955 = vpop.f32.mrb[0].mxu0
        %v8956 = vpop.f32.mrb[0].mxu0
        %v8957 = vadd.f32 0.0, %v8956
        %v8958 = vpop.f32.mrb[0].mxu0
        %8959 = vmatprep.mubr.bf16.mxu0 0
        %8960 = vmatmul.mubr.bf16.gmra.mrb[0].mxu0 %v6501
        %v8961 = vpop.f32.mrb[0].mxu0
        %v8962 = vadd.f32 0.0, %v8961
        %v8963 = vpop.f32.mrb[0].mxu0
        %v8964 = vpop.f32.mrb[0].mxu0
        %v8965 = vadd.f32 0.0, %v8964
        %v8966 = vpop.f32.mrb[0].mxu0
        %8967 = vmatprep.mubr.bf16.mxu0 0
        %8968 = vmatmul.mubr.bf16.gmra.mrb[0].mxu0 %v6504
        %v8969 = vpop.f32.mrb[0].mxu0
        %v8970 = vadd.f32 0.0, %v8969
        %v8971 = vpop.f32.mrb[0].mxu0
        %v8972 = vpop.f32.mrb[0].mxu0
        %v8973 = vadd.f32 0.0, %v8972
        %v8974 = vpop.f32.mrb[0].mxu0
        %8975 = vmatprep.mubr.bf16.mxu0 0
        %8976 = vmatmul.mubr.bf16.gmra.mrb[0].mxu0 %v6507
        %v8977 = vpop.f32.mrb[0].mxu0
        %v8978 = vadd.f32 0.0, %v8977
        %v8979 = vpop.f32.mrb[0].mxu0
        %v8980 = vpop.f32.mrb[0].mxu0
        %v8981 = vadd.f32 0.0, %v8980
        %v8982 = vpop.f32.mrb[0].mxu0
        %8983 = vmatprep.mubr.bf16.mxu0 0
        %8984 = vmatmul.mubr.bf16.gmra.mrb[0].mxu0 %v6510
        %v8985 = vpop.f32.mrb[0].mxu0
        %v8986 = vadd.f32 0.0, %v8985
        %v8987 = vpop.f32.mrb[0].mxu0
        %v8988 = vpop.f32.mrb[0].mxu0
        %v8989 = vadd.f32 0.0, %v8988
        %v8990 = vpop.f32.mrb[0].mxu0
        %8991 = vmatprep.mubr.bf16.mxu0 0
        %8992 = vmatmul.mubr.bf16.gmra.mrb[0].mxu0 %v6513
        %v8993 = vpop.f32.mrb[0].mxu0
        %v8994 = vadd.f32 0.0, %v8993
        %v8995 = vpop.f32.mrb[0].mxu0
        %v8996 = vpop.f32.mrb[0].mxu0
        %v8997 = vadd.f32 0.0, %v8996
        %v8998 = vpop.f32.mrb[0].mxu0
        %8999 = vmatprep.mubr.bf16.mxu0 0
        %9000 = vmatmul.mubr.bf16.gmra.mrb[0].mxu0 %v6516
        %v9001 = vpop.f32.mrb[0].mxu0
        %v9002 = vadd.f32 0.0, %v9001
        %v9003 = vpop.f32.mrb[0].mxu0
        %v9004 = vpop.f32.mrb[0].mxu0
        %v9005 = vadd.f32 0.0, %v9004
        %v9006 = vpop.f32.mrb[0].mxu0
        %9007 = vmatprep.mubr.bf16.mxu0 0
        %9008 = vmatmul.mubr.bf16.gmra.mrb[0].mxu0 %v6519
        %v9009 = vpop.f32.mrb[0].mxu0
        %v9010 = vadd.f32 0.0, %v9009
        %v9011 = vpop.f32.mrb[0].mxu0
        %v9012 = vpop.f32.mrb[0].mxu0
        %v9013 = vadd.f32 0.0, %v9012
        %v9014 = vpop.f32.mrb[0].mxu0
        %9015 = vmatprep.mubr.bf16.mxu0 0
        %9016 = vmatmul.mubr.bf16.gmra.mrb[0].mxu0 %v6522
        %v9017 = vpop.f32.mrb[0].mxu0
        %v9018 = vadd.f32 0.0, %v9017
        %v9019 = vpop.f32.mrb[0].mxu0
        %v9020 = vpop.f32.mrb[0].mxu0
        %v9021 = vadd.f32 0.0, %v9020
        %v9022 = vpop.f32.mrb[0].mxu0
        %9023 = vmatprep.mubr.bf16.mxu0 0
        %9024 = vmatmul.mubr.bf16.gmra.mrb[0].mxu0 %v6525
        %v9025 = vpop.f32.mrb[0].mxu0
        %v9026 = vadd.f32 0.0, %v9025
        %v9027 = vpop.f32.mrb[0].mxu0
        %v9028 = vpop.f32.mrb[0].mxu0
        %v9029 = vadd.f32 0.0, %v9028
        %v9030 = vpop.f32.mrb[0].mxu0
        %9031 = vmatprep.mubr.bf16.mxu0 0
        %9032 = vmatmul.mubr.bf16.gmra.mrb[0].mxu0 %v6528
        %v9033 = vpop.f32.mrb[0].mxu0
        %v9034 = vadd.f32 0.0, %v9033
        %v9035 = vpop.f32.mrb[0].mxu0
        %v9036 = vpop.f32.mrb[0].mxu0
        %v9037 = vadd.f32 0.0, %v9036
        %v9038 = vpop.f32.mrb[0].mxu0
        %9039 = vmatprep.mubr.bf16.mxu0 0
        %9040 = vmatmul.mubr.bf16.gmra.mrb[0].mxu0 %v6531
        %v9041 = vpop.f32.mrb[0].mxu0
        %v9042 = vadd.f32 0.0, %v9041
        %v9043 = vpop.f32.mrb[0].mxu0
        %v9044 = vpop.f32.mrb[0].mxu0
        %v9045 = vadd.f32 0.0, %v9044
        %v9046 = vpop.f32.mrb[0].mxu0
        %9047 = vmatprep.mubr.bf16.mxu0 0
        %9048 = vmatmul.mubr.bf16.gmra.mrb[0].mxu0 %v6534
        %v9049 = vpop.f32.mrb[0].mxu0
        %v9050 = vadd.f32 0.0, %v9049
        %v9051 = vpop.f32.mrb[0].mxu0
        %v9052 = vpop.f32.mrb[0].mxu0
        %v9053 = vadd.f32 0.0, %v9052
        %v9054 = vpop.f32.mrb[0].mxu0
        %9055 = vmatprep.mubr.bf16.mxu0 0
        %9056 = vmatmul.mubr.bf16.gmra.mrb[0].mxu0 %v6537
        %v9057 = vpop.f32.mrb[0].mxu0
        %v9058 = vadd.f32 0.0, %v9057
        %v9059 = vpop.f32.mrb[0].mxu0
        %v9060 = vpop.f32.mrb[0].mxu0
        %v9061 = vadd.f32 0.0, %v9060
        %v9062 = vpop.f32.mrb[0].mxu0
        %9063 = vmatprep.mubr.bf16.mxu0 0
        %9064 = vmatmul.mubr.bf16.gmra.mrb[0].mxu0 %v6540
        %v9065 = vpop.f32.mrb[0].mxu0
        %v9066 = vadd.f32 0.0, %v9065
        %v9067 = vpop.f32.mrb[0].mxu0
        %v9068 = vpop.f32.mrb[0].mxu0
        %v9069 = vadd.f32 0.0, %v9068
        %v9070 = vpop.f32.mrb[0].mxu0
        %9071 = vmatprep.mubr.bf16.mxu0 0
        %9072 = vmatmul.mubr.bf16.gmra.mrb[0].mxu0 %v6543
        %v9073 = vpop.f32.mrb[0].mxu0
        %v9074 = vadd.f32 0.0, %v9073
        %v9075 = vpop.f32.mrb[0].mxu0
        %v9076 = vpop.f32.mrb[0].mxu0
        %v9077 = vadd.f32 0.0, %v9076
        %v9078 = vpop.f32.mrb[0].mxu0
        %9079 = vmatprep.mubr.bf16.mxu0 0
        %9080 = vmatmul.mubr.bf16.gmra.mrb[0].mxu0 %v6546
        %v9081 = vpop.f32.mrb[0].mxu0
        %v9082 = vadd.f32 0.0, %v9081
        %v9083 = vpop.f32.mrb[0].mxu0
        %v9084 = vpop.f32.mrb[0].mxu0
        %v9085 = vadd.f32 0.0, %v9084
        %v9086 = vpop.f32.mrb[0].mxu0
        %9087 = vmatprep.mubr.bf16.mxu0 0
        %9088 = vmatmul.mubr.bf16.gmra.mrb[0].mxu0 %v6549
        %v9089 = vpop.f32.mrb[0].mxu0
        %v9090 = vadd.f32 0.0, %v9089
        %v9091 = vpop.f32.mrb[0].mxu0
        %v9092 = vpop.f32.mrb[0].mxu0
        %v9093 = vadd.f32 0.0, %v9092
        %v9094 = vpop.f32.mrb[0].mxu0
        %9095 = vmatprep.mubr.bf16.mxu0 0
        %9096 = vmatmul.mubr.bf16.gmra.mrb[0].mxu0 %v6552
        %v9097 = vpop.f32.mrb[0].mxu0
        %v9098 = vadd.f32 0.0, %v9097
        %v9099 = vpop.f32.mrb[0].mxu0
        %v9100 = vpop.f32.mrb[0].mxu0
        %v9101 = vadd.f32 0.0, %v9100
        %v9102 = vpop.f32.mrb[0].mxu0
        %9103 = vmatprep.mubr.bf16.mxu0 0
        %9104 = vmatmul.mubr.bf16.gmra.mrb[0].mxu0 %v6555
        %v9105 = vpop.f32.mrb[0].mxu0
        %v9106 = vadd.f32 0.0, %v9105
        %v9107 = vpop.f32.mrb[0].mxu0
        %v9108 = vpop.f32.mrb[0].mxu0
        %v9109 = vadd.f32 0.0, %v9108
        %v9110 = vpop.f32.mrb[0].mxu0
        %9111 = vmatprep.mubr.bf16.mxu0 0
        %9112 = vmatmul.mubr.bf16.gmra.mrb[0].mxu0 %v6558
        %v9113 = vpop.f32.mrb[0].mxu0
        %v9114 = vadd.f32 0.0, %v9113
        %v9115 = vpop.f32.mrb[0].mxu0
        %v9116 = vpop.f32.mrb[0].mxu0
        %v9117 = vadd.f32 0.0, %v9116
        %v9118 = vpop.f32.mrb[0].mxu0
        %9119 = vmatprep.mubr.bf16.mxu0 0
        %9120 = vmatmul.mubr.bf16.gmra.mrb[0].mxu0 %v6561
        %v9121 = vpop.f32.mrb[0].mxu0
        %v9122 = vadd.f32 0.0, %v9121
        %v9123 = vpop.f32.mrb[0].mxu0
        %v9124 = vpop.f32.mrb[0].mxu0
        %v9125 = vadd.f32 0.0, %v9124
        %v9126 = vpop.f32.mrb[0].mxu0
        %9127 = vmatprep.mubr.bf16.mxu0 0
        %9128 = vmatmul.mubr.bf16.gmra.mrb[0].mxu0 %v6564
        %v9129 = vpop.f32.mrb[0].mxu0
        %v9130 = vadd.f32 0.0, %v9129
        %v9131 = vpop.f32.mrb[0].mxu0
        %v9132 = vpop.f32.mrb[0].mxu0
        %v9133 = vadd.f32 0.0, %v9132
        %v9134 = vpop.f32.mrb[0].mxu0
        %9135 = vmatprep.mubr.bf16.mxu0 0
        %9136 = vmatmul.mubr.bf16.gmra.mrb[0].mxu0 %v6567
        %v9137 = vpop.f32.mrb[0].mxu0
        %v9138 = vadd.f32 0.0, %v9137
        %v9139 = vpop.f32.mrb[0].mxu0
        %v9140 = vpop.f32.mrb[0].mxu0
        %v9141 = vadd.f32 0.0, %v9140
        %v9142 = vpop.f32.mrb[0].mxu0
        %9143 = vmatprep.mubr.bf16.mxu0 0
        %9144 = vmatmul.mubr.bf16.gmra.mrb[0].mxu0 %v6570
        %v9145 = vpop.f32.mrb[0].mxu0
        %v9146 = vadd.f32 0.0, %v9145
        %v9147 = vpop.f32.mrb[0].mxu0
        %v9148 = vpop.f32.mrb[0].mxu0
        %v9149 = vadd.f32 0.0, %v9148
        %v9150 = vpop.f32.mrb[0].mxu0
        %9151 = vmatprep.mubr.bf16.mxu0 0
        %9152 = vmatmul.mubr.bf16.gmra.mrb[0].mxu0 %v6573
        %v9153 = vpop.f32.mrb[0].mxu0
        %v9154 = vadd.f32 0.0, %v9153
        %v9155 = vpop.f32.mrb[0].mxu0
        %v9156 = vpop.f32.mrb[0].mxu0
        %v9157 = vadd.f32 0.0, %v9156
        %v9158 = vpop.f32.mrb[0].mxu0
        %9159 = vmatprep.mubr.bf16.mxu0 0
        %9160 = vmatmul.mubr.bf16.gmra.mrb[0].mxu0 %v6576
        %v9161 = vpop.f32.mrb[0].mxu0
        %v9162 = vadd.f32 0.0, %v9161
        %v9163 = vpop.f32.mrb[0].mxu0
        %v9164 = vpop.f32.mrb[0].mxu0
        %v9165 = vadd.f32 0.0, %v9164
        %v9166 = vpop.f32.mrb[0].mxu0
        %9167 = vmatprep.mubr.bf16.mxu0 0
        %9168 = vmatmul.mubr.bf16.gmra.mrb[0].mxu0 %v6579
        %v9169 = vpop.f32.mrb[0].mxu0
        %v9170 = vadd.f32 0.0, %v9169
        %v9171 = vpop.f32.mrb[0].mxu0
        %v9172 = vpop.f32.mrb[0].mxu0
        %v9173 = vadd.f32 0.0, %v9172
        %v9174 = vpop.f32.mrb[0].mxu0
        %9175 = vmatprep.mubr.bf16.mxu0 0
        %9176 = vmatmul.mubr.bf16.gmra.mrb[0].mxu0 %v6582
        %v9177 = vpop.f32.mrb[0].mxu0
        %v9178 = vadd.f32 0.0, %v9177
        %v9179 = vpop.f32.mrb[0].mxu0
        %v9180 = vpop.f32.mrb[0].mxu0
        %v9181 = vadd.f32 0.0, %v9180
        %v9182 = vpop.f32.mrb[0].mxu0
        %9183 = vmatprep.mubr.bf16.mxu0 0
        %9184 = vmatmul.mubr.bf16.gmra.mrb[0].mxu0 %v6585
        %v9185 = vpop.f32.mrb[0].mxu0
        %v9186 = vadd.f32 0.0, %v9185
        %v9187 = vpop.f32.mrb[0].mxu0
        %v9188 = vpop.f32.mrb[0].mxu0
        %v9189 = vadd.f32 0.0, %v9188
        %v9190 = vpop.f32.mrb[0].mxu0
        %9191 = vmatprep.mubr.bf16.mxu0 0
        %9192 = vmatmul.mubr.bf16.gmra.mrb[0].mxu0 %v6588
        %v9193 = vpop.f32.mrb[0].mxu0
        %v9194 = vadd.f32 0.0, %v9193
        %v9195 = vpop.f32.mrb[0].mxu0
        %v9196 = vpop.f32.mrb[0].mxu0
        %v9197 = vadd.f32 0.0, %v9196
        %v9198 = vpop.f32.mrb[0].mxu0
        %9199 = vmatprep.mubr.bf16.mxu0 0
        %9200 = vmatmul.mubr.bf16.gmra.mrb[0].mxu0 %v6591
        %v9201 = vpop.f32.mrb[0].mxu0
        %v9202 = vadd.f32 0.0, %v9201
        %v9203 = vpop.f32.mrb[0].mxu0
        %v9204 = vpop.f32.mrb[0].mxu0
        %v9205 = vadd.f32 0.0, %v9204
        %v9206 = vpop.f32.mrb[0].mxu0
        %9207 = vmatprep.mubr.bf16.mxu0 0
        %9208 = vmatmul.mubr.bf16.gmra.mrb[0].mxu0 %v6594
        %v9209 = vpop.f32.mrb[0].mxu0
        %v9210 = vadd.f32 0.0, %v9209
        %v9211 = vpop.f32.mrb[0].mxu0
        %v9212 = vpop.f32.mrb[0].mxu0
        %v9213 = vadd.f32 0.0, %v9212
        %v9214 = vpop.f32.mrb[0].mxu0
        %9215 = vmatprep.mubr.bf16.mxu0 0
        %9216 = vmatmul.mubr.bf16.gmra.mrb[0].mxu0 %v6597
        %v9217 = vpop.f32.mrb[0].mxu0
        %v9218 = vadd.f32 0.0, %v9217
        %v9219 = vpop.f32.mrb[0].mxu0
        %v9220 = vpop.f32.mrb[0].mxu0
        %v9221 = vadd.f32 0.0, %v9220
        %v9222 = vpop.f32.mrb[0].mxu0
        %9223 = vmatprep.mubr.bf16.mxu0 0
        %9224 = vmatmul.mubr.bf16.gmra.mrb[0].mxu0 %v6600
        %v9225 = vpop.f32.mrb[0].mxu0
        %v9226 = vadd.f32 0.0, %v9225
        %v9227 = vpop.f32.mrb[0].mxu0
        %v9228 = vpop.f32.mrb[0].mxu0
        %v9229 = vadd.f32 0.0, %v9228
        %v9230 = vpop.f32.mrb[0].mxu0
        %9231 = vmatprep.mubr.bf16.mxu0 0
        %9232 = vmatmul.mubr.bf16.gmra.mrb[0].mxu0 %v6603
        %v9233 = vpop.f32.mrb[0].mxu0
        %v9234 = vadd.f32 0.0, %v9233
        %v9235 = vpop.f32.mrb[0].mxu0
        %v9236 = vpop.f32.mrb[0].mxu0
        %v9237 = vadd.f32 0.0, %v9236
        %v9238 = vpop.f32.mrb[0].mxu0
        %9239 = vmatprep.mubr.bf16.mxu0 0
        %9240 = vmatmul.mubr.bf16.gmra.mrb[0].mxu0 %v6606
        %v9241 = vpop.f32.mrb[0].mxu0
        %v9242 = vadd.f32 0.0, %v9241
        %v9243 = vpop.f32.mrb[0].mxu0
        %v9244 = vpop.f32.mrb[0].mxu0
        %v9245 = vadd.f32 0.0, %v9244
        %v9246 = vpop.f32.mrb[0].mxu0
        %9247 = vmatprep.mubr.bf16.mxu0 0
        %9248 = vmatmul.mubr.bf16.gmra.mrb[0].mxu0 %v6609
        %v9249 = vpop.f32.mrb[0].mxu0
        %v9250 = vadd.f32 0.0, %v9249
        %v9251 = vpop.f32.mrb[0].mxu0
        %v9252 = vpop.f32.mrb[0].mxu0
        %v9253 = vadd.f32 0.0, %v9252
        %v9254 = vpop.f32.mrb[0].mxu0
        %9255 = vmatprep.mubr.bf16.mxu0 0
        %9256 = vmatmul.mubr.bf16.gmra.mrb[0].mxu0 %v6612
        %v9257 = vpop.f32.mrb[0].mxu0
        %v9258 = vadd.f32 0.0, %v9257
        %v9259 = vpop.f32.mrb[0].mxu0
        %v9260 = vpop.f32.mrb[0].mxu0
        %v9261 = vadd.f32 0.0, %v9260
        %v9262 = vpop.f32.mrb[0].mxu0
        %9263 = vmatprep.mubr.bf16.mxu0 0
        %9264 = vmatmul.mubr.bf16.gmra.mrb[0].mxu0 %v6615
        %v9265 = vpop.f32.mrb[0].mxu0
        %v9266 = vadd.f32 0.0, %v9265
        %v9267 = vpop.f32.mrb[0].mxu0
        %v9268 = vpop.f32.mrb[0].mxu0
        %v9269 = vadd.f32 0.0, %v9268
        %v9270 = vpop.f32.mrb[0].mxu0
        %9271 = vmatprep.mubr.bf16.mxu0 0
        %9272 = vmatmul.mubr.bf16.gmra.mrb[0].mxu0 %v6618
        %v9273 = vpop.f32.mrb[0].mxu0
        %v9274 = vadd.f32 0.0, %v9273
        %v9275 = vpop.f32.mrb[0].mxu0
        %v9276 = vpop.f32.mrb[0].mxu0
        %v9277 = vadd.f32 0.0, %v9276
        %v9278 = vpop.f32.mrb[0].mxu0
        %9279 = vmatprep.mubr.bf16.mxu0 0
        %9280 = vmatmul.mubr.bf16.gmra.mrb[0].mxu0 %v6621
        %v9281 = vpop.f32.mrb[0].mxu0
        %v9282 = vadd.f32 0.0, %v9281
        %v9283 = vpop.f32.mrb[0].mxu0
        %v9284 = vpop.f32.mrb[0].mxu0
        %v9285 = vadd.f32 0.0, %v9284
        %v9286 = vpop.f32.mrb[0].mxu0
        %9287 = vmatprep.mubr.bf16.mxu0 0
        %9288 = vmatmul.mubr.bf16.gmra.mrb[0].mxu0 %v8751
        %v9289 = vpop.f32.mrb[0].mxu0
        %v9290 = vadd.f32 0.0, %v9289
        %v9291 = vpop.f32.mrb[0].mxu0
        %v9292 = vpop.f32.mrb[0].mxu0
        %v9293 = vadd.f32 0.0, %v9292
        %v9294 = vpop.f32.mrb[0].mxu0
        %9295 = vmatprep.mubr.bf16.mxu0 0
        %9296 = vmatmul.mubr.bf16.gmra.mrb[0].mxu0 %v8754
        %v9297 = vpop.f32.mrb[0].mxu0
        %v9298 = vadd.f32 0.0, %v9297
        %v9299 = vpop.f32.mrb[0].mxu0
        %v9300 = vpop.f32.mrb[0].mxu0
        %v9301 = vadd.f32 0.0, %v9300
        %v9302 = vpop.f32.mrb[0].mxu0
        %9303 = vdwg.mxu0
        %v9304 = vadd.f32 %v8599, %v8794
        %v9305 = vadd.f32 %v8600, %v8797
        %v9306 = vadd.f32 %v8601, %v8802
        %v9307 = vadd.f32 %v8602, %v8805
        %v9308 = vadd.f32 %v8603, %v8810
        %v9309 = vadd.f32 %v8604, %v8813
        %v9310 = vadd.f32 %v8605, %v8818
        %v9311 = vadd.f32 %v8606, %v8821
        %v9312 = vadd.f32 %v8607, %v8826
        %v9313 = vadd.f32 %v8608, %v8829
        %v9314 = vadd.f32 %v8609, %v8834
        %v9315 = vadd.f32 %v8610, %v8837
        %v9316 = vadd.f32 %v8611, %v8842
        %v9317 = vadd.f32 %v8612, %v8845
        %v9318 = vadd.f32 %v8613, %v8850
        %v9319 = vadd.f32 %v8614, %v8853
        %v9320 = vadd.f32 %v8615, %v8858
        %v9321 = vadd.f32 %v8616, %v8861
        %v9322 = vadd.f32 %v8617, %v8866
        %v9323 = vadd.f32 %v8618, %v8869
        %v9324 = vadd.f32 %v8619, %v8874
        %v9325 = vadd.f32 %v8620, %v8877
        %v9326 = vadd.f32 %v8621, %v8882
        %v9327 = vadd.f32 %v8622, %v8885
        %v9328 = vadd.f32 %v8623, %v8890
        %v9329 = vadd.f32 %v8624, %v8893
        %v9330 = vadd.f32 %v8625, %v8898
        %v9331 = vadd.f32 %v8626, %v8901
        %v9332 = vadd.f32 %v8627, %v8906
        %v9333 = vadd.f32 %v8628, %v8909
        %v9334 = vadd.f32 %v8629, %v8914
        %v9335 = vadd.f32 %v8630, %v8917
        %v9336 = vadd.f32 %v8631, %v8922
        %v9337 = vadd.f32 %v8632, %v8925
        %v9338 = vadd.f32 %v8633, %v8930
        %v9339 = vadd.f32 %v8634, %v8933
        %v9340 = vadd.f32 %v8635, %v8938
        %v9341 = vadd.f32 %v8636, %v8941
        %v9342 = vadd.f32 %v8637, %v8946
        %v9343 = vadd.f32 %v8638, %v8949
        %v9344 = vadd.f32 %v8639, %v8954
        %v9345 = vadd.f32 %v8640, %v8957
        %v9346 = vadd.f32 %v8641, %v8962
        %v9347 = vadd.f32 %v8642, %v8965
        %v9348 = vadd.f32 %v8643, %v8970
        %v9349 = vadd.f32 %v8644, %v8973
        %v9350 = vadd.f32 %v8645, %v8978
        %v9351 = vadd.f32 %v8646, %v8981
        %v9352 = vadd.f32 %v8647, %v8986
        %v9353 = vadd.f32 %v8648, %v8989
        %v9354 = vadd.f32 %v8649, %v8994
        %v9355 = vadd.f32 %v8650, %v8997
        %v9356 = vadd.f32 %v8651, %v9002
        %v9357 = vadd.f32 %v8652, %v9005
        %v9358 = vadd.f32 %v8653, %v9010
        %v9359 = vadd.f32 %v8654, %v9013
        %v9360 = vadd.f32 %v8655, %v9018
        %v9361 = vadd.f32 %v8656, %v9021
        %v9362 = vadd.f32 %v8657, %v9026
        %v9363 = vadd.f32 %v8658, %v9029
        %v9364 = vadd.f32 %v8659, %v9034
        %v9365 = vadd.f32 %v8660, %v9037
        %v9366 = vadd.f32 %v8661, %v9042
        %v9367 = vadd.f32 %v8662, %v9045
        %v9368 = vadd.f32 %v8663, %v9050
        %v9369 = vadd.f32 %v8664, %v9053
        %v9370 = vadd.f32 %v8665, %v9058
        %v9371 = vadd.f32 %v8666, %v9061
        %v9372 = vadd.f32 %v8667, %v9066
        %v9373 = vadd.f32 %v8668, %v9069
        %v9374 = vadd.f32 %v8669, %v9074
        %v9375 = vadd.f32 %v8670, %v9077
        %v9376 = vadd.f32 %v8671, %v9082
        %v9377 = vadd.f32 %v8672, %v9085
        %v9378 = vadd.f32 %v8673, %v9090
        %v9379 = vadd.f32 %v8674, %v9093
        %v9380 = vadd.f32 %v8675, %v9098
        %v9381 = vadd.f32 %v8676, %v9101
        %v9382 = vadd.f32 %v8677, %v9106
        %v9383 = vadd.f32 %v8678, %v9109
        %v9384 = vadd.f32 %v8679, %v9114
        %v9385 = vadd.f32 %v8680, %v9117
        %v9386 = vadd.f32 %v8681, %v9122
        %v9387 = vadd.f32 %v8682, %v9125
        %v9388 = vadd.f32 %v8683, %v9130
        %v9389 = vadd.f32 %v8684, %v9133
        %v9390 = vadd.f32 %v8685, %v9138
        %v9391 = vadd.f32 %v8686, %v9141
        %v9392 = vadd.f32 %v8687, %v9146
        %v9393 = vadd.f32 %v8688, %v9149
        %v9394 = vadd.f32 %v8689, %v9154
        %v9395 = vadd.f32 %v8690, %v9157
        %v9396 = vadd.f32 %v8691, %v9162
        %v9397 = vadd.f32 %v8692, %v9165
        %v9398 = vadd.f32 %v8693, %v9170
        %v9399 = vadd.f32 %v8694, %v9173
        %v9400 = vadd.f32 %v8695, %v9178
        %v9401 = vadd.f32 %v8696, %v9181
        %v9402 = vadd.f32 %v8697, %v9186
        %v9403 = vadd.f32 %v8698, %v9189
        %v9404 = vadd.f32 %v8699, %v9194
        %v9405 = vadd.f32 %v8700, %v9197
        %v9406 = vadd.f32 %v8701, %v9202
        %v9407 = vadd.f32 %v8702, %v9205
        %v9408 = vadd.f32 %v8703, %v9210
        %v9409 = vadd.f32 %v8704, %v9213
        %v9410 = vadd.f32 %v8705, %v9218
        %v9411 = vadd.f32 %v8706, %v9221
        %v9412 = vadd.f32 %v8707, %v9226
        %v9413 = vadd.f32 %v8708, %v9229
        %v9414 = vadd.f32 %v8709, %v9234
        %v9415 = vadd.f32 %v8710, %v9237
        %v9416 = vadd.f32 %v8711, %v9242
        %v9417 = vadd.f32 %v8712, %v9245
        %v9418 = vadd.f32 %v8713, %v9250
        %v9419 = vadd.f32 %v8714, %v9253
        %v9420 = vadd.f32 %v8715, %v9258
        %v9421 = vadd.f32 %v8716, %v9261
        %v9422 = vadd.f32 %v8717, %v9266
        %v9423 = vadd.f32 %v8718, %v9269
        %v9424 = vadd.f32 %v8719, %v9274
        %v9425 = vadd.f32 %v8720, %v9277
        %v9426 = vadd.f32 %v8721, %v9282
        %v9427 = vadd.f32 %v8722, %v9285
        %v9428 = vadd.f32 %v8723, %v9290
        %v9429 = vadd.f32 %v8724, %v9293
        %v9430 = vadd.f32 %v8725, %v9298
        %v9431 = vadd.f32 %v8726, %v9301
        %s9432 = scalar_lea.vmem %s210, 12
        %v9433 = vld [vmem:[%s9432] sm:$0x3]
        %v9438 = vunpack.c.l.b16 %v2271
        %v9439 = vunpack.c.l.b16 %v2272
        %v9440 = vunpack.c.l.b16 %v2273
        %v9441 = vunpack.c.l.b16 %v2274
        %v9442 = vpack.c.b16 %v9439, %v9438
        %v9443 = vpack.c.b16 %v9441, %v9440
        %v9445 = vsel %vm3949, %v9442, 0
        %v9448 = vsel %vm3949, %v9443, 0
        %v9451 = vand.u32 %v9433, %v4145
        %9453 = vmatprep.subr.bf16.mxu0 0
        %9454 = vmatpush1.bf16.msra.mxu0 %v9451
        %9455 = vmatprep.subr.bf16.mxu0 0
        %9456 = vmatpush1.bf16.msra.mxu0 0
        %9457 = vmatprep.subr.bf16.mxu0 0
        %9458 = vmatpush1.bf16.msra.mxu0 0
        %9459 = vmatprep.subr.bf16.mxu0 0
        %9460 = vmatpush1.bf16.msra.mxu0 0
        %9461 = vmatprep.subr.bf16.mxu0 0
        %9462 = vmatpush1.bf16.msra.mxu0 0
        %9463 = vmatprep.subr.bf16.mxu0 0
        %9464 = vmatpush1.bf16.msra.mxu0 0
        %9465 = vmatprep.subr.bf16.mxu0 0
        %9466 = vmatpush1.bf16.msra.mxu0 0
        %9467 = vmatprep.subr.bf16.mxu0 0
        %9468 = vmatpush1.bf16.msra.mxu0 0
        %9469 = vmatprep.subr.bf16.mxu0 0
        %9470 = vmatpush1.bf16.msra.mxu0 0
        %9471 = vmatprep.subr.bf16.mxu0 0
        %9472 = vmatpush1.bf16.msra.mxu0 0
        %9473 = vmatprep.subr.bf16.mxu0 0
        %9474 = vmatpush1.bf16.msra.mxu0 0
        %9475 = vmatprep.subr.bf16.mxu0 0
        %9476 = vmatpush1.bf16.msra.mxu0 0
        %9477 = vmatprep.subr.bf16.mxu0 0
        %9478 = vmatpush1.bf16.msra.mxu0 0
        %9479 = vmatprep.subr.bf16.mxu0 0
        %9480 = vmatpush1.bf16.msra.mxu0 0
        %9481 = vmatprep.subr.bf16.mxu0 0
        %9482 = vmatpush1.bf16.msra.mxu0 0
        %9483 = vmatprep.subr.bf16.mxu0 0
        %9484 = vmatpush1.bf16.msra.mxu0 0
        %9485 = vmatprep.mubr.bf16.mxu0 0
        %9486 = vmatmul.mubr.bf16.gmra.mrb[0].mxu0 %v5027
        %v9487 = vpop.f32.mrb[0].mxu0
        %v9488 = vadd.f32 0.0, %v9487
        %v9489 = vpop.f32.mrb[0].mxu0
        %v9490 = vpop.f32.mrb[0].mxu0
        %v9491 = vadd.f32 0.0, %v9490
        %v9492 = vpop.f32.mrb[0].mxu0
        %9493 = vmatprep.mubr.bf16.mxu0 0
        %9494 = vmatmul.mubr.bf16.gmra.mrb[0].mxu0 %v5030
        %v9495 = vpop.f32.mrb[0].mxu0
        %v9496 = vadd.f32 0.0, %v9495
        %v9497 = vpop.f32.mrb[0].mxu0
        %v9498 = vpop.f32.mrb[0].mxu0
        %v9499 = vadd.f32 0.0, %v9498
        %v9500 = vpop.f32.mrb[0].mxu0
        %9501 = vmatprep.mubr.bf16.mxu0 0
        %9502 = vmatmul.mubr.bf16.gmra.mrb[0].mxu0 %v5033
        %v9503 = vpop.f32.mrb[0].mxu0
        %v9504 = vadd.f32 0.0, %v9503
        %v9505 = vpop.f32.mrb[0].mxu0
        %v9506 = vpop.f32.mrb[0].mxu0
        %v9507 = vadd.f32 0.0, %v9506
        %v9508 = vpop.f32.mrb[0].mxu0
        %9509 = vmatprep.mubr.bf16.mxu0 0
        %9510 = vmatmul.mubr.bf16.gmra.mrb[0].mxu0 %v5036
        %v9511 = vpop.f32.mrb[0].mxu0
        %v9512 = vadd.f32 0.0, %v9511
        %v9513 = vpop.f32.mrb[0].mxu0
        %v9514 = vpop.f32.mrb[0].mxu0
        %v9515 = vadd.f32 0.0, %v9514
        %v9516 = vpop.f32.mrb[0].mxu0
        %9517 = vmatprep.mubr.bf16.mxu0 0
        %9518 = vmatmul.mubr.bf16.gmra.mrb[0].mxu0 %v5039
        %v9519 = vpop.f32.mrb[0].mxu0
        %v9520 = vadd.f32 0.0, %v9519
        %v9521 = vpop.f32.mrb[0].mxu0
        %v9522 = vpop.f32.mrb[0].mxu0
        %v9523 = vadd.f32 0.0, %v9522
        %v9524 = vpop.f32.mrb[0].mxu0
        %9525 = vmatprep.mubr.bf16.mxu0 0
        %9526 = vmatmul.mubr.bf16.gmra.mrb[0].mxu0 %v5042
        %v9527 = vpop.f32.mrb[0].mxu0
        %v9528 = vadd.f32 0.0, %v9527
        %v9529 = vpop.f32.mrb[0].mxu0
        %v9530 = vpop.f32.mrb[0].mxu0
        %v9531 = vadd.f32 0.0, %v9530
        %v9532 = vpop.f32.mrb[0].mxu0
        %9533 = vmatprep.mubr.bf16.mxu0 0
        %9534 = vmatmul.mubr.bf16.gmra.mrb[0].mxu0 %v5045
        %v9535 = vpop.f32.mrb[0].mxu0
        %v9536 = vadd.f32 0.0, %v9535
        %v9537 = vpop.f32.mrb[0].mxu0
        %v9538 = vpop.f32.mrb[0].mxu0
        %v9539 = vadd.f32 0.0, %v9538
        %v9540 = vpop.f32.mrb[0].mxu0
        %9541 = vmatprep.mubr.bf16.mxu0 0
        %9542 = vmatmul.mubr.bf16.gmra.mrb[0].mxu0 %v5048
        %v9543 = vpop.f32.mrb[0].mxu0
        %v9544 = vadd.f32 0.0, %v9543
        %v9545 = vpop.f32.mrb[0].mxu0
        %v9546 = vpop.f32.mrb[0].mxu0
        %v9547 = vadd.f32 0.0, %v9546
        %v9548 = vpop.f32.mrb[0].mxu0
        %9549 = vmatprep.mubr.bf16.mxu0 0
        %9550 = vmatmul.mubr.bf16.gmra.mrb[0].mxu0 %v5051
        %v9551 = vpop.f32.mrb[0].mxu0
        %v9552 = vadd.f32 0.0, %v9551
        %v9553 = vpop.f32.mrb[0].mxu0
        %v9554 = vpop.f32.mrb[0].mxu0
        %v9555 = vadd.f32 0.0, %v9554
        %v9556 = vpop.f32.mrb[0].mxu0
        %9557 = vmatprep.mubr.bf16.mxu0 0
        %9558 = vmatmul.mubr.bf16.gmra.mrb[0].mxu0 %v5054
        %v9559 = vpop.f32.mrb[0].mxu0
        %v9560 = vadd.f32 0.0, %v9559
        %v9561 = vpop.f32.mrb[0].mxu0
        %v9562 = vpop.f32.mrb[0].mxu0
        %v9563 = vadd.f32 0.0, %v9562
        %v9564 = vpop.f32.mrb[0].mxu0
        %9565 = vmatprep.mubr.bf16.mxu0 0
        %9566 = vmatmul.mubr.bf16.gmra.mrb[0].mxu0 %v5057
        %v9567 = vpop.f32.mrb[0].mxu0
        %v9568 = vadd.f32 0.0, %v9567
        %v9569 = vpop.f32.mrb[0].mxu0
        %v9570 = vpop.f32.mrb[0].mxu0
        %v9571 = vadd.f32 0.0, %v9570
        %v9572 = vpop.f32.mrb[0].mxu0
        %9573 = vmatprep.mubr.bf16.mxu0 0
        %9574 = vmatmul.mubr.bf16.gmra.mrb[0].mxu0 %v5060
        %v9575 = vpop.f32.mrb[0].mxu0
        %v9576 = vadd.f32 0.0, %v9575
        %v9577 = vpop.f32.mrb[0].mxu0
        %v9578 = vpop.f32.mrb[0].mxu0
        %v9579 = vadd.f32 0.0, %v9578
        %v9580 = vpop.f32.mrb[0].mxu0
        %9581 = vmatprep.mubr.bf16.mxu0 0
        %9582 = vmatmul.mubr.bf16.gmra.mrb[0].mxu0 %v5063
        %v9583 = vpop.f32.mrb[0].mxu0
        %v9584 = vadd.f32 0.0, %v9583
        %v9585 = vpop.f32.mrb[0].mxu0
        %v9586 = vpop.f32.mrb[0].mxu0
        %v9587 = vadd.f32 0.0, %v9586
        %v9588 = vpop.f32.mrb[0].mxu0
        %9589 = vmatprep.mubr.bf16.mxu0 0
        %9590 = vmatmul.mubr.bf16.gmra.mrb[0].mxu0 %v5066
        %v9591 = vpop.f32.mrb[0].mxu0
        %v9592 = vadd.f32 0.0, %v9591
        %v9593 = vpop.f32.mrb[0].mxu0
        %v9594 = vpop.f32.mrb[0].mxu0
        %v9595 = vadd.f32 0.0, %v9594
        %v9596 = vpop.f32.mrb[0].mxu0
        %9597 = vmatprep.mubr.bf16.mxu0 0
        %9598 = vmatmul.mubr.bf16.gmra.mrb[0].mxu0 %v5069
        %v9599 = vpop.f32.mrb[0].mxu0
        %v9600 = vadd.f32 0.0, %v9599
        %v9601 = vpop.f32.mrb[0].mxu0
        %v9602 = vpop.f32.mrb[0].mxu0
        %v9603 = vadd.f32 0.0, %v9602
        %v9604 = vpop.f32.mrb[0].mxu0
        %9605 = vmatprep.mubr.bf16.mxu0 0
        %9606 = vmatmul.mubr.bf16.gmra.mrb[0].mxu0 %v5072
        %v9607 = vpop.f32.mrb[0].mxu0
        %v9608 = vadd.f32 0.0, %v9607
        %v9609 = vpop.f32.mrb[0].mxu0
        %v9610 = vpop.f32.mrb[0].mxu0
        %v9611 = vadd.f32 0.0, %v9610
        %v9612 = vpop.f32.mrb[0].mxu0
        %9613 = vmatprep.mubr.bf16.mxu0 0
        %9614 = vmatmul.mubr.bf16.gmra.mrb[0].mxu0 %v5075
        %v9615 = vpop.f32.mrb[0].mxu0
        %v9616 = vadd.f32 0.0, %v9615
        %v9617 = vpop.f32.mrb[0].mxu0
        %v9618 = vpop.f32.mrb[0].mxu0
        %v9619 = vadd.f32 0.0, %v9618
        %v9620 = vpop.f32.mrb[0].mxu0
        %9621 = vmatprep.mubr.bf16.mxu0 0
        %9622 = vmatmul.mubr.bf16.gmra.mrb[0].mxu0 %v5078
        %v9623 = vpop.f32.mrb[0].mxu0
        %v9624 = vadd.f32 0.0, %v9623
        %v9625 = vpop.f32.mrb[0].mxu0
        %v9626 = vpop.f32.mrb[0].mxu0
        %v9627 = vadd.f32 0.0, %v9626
        %v9628 = vpop.f32.mrb[0].mxu0
        %9629 = vmatprep.mubr.bf16.mxu0 0
        %9630 = vmatmul.mubr.bf16.gmra.mrb[0].mxu0 %v5081
        %v9631 = vpop.f32.mrb[0].mxu0
        %v9632 = vadd.f32 0.0, %v9631
        %v9633 = vpop.f32.mrb[0].mxu0
        %v9634 = vpop.f32.mrb[0].mxu0
        %v9635 = vadd.f32 0.0, %v9634
        %v9636 = vpop.f32.mrb[0].mxu0
        %9637 = vmatprep.mubr.bf16.mxu0 0
        %9638 = vmatmul.mubr.bf16.gmra.mrb[0].mxu0 %v5084
        %v9639 = vpop.f32.mrb[0].mxu0
        %v9640 = vadd.f32 0.0, %v9639
        %v9641 = vpop.f32.mrb[0].mxu0
        %v9642 = vpop.f32.mrb[0].mxu0
        %v9643 = vadd.f32 0.0, %v9642
        %v9644 = vpop.f32.mrb[0].mxu0
        %9645 = vmatprep.mubr.bf16.mxu0 0
        %9646 = vmatmul.mubr.bf16.gmra.mrb[0].mxu0 %v5087
        %v9647 = vpop.f32.mrb[0].mxu0
        %v9648 = vadd.f32 0.0, %v9647
        %v9649 = vpop.f32.mrb[0].mxu0
        %v9650 = vpop.f32.mrb[0].mxu0
        %v9651 = vadd.f32 0.0, %v9650
        %v9652 = vpop.f32.mrb[0].mxu0
        %9653 = vmatprep.mubr.bf16.mxu0 0
        %9654 = vmatmul.mubr.bf16.gmra.mrb[0].mxu0 %v5090
        %v9655 = vpop.f32.mrb[0].mxu0
        %v9656 = vadd.f32 0.0, %v9655
        %v9657 = vpop.f32.mrb[0].mxu0
        %v9658 = vpop.f32.mrb[0].mxu0
        %v9659 = vadd.f32 0.0, %v9658
        %v9660 = vpop.f32.mrb[0].mxu0
        %9661 = vmatprep.mubr.bf16.mxu0 0
        %9662 = vmatmul.mubr.bf16.gmra.mrb[0].mxu0 %v5093
        %v9663 = vpop.f32.mrb[0].mxu0
        %v9664 = vadd.f32 0.0, %v9663
        %v9665 = vpop.f32.mrb[0].mxu0
        %v9666 = vpop.f32.mrb[0].mxu0
        %v9667 = vadd.f32 0.0, %v9666
        %v9668 = vpop.f32.mrb[0].mxu0
        %9669 = vmatprep.mubr.bf16.mxu0 0
        %9670 = vmatmul.mubr.bf16.gmra.mrb[0].mxu0 %v5096
        %v9671 = vpop.f32.mrb[0].mxu0
        %v9672 = vadd.f32 0.0, %v9671
        %v9673 = vpop.f32.mrb[0].mxu0
        %v9674 = vpop.f32.mrb[0].mxu0
        %v9675 = vadd.f32 0.0, %v9674
        %v9676 = vpop.f32.mrb[0].mxu0
        %9677 = vmatprep.mubr.bf16.mxu0 0
        %9678 = vmatmul.mubr.bf16.gmra.mrb[0].mxu0 %v5099
        %v9679 = vpop.f32.mrb[0].mxu0
        %v9680 = vadd.f32 0.0, %v9679
        %v9681 = vpop.f32.mrb[0].mxu0
        %v9682 = vpop.f32.mrb[0].mxu0
        %v9683 = vadd.f32 0.0, %v9682
        %v9684 = vpop.f32.mrb[0].mxu0
        %9685 = vmatprep.mubr.bf16.mxu0 0
        %9686 = vmatmul.mubr.bf16.gmra.mrb[0].mxu0 %v5102
        %v9687 = vpop.f32.mrb[0].mxu0
        %v9688 = vadd.f32 0.0, %v9687
        %v9689 = vpop.f32.mrb[0].mxu0
        %v9690 = vpop.f32.mrb[0].mxu0
        %v9691 = vadd.f32 0.0, %v9690
        %v9692 = vpop.f32.mrb[0].mxu0
        %9693 = vmatprep.mubr.bf16.mxu0 0
        %9694 = vmatmul.mubr.bf16.gmra.mrb[0].mxu0 %v5105
        %v9695 = vpop.f32.mrb[0].mxu0
        %v9696 = vadd.f32 0.0, %v9695
        %v9697 = vpop.f32.mrb[0].mxu0
        %v9698 = vpop.f32.mrb[0].mxu0
        %v9699 = vadd.f32 0.0, %v9698
        %v9700 = vpop.f32.mrb[0].mxu0
        %9701 = vmatprep.mubr.bf16.mxu0 0
        %9702 = vmatmul.mubr.bf16.gmra.mrb[0].mxu0 %v5108
        %v9703 = vpop.f32.mrb[0].mxu0
        %v9704 = vadd.f32 0.0, %v9703
        %v9705 = vpop.f32.mrb[0].mxu0
        %v9706 = vpop.f32.mrb[0].mxu0
        %v9707 = vadd.f32 0.0, %v9706
        %v9708 = vpop.f32.mrb[0].mxu0
        %9709 = vmatprep.mubr.bf16.mxu0 0
        %9710 = vmatmul.mubr.bf16.gmra.mrb[0].mxu0 %v5111
        %v9711 = vpop.f32.mrb[0].mxu0
        %v9712 = vadd.f32 0.0, %v9711
        %v9713 = vpop.f32.mrb[0].mxu0
        %v9714 = vpop.f32.mrb[0].mxu0
        %v9715 = vadd.f32 0.0, %v9714
        %v9716 = vpop.f32.mrb[0].mxu0
        %9717 = vmatprep.mubr.bf16.mxu0 0
        %9718 = vmatmul.mubr.bf16.gmra.mrb[0].mxu0 %v5114
        %v9719 = vpop.f32.mrb[0].mxu0
        %v9720 = vadd.f32 0.0, %v9719
        %v9721 = vpop.f32.mrb[0].mxu0
        %v9722 = vpop.f32.mrb[0].mxu0
        %v9723 = vadd.f32 0.0, %v9722
        %v9724 = vpop.f32.mrb[0].mxu0
        %9725 = vmatprep.mubr.bf16.mxu0 0
        %9726 = vmatmul.mubr.bf16.gmra.mrb[0].mxu0 %v5117
        %v9727 = vpop.f32.mrb[0].mxu0
        %v9728 = vadd.f32 0.0, %v9727
        %v9729 = vpop.f32.mrb[0].mxu0
        %v9730 = vpop.f32.mrb[0].mxu0
        %v9731 = vadd.f32 0.0, %v9730
        %v9732 = vpop.f32.mrb[0].mxu0
        %9733 = vmatprep.mubr.bf16.mxu0 0
        %9734 = vmatmul.mubr.bf16.gmra.mrb[0].mxu0 %v5120
        %v9735 = vpop.f32.mrb[0].mxu0
        %v9736 = vadd.f32 0.0, %v9735
        %v9737 = vpop.f32.mrb[0].mxu0
        %v9738 = vpop.f32.mrb[0].mxu0
        %v9739 = vadd.f32 0.0, %v9738
        %v9740 = vpop.f32.mrb[0].mxu0
        %9741 = vmatprep.mubr.bf16.mxu0 0
        %9742 = vmatmul.mubr.bf16.gmra.mrb[0].mxu0 %v5123
        %v9743 = vpop.f32.mrb[0].mxu0
        %v9744 = vadd.f32 0.0, %v9743
        %v9745 = vpop.f32.mrb[0].mxu0
        %v9746 = vpop.f32.mrb[0].mxu0
        %v9747 = vadd.f32 0.0, %v9746
        %v9748 = vpop.f32.mrb[0].mxu0
        %9749 = vmatprep.mubr.bf16.mxu0 0
        %9750 = vmatmul.mubr.bf16.gmra.mrb[0].mxu0 %v5126
        %v9751 = vpop.f32.mrb[0].mxu0
        %v9752 = vadd.f32 0.0, %v9751
        %v9753 = vpop.f32.mrb[0].mxu0
        %v9754 = vpop.f32.mrb[0].mxu0
        %v9755 = vadd.f32 0.0, %v9754
        %v9756 = vpop.f32.mrb[0].mxu0
        %9757 = vmatprep.mubr.bf16.mxu0 0
        %9758 = vmatmul.mubr.bf16.gmra.mrb[0].mxu0 %v5129
        %v9759 = vpop.f32.mrb[0].mxu0
        %v9760 = vadd.f32 0.0, %v9759
        %v9761 = vpop.f32.mrb[0].mxu0
        %v9762 = vpop.f32.mrb[0].mxu0
        %v9763 = vadd.f32 0.0, %v9762
        %v9764 = vpop.f32.mrb[0].mxu0
        %9765 = vmatprep.mubr.bf16.mxu0 0
        %9766 = vmatmul.mubr.bf16.gmra.mrb[0].mxu0 %v5132
        %v9767 = vpop.f32.mrb[0].mxu0
        %v9768 = vadd.f32 0.0, %v9767
        %v9769 = vpop.f32.mrb[0].mxu0
        %v9770 = vpop.f32.mrb[0].mxu0
        %v9771 = vadd.f32 0.0, %v9770
        %v9772 = vpop.f32.mrb[0].mxu0
        %9773 = vmatprep.mubr.bf16.mxu0 0
        %9774 = vmatmul.mubr.bf16.gmra.mrb[0].mxu0 %v5135
        %v9775 = vpop.f32.mrb[0].mxu0
        %v9776 = vadd.f32 0.0, %v9775
        %v9777 = vpop.f32.mrb[0].mxu0
        %v9778 = vpop.f32.mrb[0].mxu0
        %v9779 = vadd.f32 0.0, %v9778
        %v9780 = vpop.f32.mrb[0].mxu0
        %9781 = vmatprep.mubr.bf16.mxu0 0
        %9782 = vmatmul.mubr.bf16.gmra.mrb[0].mxu0 %v5138
        %v9783 = vpop.f32.mrb[0].mxu0
        %v9784 = vadd.f32 0.0, %v9783
        %v9785 = vpop.f32.mrb[0].mxu0
        %v9786 = vpop.f32.mrb[0].mxu0
        %v9787 = vadd.f32 0.0, %v9786
        %v9788 = vpop.f32.mrb[0].mxu0
        %9789 = vmatprep.mubr.bf16.mxu0 0
        %9790 = vmatmul.mubr.bf16.gmra.mrb[0].mxu0 %v5141
        %v9791 = vpop.f32.mrb[0].mxu0
        %v9792 = vadd.f32 0.0, %v9791
        %v9793 = vpop.f32.mrb[0].mxu0
        %v9794 = vpop.f32.mrb[0].mxu0
        %v9795 = vadd.f32 0.0, %v9794
        %v9796 = vpop.f32.mrb[0].mxu0
        %9797 = vmatprep.mubr.bf16.mxu0 0
        %9798 = vmatmul.mubr.bf16.gmra.mrb[0].mxu0 %v5144
        %v9799 = vpop.f32.mrb[0].mxu0
        %v9800 = vadd.f32 0.0, %v9799
        %v9801 = vpop.f32.mrb[0].mxu0
        %v9802 = vpop.f32.mrb[0].mxu0
        %v9803 = vadd.f32 0.0, %v9802
        %v9804 = vpop.f32.mrb[0].mxu0
        %9805 = vmatprep.mubr.bf16.mxu0 0
        %9806 = vmatmul.mubr.bf16.gmra.mrb[0].mxu0 %v5147
        %v9807 = vpop.f32.mrb[0].mxu0
        %v9808 = vadd.f32 0.0, %v9807
        %v9809 = vpop.f32.mrb[0].mxu0
        %v9810 = vpop.f32.mrb[0].mxu0
        %v9811 = vadd.f32 0.0, %v9810
        %v9812 = vpop.f32.mrb[0].mxu0
        %9813 = vmatprep.mubr.bf16.mxu0 0
        %9814 = vmatmul.mubr.bf16.gmra.mrb[0].mxu0 %v5150
        %v9815 = vpop.f32.mrb[0].mxu0
        %v9816 = vadd.f32 0.0, %v9815
        %v9817 = vpop.f32.mrb[0].mxu0
        %v9818 = vpop.f32.mrb[0].mxu0
        %v9819 = vadd.f32 0.0, %v9818
        %v9820 = vpop.f32.mrb[0].mxu0
        %9821 = vmatprep.mubr.bf16.mxu0 0
        %9822 = vmatmul.mubr.bf16.gmra.mrb[0].mxu0 %v5153
        %v9823 = vpop.f32.mrb[0].mxu0
        %v9824 = vadd.f32 0.0, %v9823
        %v9825 = vpop.f32.mrb[0].mxu0
        %v9826 = vpop.f32.mrb[0].mxu0
        %v9827 = vadd.f32 0.0, %v9826
        %v9828 = vpop.f32.mrb[0].mxu0
        %9829 = vmatprep.mubr.bf16.mxu0 0
        %9830 = vmatmul.mubr.bf16.gmra.mrb[0].mxu0 %v5156
        %v9831 = vpop.f32.mrb[0].mxu0
        %v9832 = vadd.f32 0.0, %v9831
        %v9833 = vpop.f32.mrb[0].mxu0
        %v9834 = vpop.f32.mrb[0].mxu0
        %v9835 = vadd.f32 0.0, %v9834
        %v9836 = vpop.f32.mrb[0].mxu0
        %9837 = vmatprep.mubr.bf16.mxu0 0
        %9838 = vmatmul.mubr.bf16.gmra.mrb[0].mxu0 %v5159
        %v9839 = vpop.f32.mrb[0].mxu0
        %v9840 = vadd.f32 0.0, %v9839
        %v9841 = vpop.f32.mrb[0].mxu0
        %v9842 = vpop.f32.mrb[0].mxu0
        %v9843 = vadd.f32 0.0, %v9842
        %v9844 = vpop.f32.mrb[0].mxu0
        %9845 = vmatprep.mubr.bf16.mxu0 0
        %9846 = vmatmul.mubr.bf16.gmra.mrb[0].mxu0 %v5162
        %v9847 = vpop.f32.mrb[0].mxu0
        %v9848 = vadd.f32 0.0, %v9847
        %v9849 = vpop.f32.mrb[0].mxu0
        %v9850 = vpop.f32.mrb[0].mxu0
        %v9851 = vadd.f32 0.0, %v9850
        %v9852 = vpop.f32.mrb[0].mxu0
        %9853 = vmatprep.mubr.bf16.mxu0 0
        %9854 = vmatmul.mubr.bf16.gmra.mrb[0].mxu0 %v5165
        %v9855 = vpop.f32.mrb[0].mxu0
        %v9856 = vadd.f32 0.0, %v9855
        %v9857 = vpop.f32.mrb[0].mxu0
        %v9858 = vpop.f32.mrb[0].mxu0
        %v9859 = vadd.f32 0.0, %v9858
        %v9860 = vpop.f32.mrb[0].mxu0
        %9861 = vmatprep.mubr.bf16.mxu0 0
        %9862 = vmatmul.mubr.bf16.gmra.mrb[0].mxu0 %v5168
        %v9863 = vpop.f32.mrb[0].mxu0
        %v9864 = vadd.f32 0.0, %v9863
        %v9865 = vpop.f32.mrb[0].mxu0
        %v9866 = vpop.f32.mrb[0].mxu0
        %v9867 = vadd.f32 0.0, %v9866
        %v9868 = vpop.f32.mrb[0].mxu0
        %9869 = vmatprep.mubr.bf16.mxu0 0
        %9870 = vmatmul.mubr.bf16.gmra.mrb[0].mxu0 %v5171
        %v9871 = vpop.f32.mrb[0].mxu0
        %v9872 = vadd.f32 0.0, %v9871
        %v9873 = vpop.f32.mrb[0].mxu0
        %v9874 = vpop.f32.mrb[0].mxu0
        %v9875 = vadd.f32 0.0, %v9874
        %v9876 = vpop.f32.mrb[0].mxu0
        %9877 = vmatprep.mubr.bf16.mxu0 0
        %9878 = vmatmul.mubr.bf16.gmra.mrb[0].mxu0 %v5174
        %v9879 = vpop.f32.mrb[0].mxu0
        %v9880 = vadd.f32 0.0, %v9879
        %v9881 = vpop.f32.mrb[0].mxu0
        %v9882 = vpop.f32.mrb[0].mxu0
        %v9883 = vadd.f32 0.0, %v9882
        %v9884 = vpop.f32.mrb[0].mxu0
        %9885 = vmatprep.mubr.bf16.mxu0 0
        %9886 = vmatmul.mubr.bf16.gmra.mrb[0].mxu0 %v5177
        %v9887 = vpop.f32.mrb[0].mxu0
        %v9888 = vadd.f32 0.0, %v9887
        %v9889 = vpop.f32.mrb[0].mxu0
        %v9890 = vpop.f32.mrb[0].mxu0
        %v9891 = vadd.f32 0.0, %v9890
        %v9892 = vpop.f32.mrb[0].mxu0
        %9893 = vmatprep.mubr.bf16.mxu0 0
        %9894 = vmatmul.mubr.bf16.gmra.mrb[0].mxu0 %v5180
        %v9895 = vpop.f32.mrb[0].mxu0
        %v9896 = vadd.f32 0.0, %v9895
        %v9897 = vpop.f32.mrb[0].mxu0
        %v9898 = vpop.f32.mrb[0].mxu0
        %v9899 = vadd.f32 0.0, %v9898
        %v9900 = vpop.f32.mrb[0].mxu0
        %9901 = vmatprep.mubr.bf16.mxu0 0
        %9902 = vmatmul.mubr.bf16.gmra.mrb[0].mxu0 %v5183
        %v9903 = vpop.f32.mrb[0].mxu0
        %v9904 = vadd.f32 0.0, %v9903
        %v9905 = vpop.f32.mrb[0].mxu0
        %v9906 = vpop.f32.mrb[0].mxu0
        %v9907 = vadd.f32 0.0, %v9906
        %v9908 = vpop.f32.mrb[0].mxu0
        %9909 = vmatprep.mubr.bf16.mxu0 0
        %9910 = vmatmul.mubr.bf16.gmra.mrb[0].mxu0 %v5186
        %v9911 = vpop.f32.mrb[0].mxu0
        %v9912 = vadd.f32 0.0, %v9911
        %v9913 = vpop.f32.mrb[0].mxu0
        %v9914 = vpop.f32.mrb[0].mxu0
        %v9915 = vadd.f32 0.0, %v9914
        %v9916 = vpop.f32.mrb[0].mxu0
        %9917 = vmatprep.mubr.bf16.mxu0 0
        %9918 = vmatmul.mubr.bf16.gmra.mrb[0].mxu0 %v5189
        %v9919 = vpop.f32.mrb[0].mxu0
        %v9920 = vadd.f32 0.0, %v9919
        %v9921 = vpop.f32.mrb[0].mxu0
        %v9922 = vpop.f32.mrb[0].mxu0
        %v9923 = vadd.f32 0.0, %v9922
        %v9924 = vpop.f32.mrb[0].mxu0
        %9925 = vmatprep.mubr.bf16.mxu0 0
        %9926 = vmatmul.mubr.bf16.gmra.mrb[0].mxu0 %v5192
        %v9927 = vpop.f32.mrb[0].mxu0
        %v9928 = vadd.f32 0.0, %v9927
        %v9929 = vpop.f32.mrb[0].mxu0
        %v9930 = vpop.f32.mrb[0].mxu0
        %v9931 = vadd.f32 0.0, %v9930
        %v9932 = vpop.f32.mrb[0].mxu0
        %9933 = vmatprep.mubr.bf16.mxu0 0
        %9934 = vmatmul.mubr.bf16.gmra.mrb[0].mxu0 %v5195
        %v9935 = vpop.f32.mrb[0].mxu0
        %v9936 = vadd.f32 0.0, %v9935
        %v9937 = vpop.f32.mrb[0].mxu0
        %v9938 = vpop.f32.mrb[0].mxu0
        %v9939 = vadd.f32 0.0, %v9938
        %v9940 = vpop.f32.mrb[0].mxu0
        %9941 = vmatprep.mubr.bf16.mxu0 0
        %9942 = vmatmul.mubr.bf16.gmra.mrb[0].mxu0 %v5198
        %v9943 = vpop.f32.mrb[0].mxu0
        %v9944 = vadd.f32 0.0, %v9943
        %v9945 = vpop.f32.mrb[0].mxu0
        %v9946 = vpop.f32.mrb[0].mxu0
        %v9947 = vadd.f32 0.0, %v9946
        %v9948 = vpop.f32.mrb[0].mxu0
        %9949 = vmatprep.mubr.bf16.mxu0 0
        %9950 = vmatmul.mubr.bf16.gmra.mrb[0].mxu0 %v5201
        %v9951 = vpop.f32.mrb[0].mxu0
        %v9952 = vadd.f32 0.0, %v9951
        %v9953 = vpop.f32.mrb[0].mxu0
        %v9954 = vpop.f32.mrb[0].mxu0
        %v9955 = vadd.f32 0.0, %v9954
        %v9956 = vpop.f32.mrb[0].mxu0
        %9957 = vmatprep.mubr.bf16.mxu0 0
        %9958 = vmatmul.mubr.bf16.gmra.mrb[0].mxu0 %v5204
        %v9959 = vpop.f32.mrb[0].mxu0
        %v9960 = vadd.f32 0.0, %v9959
        %v9961 = vpop.f32.mrb[0].mxu0
        %v9962 = vpop.f32.mrb[0].mxu0
        %v9963 = vadd.f32 0.0, %v9962
        %v9964 = vpop.f32.mrb[0].mxu0
        %9965 = vmatprep.mubr.bf16.mxu0 0
        %9966 = vmatmul.mubr.bf16.gmra.mrb[0].mxu0 %v7312
        %v9967 = vpop.f32.mrb[0].mxu0
        %v9968 = vadd.f32 0.0, %v9967
        %v9969 = vpop.f32.mrb[0].mxu0
        %v9970 = vpop.f32.mrb[0].mxu0
        %v9971 = vadd.f32 0.0, %v9970
        %v9972 = vpop.f32.mrb[0].mxu0
        %9973 = vmatprep.mubr.bf16.mxu0 0
        %9974 = vmatmul.mubr.bf16.gmra.mrb[0].mxu0 %v7315
        %v9975 = vpop.f32.mrb[0].mxu0
        %v9976 = vadd.f32 0.0, %v9975
        %v9977 = vpop.f32.mrb[0].mxu0
        %v9978 = vpop.f32.mrb[0].mxu0
        %v9979 = vadd.f32 0.0, %v9978
        %v9980 = vpop.f32.mrb[0].mxu0
        %9981 = vmatprep.mubr.bf16.mxu0 0
        %9982 = vmatmul.mubr.bf16.gmra.mrb[0].mxu0 %v9445
        %v9983 = vpop.f32.mrb[0].mxu0
        %v9984 = vadd.f32 0.0, %v9983
        %v9985 = vpop.f32.mrb[0].mxu0
        %v9986 = vpop.f32.mrb[0].mxu0
        %v9987 = vadd.f32 0.0, %v9986
        %v9988 = vpop.f32.mrb[0].mxu0
        %9989 = vmatprep.mubr.bf16.mxu0 0
        %9990 = vmatmul.mubr.bf16.gmra.mrb[0].mxu0 %v9448
        %v9991 = vpop.f32.mrb[0].mxu0
        %v9992 = vadd.f32 0.0, %v9991
        %v9993 = vpop.f32.mrb[0].mxu0
        %v9994 = vpop.f32.mrb[0].mxu0
        %v9995 = vadd.f32 0.0, %v9994
        %v9996 = vpop.f32.mrb[0].mxu0
        %9997 = vdwg.mxu0
        %v9998 = vadd.f32 %v9304, %v9488
        %v9999 = vadd.f32 %v9305, %v9491
        %v10000 = vadd.f32 %v9306, %v9496
        %v10001 = vadd.f32 %v9307, %v9499
        %v10002 = vadd.f32 %v9308, %v9504
        %v10003 = vadd.f32 %v9309, %v9507
        %v10004 = vadd.f32 %v9310, %v9512
        %v10005 = vadd.f32 %v9311, %v9515
        %v10006 = vadd.f32 %v9312, %v9520
        %v10007 = vadd.f32 %v9313, %v9523
        %v10008 = vadd.f32 %v9314, %v9528
        %v10009 = vadd.f32 %v9315, %v9531
        %v10010 = vadd.f32 %v9316, %v9536
        %v10011 = vadd.f32 %v9317, %v9539
        %v10012 = vadd.f32 %v9318, %v9544
        %v10013 = vadd.f32 %v9319, %v9547
        %v10014 = vadd.f32 %v9320, %v9552
        %v10015 = vadd.f32 %v9321, %v9555
        %v10016 = vadd.f32 %v9322, %v9560
        %v10017 = vadd.f32 %v9323, %v9563
        %v10018 = vadd.f32 %v9324, %v9568
        %v10019 = vadd.f32 %v9325, %v9571
        %v10020 = vadd.f32 %v9326, %v9576
        %v10021 = vadd.f32 %v9327, %v9579
        %v10022 = vadd.f32 %v9328, %v9584
        %v10023 = vadd.f32 %v9329, %v9587
        %v10024 = vadd.f32 %v9330, %v9592
        %v10025 = vadd.f32 %v9331, %v9595
        %v10026 = vadd.f32 %v9332, %v9600
        %v10027 = vadd.f32 %v9333, %v9603
        %v10028 = vadd.f32 %v9334, %v9608
        %v10029 = vadd.f32 %v9335, %v9611
        %v10030 = vadd.f32 %v9336, %v9616
        %v10031 = vadd.f32 %v9337, %v9619
        %v10032 = vadd.f32 %v9338, %v9624
        %v10033 = vadd.f32 %v9339, %v9627
        %v10034 = vadd.f32 %v9340, %v9632
        %v10035 = vadd.f32 %v9341, %v9635
        %v10036 = vadd.f32 %v9342, %v9640
        %v10037 = vadd.f32 %v9343, %v9643
        %v10038 = vadd.f32 %v9344, %v9648
        %v10039 = vadd.f32 %v9345, %v9651
        %v10040 = vadd.f32 %v9346, %v9656
        %v10041 = vadd.f32 %v9347, %v9659
        %v10042 = vadd.f32 %v9348, %v9664
        %v10043 = vadd.f32 %v9349, %v9667
        %v10044 = vadd.f32 %v9350, %v9672
        %v10045 = vadd.f32 %v9351, %v9675
        %v10046 = vadd.f32 %v9352, %v9680
        %v10047 = vadd.f32 %v9353, %v9683
        %v10048 = vadd.f32 %v9354, %v9688
        %v10049 = vadd.f32 %v9355, %v9691
        %v10050 = vadd.f32 %v9356, %v9696
        %v10051 = vadd.f32 %v9357, %v9699
        %v10052 = vadd.f32 %v9358, %v9704
        %v10053 = vadd.f32 %v9359, %v9707
        %v10054 = vadd.f32 %v9360, %v9712
        %v10055 = vadd.f32 %v9361, %v9715
        %v10056 = vadd.f32 %v9362, %v9720
        %v10057 = vadd.f32 %v9363, %v9723
        %v10058 = vadd.f32 %v9364, %v9728
        %v10059 = vadd.f32 %v9365, %v9731
        %v10060 = vadd.f32 %v9366, %v9736
        %v10061 = vadd.f32 %v9367, %v9739
        %v10062 = vadd.f32 %v9368, %v9744
        %v10063 = vadd.f32 %v9369, %v9747
        %v10064 = vadd.f32 %v9370, %v9752
        %v10065 = vadd.f32 %v9371, %v9755
        %v10066 = vadd.f32 %v9372, %v9760
        %v10067 = vadd.f32 %v9373, %v9763
        %v10068 = vadd.f32 %v9374, %v9768
        %v10069 = vadd.f32 %v9375, %v9771
        %v10070 = vadd.f32 %v9376, %v9776
        %v10071 = vadd.f32 %v9377, %v9779
        %v10072 = vadd.f32 %v9378, %v9784
        %v10073 = vadd.f32 %v9379, %v9787
        %v10074 = vadd.f32 %v9380, %v9792
        %v10075 = vadd.f32 %v9381, %v9795
        %v10076 = vadd.f32 %v9382, %v9800
        %v10077 = vadd.f32 %v9383, %v9803
        %v10078 = vadd.f32 %v9384, %v9808
        %v10079 = vadd.f32 %v9385, %v9811
        %v10080 = vadd.f32 %v9386, %v9816
        %v10081 = vadd.f32 %v9387, %v9819
        %v10082 = vadd.f32 %v9388, %v9824
        %v10083 = vadd.f32 %v9389, %v9827
        %v10084 = vadd.f32 %v9390, %v9832
        %v10085 = vadd.f32 %v9391, %v9835
        %v10086 = vadd.f32 %v9392, %v9840
        %v10087 = vadd.f32 %v9393, %v9843
        %v10088 = vadd.f32 %v9394, %v9848
        %v10089 = vadd.f32 %v9395, %v9851
        %v10090 = vadd.f32 %v9396, %v9856
        %v10091 = vadd.f32 %v9397, %v9859
        %v10092 = vadd.f32 %v9398, %v9864
        %v10093 = vadd.f32 %v9399, %v9867
        %v10094 = vadd.f32 %v9400, %v9872
        %v10095 = vadd.f32 %v9401, %v9875
        %v10096 = vadd.f32 %v9402, %v9880
        %v10097 = vadd.f32 %v9403, %v9883
        %v10098 = vadd.f32 %v9404, %v9888
        %v10099 = vadd.f32 %v9405, %v9891
        %v10100 = vadd.f32 %v9406, %v9896
        %v10101 = vadd.f32 %v9407, %v9899
        %v10102 = vadd.f32 %v9408, %v9904
        %v10103 = vadd.f32 %v9409, %v9907
        %v10104 = vadd.f32 %v9410, %v9912
        %v10105 = vadd.f32 %v9411, %v9915
        %v10106 = vadd.f32 %v9412, %v9920
        %v10107 = vadd.f32 %v9413, %v9923
        %v10108 = vadd.f32 %v9414, %v9928
        %v10109 = vadd.f32 %v9415, %v9931
        %v10110 = vadd.f32 %v9416, %v9936
        %v10111 = vadd.f32 %v9417, %v9939
        %v10112 = vadd.f32 %v9418, %v9944
        %v10113 = vadd.f32 %v9419, %v9947
        %v10114 = vadd.f32 %v9420, %v9952
        %v10115 = vadd.f32 %v9421, %v9955
        %v10116 = vadd.f32 %v9422, %v9960
        %v10117 = vadd.f32 %v9423, %v9963
        %v10118 = vadd.f32 %v9424, %v9968
        %v10119 = vadd.f32 %v9425, %v9971
        %v10120 = vadd.f32 %v9426, %v9976
        %v10121 = vadd.f32 %v9427, %v9979
        %v10122 = vadd.f32 %v9428, %v9984
        %v10123 = vadd.f32 %v9429, %v9987
        %v10124 = vadd.f32 %v9430, %v9992
        %v10125 = vadd.f32 %v9431, %v9995
        %v10127 = vshrl.u32 %v2271, 16
        %v10129 = vrot.slane %v10127, 4
        %v10130 = vshll.u32 %v2271, 16
        %v10132 = vrot.slane %v10130, 5
        %v10133 = vor.u32 %v10129, %v10132
        %v10134 = vrot.slane %v10133, 4
        %v10136 = vshll.u32 %v2272, 16
        %v10138 = vrot.slane %v10136, 5
        %v10139 = vsel %vm2346, %v10134, %v10138
        %v10140 = vshrl.u32 %v2272, 16
        %v10142 = vrot.slane %v10140, 4
        %v10143 = vor.u32 %v10142, %v10138
        %v10144 = vrot.slane %v10143, 4
        %v10146 = vshll.u32 %v2273, 16
        %v10148 = vrot.slane %v10146, 5
        %v10149 = vsel %vm2346, %v10144, %v10148
        %v10150 = vshrl.u32 %v2273, 16
        %v10152 = vrot.slane %v10150, 4
        %v10153 = vor.u32 %v10152, %v10148
        %v10154 = vrot.slane %v10153, 4
        %v10156 = vshll.u32 %v2274, 16
        %v10158 = vrot.slane %v10156, 5
        %v10159 = vsel %vm2346, %v10154, %v10158
        %v10160 = vshrl.u32 %v2274, 16
        %v10162 = vrot.slane %v10160, 4
        %v10163 = vor.u32 %v10162, %v10158
        %v10164 = vrot.slane %v10163, 4
        %v10166 = vshll.u32 %v2308, 16
        %v10168 = vrot.slane %v10166, 5
        %v10169 = vsel %vm2346, %v10164, %v10168
        %s10170 = scalar_lea.vmem %s210, 14
        %v10171 = vld [vmem:[%s10170] sm:$0x3]
        %v10172 = vunpack.c.l.b16 %v10139
        %v10173 = vunpack.c.l.b16 %v10149
        %v10174 = vunpack.c.l.b16 %v10159
        %v10175 = vunpack.c.l.b16 %v10169
        %v10176 = vpack.c.b16 %v10173, %v10172
        %v10177 = vpack.c.b16 %v10175, %v10174
        %v10179 = vsel %vm3949, %v10176, 0
        %v10182 = vsel %vm3949, %v10177, 0
        %v10185 = vand.u32 %v10171, %v4145
        %10187 = vmatprep.subr.bf16.mxu0 0
        %10188 = vmatpush1.bf16.msra.mxu0 %v10185
        %10189 = vmatprep.subr.bf16.mxu0 0
        %10190 = vmatpush1.bf16.msra.mxu0 0
        %10191 = vmatprep.subr.bf16.mxu0 0
        %10192 = vmatpush1.bf16.msra.mxu0 0
        %10193 = vmatprep.subr.bf16.mxu0 0
        %10194 = vmatpush1.bf16.msra.mxu0 0
        %10195 = vmatprep.subr.bf16.mxu0 0
        %10196 = vmatpush1.bf16.msra.mxu0 0
        %10197 = vmatprep.subr.bf16.mxu0 0
        %10198 = vmatpush1.bf16.msra.mxu0 0
        %10199 = vmatprep.subr.bf16.mxu0 0
        %10200 = vmatpush1.bf16.msra.mxu0 0
        %10201 = vmatprep.subr.bf16.mxu0 0
        %10202 = vmatpush1.bf16.msra.mxu0 0
        %10203 = vmatprep.subr.bf16.mxu0 0
        %10204 = vmatpush1.bf16.msra.mxu0 0
        %10205 = vmatprep.subr.bf16.mxu0 0
        %10206 = vmatpush1.bf16.msra.mxu0 0
        %10207 = vmatprep.subr.bf16.mxu0 0
        %10208 = vmatpush1.bf16.msra.mxu0 0
        %10209 = vmatprep.subr.bf16.mxu0 0
        %10210 = vmatpush1.bf16.msra.mxu0 0
        %10211 = vmatprep.subr.bf16.mxu0 0
        %10212 = vmatpush1.bf16.msra.mxu0 0
        %10213 = vmatprep.subr.bf16.mxu0 0
        %10214 = vmatpush1.bf16.msra.mxu0 0
        %10215 = vmatprep.subr.bf16.mxu0 0
        %10216 = vmatpush1.bf16.msra.mxu0 0
        %10217 = vmatprep.subr.bf16.mxu0 0
        %10218 = vmatpush1.bf16.msra.mxu0 0
        %10219 = vmatprep.mubr.bf16.mxu0 0
        %10220 = vmatmul.mubr.bf16.gmra.mrb[0].mxu0 %v3963
        %v10221 = vpop.f32.mrb[0].mxu0
        %v10222 = vadd.f32 0.0, %v10221
        %v10223 = vpop.f32.mrb[0].mxu0
        %v10224 = vpop.f32.mrb[0].mxu0
        %v10225 = vadd.f32 0.0, %v10224
        %v10226 = vpop.f32.mrb[0].mxu0
        %10227 = vmatprep.mubr.bf16.mxu0 0
        %10228 = vmatmul.mubr.bf16.gmra.mrb[0].mxu0 %v3966
        %v10229 = vpop.f32.mrb[0].mxu0
        %v10230 = vadd.f32 0.0, %v10229
        %v10231 = vpop.f32.mrb[0].mxu0
        %v10232 = vpop.f32.mrb[0].mxu0
        %v10233 = vadd.f32 0.0, %v10232
        %v10234 = vpop.f32.mrb[0].mxu0
        %10235 = vmatprep.mubr.bf16.mxu0 0
        %10236 = vmatmul.mubr.bf16.gmra.mrb[0].mxu0 %v3969
        %v10237 = vpop.f32.mrb[0].mxu0
        %v10238 = vadd.f32 0.0, %v10237
        %v10239 = vpop.f32.mrb[0].mxu0
        %v10240 = vpop.f32.mrb[0].mxu0
        %v10241 = vadd.f32 0.0, %v10240
        %v10242 = vpop.f32.mrb[0].mxu0
        %10243 = vmatprep.mubr.bf16.mxu0 0
        %10244 = vmatmul.mubr.bf16.gmra.mrb[0].mxu0 %v3972
        %v10245 = vpop.f32.mrb[0].mxu0
        %v10246 = vadd.f32 0.0, %v10245
        %v10247 = vpop.f32.mrb[0].mxu0
        %v10248 = vpop.f32.mrb[0].mxu0
        %v10249 = vadd.f32 0.0, %v10248
        %v10250 = vpop.f32.mrb[0].mxu0
        %10251 = vmatprep.mubr.bf16.mxu0 0
        %10252 = vmatmul.mubr.bf16.gmra.mrb[0].mxu0 %v3975
        %v10253 = vpop.f32.mrb[0].mxu0
        %v10254 = vadd.f32 0.0, %v10253
        %v10255 = vpop.f32.mrb[0].mxu0
        %v10256 = vpop.f32.mrb[0].mxu0
        %v10257 = vadd.f32 0.0, %v10256
        %v10258 = vpop.f32.mrb[0].mxu0
        %10259 = vmatprep.mubr.bf16.mxu0 0
        %10260 = vmatmul.mubr.bf16.gmra.mrb[0].mxu0 %v3978
        %v10261 = vpop.f32.mrb[0].mxu0
        %v10262 = vadd.f32 0.0, %v10261
        %v10263 = vpop.f32.mrb[0].mxu0
        %v10264 = vpop.f32.mrb[0].mxu0
        %v10265 = vadd.f32 0.0, %v10264
        %v10266 = vpop.f32.mrb[0].mxu0
        %10267 = vmatprep.mubr.bf16.mxu0 0
        %10268 = vmatmul.mubr.bf16.gmra.mrb[0].mxu0 %v3981
        %v10269 = vpop.f32.mrb[0].mxu0
        %v10270 = vadd.f32 0.0, %v10269
        %v10271 = vpop.f32.mrb[0].mxu0
        %v10272 = vpop.f32.mrb[0].mxu0
        %v10273 = vadd.f32 0.0, %v10272
        %v10274 = vpop.f32.mrb[0].mxu0
        %10275 = vmatprep.mubr.bf16.mxu0 0
        %10276 = vmatmul.mubr.bf16.gmra.mrb[0].mxu0 %v3984
        %v10277 = vpop.f32.mrb[0].mxu0
        %v10278 = vadd.f32 0.0, %v10277
        %v10279 = vpop.f32.mrb[0].mxu0
        %v10280 = vpop.f32.mrb[0].mxu0
        %v10281 = vadd.f32 0.0, %v10280
        %v10282 = vpop.f32.mrb[0].mxu0
        %10283 = vmatprep.mubr.bf16.mxu0 0
        %10284 = vmatmul.mubr.bf16.gmra.mrb[0].mxu0 %v3987
        %v10285 = vpop.f32.mrb[0].mxu0
        %v10286 = vadd.f32 0.0, %v10285
        %v10287 = vpop.f32.mrb[0].mxu0
        %v10288 = vpop.f32.mrb[0].mxu0
        %v10289 = vadd.f32 0.0, %v10288
        %v10290 = vpop.f32.mrb[0].mxu0
        %10291 = vmatprep.mubr.bf16.mxu0 0
        %10292 = vmatmul.mubr.bf16.gmra.mrb[0].mxu0 %v3990
        %v10293 = vpop.f32.mrb[0].mxu0
        %v10294 = vadd.f32 0.0, %v10293
        %v10295 = vpop.f32.mrb[0].mxu0
        %v10296 = vpop.f32.mrb[0].mxu0
        %v10297 = vadd.f32 0.0, %v10296
        %v10298 = vpop.f32.mrb[0].mxu0
        %10299 = vmatprep.mubr.bf16.mxu0 0
        %10300 = vmatmul.mubr.bf16.gmra.mrb[0].mxu0 %v3993
        %v10301 = vpop.f32.mrb[0].mxu0
        %v10302 = vadd.f32 0.0, %v10301
        %v10303 = vpop.f32.mrb[0].mxu0
        %v10304 = vpop.f32.mrb[0].mxu0
        %v10305 = vadd.f32 0.0, %v10304
        %v10306 = vpop.f32.mrb[0].mxu0
        %10307 = vmatprep.mubr.bf16.mxu0 0
        %10308 = vmatmul.mubr.bf16.gmra.mrb[0].mxu0 %v3996
        %v10309 = vpop.f32.mrb[0].mxu0
        %v10310 = vadd.f32 0.0, %v10309
        %v10311 = vpop.f32.mrb[0].mxu0
        %v10312 = vpop.f32.mrb[0].mxu0
        %v10313 = vadd.f32 0.0, %v10312
        %v10314 = vpop.f32.mrb[0].mxu0
        %10315 = vmatprep.mubr.bf16.mxu0 0
        %10316 = vmatmul.mubr.bf16.gmra.mrb[0].mxu0 %v3999
        %v10317 = vpop.f32.mrb[0].mxu0
        %v10318 = vadd.f32 0.0, %v10317
        %v10319 = vpop.f32.mrb[0].mxu0
        %v10320 = vpop.f32.mrb[0].mxu0
        %v10321 = vadd.f32 0.0, %v10320
        %v10322 = vpop.f32.mrb[0].mxu0
        %10323 = vmatprep.mubr.bf16.mxu0 0
        %10324 = vmatmul.mubr.bf16.gmra.mrb[0].mxu0 %v4002
        %v10325 = vpop.f32.mrb[0].mxu0
        %v10326 = vadd.f32 0.0, %v10325
        %v10327 = vpop.f32.mrb[0].mxu0
        %v10328 = vpop.f32.mrb[0].mxu0
        %v10329 = vadd.f32 0.0, %v10328
        %v10330 = vpop.f32.mrb[0].mxu0
        %10331 = vmatprep.mubr.bf16.mxu0 0
        %10332 = vmatmul.mubr.bf16.gmra.mrb[0].mxu0 %v4005
        %v10333 = vpop.f32.mrb[0].mxu0
        %v10334 = vadd.f32 0.0, %v10333
        %v10335 = vpop.f32.mrb[0].mxu0
        %v10336 = vpop.f32.mrb[0].mxu0
        %v10337 = vadd.f32 0.0, %v10336
        %v10338 = vpop.f32.mrb[0].mxu0
        %10339 = vmatprep.mubr.bf16.mxu0 0
        %10340 = vmatmul.mubr.bf16.gmra.mrb[0].mxu0 %v4008
        %v10341 = vpop.f32.mrb[0].mxu0
        %v10342 = vadd.f32 0.0, %v10341
        %v10343 = vpop.f32.mrb[0].mxu0
        %v10344 = vpop.f32.mrb[0].mxu0
        %v10345 = vadd.f32 0.0, %v10344
        %v10346 = vpop.f32.mrb[0].mxu0
        %10347 = vmatprep.mubr.bf16.mxu0 0
        %10348 = vmatmul.mubr.bf16.gmra.mrb[0].mxu0 %v4011
        %v10349 = vpop.f32.mrb[0].mxu0
        %v10350 = vadd.f32 0.0, %v10349
        %v10351 = vpop.f32.mrb[0].mxu0
        %v10352 = vpop.f32.mrb[0].mxu0
        %v10353 = vadd.f32 0.0, %v10352
        %v10354 = vpop.f32.mrb[0].mxu0
        %10355 = vmatprep.mubr.bf16.mxu0 0
        %10356 = vmatmul.mubr.bf16.gmra.mrb[0].mxu0 %v4014
        %v10357 = vpop.f32.mrb[0].mxu0
        %v10358 = vadd.f32 0.0, %v10357
        %v10359 = vpop.f32.mrb[0].mxu0
        %v10360 = vpop.f32.mrb[0].mxu0
        %v10361 = vadd.f32 0.0, %v10360
        %v10362 = vpop.f32.mrb[0].mxu0
        %10363 = vmatprep.mubr.bf16.mxu0 0
        %10364 = vmatmul.mubr.bf16.gmra.mrb[0].mxu0 %v4017
        %v10365 = vpop.f32.mrb[0].mxu0
        %v10366 = vadd.f32 0.0, %v10365
        %v10367 = vpop.f32.mrb[0].mxu0
        %v10368 = vpop.f32.mrb[0].mxu0
        %v10369 = vadd.f32 0.0, %v10368
        %v10370 = vpop.f32.mrb[0].mxu0
        %10371 = vmatprep.mubr.bf16.mxu0 0
        %10372 = vmatmul.mubr.bf16.gmra.mrb[0].mxu0 %v4020
        %v10373 = vpop.f32.mrb[0].mxu0
        %v10374 = vadd.f32 0.0, %v10373
        %v10375 = vpop.f32.mrb[0].mxu0
        %v10376 = vpop.f32.mrb[0].mxu0
        %v10377 = vadd.f32 0.0, %v10376
        %v10378 = vpop.f32.mrb[0].mxu0
        %10379 = vmatprep.mubr.bf16.mxu0 0
        %10380 = vmatmul.mubr.bf16.gmra.mrb[0].mxu0 %v4023
        %v10381 = vpop.f32.mrb[0].mxu0
        %v10382 = vadd.f32 0.0, %v10381
        %v10383 = vpop.f32.mrb[0].mxu0
        %v10384 = vpop.f32.mrb[0].mxu0
        %v10385 = vadd.f32 0.0, %v10384
        %v10386 = vpop.f32.mrb[0].mxu0
        %10387 = vmatprep.mubr.bf16.mxu0 0
        %10388 = vmatmul.mubr.bf16.gmra.mrb[0].mxu0 %v4026
        %v10389 = vpop.f32.mrb[0].mxu0
        %v10390 = vadd.f32 0.0, %v10389
        %v10391 = vpop.f32.mrb[0].mxu0
        %v10392 = vpop.f32.mrb[0].mxu0
        %v10393 = vadd.f32 0.0, %v10392
        %v10394 = vpop.f32.mrb[0].mxu0
        %10395 = vmatprep.mubr.bf16.mxu0 0
        %10396 = vmatmul.mubr.bf16.gmra.mrb[0].mxu0 %v4029
        %v10397 = vpop.f32.mrb[0].mxu0
        %v10398 = vadd.f32 0.0, %v10397
        %v10399 = vpop.f32.mrb[0].mxu0
        %v10400 = vpop.f32.mrb[0].mxu0
        %v10401 = vadd.f32 0.0, %v10400
        %v10402 = vpop.f32.mrb[0].mxu0
        %10403 = vmatprep.mubr.bf16.mxu0 0
        %10404 = vmatmul.mubr.bf16.gmra.mrb[0].mxu0 %v4032
        %v10405 = vpop.f32.mrb[0].mxu0
        %v10406 = vadd.f32 0.0, %v10405
        %v10407 = vpop.f32.mrb[0].mxu0
        %v10408 = vpop.f32.mrb[0].mxu0
        %v10409 = vadd.f32 0.0, %v10408
        %v10410 = vpop.f32.mrb[0].mxu0
        %10411 = vmatprep.mubr.bf16.mxu0 0
        %10412 = vmatmul.mubr.bf16.gmra.mrb[0].mxu0 %v4035
        %v10413 = vpop.f32.mrb[0].mxu0
        %v10414 = vadd.f32 0.0, %v10413
        %v10415 = vpop.f32.mrb[0].mxu0
        %v10416 = vpop.f32.mrb[0].mxu0
        %v10417 = vadd.f32 0.0, %v10416
        %v10418 = vpop.f32.mrb[0].mxu0
        %10419 = vmatprep.mubr.bf16.mxu0 0
        %10420 = vmatmul.mubr.bf16.gmra.mrb[0].mxu0 %v4038
        %v10421 = vpop.f32.mrb[0].mxu0
        %v10422 = vadd.f32 0.0, %v10421
        %v10423 = vpop.f32.mrb[0].mxu0
        %v10424 = vpop.f32.mrb[0].mxu0
        %v10425 = vadd.f32 0.0, %v10424
        %v10426 = vpop.f32.mrb[0].mxu0
        %10427 = vmatprep.mubr.bf16.mxu0 0
        %10428 = vmatmul.mubr.bf16.gmra.mrb[0].mxu0 %v4041
        %v10429 = vpop.f32.mrb[0].mxu0
        %v10430 = vadd.f32 0.0, %v10429
        %v10431 = vpop.f32.mrb[0].mxu0
        %v10432 = vpop.f32.mrb[0].mxu0
        %v10433 = vadd.f32 0.0, %v10432
        %v10434 = vpop.f32.mrb[0].mxu0
        %10435 = vmatprep.mubr.bf16.mxu0 0
        %10436 = vmatmul.mubr.bf16.gmra.mrb[0].mxu0 %v4044
        %v10437 = vpop.f32.mrb[0].mxu0
        %v10438 = vadd.f32 0.0, %v10437
        %v10439 = vpop.f32.mrb[0].mxu0
        %v10440 = vpop.f32.mrb[0].mxu0
        %v10441 = vadd.f32 0.0, %v10440
        %v10442 = vpop.f32.mrb[0].mxu0
        %10443 = vmatprep.mubr.bf16.mxu0 0
        %10444 = vmatmul.mubr.bf16.gmra.mrb[0].mxu0 %v4047
        %v10445 = vpop.f32.mrb[0].mxu0
        %v10446 = vadd.f32 0.0, %v10445
        %v10447 = vpop.f32.mrb[0].mxu0
        %v10448 = vpop.f32.mrb[0].mxu0
        %v10449 = vadd.f32 0.0, %v10448
        %v10450 = vpop.f32.mrb[0].mxu0
        %10451 = vmatprep.mubr.bf16.mxu0 0
        %10452 = vmatmul.mubr.bf16.gmra.mrb[0].mxu0 %v4050
        %v10453 = vpop.f32.mrb[0].mxu0
        %v10454 = vadd.f32 0.0, %v10453
        %v10455 = vpop.f32.mrb[0].mxu0
        %v10456 = vpop.f32.mrb[0].mxu0
        %v10457 = vadd.f32 0.0, %v10456
        %v10458 = vpop.f32.mrb[0].mxu0
        %10459 = vmatprep.mubr.bf16.mxu0 0
        %10460 = vmatmul.mubr.bf16.gmra.mrb[0].mxu0 %v4053
        %v10461 = vpop.f32.mrb[0].mxu0
        %v10462 = vadd.f32 0.0, %v10461
        %v10463 = vpop.f32.mrb[0].mxu0
        %v10464 = vpop.f32.mrb[0].mxu0
        %v10465 = vadd.f32 0.0, %v10464
        %v10466 = vpop.f32.mrb[0].mxu0
        %10467 = vmatprep.mubr.bf16.mxu0 0
        %10468 = vmatmul.mubr.bf16.gmra.mrb[0].mxu0 %v4056
        %v10469 = vpop.f32.mrb[0].mxu0
        %v10470 = vadd.f32 0.0, %v10469
        %v10471 = vpop.f32.mrb[0].mxu0
        %v10472 = vpop.f32.mrb[0].mxu0
        %v10473 = vadd.f32 0.0, %v10472
        %v10474 = vpop.f32.mrb[0].mxu0
        %10475 = vmatprep.mubr.bf16.mxu0 0
        %10476 = vmatmul.mubr.bf16.gmra.mrb[0].mxu0 %v4059
        %v10477 = vpop.f32.mrb[0].mxu0
        %v10478 = vadd.f32 0.0, %v10477
        %v10479 = vpop.f32.mrb[0].mxu0
        %v10480 = vpop.f32.mrb[0].mxu0
        %v10481 = vadd.f32 0.0, %v10480
        %v10482 = vpop.f32.mrb[0].mxu0
        %10483 = vmatprep.mubr.bf16.mxu0 0
        %10484 = vmatmul.mubr.bf16.gmra.mrb[0].mxu0 %v4062
        %v10485 = vpop.f32.mrb[0].mxu0
        %v10486 = vadd.f32 0.0, %v10485
        %v10487 = vpop.f32.mrb[0].mxu0
        %v10488 = vpop.f32.mrb[0].mxu0
        %v10489 = vadd.f32 0.0, %v10488
        %v10490 = vpop.f32.mrb[0].mxu0
        %10491 = vmatprep.mubr.bf16.mxu0 0
        %10492 = vmatmul.mubr.bf16.gmra.mrb[0].mxu0 %v4065
        %v10493 = vpop.f32.mrb[0].mxu0
        %v10494 = vadd.f32 0.0, %v10493
        %v10495 = vpop.f32.mrb[0].mxu0
        %v10496 = vpop.f32.mrb[0].mxu0
        %v10497 = vadd.f32 0.0, %v10496
        %v10498 = vpop.f32.mrb[0].mxu0
        %10499 = vmatprep.mubr.bf16.mxu0 0
        %10500 = vmatmul.mubr.bf16.gmra.mrb[0].mxu0 %v4068
        %v10501 = vpop.f32.mrb[0].mxu0
        %v10502 = vadd.f32 0.0, %v10501
        %v10503 = vpop.f32.mrb[0].mxu0
        %v10504 = vpop.f32.mrb[0].mxu0
        %v10505 = vadd.f32 0.0, %v10504
        %v10506 = vpop.f32.mrb[0].mxu0
        %10507 = vmatprep.mubr.bf16.mxu0 0
        %10508 = vmatmul.mubr.bf16.gmra.mrb[0].mxu0 %v4071
        %v10509 = vpop.f32.mrb[0].mxu0
        %v10510 = vadd.f32 0.0, %v10509
        %v10511 = vpop.f32.mrb[0].mxu0
        %v10512 = vpop.f32.mrb[0].mxu0
        %v10513 = vadd.f32 0.0, %v10512
        %v10514 = vpop.f32.mrb[0].mxu0
        %10515 = vmatprep.mubr.bf16.mxu0 0
        %10516 = vmatmul.mubr.bf16.gmra.mrb[0].mxu0 %v4074
        %v10517 = vpop.f32.mrb[0].mxu0
        %v10518 = vadd.f32 0.0, %v10517
        %v10519 = vpop.f32.mrb[0].mxu0
        %v10520 = vpop.f32.mrb[0].mxu0
        %v10521 = vadd.f32 0.0, %v10520
        %v10522 = vpop.f32.mrb[0].mxu0
        %10523 = vmatprep.mubr.bf16.mxu0 0
        %10524 = vmatmul.mubr.bf16.gmra.mrb[0].mxu0 %v4077
        %v10525 = vpop.f32.mrb[0].mxu0
        %v10526 = vadd.f32 0.0, %v10525
        %v10527 = vpop.f32.mrb[0].mxu0
        %v10528 = vpop.f32.mrb[0].mxu0
        %v10529 = vadd.f32 0.0, %v10528
        %v10530 = vpop.f32.mrb[0].mxu0
        %10531 = vmatprep.mubr.bf16.mxu0 0
        %10532 = vmatmul.mubr.bf16.gmra.mrb[0].mxu0 %v4080
        %v10533 = vpop.f32.mrb[0].mxu0
        %v10534 = vadd.f32 0.0, %v10533
        %v10535 = vpop.f32.mrb[0].mxu0
        %v10536 = vpop.f32.mrb[0].mxu0
        %v10537 = vadd.f32 0.0, %v10536
        %v10538 = vpop.f32.mrb[0].mxu0
        %10539 = vmatprep.mubr.bf16.mxu0 0
        %10540 = vmatmul.mubr.bf16.gmra.mrb[0].mxu0 %v4083
        %v10541 = vpop.f32.mrb[0].mxu0
        %v10542 = vadd.f32 0.0, %v10541
        %v10543 = vpop.f32.mrb[0].mxu0
        %v10544 = vpop.f32.mrb[0].mxu0
        %v10545 = vadd.f32 0.0, %v10544
        %v10546 = vpop.f32.mrb[0].mxu0
        %10547 = vmatprep.mubr.bf16.mxu0 0
        %10548 = vmatmul.mubr.bf16.gmra.mrb[0].mxu0 %v4086
        %v10549 = vpop.f32.mrb[0].mxu0
        %v10550 = vadd.f32 0.0, %v10549
        %v10551 = vpop.f32.mrb[0].mxu0
        %v10552 = vpop.f32.mrb[0].mxu0
        %v10553 = vadd.f32 0.0, %v10552
        %v10554 = vpop.f32.mrb[0].mxu0
        %10555 = vmatprep.mubr.bf16.mxu0 0
        %10556 = vmatmul.mubr.bf16.gmra.mrb[0].mxu0 %v4089
        %v10557 = vpop.f32.mrb[0].mxu0
        %v10558 = vadd.f32 0.0, %v10557
        %v10559 = vpop.f32.mrb[0].mxu0
        %v10560 = vpop.f32.mrb[0].mxu0
        %v10561 = vadd.f32 0.0, %v10560
        %v10562 = vpop.f32.mrb[0].mxu0
        %10563 = vmatprep.mubr.bf16.mxu0 0
        %10564 = vmatmul.mubr.bf16.gmra.mrb[0].mxu0 %v4092
        %v10565 = vpop.f32.mrb[0].mxu0
        %v10566 = vadd.f32 0.0, %v10565
        %v10567 = vpop.f32.mrb[0].mxu0
        %v10568 = vpop.f32.mrb[0].mxu0
        %v10569 = vadd.f32 0.0, %v10568
        %v10570 = vpop.f32.mrb[0].mxu0
        %10571 = vmatprep.mubr.bf16.mxu0 0
        %10572 = vmatmul.mubr.bf16.gmra.mrb[0].mxu0 %v4095
        %v10573 = vpop.f32.mrb[0].mxu0
        %v10574 = vadd.f32 0.0, %v10573
        %v10575 = vpop.f32.mrb[0].mxu0
        %v10576 = vpop.f32.mrb[0].mxu0
        %v10577 = vadd.f32 0.0, %v10576
        %v10578 = vpop.f32.mrb[0].mxu0
        %10579 = vmatprep.mubr.bf16.mxu0 0
        %10580 = vmatmul.mubr.bf16.gmra.mrb[0].mxu0 %v4098
        %v10581 = vpop.f32.mrb[0].mxu0
        %v10582 = vadd.f32 0.0, %v10581
        %v10583 = vpop.f32.mrb[0].mxu0
        %v10584 = vpop.f32.mrb[0].mxu0
        %v10585 = vadd.f32 0.0, %v10584
        %v10586 = vpop.f32.mrb[0].mxu0
        %10587 = vmatprep.mubr.bf16.mxu0 0
        %10588 = vmatmul.mubr.bf16.gmra.mrb[0].mxu0 %v4101
        %v10589 = vpop.f32.mrb[0].mxu0
        %v10590 = vadd.f32 0.0, %v10589
        %v10591 = vpop.f32.mrb[0].mxu0
        %v10592 = vpop.f32.mrb[0].mxu0
        %v10593 = vadd.f32 0.0, %v10592
        %v10594 = vpop.f32.mrb[0].mxu0
        %10595 = vmatprep.mubr.bf16.mxu0 0
        %10596 = vmatmul.mubr.bf16.gmra.mrb[0].mxu0 %v4104
        %v10597 = vpop.f32.mrb[0].mxu0
        %v10598 = vadd.f32 0.0, %v10597
        %v10599 = vpop.f32.mrb[0].mxu0
        %v10600 = vpop.f32.mrb[0].mxu0
        %v10601 = vadd.f32 0.0, %v10600
        %v10602 = vpop.f32.mrb[0].mxu0
        %10603 = vmatprep.mubr.bf16.mxu0 0
        %10604 = vmatmul.mubr.bf16.gmra.mrb[0].mxu0 %v4107
        %v10605 = vpop.f32.mrb[0].mxu0
        %v10606 = vadd.f32 0.0, %v10605
        %v10607 = vpop.f32.mrb[0].mxu0
        %v10608 = vpop.f32.mrb[0].mxu0
        %v10609 = vadd.f32 0.0, %v10608
        %v10610 = vpop.f32.mrb[0].mxu0
        %10611 = vmatprep.mubr.bf16.mxu0 0
        %10612 = vmatmul.mubr.bf16.gmra.mrb[0].mxu0 %v4110
        %v10613 = vpop.f32.mrb[0].mxu0
        %v10614 = vadd.f32 0.0, %v10613
        %v10615 = vpop.f32.mrb[0].mxu0
        %v10616 = vpop.f32.mrb[0].mxu0
        %v10617 = vadd.f32 0.0, %v10616
        %v10618 = vpop.f32.mrb[0].mxu0
        %10619 = vmatprep.mubr.bf16.mxu0 0
        %10620 = vmatmul.mubr.bf16.gmra.mrb[0].mxu0 %v4113
        %v10621 = vpop.f32.mrb[0].mxu0
        %v10622 = vadd.f32 0.0, %v10621
        %v10623 = vpop.f32.mrb[0].mxu0
        %v10624 = vpop.f32.mrb[0].mxu0
        %v10625 = vadd.f32 0.0, %v10624
        %v10626 = vpop.f32.mrb[0].mxu0
        %10627 = vmatprep.mubr.bf16.mxu0 0
        %10628 = vmatmul.mubr.bf16.gmra.mrb[0].mxu0 %v4116
        %v10629 = vpop.f32.mrb[0].mxu0
        %v10630 = vadd.f32 0.0, %v10629
        %v10631 = vpop.f32.mrb[0].mxu0
        %v10632 = vpop.f32.mrb[0].mxu0
        %v10633 = vadd.f32 0.0, %v10632
        %v10634 = vpop.f32.mrb[0].mxu0
        %10635 = vmatprep.mubr.bf16.mxu0 0
        %10636 = vmatmul.mubr.bf16.gmra.mrb[0].mxu0 %v4119
        %v10637 = vpop.f32.mrb[0].mxu0
        %v10638 = vadd.f32 0.0, %v10637
        %v10639 = vpop.f32.mrb[0].mxu0
        %v10640 = vpop.f32.mrb[0].mxu0
        %v10641 = vadd.f32 0.0, %v10640
        %v10642 = vpop.f32.mrb[0].mxu0
        %10643 = vmatprep.mubr.bf16.mxu0 0
        %10644 = vmatmul.mubr.bf16.gmra.mrb[0].mxu0 %v4122
        %v10645 = vpop.f32.mrb[0].mxu0
        %v10646 = vadd.f32 0.0, %v10645
        %v10647 = vpop.f32.mrb[0].mxu0
        %v10648 = vpop.f32.mrb[0].mxu0
        %v10649 = vadd.f32 0.0, %v10648
        %v10650 = vpop.f32.mrb[0].mxu0
        %10651 = vmatprep.mubr.bf16.mxu0 0
        %10652 = vmatmul.mubr.bf16.gmra.mrb[0].mxu0 %v4125
        %v10653 = vpop.f32.mrb[0].mxu0
        %v10654 = vadd.f32 0.0, %v10653
        %v10655 = vpop.f32.mrb[0].mxu0
        %v10656 = vpop.f32.mrb[0].mxu0
        %v10657 = vadd.f32 0.0, %v10656
        %v10658 = vpop.f32.mrb[0].mxu0
        %10659 = vmatprep.mubr.bf16.mxu0 0
        %10660 = vmatmul.mubr.bf16.gmra.mrb[0].mxu0 %v4128
        %v10661 = vpop.f32.mrb[0].mxu0
        %v10662 = vadd.f32 0.0, %v10661
        %v10663 = vpop.f32.mrb[0].mxu0
        %v10664 = vpop.f32.mrb[0].mxu0
        %v10665 = vadd.f32 0.0, %v10664
        %v10666 = vpop.f32.mrb[0].mxu0
        %10667 = vmatprep.mubr.bf16.mxu0 0
        %10668 = vmatmul.mubr.bf16.gmra.mrb[0].mxu0 %v4131
        %v10669 = vpop.f32.mrb[0].mxu0
        %v10670 = vadd.f32 0.0, %v10669
        %v10671 = vpop.f32.mrb[0].mxu0
        %v10672 = vpop.f32.mrb[0].mxu0
        %v10673 = vadd.f32 0.0, %v10672
        %v10674 = vpop.f32.mrb[0].mxu0
        %10675 = vmatprep.mubr.bf16.mxu0 0
        %10676 = vmatmul.mubr.bf16.gmra.mrb[0].mxu0 %v4134
        %v10677 = vpop.f32.mrb[0].mxu0
        %v10678 = vadd.f32 0.0, %v10677
        %v10679 = vpop.f32.mrb[0].mxu0
        %v10680 = vpop.f32.mrb[0].mxu0
        %v10681 = vadd.f32 0.0, %v10680
        %v10682 = vpop.f32.mrb[0].mxu0
        %10683 = vmatprep.mubr.bf16.mxu0 0
        %10684 = vmatmul.mubr.bf16.gmra.mrb[0].mxu0 %v4137
        %v10685 = vpop.f32.mrb[0].mxu0
        %v10686 = vadd.f32 0.0, %v10685
        %v10687 = vpop.f32.mrb[0].mxu0
        %v10688 = vpop.f32.mrb[0].mxu0
        %v10689 = vadd.f32 0.0, %v10688
        %v10690 = vpop.f32.mrb[0].mxu0
        %10691 = vmatprep.mubr.bf16.mxu0 0
        %10692 = vmatmul.mubr.bf16.gmra.mrb[0].mxu0 %v4140
        %v10693 = vpop.f32.mrb[0].mxu0
        %v10694 = vadd.f32 0.0, %v10693
        %v10695 = vpop.f32.mrb[0].mxu0
        %v10696 = vpop.f32.mrb[0].mxu0
        %v10697 = vadd.f32 0.0, %v10696
        %v10698 = vpop.f32.mrb[0].mxu0
        %10699 = vmatprep.mubr.bf16.mxu0 0
        %10700 = vmatmul.mubr.bf16.gmra.mrb[0].mxu0 %v8046
        %v10701 = vpop.f32.mrb[0].mxu0
        %v10702 = vadd.f32 0.0, %v10701
        %v10703 = vpop.f32.mrb[0].mxu0
        %v10704 = vpop.f32.mrb[0].mxu0
        %v10705 = vadd.f32 0.0, %v10704
        %v10706 = vpop.f32.mrb[0].mxu0
        %10707 = vmatprep.mubr.bf16.mxu0 0
        %10708 = vmatmul.mubr.bf16.gmra.mrb[0].mxu0 %v8049
        %v10709 = vpop.f32.mrb[0].mxu0
        %v10710 = vadd.f32 0.0, %v10709
        %v10711 = vpop.f32.mrb[0].mxu0
        %v10712 = vpop.f32.mrb[0].mxu0
        %v10713 = vadd.f32 0.0, %v10712
        %v10714 = vpop.f32.mrb[0].mxu0
        %10715 = vmatprep.mubr.bf16.mxu0 0
        %10716 = vmatmul.mubr.bf16.gmra.mrb[0].mxu0 %v10179
        %v10717 = vpop.f32.mrb[0].mxu0
        %v10718 = vadd.f32 0.0, %v10717
        %v10719 = vpop.f32.mrb[0].mxu0
        %v10720 = vpop.f32.mrb[0].mxu0
        %v10721 = vadd.f32 0.0, %v10720
        %v10722 = vpop.f32.mrb[0].mxu0
        %10723 = vmatprep.mubr.bf16.mxu0 0
        %10724 = vmatmul.mubr.bf16.gmra.mrb[0].mxu0 %v10182
        %v10725 = vpop.f32.mrb[0].mxu0
        %v10726 = vadd.f32 0.0, %v10725
        %v10727 = vpop.f32.mrb[0].mxu0
        %v10728 = vpop.f32.mrb[0].mxu0
        %v10729 = vadd.f32 0.0, %v10728
        %v10730 = vpop.f32.mrb[0].mxu0
        %10731 = vdwg.mxu0
        %v10732 = vadd.f32 %v9998, %v10222
        %v10733 = vadd.f32 %v9999, %v10225
        %v10734 = vadd.f32 %v10000, %v10230
        %v10735 = vadd.f32 %v10001, %v10233
        %v10736 = vadd.f32 %v10002, %v10238
        %v10737 = vadd.f32 %v10003, %v10241
        %v10738 = vadd.f32 %v10004, %v10246
        %v10739 = vadd.f32 %v10005, %v10249
        %v10740 = vadd.f32 %v10006, %v10254
        %v10741 = vadd.f32 %v10007, %v10257
        %v10742 = vadd.f32 %v10008, %v10262
        %v10743 = vadd.f32 %v10009, %v10265
        %v10744 = vadd.f32 %v10010, %v10270
        %v10745 = vadd.f32 %v10011, %v10273
        %v10746 = vadd.f32 %v10012, %v10278
        %v10747 = vadd.f32 %v10013, %v10281
        %v10748 = vadd.f32 %v10014, %v10286
        %v10749 = vadd.f32 %v10015, %v10289
        %v10750 = vadd.f32 %v10016, %v10294
        %v10751 = vadd.f32 %v10017, %v10297
        %v10752 = vadd.f32 %v10018, %v10302
        %v10753 = vadd.f32 %v10019, %v10305
        %v10754 = vadd.f32 %v10020, %v10310
        %v10755 = vadd.f32 %v10021, %v10313
        %v10756 = vadd.f32 %v10022, %v10318
        %v10757 = vadd.f32 %v10023, %v10321
        %v10758 = vadd.f32 %v10024, %v10326
        %v10759 = vadd.f32 %v10025, %v10329
        %v10760 = vadd.f32 %v10026, %v10334
        %v10761 = vadd.f32 %v10027, %v10337
        %v10762 = vadd.f32 %v10028, %v10342
        %v10763 = vadd.f32 %v10029, %v10345
        %v10764 = vadd.f32 %v10030, %v10350
        %v10765 = vadd.f32 %v10031, %v10353
        %v10766 = vadd.f32 %v10032, %v10358
        %v10767 = vadd.f32 %v10033, %v10361
        %v10768 = vadd.f32 %v10034, %v10366
        %v10769 = vadd.f32 %v10035, %v10369
        %v10770 = vadd.f32 %v10036, %v10374
        %v10771 = vadd.f32 %v10037, %v10377
        %v10772 = vadd.f32 %v10038, %v10382
        %v10773 = vadd.f32 %v10039, %v10385
        %v10774 = vadd.f32 %v10040, %v10390
        %v10775 = vadd.f32 %v10041, %v10393
        %v10776 = vadd.f32 %v10042, %v10398
        %v10777 = vadd.f32 %v10043, %v10401
        %v10778 = vadd.f32 %v10044, %v10406
        %v10779 = vadd.f32 %v10045, %v10409
        %v10780 = vadd.f32 %v10046, %v10414
        %v10781 = vadd.f32 %v10047, %v10417
        %v10782 = vadd.f32 %v10048, %v10422
        %v10783 = vadd.f32 %v10049, %v10425
        %v10784 = vadd.f32 %v10050, %v10430
        %v10785 = vadd.f32 %v10051, %v10433
        %v10786 = vadd.f32 %v10052, %v10438
        %v10787 = vadd.f32 %v10053, %v10441
        %v10788 = vadd.f32 %v10054, %v10446
        %v10789 = vadd.f32 %v10055, %v10449
        %v10790 = vadd.f32 %v10056, %v10454
        %v10791 = vadd.f32 %v10057, %v10457
        %v10792 = vadd.f32 %v10058, %v10462
        %v10793 = vadd.f32 %v10059, %v10465
        %v10794 = vadd.f32 %v10060, %v10470
        %v10795 = vadd.f32 %v10061, %v10473
        %v10796 = vadd.f32 %v10062, %v10478
        %v10797 = vadd.f32 %v10063, %v10481
        %v10798 = vadd.f32 %v10064, %v10486
        %v10799 = vadd.f32 %v10065, %v10489
        %v10800 = vadd.f32 %v10066, %v10494
        %v10801 = vadd.f32 %v10067, %v10497
        %v10802 = vadd.f32 %v10068, %v10502
        %v10803 = vadd.f32 %v10069, %v10505
        %v10804 = vadd.f32 %v10070, %v10510
        %v10805 = vadd.f32 %v10071, %v10513
        %v10806 = vadd.f32 %v10072, %v10518
        %v10807 = vadd.f32 %v10073, %v10521
        %v10808 = vadd.f32 %v10074, %v10526
        %v10809 = vadd.f32 %v10075, %v10529
        %v10810 = vadd.f32 %v10076, %v10534
        %v10811 = vadd.f32 %v10077, %v10537
        %v10812 = vadd.f32 %v10078, %v10542
        %v10813 = vadd.f32 %v10079, %v10545
        %v10814 = vadd.f32 %v10080, %v10550
        %v10815 = vadd.f32 %v10081, %v10553
        %v10816 = vadd.f32 %v10082, %v10558
        %v10817 = vadd.f32 %v10083, %v10561
        %v10818 = vadd.f32 %v10084, %v10566
        %v10819 = vadd.f32 %v10085, %v10569
        %v10820 = vadd.f32 %v10086, %v10574
        %v10821 = vadd.f32 %v10087, %v10577
        %v10822 = vadd.f32 %v10088, %v10582
        %v10823 = vadd.f32 %v10089, %v10585
        %v10824 = vadd.f32 %v10090, %v10590
        %v10825 = vadd.f32 %v10091, %v10593
        %v10826 = vadd.f32 %v10092, %v10598
        %v10827 = vadd.f32 %v10093, %v10601
        %v10828 = vadd.f32 %v10094, %v10606
        %v10829 = vadd.f32 %v10095, %v10609
        %v10830 = vadd.f32 %v10096, %v10614
        %v10831 = vadd.f32 %v10097, %v10617
        %v10832 = vadd.f32 %v10098, %v10622
        %v10833 = vadd.f32 %v10099, %v10625
        %v10834 = vadd.f32 %v10100, %v10630
        %v10835 = vadd.f32 %v10101, %v10633
        %v10836 = vadd.f32 %v10102, %v10638
        %v10837 = vadd.f32 %v10103, %v10641
        %v10838 = vadd.f32 %v10104, %v10646
        %v10839 = vadd.f32 %v10105, %v10649
        %v10840 = vadd.f32 %v10106, %v10654
        %v10841 = vadd.f32 %v10107, %v10657
        %v10842 = vadd.f32 %v10108, %v10662
        %v10843 = vadd.f32 %v10109, %v10665
        %v10844 = vadd.f32 %v10110, %v10670
        %v10845 = vadd.f32 %v10111, %v10673
        %v10846 = vadd.f32 %v10112, %v10678
        %v10847 = vadd.f32 %v10113, %v10681
        %v10848 = vadd.f32 %v10114, %v10686
        %v10849 = vadd.f32 %v10115, %v10689
        %v10850 = vadd.f32 %v10116, %v10694
        %v10851 = vadd.f32 %v10117, %v10697
        %v10852 = vadd.f32 %v10118, %v10702
        %v10853 = vadd.f32 %v10119, %v10705
        %v10854 = vadd.f32 %v10120, %v10710
        %v10855 = vadd.f32 %v10121, %v10713
        %v10856 = vadd.f32 %v10122, %v10718
        %v10857 = vadd.f32 %v10123, %v10721
        %v10858 = vadd.f32 %v10124, %v10726
        %v10859 = vadd.f32 %v10125, %v10729
        %v10862 = vrot.slane %v2342, 5
        %v10863 = vrot.slane %v10862, 4
        %v10864 = vrot.slane %v2272, 5
        %v10865 = vsel %vm5820, %v10863, %v10864
        %v10866 = vrot.slane %v10864, 4
        %v10867 = vrot.slane %v2273, 5
        %v10868 = vsel %vm5820, %v10866, %v10867
        %v10869 = vrot.slane %v10867, 4
        %v10870 = vrot.slane %v2274, 5
        %v10871 = vsel %vm5820, %v10869, %v10870
        %v10872 = vrot.slane %v10870, 4
        %v10873 = vrot.slane %v2308, 5
        %v10874 = vsel %vm5820, %v10872, %v10873
        %s10875 = scalar_lea.vmem %s210, 16
        %v10876 = vld [vmem:[%s10875] sm:$0x3]
        %v10877 = vunpack.c.l.b16 %v10865
        %v10878 = vunpack.c.l.b16 %v10868
        %v10879 = vunpack.c.l.b16 %v10871
        %v10880 = vunpack.c.l.b16 %v10874
        %v10881 = vpack.c.b16 %v10878, %v10877
        %v10882 = vpack.c.b16 %v10880, %v10879
        %v10884 = vsel %vm3949, %v10881, 0
        %v10887 = vsel %vm3949, %v10882, 0
        %v10890 = vand.u32 %v10876, %v4145
        %10892 = vmatprep.subr.bf16.mxu0 0
        %10893 = vmatpush1.bf16.msra.mxu0 %v10890
        %10894 = vmatprep.subr.bf16.mxu0 0
        %10895 = vmatpush1.bf16.msra.mxu0 0
        %10896 = vmatprep.subr.bf16.mxu0 0
        %10897 = vmatpush1.bf16.msra.mxu0 0
        %10898 = vmatprep.subr.bf16.mxu0 0
        %10899 = vmatpush1.bf16.msra.mxu0 0
        %10900 = vmatprep.subr.bf16.mxu0 0
        %10901 = vmatpush1.bf16.msra.mxu0 0
        %10902 = vmatprep.subr.bf16.mxu0 0
        %10903 = vmatpush1.bf16.msra.mxu0 0
        %10904 = vmatprep.subr.bf16.mxu0 0
        %10905 = vmatpush1.bf16.msra.mxu0 0
        %10906 = vmatprep.subr.bf16.mxu0 0
        %10907 = vmatpush1.bf16.msra.mxu0 0
        %10908 = vmatprep.subr.bf16.mxu0 0
        %10909 = vmatpush1.bf16.msra.mxu0 0
        %10910 = vmatprep.subr.bf16.mxu0 0
        %10911 = vmatpush1.bf16.msra.mxu0 0
        %10912 = vmatprep.subr.bf16.mxu0 0
        %10913 = vmatpush1.bf16.msra.mxu0 0
        %10914 = vmatprep.subr.bf16.mxu0 0
        %10915 = vmatpush1.bf16.msra.mxu0 0
        %10916 = vmatprep.subr.bf16.mxu0 0
        %10917 = vmatpush1.bf16.msra.mxu0 0
        %10918 = vmatprep.subr.bf16.mxu0 0
        %10919 = vmatpush1.bf16.msra.mxu0 0
        %10920 = vmatprep.subr.bf16.mxu0 0
        %10921 = vmatpush1.bf16.msra.mxu0 0
        %10922 = vmatprep.subr.bf16.mxu0 0
        %10923 = vmatpush1.bf16.msra.mxu0 0
        %10924 = vmatprep.mubr.bf16.mxu0 0
        %10925 = vmatmul.mubr.bf16.gmra.mrb[0].mxu0 %v6444
        %v10926 = vpop.f32.mrb[0].mxu0
        %v10927 = vadd.f32 0.0, %v10926
        %v10928 = vpop.f32.mrb[0].mxu0
        %v10929 = vpop.f32.mrb[0].mxu0
        %v10930 = vadd.f32 0.0, %v10929
        %v10931 = vpop.f32.mrb[0].mxu0
        %10932 = vmatprep.mubr.bf16.mxu0 0
        %10933 = vmatmul.mubr.bf16.gmra.mrb[0].mxu0 %v6447
        %v10934 = vpop.f32.mrb[0].mxu0
        %v10935 = vadd.f32 0.0, %v10934
        %v10936 = vpop.f32.mrb[0].mxu0
        %v10937 = vpop.f32.mrb[0].mxu0
        %v10938 = vadd.f32 0.0, %v10937
        %v10939 = vpop.f32.mrb[0].mxu0
        %10940 = vmatprep.mubr.bf16.mxu0 0
        %10941 = vmatmul.mubr.bf16.gmra.mrb[0].mxu0 %v6450
        %v10942 = vpop.f32.mrb[0].mxu0
        %v10943 = vadd.f32 0.0, %v10942
        %v10944 = vpop.f32.mrb[0].mxu0
        %v10945 = vpop.f32.mrb[0].mxu0
        %v10946 = vadd.f32 0.0, %v10945
        %v10947 = vpop.f32.mrb[0].mxu0
        %10948 = vmatprep.mubr.bf16.mxu0 0
        %10949 = vmatmul.mubr.bf16.gmra.mrb[0].mxu0 %v6453
        %v10950 = vpop.f32.mrb[0].mxu0
        %v10951 = vadd.f32 0.0, %v10950
        %v10952 = vpop.f32.mrb[0].mxu0
        %v10953 = vpop.f32.mrb[0].mxu0
        %v10954 = vadd.f32 0.0, %v10953
        %v10955 = vpop.f32.mrb[0].mxu0
        %10956 = vmatprep.mubr.bf16.mxu0 0
        %10957 = vmatmul.mubr.bf16.gmra.mrb[0].mxu0 %v6456
        %v10958 = vpop.f32.mrb[0].mxu0
        %v10959 = vadd.f32 0.0, %v10958
        %v10960 = vpop.f32.mrb[0].mxu0
        %v10961 = vpop.f32.mrb[0].mxu0
        %v10962 = vadd.f32 0.0, %v10961
        %v10963 = vpop.f32.mrb[0].mxu0
        %10964 = vmatprep.mubr.bf16.mxu0 0
        %10965 = vmatmul.mubr.bf16.gmra.mrb[0].mxu0 %v6459
        %v10966 = vpop.f32.mrb[0].mxu0
        %v10967 = vadd.f32 0.0, %v10966
        %v10968 = vpop.f32.mrb[0].mxu0
        %v10969 = vpop.f32.mrb[0].mxu0
        %v10970 = vadd.f32 0.0, %v10969
        %v10971 = vpop.f32.mrb[0].mxu0
        %10972 = vmatprep.mubr.bf16.mxu0 0
        %10973 = vmatmul.mubr.bf16.gmra.mrb[0].mxu0 %v6462
        %v10974 = vpop.f32.mrb[0].mxu0
        %v10975 = vadd.f32 0.0, %v10974
        %v10976 = vpop.f32.mrb[0].mxu0
        %v10977 = vpop.f32.mrb[0].mxu0
        %v10978 = vadd.f32 0.0, %v10977
        %v10979 = vpop.f32.mrb[0].mxu0
        %10980 = vmatprep.mubr.bf16.mxu0 0
        %10981 = vmatmul.mubr.bf16.gmra.mrb[0].mxu0 %v6465
        %v10982 = vpop.f32.mrb[0].mxu0
        %v10983 = vadd.f32 0.0, %v10982
        %v10984 = vpop.f32.mrb[0].mxu0
        %v10985 = vpop.f32.mrb[0].mxu0
        %v10986 = vadd.f32 0.0, %v10985
        %v10987 = vpop.f32.mrb[0].mxu0
        %10988 = vmatprep.mubr.bf16.mxu0 0
        %10989 = vmatmul.mubr.bf16.gmra.mrb[0].mxu0 %v6468
        %v10990 = vpop.f32.mrb[0].mxu0
        %v10991 = vadd.f32 0.0, %v10990
        %v10992 = vpop.f32.mrb[0].mxu0
        %v10993 = vpop.f32.mrb[0].mxu0
        %v10994 = vadd.f32 0.0, %v10993
        %v10995 = vpop.f32.mrb[0].mxu0
        %10996 = vmatprep.mubr.bf16.mxu0 0
        %10997 = vmatmul.mubr.bf16.gmra.mrb[0].mxu0 %v6471
        %v10998 = vpop.f32.mrb[0].mxu0
        %v10999 = vadd.f32 0.0, %v10998
        %v11000 = vpop.f32.mrb[0].mxu0
        %v11001 = vpop.f32.mrb[0].mxu0
        %v11002 = vadd.f32 0.0, %v11001
        %v11003 = vpop.f32.mrb[0].mxu0
        %11004 = vmatprep.mubr.bf16.mxu0 0
        %11005 = vmatmul.mubr.bf16.gmra.mrb[0].mxu0 %v6474
        %v11006 = vpop.f32.mrb[0].mxu0
        %v11007 = vadd.f32 0.0, %v11006
        %v11008 = vpop.f32.mrb[0].mxu0
        %v11009 = vpop.f32.mrb[0].mxu0
        %v11010 = vadd.f32 0.0, %v11009
        %v11011 = vpop.f32.mrb[0].mxu0
        %11012 = vmatprep.mubr.bf16.mxu0 0
        %11013 = vmatmul.mubr.bf16.gmra.mrb[0].mxu0 %v6477
        %v11014 = vpop.f32.mrb[0].mxu0
        %v11015 = vadd.f32 0.0, %v11014
        %v11016 = vpop.f32.mrb[0].mxu0
        %v11017 = vpop.f32.mrb[0].mxu0
        %v11018 = vadd.f32 0.0, %v11017
        %v11019 = vpop.f32.mrb[0].mxu0
        %11020 = vmatprep.mubr.bf16.mxu0 0
        %11021 = vmatmul.mubr.bf16.gmra.mrb[0].mxu0 %v6480
        %v11022 = vpop.f32.mrb[0].mxu0
        %v11023 = vadd.f32 0.0, %v11022
        %v11024 = vpop.f32.mrb[0].mxu0
        %v11025 = vpop.f32.mrb[0].mxu0
        %v11026 = vadd.f32 0.0, %v11025
        %v11027 = vpop.f32.mrb[0].mxu0
        %11028 = vmatprep.mubr.bf16.mxu0 0
        %11029 = vmatmul.mubr.bf16.gmra.mrb[0].mxu0 %v6483
        %v11030 = vpop.f32.mrb[0].mxu0
        %v11031 = vadd.f32 0.0, %v11030
        %v11032 = vpop.f32.mrb[0].mxu0
        %v11033 = vpop.f32.mrb[0].mxu0
        %v11034 = vadd.f32 0.0, %v11033
        %v11035 = vpop.f32.mrb[0].mxu0
        %11036 = vmatprep.mubr.bf16.mxu0 0
        %11037 = vmatmul.mubr.bf16.gmra.mrb[0].mxu0 %v6486
        %v11038 = vpop.f32.mrb[0].mxu0
        %v11039 = vadd.f32 0.0, %v11038
        %v11040 = vpop.f32.mrb[0].mxu0
        %v11041 = vpop.f32.mrb[0].mxu0
        %v11042 = vadd.f32 0.0, %v11041
        %v11043 = vpop.f32.mrb[0].mxu0
        %11044 = vmatprep.mubr.bf16.mxu0 0
        %11045 = vmatmul.mubr.bf16.gmra.mrb[0].mxu0 %v6489
        %v11046 = vpop.f32.mrb[0].mxu0
        %v11047 = vadd.f32 0.0, %v11046
        %v11048 = vpop.f32.mrb[0].mxu0
        %v11049 = vpop.f32.mrb[0].mxu0
        %v11050 = vadd.f32 0.0, %v11049
        %v11051 = vpop.f32.mrb[0].mxu0
        %11052 = vmatprep.mubr.bf16.mxu0 0
        %11053 = vmatmul.mubr.bf16.gmra.mrb[0].mxu0 %v6492
        %v11054 = vpop.f32.mrb[0].mxu0
        %v11055 = vadd.f32 0.0, %v11054
        %v11056 = vpop.f32.mrb[0].mxu0
        %v11057 = vpop.f32.mrb[0].mxu0
        %v11058 = vadd.f32 0.0, %v11057
        %v11059 = vpop.f32.mrb[0].mxu0
        %11060 = vmatprep.mubr.bf16.mxu0 0
        %11061 = vmatmul.mubr.bf16.gmra.mrb[0].mxu0 %v6495
        %v11062 = vpop.f32.mrb[0].mxu0
        %v11063 = vadd.f32 0.0, %v11062
        %v11064 = vpop.f32.mrb[0].mxu0
        %v11065 = vpop.f32.mrb[0].mxu0
        %v11066 = vadd.f32 0.0, %v11065
        %v11067 = vpop.f32.mrb[0].mxu0
        %11068 = vmatprep.mubr.bf16.mxu0 0
        %11069 = vmatmul.mubr.bf16.gmra.mrb[0].mxu0 %v6498
        %v11070 = vpop.f32.mrb[0].mxu0
        %v11071 = vadd.f32 0.0, %v11070
        %v11072 = vpop.f32.mrb[0].mxu0
        %v11073 = vpop.f32.mrb[0].mxu0
        %v11074 = vadd.f32 0.0, %v11073
        %v11075 = vpop.f32.mrb[0].mxu0
        %11076 = vmatprep.mubr.bf16.mxu0 0
        %11077 = vmatmul.mubr.bf16.gmra.mrb[0].mxu0 %v6501
        %v11078 = vpop.f32.mrb[0].mxu0
        %v11079 = vadd.f32 0.0, %v11078
        %v11080 = vpop.f32.mrb[0].mxu0
        %v11081 = vpop.f32.mrb[0].mxu0
        %v11082 = vadd.f32 0.0, %v11081
        %v11083 = vpop.f32.mrb[0].mxu0
        %11084 = vmatprep.mubr.bf16.mxu0 0
        %11085 = vmatmul.mubr.bf16.gmra.mrb[0].mxu0 %v6504
        %v11086 = vpop.f32.mrb[0].mxu0
        %v11087 = vadd.f32 0.0, %v11086
        %v11088 = vpop.f32.mrb[0].mxu0
        %v11089 = vpop.f32.mrb[0].mxu0
        %v11090 = vadd.f32 0.0, %v11089
        %v11091 = vpop.f32.mrb[0].mxu0
        %11092 = vmatprep.mubr.bf16.mxu0 0
        %11093 = vmatmul.mubr.bf16.gmra.mrb[0].mxu0 %v6507
        %v11094 = vpop.f32.mrb[0].mxu0
        %v11095 = vadd.f32 0.0, %v11094
        %v11096 = vpop.f32.mrb[0].mxu0
        %v11097 = vpop.f32.mrb[0].mxu0
        %v11098 = vadd.f32 0.0, %v11097
        %v11099 = vpop.f32.mrb[0].mxu0
        %11100 = vmatprep.mubr.bf16.mxu0 0
        %11101 = vmatmul.mubr.bf16.gmra.mrb[0].mxu0 %v6510
        %v11102 = vpop.f32.mrb[0].mxu0
        %v11103 = vadd.f32 0.0, %v11102
        %v11104 = vpop.f32.mrb[0].mxu0
        %v11105 = vpop.f32.mrb[0].mxu0
        %v11106 = vadd.f32 0.0, %v11105
        %v11107 = vpop.f32.mrb[0].mxu0
        %11108 = vmatprep.mubr.bf16.mxu0 0
        %11109 = vmatmul.mubr.bf16.gmra.mrb[0].mxu0 %v6513
        %v11110 = vpop.f32.mrb[0].mxu0
        %v11111 = vadd.f32 0.0, %v11110
        %v11112 = vpop.f32.mrb[0].mxu0
        %v11113 = vpop.f32.mrb[0].mxu0
        %v11114 = vadd.f32 0.0, %v11113
        %v11115 = vpop.f32.mrb[0].mxu0
        %11116 = vmatprep.mubr.bf16.mxu0 0
        %11117 = vmatmul.mubr.bf16.gmra.mrb[0].mxu0 %v6516
        %v11118 = vpop.f32.mrb[0].mxu0
        %v11119 = vadd.f32 0.0, %v11118
        %v11120 = vpop.f32.mrb[0].mxu0
        %v11121 = vpop.f32.mrb[0].mxu0
        %v11122 = vadd.f32 0.0, %v11121
        %v11123 = vpop.f32.mrb[0].mxu0
        %11124 = vmatprep.mubr.bf16.mxu0 0
        %11125 = vmatmul.mubr.bf16.gmra.mrb[0].mxu0 %v6519
        %v11126 = vpop.f32.mrb[0].mxu0
        %v11127 = vadd.f32 0.0, %v11126
        %v11128 = vpop.f32.mrb[0].mxu0
        %v11129 = vpop.f32.mrb[0].mxu0
        %v11130 = vadd.f32 0.0, %v11129
        %v11131 = vpop.f32.mrb[0].mxu0
        %11132 = vmatprep.mubr.bf16.mxu0 0
        %11133 = vmatmul.mubr.bf16.gmra.mrb[0].mxu0 %v6522
        %v11134 = vpop.f32.mrb[0].mxu0
        %v11135 = vadd.f32 0.0, %v11134
        %v11136 = vpop.f32.mrb[0].mxu0
        %v11137 = vpop.f32.mrb[0].mxu0
        %v11138 = vadd.f32 0.0, %v11137
        %v11139 = vpop.f32.mrb[0].mxu0
        %11140 = vmatprep.mubr.bf16.mxu0 0
        %11141 = vmatmul.mubr.bf16.gmra.mrb[0].mxu0 %v6525
        %v11142 = vpop.f32.mrb[0].mxu0
        %v11143 = vadd.f32 0.0, %v11142
        %v11144 = vpop.f32.mrb[0].mxu0
        %v11145 = vpop.f32.mrb[0].mxu0
        %v11146 = vadd.f32 0.0, %v11145
        %v11147 = vpop.f32.mrb[0].mxu0
        %11148 = vmatprep.mubr.bf16.mxu0 0
        %11149 = vmatmul.mubr.bf16.gmra.mrb[0].mxu0 %v6528
        %v11150 = vpop.f32.mrb[0].mxu0
        %v11151 = vadd.f32 0.0, %v11150
        %v11152 = vpop.f32.mrb[0].mxu0
        %v11153 = vpop.f32.mrb[0].mxu0
        %v11154 = vadd.f32 0.0, %v11153
        %v11155 = vpop.f32.mrb[0].mxu0
        %11156 = vmatprep.mubr.bf16.mxu0 0
        %11157 = vmatmul.mubr.bf16.gmra.mrb[0].mxu0 %v6531
        %v11158 = vpop.f32.mrb[0].mxu0
        %v11159 = vadd.f32 0.0, %v11158
        %v11160 = vpop.f32.mrb[0].mxu0
        %v11161 = vpop.f32.mrb[0].mxu0
        %v11162 = vadd.f32 0.0, %v11161
        %v11163 = vpop.f32.mrb[0].mxu0
        %11164 = vmatprep.mubr.bf16.mxu0 0
        %11165 = vmatmul.mubr.bf16.gmra.mrb[0].mxu0 %v6534
        %v11166 = vpop.f32.mrb[0].mxu0
        %v11167 = vadd.f32 0.0, %v11166
        %v11168 = vpop.f32.mrb[0].mxu0
        %v11169 = vpop.f32.mrb[0].mxu0
        %v11170 = vadd.f32 0.0, %v11169
        %v11171 = vpop.f32.mrb[0].mxu0
        %11172 = vmatprep.mubr.bf16.mxu0 0
        %11173 = vmatmul.mubr.bf16.gmra.mrb[0].mxu0 %v6537
        %v11174 = vpop.f32.mrb[0].mxu0
        %v11175 = vadd.f32 0.0, %v11174
        %v11176 = vpop.f32.mrb[0].mxu0
        %v11177 = vpop.f32.mrb[0].mxu0
        %v11178 = vadd.f32 0.0, %v11177
        %v11179 = vpop.f32.mrb[0].mxu0
        %11180 = vmatprep.mubr.bf16.mxu0 0
        %11181 = vmatmul.mubr.bf16.gmra.mrb[0].mxu0 %v6540
        %v11182 = vpop.f32.mrb[0].mxu0
        %v11183 = vadd.f32 0.0, %v11182
        %v11184 = vpop.f32.mrb[0].mxu0
        %v11185 = vpop.f32.mrb[0].mxu0
        %v11186 = vadd.f32 0.0, %v11185
        %v11187 = vpop.f32.mrb[0].mxu0
        %11188 = vmatprep.mubr.bf16.mxu0 0
        %11189 = vmatmul.mubr.bf16.gmra.mrb[0].mxu0 %v6543
        %v11190 = vpop.f32.mrb[0].mxu0
        %v11191 = vadd.f32 0.0, %v11190
        %v11192 = vpop.f32.mrb[0].mxu0
        %v11193 = vpop.f32.mrb[0].mxu0
        %v11194 = vadd.f32 0.0, %v11193
        %v11195 = vpop.f32.mrb[0].mxu0
        %11196 = vmatprep.mubr.bf16.mxu0 0
        %11197 = vmatmul.mubr.bf16.gmra.mrb[0].mxu0 %v6546
        %v11198 = vpop.f32.mrb[0].mxu0
        %v11199 = vadd.f32 0.0, %v11198
        %v11200 = vpop.f32.mrb[0].mxu0
        %v11201 = vpop.f32.mrb[0].mxu0
        %v11202 = vadd.f32 0.0, %v11201
        %v11203 = vpop.f32.mrb[0].mxu0
        %11204 = vmatprep.mubr.bf16.mxu0 0
        %11205 = vmatmul.mubr.bf16.gmra.mrb[0].mxu0 %v6549
        %v11206 = vpop.f32.mrb[0].mxu0
        %v11207 = vadd.f32 0.0, %v11206
        %v11208 = vpop.f32.mrb[0].mxu0
        %v11209 = vpop.f32.mrb[0].mxu0
        %v11210 = vadd.f32 0.0, %v11209
        %v11211 = vpop.f32.mrb[0].mxu0
        %11212 = vmatprep.mubr.bf16.mxu0 0
        %11213 = vmatmul.mubr.bf16.gmra.mrb[0].mxu0 %v6552
        %v11214 = vpop.f32.mrb[0].mxu0
        %v11215 = vadd.f32 0.0, %v11214
        %v11216 = vpop.f32.mrb[0].mxu0
        %v11217 = vpop.f32.mrb[0].mxu0
        %v11218 = vadd.f32 0.0, %v11217
        %v11219 = vpop.f32.mrb[0].mxu0
        %11220 = vmatprep.mubr.bf16.mxu0 0
        %11221 = vmatmul.mubr.bf16.gmra.mrb[0].mxu0 %v6555
        %v11222 = vpop.f32.mrb[0].mxu0
        %v11223 = vadd.f32 0.0, %v11222
        %v11224 = vpop.f32.mrb[0].mxu0
        %v11225 = vpop.f32.mrb[0].mxu0
        %v11226 = vadd.f32 0.0, %v11225
        %v11227 = vpop.f32.mrb[0].mxu0
        %11228 = vmatprep.mubr.bf16.mxu0 0
        %11229 = vmatmul.mubr.bf16.gmra.mrb[0].mxu0 %v6558
        %v11230 = vpop.f32.mrb[0].mxu0
        %v11231 = vadd.f32 0.0, %v11230
        %v11232 = vpop.f32.mrb[0].mxu0
        %v11233 = vpop.f32.mrb[0].mxu0
        %v11234 = vadd.f32 0.0, %v11233
        %v11235 = vpop.f32.mrb[0].mxu0
        %11236 = vmatprep.mubr.bf16.mxu0 0
        %11237 = vmatmul.mubr.bf16.gmra.mrb[0].mxu0 %v6561
        %v11238 = vpop.f32.mrb[0].mxu0
        %v11239 = vadd.f32 0.0, %v11238
        %v11240 = vpop.f32.mrb[0].mxu0
        %v11241 = vpop.f32.mrb[0].mxu0
        %v11242 = vadd.f32 0.0, %v11241
        %v11243 = vpop.f32.mrb[0].mxu0
        %11244 = vmatprep.mubr.bf16.mxu0 0
        %11245 = vmatmul.mubr.bf16.gmra.mrb[0].mxu0 %v6564
        %v11246 = vpop.f32.mrb[0].mxu0
        %v11247 = vadd.f32 0.0, %v11246
        %v11248 = vpop.f32.mrb[0].mxu0
        %v11249 = vpop.f32.mrb[0].mxu0
        %v11250 = vadd.f32 0.0, %v11249
        %v11251 = vpop.f32.mrb[0].mxu0
        %11252 = vmatprep.mubr.bf16.mxu0 0
        %11253 = vmatmul.mubr.bf16.gmra.mrb[0].mxu0 %v6567
        %v11254 = vpop.f32.mrb[0].mxu0
        %v11255 = vadd.f32 0.0, %v11254
        %v11256 = vpop.f32.mrb[0].mxu0
        %v11257 = vpop.f32.mrb[0].mxu0
        %v11258 = vadd.f32 0.0, %v11257
        %v11259 = vpop.f32.mrb[0].mxu0
        %11260 = vmatprep.mubr.bf16.mxu0 0
        %11261 = vmatmul.mubr.bf16.gmra.mrb[0].mxu0 %v6570
        %v11262 = vpop.f32.mrb[0].mxu0
        %v11263 = vadd.f32 0.0, %v11262
        %v11264 = vpop.f32.mrb[0].mxu0
        %v11265 = vpop.f32.mrb[0].mxu0
        %v11266 = vadd.f32 0.0, %v11265
        %v11267 = vpop.f32.mrb[0].mxu0
        %11268 = vmatprep.mubr.bf16.mxu0 0
        %11269 = vmatmul.mubr.bf16.gmra.mrb[0].mxu0 %v6573
        %v11270 = vpop.f32.mrb[0].mxu0
        %v11271 = vadd.f32 0.0, %v11270
        %v11272 = vpop.f32.mrb[0].mxu0
        %v11273 = vpop.f32.mrb[0].mxu0
        %v11274 = vadd.f32 0.0, %v11273
        %v11275 = vpop.f32.mrb[0].mxu0
        %11276 = vmatprep.mubr.bf16.mxu0 0
        %11277 = vmatmul.mubr.bf16.gmra.mrb[0].mxu0 %v6576
        %v11278 = vpop.f32.mrb[0].mxu0
        %v11279 = vadd.f32 0.0, %v11278
        %v11280 = vpop.f32.mrb[0].mxu0
        %v11281 = vpop.f32.mrb[0].mxu0
        %v11282 = vadd.f32 0.0, %v11281
        %v11283 = vpop.f32.mrb[0].mxu0
        %11284 = vmatprep.mubr.bf16.mxu0 0
        %11285 = vmatmul.mubr.bf16.gmra.mrb[0].mxu0 %v6579
        %v11286 = vpop.f32.mrb[0].mxu0
        %v11287 = vadd.f32 0.0, %v11286
        %v11288 = vpop.f32.mrb[0].mxu0
        %v11289 = vpop.f32.mrb[0].mxu0
        %v11290 = vadd.f32 0.0, %v11289
        %v11291 = vpop.f32.mrb[0].mxu0
        %11292 = vmatprep.mubr.bf16.mxu0 0
        %11293 = vmatmul.mubr.bf16.gmra.mrb[0].mxu0 %v6582
        %v11294 = vpop.f32.mrb[0].mxu0
        %v11295 = vadd.f32 0.0, %v11294
        %v11296 = vpop.f32.mrb[0].mxu0
        %v11297 = vpop.f32.mrb[0].mxu0
        %v11298 = vadd.f32 0.0, %v11297
        %v11299 = vpop.f32.mrb[0].mxu0
        %11300 = vmatprep.mubr.bf16.mxu0 0
        %11301 = vmatmul.mubr.bf16.gmra.mrb[0].mxu0 %v6585
        %v11302 = vpop.f32.mrb[0].mxu0
        %v11303 = vadd.f32 0.0, %v11302
        %v11304 = vpop.f32.mrb[0].mxu0
        %v11305 = vpop.f32.mrb[0].mxu0
        %v11306 = vadd.f32 0.0, %v11305
        %v11307 = vpop.f32.mrb[0].mxu0
        %11308 = vmatprep.mubr.bf16.mxu0 0
        %11309 = vmatmul.mubr.bf16.gmra.mrb[0].mxu0 %v6588
        %v11310 = vpop.f32.mrb[0].mxu0
        %v11311 = vadd.f32 0.0, %v11310
        %v11312 = vpop.f32.mrb[0].mxu0
        %v11313 = vpop.f32.mrb[0].mxu0
        %v11314 = vadd.f32 0.0, %v11313
        %v11315 = vpop.f32.mrb[0].mxu0
        %11316 = vmatprep.mubr.bf16.mxu0 0
        %11317 = vmatmul.mubr.bf16.gmra.mrb[0].mxu0 %v6591
        %v11318 = vpop.f32.mrb[0].mxu0
        %v11319 = vadd.f32 0.0, %v11318
        %v11320 = vpop.f32.mrb[0].mxu0
        %v11321 = vpop.f32.mrb[0].mxu0
        %v11322 = vadd.f32 0.0, %v11321
        %v11323 = vpop.f32.mrb[0].mxu0
        %11324 = vmatprep.mubr.bf16.mxu0 0
        %11325 = vmatmul.mubr.bf16.gmra.mrb[0].mxu0 %v6594
        %v11326 = vpop.f32.mrb[0].mxu0
        %v11327 = vadd.f32 0.0, %v11326
        %v11328 = vpop.f32.mrb[0].mxu0
        %v11329 = vpop.f32.mrb[0].mxu0
        %v11330 = vadd.f32 0.0, %v11329
        %v11331 = vpop.f32.mrb[0].mxu0
        %11332 = vmatprep.mubr.bf16.mxu0 0
        %11333 = vmatmul.mubr.bf16.gmra.mrb[0].mxu0 %v6597
        %v11334 = vpop.f32.mrb[0].mxu0
        %v11335 = vadd.f32 0.0, %v11334
        %v11336 = vpop.f32.mrb[0].mxu0
        %v11337 = vpop.f32.mrb[0].mxu0
        %v11338 = vadd.f32 0.0, %v11337
        %v11339 = vpop.f32.mrb[0].mxu0
        %11340 = vmatprep.mubr.bf16.mxu0 0
        %11341 = vmatmul.mubr.bf16.gmra.mrb[0].mxu0 %v6600
        %v11342 = vpop.f32.mrb[0].mxu0
        %v11343 = vadd.f32 0.0, %v11342
        %v11344 = vpop.f32.mrb[0].mxu0
        %v11345 = vpop.f32.mrb[0].mxu0
        %v11346 = vadd.f32 0.0, %v11345
        %v11347 = vpop.f32.mrb[0].mxu0
        %11348 = vmatprep.mubr.bf16.mxu0 0
        %11349 = vmatmul.mubr.bf16.gmra.mrb[0].mxu0 %v6603
        %v11350 = vpop.f32.mrb[0].mxu0
        %v11351 = vadd.f32 0.0, %v11350
        %v11352 = vpop.f32.mrb[0].mxu0
        %v11353 = vpop.f32.mrb[0].mxu0
        %v11354 = vadd.f32 0.0, %v11353
        %v11355 = vpop.f32.mrb[0].mxu0
        %11356 = vmatprep.mubr.bf16.mxu0 0
        %11357 = vmatmul.mubr.bf16.gmra.mrb[0].mxu0 %v6606
        %v11358 = vpop.f32.mrb[0].mxu0
        %v11359 = vadd.f32 0.0, %v11358
        %v11360 = vpop.f32.mrb[0].mxu0
        %v11361 = vpop.f32.mrb[0].mxu0
        %v11362 = vadd.f32 0.0, %v11361
        %v11363 = vpop.f32.mrb[0].mxu0
        %11364 = vmatprep.mubr.bf16.mxu0 0
        %11365 = vmatmul.mubr.bf16.gmra.mrb[0].mxu0 %v6609
        %v11366 = vpop.f32.mrb[0].mxu0
        %v11367 = vadd.f32 0.0, %v11366
        %v11368 = vpop.f32.mrb[0].mxu0
        %v11369 = vpop.f32.mrb[0].mxu0
        %v11370 = vadd.f32 0.0, %v11369
        %v11371 = vpop.f32.mrb[0].mxu0
        %11372 = vmatprep.mubr.bf16.mxu0 0
        %11373 = vmatmul.mubr.bf16.gmra.mrb[0].mxu0 %v6612
        %v11374 = vpop.f32.mrb[0].mxu0
        %v11375 = vadd.f32 0.0, %v11374
        %v11376 = vpop.f32.mrb[0].mxu0
        %v11377 = vpop.f32.mrb[0].mxu0
        %v11378 = vadd.f32 0.0, %v11377
        %v11379 = vpop.f32.mrb[0].mxu0
        %11380 = vmatprep.mubr.bf16.mxu0 0
        %11381 = vmatmul.mubr.bf16.gmra.mrb[0].mxu0 %v6615
        %v11382 = vpop.f32.mrb[0].mxu0
        %v11383 = vadd.f32 0.0, %v11382
        %v11384 = vpop.f32.mrb[0].mxu0
        %v11385 = vpop.f32.mrb[0].mxu0
        %v11386 = vadd.f32 0.0, %v11385
        %v11387 = vpop.f32.mrb[0].mxu0
        %11388 = vmatprep.mubr.bf16.mxu0 0
        %11389 = vmatmul.mubr.bf16.gmra.mrb[0].mxu0 %v6618
        %v11390 = vpop.f32.mrb[0].mxu0
        %v11391 = vadd.f32 0.0, %v11390
        %v11392 = vpop.f32.mrb[0].mxu0
        %v11393 = vpop.f32.mrb[0].mxu0
        %v11394 = vadd.f32 0.0, %v11393
        %v11395 = vpop.f32.mrb[0].mxu0
        %11396 = vmatprep.mubr.bf16.mxu0 0
        %11397 = vmatmul.mubr.bf16.gmra.mrb[0].mxu0 %v6621
        %v11398 = vpop.f32.mrb[0].mxu0
        %v11399 = vadd.f32 0.0, %v11398
        %v11400 = vpop.f32.mrb[0].mxu0
        %v11401 = vpop.f32.mrb[0].mxu0
        %v11402 = vadd.f32 0.0, %v11401
        %v11403 = vpop.f32.mrb[0].mxu0
        %11404 = vmatprep.mubr.bf16.mxu0 0
        %11405 = vmatmul.mubr.bf16.gmra.mrb[0].mxu0 %v8751
        %v11406 = vpop.f32.mrb[0].mxu0
        %v11407 = vadd.f32 0.0, %v11406
        %v11408 = vpop.f32.mrb[0].mxu0
        %v11409 = vpop.f32.mrb[0].mxu0
        %v11410 = vadd.f32 0.0, %v11409
        %v11411 = vpop.f32.mrb[0].mxu0
        %11412 = vmatprep.mubr.bf16.mxu0 0
        %11413 = vmatmul.mubr.bf16.gmra.mrb[0].mxu0 %v8754
        %v11414 = vpop.f32.mrb[0].mxu0
        %v11415 = vadd.f32 0.0, %v11414
        %v11416 = vpop.f32.mrb[0].mxu0
        %v11417 = vpop.f32.mrb[0].mxu0
        %v11418 = vadd.f32 0.0, %v11417
        %v11419 = vpop.f32.mrb[0].mxu0
        %11420 = vmatprep.mubr.bf16.mxu0 0
        %11421 = vmatmul.mubr.bf16.gmra.mrb[0].mxu0 %v10884
        %v11422 = vpop.f32.mrb[0].mxu0
        %v11423 = vadd.f32 0.0, %v11422
        %v11424 = vpop.f32.mrb[0].mxu0
        %v11425 = vpop.f32.mrb[0].mxu0
        %v11426 = vadd.f32 0.0, %v11425
        %v11427 = vpop.f32.mrb[0].mxu0
        %11428 = vmatprep.mubr.bf16.mxu0 0
        %11429 = vmatmul.mubr.bf16.gmra.mrb[0].mxu0 %v10887
        %v11430 = vpop.f32.mrb[0].mxu0
        %v11431 = vadd.f32 0.0, %v11430
        %v11432 = vpop.f32.mrb[0].mxu0
        %v11433 = vpop.f32.mrb[0].mxu0
        %v11434 = vadd.f32 0.0, %v11433
        %v11435 = vpop.f32.mrb[0].mxu0
        %11436 = vdwg.mxu0
        %v11437 = vadd.f32 %v10732, %v10927
        %v11438 = vadd.f32 %v10733, %v10930
        %v11439 = vadd.f32 %v10734, %v10935
        %v11440 = vadd.f32 %v10735, %v10938
        %v11441 = vadd.f32 %v10736, %v10943
        %v11442 = vadd.f32 %v10737, %v10946
        %v11443 = vadd.f32 %v10738, %v10951
        %v11444 = vadd.f32 %v10739, %v10954
        %v11445 = vadd.f32 %v10740, %v10959
        %v11446 = vadd.f32 %v10741, %v10962
        %v11447 = vadd.f32 %v10742, %v10967
        %v11448 = vadd.f32 %v10743, %v10970
        %v11449 = vadd.f32 %v10744, %v10975
        %v11450 = vadd.f32 %v10745, %v10978
        %v11451 = vadd.f32 %v10746, %v10983
        %v11452 = vadd.f32 %v10747, %v10986
        %v11453 = vadd.f32 %v10748, %v10991
        %v11454 = vadd.f32 %v10749, %v10994
        %v11455 = vadd.f32 %v10750, %v10999
        %v11456 = vadd.f32 %v10751, %v11002
        %v11457 = vadd.f32 %v10752, %v11007
        %v11458 = vadd.f32 %v10753, %v11010
        %v11459 = vadd.f32 %v10754, %v11015
        %v11460 = vadd.f32 %v10755, %v11018
        %v11461 = vadd.f32 %v10756, %v11023
        %v11462 = vadd.f32 %v10757, %v11026
        %v11463 = vadd.f32 %v10758, %v11031
        %v11464 = vadd.f32 %v10759, %v11034
        %v11465 = vadd.f32 %v10760, %v11039
        %v11466 = vadd.f32 %v10761, %v11042
        %v11467 = vadd.f32 %v10762, %v11047
        %v11468 = vadd.f32 %v10763, %v11050
        %v11469 = vadd.f32 %v10764, %v11055
        %v11470 = vadd.f32 %v10765, %v11058
        %v11471 = vadd.f32 %v10766, %v11063
        %v11472 = vadd.f32 %v10767, %v11066
        %v11473 = vadd.f32 %v10768, %v11071
        %v11474 = vadd.f32 %v10769, %v11074
        %v11475 = vadd.f32 %v10770, %v11079
        %v11476 = vadd.f32 %v10771, %v11082
        %v11477 = vadd.f32 %v10772, %v11087
        %v11478 = vadd.f32 %v10773, %v11090
        %v11479 = vadd.f32 %v10774, %v11095
        %v11480 = vadd.f32 %v10775, %v11098
        %v11481 = vadd.f32 %v10776, %v11103
        %v11482 = vadd.f32 %v10777, %v11106
        %v11483 = vadd.f32 %v10778, %v11111
        %v11484 = vadd.f32 %v10779, %v11114
        %v11485 = vadd.f32 %v10780, %v11119
        %v11486 = vadd.f32 %v10781, %v11122
        %v11487 = vadd.f32 %v10782, %v11127
        %v11488 = vadd.f32 %v10783, %v11130
        %v11489 = vadd.f32 %v10784, %v11135
        %v11490 = vadd.f32 %v10785, %v11138
        %v11491 = vadd.f32 %v10786, %v11143
        %v11492 = vadd.f32 %v10787, %v11146
        %v11493 = vadd.f32 %v10788, %v11151
        %v11494 = vadd.f32 %v10789, %v11154
        %v11495 = vadd.f32 %v10790, %v11159
        %v11496 = vadd.f32 %v10791, %v11162
        %v11497 = vadd.f32 %v10792, %v11167
        %v11498 = vadd.f32 %v10793, %v11170
        %v11499 = vadd.f32 %v10794, %v11175
        %v11500 = vadd.f32 %v10795, %v11178
        %v11501 = vadd.f32 %v10796, %v11183
        %v11502 = vadd.f32 %v10797, %v11186
        %v11503 = vadd.f32 %v10798, %v11191
        %v11504 = vadd.f32 %v10799, %v11194
        %v11505 = vadd.f32 %v10800, %v11199
        %v11506 = vadd.f32 %v10801, %v11202
        %v11507 = vadd.f32 %v10802, %v11207
        %v11508 = vadd.f32 %v10803, %v11210
        %v11509 = vadd.f32 %v10804, %v11215
        %v11510 = vadd.f32 %v10805, %v11218
        %v11511 = vadd.f32 %v10806, %v11223
        %v11512 = vadd.f32 %v10807, %v11226
        %v11513 = vadd.f32 %v10808, %v11231
        %v11514 = vadd.f32 %v10809, %v11234
        %v11515 = vadd.f32 %v10810, %v11239
        %v11516 = vadd.f32 %v10811, %v11242
        %v11517 = vadd.f32 %v10812, %v11247
        %v11518 = vadd.f32 %v10813, %v11250
        %v11519 = vadd.f32 %v10814, %v11255
        %v11520 = vadd.f32 %v10815, %v11258
        %v11521 = vadd.f32 %v10816, %v11263
        %v11522 = vadd.f32 %v10817, %v11266
        %v11523 = vadd.f32 %v10818, %v11271
        %v11524 = vadd.f32 %v10819, %v11274
        %v11525 = vadd.f32 %v10820, %v11279
        %v11526 = vadd.f32 %v10821, %v11282
        %v11527 = vadd.f32 %v10822, %v11287
        %v11528 = vadd.f32 %v10823, %v11290
        %v11529 = vadd.f32 %v10824, %v11295
        %v11530 = vadd.f32 %v10825, %v11298
        %v11531 = vadd.f32 %v10826, %v11303
        %v11532 = vadd.f32 %v10827, %v11306
        %v11533 = vadd.f32 %v10828, %v11311
        %v11534 = vadd.f32 %v10829, %v11314
        %v11535 = vadd.f32 %v10830, %v11319
        %v11536 = vadd.f32 %v10831, %v11322
        %v11537 = vadd.f32 %v10832, %v11327
        %v11538 = vadd.f32 %v10833, %v11330
        %v11539 = vadd.f32 %v10834, %v11335
        %v11540 = vadd.f32 %v10835, %v11338
        %v11541 = vadd.f32 %v10836, %v11343
        %v11542 = vadd.f32 %v10837, %v11346
        %v11543 = vadd.f32 %v10838, %v11351
        %v11544 = vadd.f32 %v10839, %v11354
        %v11545 = vadd.f32 %v10840, %v11359
        %v11546 = vadd.f32 %v10841, %v11362
        %v11547 = vadd.f32 %v10842, %v11367
        %v11548 = vadd.f32 %v10843, %v11370
        %v11549 = vadd.f32 %v10844, %v11375
        %v11550 = vadd.f32 %v10845, %v11378
        %v11551 = vadd.f32 %v10846, %v11383
        %v11552 = vadd.f32 %v10847, %v11386
        %v11553 = vadd.f32 %v10848, %v11391
        %v11554 = vadd.f32 %v10849, %v11394
        %v11555 = vadd.f32 %v10850, %v11399
        %v11556 = vadd.f32 %v10851, %v11402
        %v11557 = vadd.f32 %v10852, %v11407
        %v11558 = vadd.f32 %v10853, %v11410
        %v11559 = vadd.f32 %v10854, %v11415
        %v11560 = vadd.f32 %v10855, %v11418
        %v11561 = vadd.f32 %v10856, %v11423
        %v11562 = vadd.f32 %v10857, %v11426
        %v11563 = vadd.f32 %v10858, %v11431
        %v11564 = vadd.f32 %v10859, %v11434
        %v11566 = vlaneseq
        %v11567 = vshrl.u32 %v11566, 7
        %v11568 = vsub.s32 0, %v11567
        %v11569 = vrot.slane %v2138, %v11568
        %v11571 = vadd.f32 %v11437, %v11569
        %v11572 = vadd.f32 %v11438, %v11569
        %v11573 = vadd.f32 %v11439, %v11569
        %v11574 = vadd.f32 %v11440, %v11569
        %v11575 = vadd.f32 %v11441, %v11569
        %v11576 = vadd.f32 %v11442, %v11569
        %v11577 = vadd.f32 %v11443, %v11569
        %v11578 = vadd.f32 %v11444, %v11569
        %v11579 = vadd.f32 %v11445, %v11569
        %v11580 = vadd.f32 %v11446, %v11569
        %v11581 = vadd.f32 %v11447, %v11569
        %v11582 = vadd.f32 %v11448, %v11569
        %v11583 = vadd.f32 %v11449, %v11569
        %v11584 = vadd.f32 %v11450, %v11569
        %v11585 = vadd.f32 %v11451, %v11569
        %v11586 = vadd.f32 %v11452, %v11569
        %v11587 = vadd.f32 %v11453, %v11569
        %v11588 = vadd.f32 %v11454, %v11569
        %v11589 = vadd.f32 %v11455, %v11569
        %v11590 = vadd.f32 %v11456, %v11569
        %v11591 = vadd.f32 %v11457, %v11569
        %v11592 = vadd.f32 %v11458, %v11569
        %v11593 = vadd.f32 %v11459, %v11569
        %v11594 = vadd.f32 %v11460, %v11569
        %v11595 = vadd.f32 %v11461, %v11569
        %v11596 = vadd.f32 %v11462, %v11569
        %v11597 = vadd.f32 %v11463, %v11569
        %v11598 = vadd.f32 %v11464, %v11569
        %v11599 = vadd.f32 %v11465, %v11569
        %v11600 = vadd.f32 %v11466, %v11569
        %v11601 = vadd.f32 %v11467, %v11569
        %v11602 = vadd.f32 %v11468, %v11569
        %v11603 = vadd.f32 %v11469, %v11569
        %v11604 = vadd.f32 %v11470, %v11569
        %v11605 = vadd.f32 %v11471, %v11569
        %v11606 = vadd.f32 %v11472, %v11569
        %v11607 = vadd.f32 %v11473, %v11569
        %v11608 = vadd.f32 %v11474, %v11569
        %v11609 = vadd.f32 %v11475, %v11569
        %v11610 = vadd.f32 %v11476, %v11569
        %v11611 = vadd.f32 %v11477, %v11569
        %v11612 = vadd.f32 %v11478, %v11569
        %v11613 = vadd.f32 %v11479, %v11569
        %v11614 = vadd.f32 %v11480, %v11569
        %v11615 = vadd.f32 %v11481, %v11569
        %v11616 = vadd.f32 %v11482, %v11569
        %v11617 = vadd.f32 %v11483, %v11569
        %v11618 = vadd.f32 %v11484, %v11569
        %v11619 = vadd.f32 %v11485, %v11569
        %v11620 = vadd.f32 %v11486, %v11569
        %v11621 = vadd.f32 %v11487, %v11569
        %v11622 = vadd.f32 %v11488, %v11569
        %v11623 = vadd.f32 %v11489, %v11569
        %v11624 = vadd.f32 %v11490, %v11569
        %v11625 = vadd.f32 %v11491, %v11569
        %v11626 = vadd.f32 %v11492, %v11569
        %v11627 = vadd.f32 %v11493, %v11569
        %v11628 = vadd.f32 %v11494, %v11569
        %v11629 = vadd.f32 %v11495, %v11569
        %v11630 = vadd.f32 %v11496, %v11569
        %v11631 = vadd.f32 %v11497, %v11569
        %v11632 = vadd.f32 %v11498, %v11569
        %v11633 = vadd.f32 %v11499, %v11569
        %v11634 = vadd.f32 %v11500, %v11569
        %v11635 = vadd.f32 %v11501, %v11569
        %v11636 = vadd.f32 %v11502, %v11569
        %v11637 = vadd.f32 %v11503, %v11569
        %v11638 = vadd.f32 %v11504, %v11569
        %v11639 = vadd.f32 %v11505, %v11569
        %v11640 = vadd.f32 %v11506, %v11569
        %v11641 = vadd.f32 %v11507, %v11569
        %v11642 = vadd.f32 %v11508, %v11569
        %v11643 = vadd.f32 %v11509, %v11569
        %v11644 = vadd.f32 %v11510, %v11569
        %v11645 = vadd.f32 %v11511, %v11569
        %v11646 = vadd.f32 %v11512, %v11569
        %v11647 = vadd.f32 %v11513, %v11569
        %v11648 = vadd.f32 %v11514, %v11569
        %v11649 = vadd.f32 %v11515, %v11569
        %v11650 = vadd.f32 %v11516, %v11569
        %v11651 = vadd.f32 %v11517, %v11569
        %v11652 = vadd.f32 %v11518, %v11569
        %v11653 = vadd.f32 %v11519, %v11569
        %v11654 = vadd.f32 %v11520, %v11569
        %v11655 = vadd.f32 %v11521, %v11569
        %v11656 = vadd.f32 %v11522, %v11569
        %v11657 = vadd.f32 %v11523, %v11569
        %v11658 = vadd.f32 %v11524, %v11569
        %v11659 = vadd.f32 %v11525, %v11569
        %v11660 = vadd.f32 %v11526, %v11569
        %v11661 = vadd.f32 %v11527, %v11569
        %v11662 = vadd.f32 %v11528, %v11569
        %v11663 = vadd.f32 %v11529, %v11569
        %v11664 = vadd.f32 %v11530, %v11569
        %v11665 = vadd.f32 %v11531, %v11569
        %v11666 = vadd.f32 %v11532, %v11569
        %v11667 = vadd.f32 %v11533, %v11569
        %v11668 = vadd.f32 %v11534, %v11569
        %v11669 = vadd.f32 %v11535, %v11569
        %v11670 = vadd.f32 %v11536, %v11569
        %v11671 = vadd.f32 %v11537, %v11569
        %v11672 = vadd.f32 %v11538, %v11569
        %v11673 = vadd.f32 %v11539, %v11569
        %v11674 = vadd.f32 %v11540, %v11569
        %v11675 = vadd.f32 %v11541, %v11569
        %v11676 = vadd.f32 %v11542, %v11569
        %v11677 = vadd.f32 %v11543, %v11569
        %v11678 = vadd.f32 %v11544, %v11569
        %v11679 = vadd.f32 %v11545, %v11569
        %v11680 = vadd.f32 %v11546, %v11569
        %v11681 = vadd.f32 %v11547, %v11569
        %v11682 = vadd.f32 %v11548, %v11569
        %v11683 = vadd.f32 %v11549, %v11569
        %v11684 = vadd.f32 %v11550, %v11569
        %v11685 = vadd.f32 %v11551, %v11569
        %v11686 = vadd.f32 %v11552, %v11569
        %v11687 = vadd.f32 %v11553, %v11569
        %v11688 = vadd.f32 %v11554, %v11569
        %v11689 = vadd.f32 %v11555, %v11569
        %v11690 = vadd.f32 %v11556, %v11569
        %v11691 = vadd.f32 %v11557, %v11569
        %v11692 = vadd.f32 %v11558, %v11569
        %v11693 = vadd.f32 %v11559, %v11569
        %v11694 = vadd.f32 %v11560, %v11569
        %v11695 = vadd.f32 %v11561, %v11569
        %v11696 = vadd.f32 %v11562, %v11569
        %v11697 = vadd.f32 %v11563, %v11569
        %v11698 = vadd.f32 %v11564, %v11569
        %v11699 = vmax.f32 %v11571, 0.0
        %v11700 = vmax.f32 %v11572, 0.0
        %v11701 = vmax.f32 %v11573, 0.0
        %v11702 = vmax.f32 %v11574, 0.0
        %v11703 = vmax.f32 %v11575, 0.0
        %v11704 = vmax.f32 %v11576, 0.0
        %v11705 = vmax.f32 %v11577, 0.0
        %v11706 = vmax.f32 %v11578, 0.0
        %v11707 = vmax.f32 %v11579, 0.0
        %v11708 = vmax.f32 %v11580, 0.0
        %v11709 = vmax.f32 %v11581, 0.0
        %v11710 = vmax.f32 %v11582, 0.0
        %v11711 = vmax.f32 %v11583, 0.0
        %v11712 = vmax.f32 %v11584, 0.0
        %v11713 = vmax.f32 %v11585, 0.0
        %v11714 = vmax.f32 %v11586, 0.0
        %v11715 = vmax.f32 %v11587, 0.0
        %v11716 = vmax.f32 %v11588, 0.0
        %v11717 = vmax.f32 %v11589, 0.0
        %v11718 = vmax.f32 %v11590, 0.0
        %v11719 = vmax.f32 %v11591, 0.0
        %v11720 = vmax.f32 %v11592, 0.0
        %v11721 = vmax.f32 %v11593, 0.0
        %v11722 = vmax.f32 %v11594, 0.0
        %v11723 = vmax.f32 %v11595, 0.0
        %v11724 = vmax.f32 %v11596, 0.0
        %v11725 = vmax.f32 %v11597, 0.0
        %v11726 = vmax.f32 %v11598, 0.0
        %v11727 = vmax.f32 %v11599, 0.0
        %v11728 = vmax.f32 %v11600, 0.0
        %v11729 = vmax.f32 %v11601, 0.0
        %v11730 = vmax.f32 %v11602, 0.0
        %v11731 = vmax.f32 %v11603, 0.0
        %v11732 = vmax.f32 %v11604, 0.0
        %v11733 = vmax.f32 %v11605, 0.0
        %v11734 = vmax.f32 %v11606, 0.0
        %v11735 = vmax.f32 %v11607, 0.0
        %v11736 = vmax.f32 %v11608, 0.0
        %v11737 = vmax.f32 %v11609, 0.0
        %v11738 = vmax.f32 %v11610, 0.0
        %v11739 = vmax.f32 %v11611, 0.0
        %v11740 = vmax.f32 %v11612, 0.0
        %v11741 = vmax.f32 %v11613, 0.0
        %v11742 = vmax.f32 %v11614, 0.0
        %v11743 = vmax.f32 %v11615, 0.0
        %v11744 = vmax.f32 %v11616, 0.0
        %v11745 = vmax.f32 %v11617, 0.0
        %v11746 = vmax.f32 %v11618, 0.0
        %v11747 = vmax.f32 %v11619, 0.0
        %v11748 = vmax.f32 %v11620, 0.0
        %v11749 = vmax.f32 %v11621, 0.0
        %v11750 = vmax.f32 %v11622, 0.0
        %v11751 = vmax.f32 %v11623, 0.0
        %v11752 = vmax.f32 %v11624, 0.0
        %v11753 = vmax.f32 %v11625, 0.0
        %v11754 = vmax.f32 %v11626, 0.0
        %v11755 = vmax.f32 %v11627, 0.0
        %v11756 = vmax.f32 %v11628, 0.0
        %v11757 = vmax.f32 %v11629, 0.0
        %v11758 = vmax.f32 %v11630, 0.0
        %v11759 = vmax.f32 %v11631, 0.0
        %v11760 = vmax.f32 %v11632, 0.0
        %v11761 = vmax.f32 %v11633, 0.0
        %v11762 = vmax.f32 %v11634, 0.0
        %v11763 = vmax.f32 %v11635, 0.0
        %v11764 = vmax.f32 %v11636, 0.0
        %v11765 = vmax.f32 %v11637, 0.0
        %v11766 = vmax.f32 %v11638, 0.0
        %v11767 = vmax.f32 %v11639, 0.0
        %v11768 = vmax.f32 %v11640, 0.0
        %v11769 = vmax.f32 %v11641, 0.0
        %v11770 = vmax.f32 %v11642, 0.0
        %v11771 = vmax.f32 %v11643, 0.0
        %v11772 = vmax.f32 %v11644, 0.0
        %v11773 = vmax.f32 %v11645, 0.0
        %v11774 = vmax.f32 %v11646, 0.0
        %v11775 = vmax.f32 %v11647, 0.0
        %v11776 = vmax.f32 %v11648, 0.0
        %v11777 = vmax.f32 %v11649, 0.0
        %v11778 = vmax.f32 %v11650, 0.0
        %v11779 = vmax.f32 %v11651, 0.0
        %v11780 = vmax.f32 %v11652, 0.0
        %v11781 = vmax.f32 %v11653, 0.0
        %v11782 = vmax.f32 %v11654, 0.0
        %v11783 = vmax.f32 %v11655, 0.0
        %v11784 = vmax.f32 %v11656, 0.0
        %v11785 = vmax.f32 %v11657, 0.0
        %v11786 = vmax.f32 %v11658, 0.0
        %v11787 = vmax.f32 %v11659, 0.0
        %v11788 = vmax.f32 %v11660, 0.0
        %v11789 = vmax.f32 %v11661, 0.0
        %v11790 = vmax.f32 %v11662, 0.0
        %v11791 = vmax.f32 %v11663, 0.0
        %v11792 = vmax.f32 %v11664, 0.0
        %v11793 = vmax.f32 %v11665, 0.0
        %v11794 = vmax.f32 %v11666, 0.0
        %v11795 = vmax.f32 %v11667, 0.0
        %v11796 = vmax.f32 %v11668, 0.0
        %v11797 = vmax.f32 %v11669, 0.0
        %v11798 = vmax.f32 %v11670, 0.0
        %v11799 = vmax.f32 %v11671, 0.0
        %v11800 = vmax.f32 %v11672, 0.0
        %v11801 = vmax.f32 %v11673, 0.0
        %v11802 = vmax.f32 %v11674, 0.0
        %v11803 = vmax.f32 %v11675, 0.0
        %v11804 = vmax.f32 %v11676, 0.0
        %v11805 = vmax.f32 %v11677, 0.0
        %v11806 = vmax.f32 %v11678, 0.0
        %v11807 = vmax.f32 %v11679, 0.0
        %v11808 = vmax.f32 %v11680, 0.0
        %v11809 = vmax.f32 %v11681, 0.0
        %v11810 = vmax.f32 %v11682, 0.0
        %v11811 = vmax.f32 %v11683, 0.0
        %v11812 = vmax.f32 %v11684, 0.0
        %v11813 = vmax.f32 %v11685, 0.0
        %v11814 = vmax.f32 %v11686, 0.0
        %v11815 = vmax.f32 %v11687, 0.0
        %v11816 = vmax.f32 %v11688, 0.0
        %v11817 = vmax.f32 %v11689, 0.0
        %v11818 = vmax.f32 %v11690, 0.0
        %v11819 = vmax.f32 %v11691, 0.0
        %v11820 = vmax.f32 %v11692, 0.0
        %v11821 = vmax.f32 %v11693, 0.0
        %v11822 = vmax.f32 %v11694, 0.0
        %v11823 = vmax.f32 %v11695, 0.0
        %v11824 = vmax.f32 %v11696, 0.0
        %v11825 = vmax.f32 %v11697, 0.0
        %v11826 = vmax.f32 %v11698, 0.0
        %v11827 = vpack.c.bf16 %v11700, %v11699
        %v11828 = vpack.c.bf16 %v11702, %v11701
        %v11829 = vpack.c.bf16 %v11704, %v11703
        %v11830 = vpack.c.bf16 %v11706, %v11705
        %v11831 = vpack.c.bf16 %v11708, %v11707
        %v11832 = vpack.c.bf16 %v11710, %v11709
        %v11833 = vpack.c.bf16 %v11712, %v11711
        %v11834 = vpack.c.bf16 %v11714, %v11713
        %v11835 = vpack.c.bf16 %v11716, %v11715
        %v11836 = vpack.c.bf16 %v11718, %v11717
        %v11837 = vpack.c.bf16 %v11720, %v11719
        %v11838 = vpack.c.bf16 %v11722, %v11721
        %v11839 = vpack.c.bf16 %v11724, %v11723
        %v11840 = vpack.c.bf16 %v11726, %v11725
        %v11841 = vpack.c.bf16 %v11728, %v11727
        %v11842 = vpack.c.bf16 %v11730, %v11729
        %v11843 = vpack.c.bf16 %v11732, %v11731
        %v11844 = vpack.c.bf16 %v11734, %v11733
        %v11845 = vpack.c.bf16 %v11736, %v11735
        %v11846 = vpack.c.bf16 %v11738, %v11737
        %v11847 = vpack.c.bf16 %v11740, %v11739
        %v11848 = vpack.c.bf16 %v11742, %v11741
        %v11849 = vpack.c.bf16 %v11744, %v11743
        %v11850 = vpack.c.bf16 %v11746, %v11745
        %v11851 = vpack.c.bf16 %v11748, %v11747
        %v11852 = vpack.c.bf16 %v11750, %v11749
        %v11853 = vpack.c.bf16 %v11752, %v11751
        %v11854 = vpack.c.bf16 %v11754, %v11753
        %v11855 = vpack.c.bf16 %v11756, %v11755
        %v11856 = vpack.c.bf16 %v11758, %v11757
        %v11857 = vpack.c.bf16 %v11760, %v11759
        %v11858 = vpack.c.bf16 %v11762, %v11761
        %v11859 = vpack.c.bf16 %v11764, %v11763
        %v11860 = vpack.c.bf16 %v11766, %v11765
        %v11861 = vpack.c.bf16 %v11768, %v11767
        %v11862 = vpack.c.bf16 %v11770, %v11769
        %v11863 = vpack.c.bf16 %v11772, %v11771
        %v11864 = vpack.c.bf16 %v11774, %v11773
        %v11865 = vpack.c.bf16 %v11776, %v11775
        %v11866 = vpack.c.bf16 %v11778, %v11777
        %v11867 = vpack.c.bf16 %v11780, %v11779
        %v11868 = vpack.c.bf16 %v11782, %v11781
        %v11869 = vpack.c.bf16 %v11784, %v11783
        %v11870 = vpack.c.bf16 %v11786, %v11785
        %v11871 = vpack.c.bf16 %v11788, %v11787
        %v11872 = vpack.c.bf16 %v11790, %v11789
        %v11873 = vpack.c.bf16 %v11792, %v11791
        %v11874 = vpack.c.bf16 %v11794, %v11793
        %v11875 = vpack.c.bf16 %v11796, %v11795
        %v11876 = vpack.c.bf16 %v11798, %v11797
        %v11877 = vpack.c.bf16 %v11800, %v11799
        %v11878 = vpack.c.bf16 %v11802, %v11801
        %v11879 = vpack.c.bf16 %v11804, %v11803
        %v11880 = vpack.c.bf16 %v11806, %v11805
        %v11881 = vpack.c.bf16 %v11808, %v11807
        %v11882 = vpack.c.bf16 %v11810, %v11809
        %v11883 = vpack.c.bf16 %v11812, %v11811
        %v11884 = vpack.c.bf16 %v11814, %v11813
        %v11885 = vpack.c.bf16 %v11816, %v11815
        %v11886 = vpack.c.bf16 %v11818, %v11817
        %v11887 = vpack.c.bf16 %v11820, %v11819
        %v11888 = vpack.c.bf16 %v11822, %v11821
        %v11889 = vpack.c.bf16 %v11824, %v11823
        %v11890 = vpack.c.bf16 %v11826, %v11825
        %v11955 = vunpack.c.l.b16 %v11827
        %v11956 = vunpack.c.h.b16 %v11827
        %v11957 = vunpack.c.l.b16 %v11828
        %v11958 = vunpack.c.h.b16 %v11828
        %v11959 = vunpack.c.l.b16 %v11829
        %v11960 = vunpack.c.h.b16 %v11829
        %v11961 = vunpack.c.l.b16 %v11830
        %v11962 = vunpack.c.h.b16 %v11830
        %v11963 = vunpack.c.l.b16 %v11831
        %v11964 = vunpack.c.h.b16 %v11831
        %v11965 = vunpack.c.l.b16 %v11832
        %v11966 = vunpack.c.h.b16 %v11832
        %v11967 = vunpack.c.l.b16 %v11833
        %v11968 = vunpack.c.h.b16 %v11833
        %v11969 = vunpack.c.l.b16 %v11834
        %v11970 = vunpack.c.h.b16 %v11834
        %v11971 = vunpack.c.l.b16 %v11835
        %v11972 = vunpack.c.h.b16 %v11835
        %v11973 = vunpack.c.l.b16 %v11836
        %v11974 = vunpack.c.h.b16 %v11836
        %v11975 = vunpack.c.l.b16 %v11837
        %v11976 = vunpack.c.h.b16 %v11837
        %v11977 = vunpack.c.l.b16 %v11838
        %v11978 = vunpack.c.h.b16 %v11838
        %v11979 = vunpack.c.l.b16 %v11839
        %v11980 = vunpack.c.h.b16 %v11839
        %v11981 = vunpack.c.l.b16 %v11840
        %v11982 = vunpack.c.h.b16 %v11840
        %v11983 = vunpack.c.l.b16 %v11841
        %v11984 = vunpack.c.h.b16 %v11841
        %v11985 = vunpack.c.l.b16 %v11842
        %v11986 = vunpack.c.h.b16 %v11842
        %v11987 = vunpack.c.l.b16 %v11843
        %v11988 = vunpack.c.h.b16 %v11843
        %v11989 = vunpack.c.l.b16 %v11844
        %v11990 = vunpack.c.h.b16 %v11844
        %v11991 = vunpack.c.l.b16 %v11845
        %v11992 = vunpack.c.h.b16 %v11845
        %v11993 = vunpack.c.l.b16 %v11846
        %v11994 = vunpack.c.h.b16 %v11846
        %v11995 = vunpack.c.l.b16 %v11847
        %v11996 = vunpack.c.h.b16 %v11847
        %v11997 = vunpack.c.l.b16 %v11848
        %v11998 = vunpack.c.h.b16 %v11848
        %v11999 = vunpack.c.l.b16 %v11849
        %v12000 = vunpack.c.h.b16 %v11849
        %v12001 = vunpack.c.l.b16 %v11850
        %v12002 = vunpack.c.h.b16 %v11850
        %v12003 = vunpack.c.l.b16 %v11851
        %v12004 = vunpack.c.h.b16 %v11851
        %v12005 = vunpack.c.l.b16 %v11852
        %v12006 = vunpack.c.h.b16 %v11852
        %v12007 = vunpack.c.l.b16 %v11853
        %v12008 = vunpack.c.h.b16 %v11853
        %v12009 = vunpack.c.l.b16 %v11854
        %v12010 = vunpack.c.h.b16 %v11854
        %v12011 = vunpack.c.l.b16 %v11855
        %v12012 = vunpack.c.h.b16 %v11855
        %v12013 = vunpack.c.l.b16 %v11856
        %v12014 = vunpack.c.h.b16 %v11856
        %v12015 = vunpack.c.l.b16 %v11857
        %v12016 = vunpack.c.h.b16 %v11857
        %v12017 = vunpack.c.l.b16 %v11858
        %v12018 = vunpack.c.h.b16 %v11858
        %v12019 = vunpack.c.l.b16 %v11859
        %v12020 = vunpack.c.h.b16 %v11859
        %v12021 = vunpack.c.l.b16 %v11860
        %v12022 = vunpack.c.h.b16 %v11860
        %v12023 = vunpack.c.l.b16 %v11861
        %v12024 = vunpack.c.h.b16 %v11861
        %v12025 = vunpack.c.l.b16 %v11862
        %v12026 = vunpack.c.h.b16 %v11862
        %v12027 = vunpack.c.l.b16 %v11863
        %v12028 = vunpack.c.h.b16 %v11863
        %v12029 = vunpack.c.l.b16 %v11864
        %v12030 = vunpack.c.h.b16 %v11864
        %v12031 = vunpack.c.l.b16 %v11865
        %v12032 = vunpack.c.h.b16 %v11865
        %v12033 = vunpack.c.l.b16 %v11866
        %v12034 = vunpack.c.h.b16 %v11866
        %v12035 = vunpack.c.l.b16 %v11867
        %v12036 = vunpack.c.h.b16 %v11867
        %v12037 = vunpack.c.l.b16 %v11868
        %v12038 = vunpack.c.h.b16 %v11868
        %v12039 = vunpack.c.l.b16 %v11869
        %v12040 = vunpack.c.h.b16 %v11869
        %v12041 = vunpack.c.l.b16 %v11870
        %v12042 = vunpack.c.h.b16 %v11870
        %v12043 = vunpack.c.l.b16 %v11871
        %v12044 = vunpack.c.h.b16 %v11871
        %v12045 = vunpack.c.l.b16 %v11872
        %v12046 = vunpack.c.h.b16 %v11872
        %v12047 = vunpack.c.l.b16 %v11873
        %v12048 = vunpack.c.h.b16 %v11873
        %v12049 = vunpack.c.l.b16 %v11874
        %v12050 = vunpack.c.h.b16 %v11874
        %v12051 = vunpack.c.l.b16 %v11875
        %v12052 = vunpack.c.h.b16 %v11875
        %v12053 = vunpack.c.l.b16 %v11876
        %v12054 = vunpack.c.h.b16 %v11876
        %v12055 = vunpack.c.l.b16 %v11877
        %v12056 = vunpack.c.h.b16 %v11877
        %v12057 = vunpack.c.l.b16 %v11878
        %v12058 = vunpack.c.h.b16 %v11878
        %v12059 = vunpack.c.l.b16 %v11879
        %v12060 = vunpack.c.h.b16 %v11879
        %v12061 = vunpack.c.l.b16 %v11880
        %v12062 = vunpack.c.h.b16 %v11880
        %v12063 = vunpack.c.l.b16 %v11881
        %v12064 = vunpack.c.h.b16 %v11881
        %v12065 = vunpack.c.l.b16 %v11882
        %v12066 = vunpack.c.h.b16 %v11882
        %v12067 = vunpack.c.l.b16 %v11883
        %v12068 = vunpack.c.h.b16 %v11883
        %v12069 = vunpack.c.l.b16 %v11884
        %v12070 = vunpack.c.h.b16 %v11884
        %v12071 = vunpack.c.l.b16 %v11885
        %v12072 = vunpack.c.h.b16 %v11885
        %v12073 = vunpack.c.l.b16 %v11886
        %v12074 = vunpack.c.h.b16 %v11886
        %v12075 = vunpack.c.l.b16 %v11887
        %v12076 = vunpack.c.h.b16 %v11887
        %v12077 = vunpack.c.l.b16 %v11888
        %v12078 = vunpack.c.h.b16 %v11888
        %v12079 = vunpack.c.l.b16 %v11889
        %v12080 = vunpack.c.h.b16 %v11889
        %v12081 = vunpack.c.l.b16 %v11890
        %v12082 = vunpack.c.h.b16 %v11890
        %v12083 = vpack.c.b16 %v11955, %v11955
        %v12084 = vpack.c.b16 %v11956, %v11956
        %v12085 = vpack.c.b16 %v11957, %v11957
        %v12086 = vpack.c.b16 %v11958, %v11958
        %v12087 = vpack.c.b16 %v11959, %v11959
        %v12088 = vpack.c.b16 %v11960, %v11960
        %v12089 = vpack.c.b16 %v11961, %v11961
        %v12090 = vpack.c.b16 %v11962, %v11962
        %v12091 = vpack.c.b16 %v11963, %v11963
        %v12092 = vpack.c.b16 %v11964, %v11964
        %v12093 = vpack.c.b16 %v11965, %v11965
        %v12094 = vpack.c.b16 %v11966, %v11966
        %v12095 = vpack.c.b16 %v11967, %v11967
        %v12096 = vpack.c.b16 %v11968, %v11968
        %v12097 = vpack.c.b16 %v11969, %v11969
        %v12098 = vpack.c.b16 %v11970, %v11970
        %v12099 = vpack.c.b16 %v11971, %v11971
        %v12100 = vpack.c.b16 %v11972, %v11972
        %v12101 = vpack.c.b16 %v11973, %v11973
        %v12102 = vpack.c.b16 %v11974, %v11974
        %v12103 = vpack.c.b16 %v11975, %v11975
        %v12104 = vpack.c.b16 %v11976, %v11976
        %v12105 = vpack.c.b16 %v11977, %v11977
        %v12106 = vpack.c.b16 %v11978, %v11978
        %v12107 = vpack.c.b16 %v11979, %v11979
        %v12108 = vpack.c.b16 %v11980, %v11980
        %v12109 = vpack.c.b16 %v11981, %v11981
        %v12110 = vpack.c.b16 %v11982, %v11982
        %v12111 = vpack.c.b16 %v11983, %v11983
        %v12112 = vpack.c.b16 %v11984, %v11984
        %v12113 = vpack.c.b16 %v11985, %v11985
        %v12114 = vpack.c.b16 %v11986, %v11986
        %v12115 = vpack.c.b16 %v11987, %v11987
        %v12116 = vpack.c.b16 %v11988, %v11988
        %v12117 = vpack.c.b16 %v11989, %v11989
        %v12118 = vpack.c.b16 %v11990, %v11990
        %v12119 = vpack.c.b16 %v11991, %v11991
        %v12120 = vpack.c.b16 %v11992, %v11992
        %v12121 = vpack.c.b16 %v11993, %v11993
        %v12122 = vpack.c.b16 %v11994, %v11994
        %v12123 = vpack.c.b16 %v11995, %v11995
        %v12124 = vpack.c.b16 %v11996, %v11996
        %v12125 = vpack.c.b16 %v11997, %v11997
        %v12126 = vpack.c.b16 %v11998, %v11998
        %v12127 = vpack.c.b16 %v11999, %v11999
        %v12128 = vpack.c.b16 %v12000, %v12000
        %v12129 = vpack.c.b16 %v12001, %v12001
        %v12130 = vpack.c.b16 %v12002, %v12002
        %v12131 = vpack.c.b16 %v12003, %v12003
        %v12132 = vpack.c.b16 %v12004, %v12004
        %v12133 = vpack.c.b16 %v12005, %v12005
        %v12134 = vpack.c.b16 %v12006, %v12006
        %v12135 = vpack.c.b16 %v12007, %v12007
        %v12136 = vpack.c.b16 %v12008, %v12008
        %v12137 = vpack.c.b16 %v12009, %v12009
        %v12138 = vpack.c.b16 %v12010, %v12010
        %v12139 = vpack.c.b16 %v12011, %v12011
        %v12140 = vpack.c.b16 %v12012, %v12012
        %v12141 = vpack.c.b16 %v12013, %v12013
        %v12142 = vpack.c.b16 %v12014, %v12014
        %v12143 = vpack.c.b16 %v12015, %v12015
        %v12144 = vpack.c.b16 %v12016, %v12016
        %v12145 = vpack.c.b16 %v12017, %v12017
        %v12146 = vpack.c.b16 %v12018, %v12018
        %v12147 = vpack.c.b16 %v12019, %v12019
        %v12148 = vpack.c.b16 %v12020, %v12020
        %v12149 = vpack.c.b16 %v12021, %v12021
        %v12150 = vpack.c.b16 %v12022, %v12022
        %v12151 = vpack.c.b16 %v12023, %v12023
        %v12152 = vpack.c.b16 %v12024, %v12024
        %v12153 = vpack.c.b16 %v12025, %v12025
        %v12154 = vpack.c.b16 %v12026, %v12026
        %v12155 = vpack.c.b16 %v12027, %v12027
        %v12156 = vpack.c.b16 %v12028, %v12028
        %v12157 = vpack.c.b16 %v12029, %v12029
        %v12158 = vpack.c.b16 %v12030, %v12030
        %v12159 = vpack.c.b16 %v12031, %v12031
        %v12160 = vpack.c.b16 %v12032, %v12032
        %v12161 = vpack.c.b16 %v12033, %v12033
        %v12162 = vpack.c.b16 %v12034, %v12034
        %v12163 = vpack.c.b16 %v12035, %v12035
        %v12164 = vpack.c.b16 %v12036, %v12036
        %v12165 = vpack.c.b16 %v12037, %v12037
        %v12166 = vpack.c.b16 %v12038, %v12038
        %v12167 = vpack.c.b16 %v12039, %v12039
        %v12168 = vpack.c.b16 %v12040, %v12040
        %v12169 = vpack.c.b16 %v12041, %v12041
        %v12170 = vpack.c.b16 %v12042, %v12042
        %v12171 = vpack.c.b16 %v12043, %v12043
        %v12172 = vpack.c.b16 %v12044, %v12044
        %v12173 = vpack.c.b16 %v12045, %v12045
        %v12174 = vpack.c.b16 %v12046, %v12046
        %v12175 = vpack.c.b16 %v12047, %v12047
        %v12176 = vpack.c.b16 %v12048, %v12048
        %v12177 = vpack.c.b16 %v12049, %v12049
        %v12178 = vpack.c.b16 %v12050, %v12050
        %v12179 = vpack.c.b16 %v12051, %v12051
        %v12180 = vpack.c.b16 %v12052, %v12052
        %v12181 = vpack.c.b16 %v12053, %v12053
        %v12182 = vpack.c.b16 %v12054, %v12054
        %v12183 = vpack.c.b16 %v12055, %v12055
        %v12184 = vpack.c.b16 %v12056, %v12056
        %v12185 = vpack.c.b16 %v12057, %v12057
        %v12186 = vpack.c.b16 %v12058, %v12058
        %v12187 = vpack.c.b16 %v12059, %v12059
        %v12188 = vpack.c.b16 %v12060, %v12060
        %v12189 = vpack.c.b16 %v12061, %v12061
        %v12190 = vpack.c.b16 %v12062, %v12062
        %v12191 = vpack.c.b16 %v12063, %v12063
        %v12192 = vpack.c.b16 %v12064, %v12064
        %v12193 = vpack.c.b16 %v12065, %v12065
        %v12194 = vpack.c.b16 %v12066, %v12066
        %v12195 = vpack.c.b16 %v12067, %v12067
        %v12196 = vpack.c.b16 %v12068, %v12068
        %v12197 = vpack.c.b16 %v12069, %v12069
        %v12198 = vpack.c.b16 %v12070, %v12070
        %v12199 = vpack.c.b16 %v12071, %v12071
        %v12200 = vpack.c.b16 %v12072, %v12072
        %v12201 = vpack.c.b16 %v12073, %v12073
        %v12202 = vpack.c.b16 %v12074, %v12074
        %v12203 = vpack.c.b16 %v12075, %v12075
        %v12204 = vpack.c.b16 %v12076, %v12076
        %v12205 = vpack.c.b16 %v12077, %v12077
        %v12206 = vpack.c.b16 %v12078, %v12078
        %v12207 = vpack.c.b16 %v12079, %v12079
        %v12208 = vpack.c.b16 %v12080, %v12080
        %v12209 = vpack.c.b16 %v12081, %v12081
        %v12210 = vpack.c.b16 %v12082, %v12082
        %vm12339 = vcmask 519168
        %12340 = vst.msk [vmem:[%s201] sm:$0xf] %vm12339, %v12083
        %12341 = vst.msk [vmem:[%s201 + $0x4] sm:$0xf] %vm12339, %v12084
        %12342 = vst.msk [vmem:[%s201 + $0x8] sm:$0xf] %vm12339, %v12085
        %12343 = vst.msk [vmem:[%s201 + $0xc] sm:$0xf] %vm12339, %v12086
        %12344 = vst.msk [vmem:[%s201 + $0x10] sm:$0xf] %vm12339, %v12087
        %12345 = vst.msk [vmem:[%s201 + $0x14] sm:$0xf] %vm12339, %v12088
        %12346 = vst.msk [vmem:[%s201 + $0x18] sm:$0xf] %vm12339, %v12089
        %12347 = vst.msk [vmem:[%s201 + $0x1c] sm:$0xf] %vm12339, %v12090
        %12348 = vst.msk [vmem:[%s201 + $0x20] sm:$0xf] %vm12339, %v12091
        %12349 = vst.msk [vmem:[%s201 + $0x24] sm:$0xf] %vm12339, %v12092
        %12350 = vst.msk [vmem:[%s201 + $0x28] sm:$0xf] %vm12339, %v12093
        %12351 = vst.msk [vmem:[%s201 + $0x2c] sm:$0xf] %vm12339, %v12094
        %12352 = vst.msk [vmem:[%s201 + $0x30] sm:$0xf] %vm12339, %v12095
        %12353 = vst.msk [vmem:[%s201 + $0x34] sm:$0xf] %vm12339, %v12096
        %12354 = vst.msk [vmem:[%s201 + $0x38] sm:$0xf] %vm12339, %v12097
        %12355 = vst.msk [vmem:[%s201 + $0x3c] sm:$0xf] %vm12339, %v12098
        %12356 = vst.msk [vmem:[%s201 + $0x40] sm:$0xf] %vm12339, %v12099
        %12357 = vst.msk [vmem:[%s201 + $0x44] sm:$0xf] %vm12339, %v12100
        %12358 = vst.msk [vmem:[%s201 + $0x48] sm:$0xf] %vm12339, %v12101
        %12359 = vst.msk [vmem:[%s201 + $0x4c] sm:$0xf] %vm12339, %v12102
        %12360 = vst.msk [vmem:[%s201 + $0x50] sm:$0xf] %vm12339, %v12103
        %12361 = vst.msk [vmem:[%s201 + $0x54] sm:$0xf] %vm12339, %v12104
        %12362 = vst.msk [vmem:[%s201 + $0x58] sm:$0xf] %vm12339, %v12105
        %12363 = vst.msk [vmem:[%s201 + $0x5c] sm:$0xf] %vm12339, %v12106
        %12364 = vst.msk [vmem:[%s201 + $0x60] sm:$0xf] %vm12339, %v12107
        %12365 = vst.msk [vmem:[%s201 + $0x64] sm:$0xf] %vm12339, %v12108
        %12366 = vst.msk [vmem:[%s201 + $0x68] sm:$0xf] %vm12339, %v12109
        %12367 = vst.msk [vmem:[%s201 + $0x6c] sm:$0xf] %vm12339, %v12110
        %12368 = vst.msk [vmem:[%s201 + $0x70] sm:$0xf] %vm12339, %v12111
        %12369 = vst.msk [vmem:[%s201 + $0x74] sm:$0xf] %vm12339, %v12112
        %12370 = vst.msk [vmem:[%s201 + $0x78] sm:$0xf] %vm12339, %v12113
        %12371 = vst.msk [vmem:[%s201 + $0x7c] sm:$0xf] %vm12339, %v12114
        %12372 = vst.msk [vmem:[%s201 + $0x80] sm:$0xf] %vm12339, %v12115
        %12373 = vst.msk [vmem:[%s201 + $0x84] sm:$0xf] %vm12339, %v12116
        %12374 = vst.msk [vmem:[%s201 + $0x88] sm:$0xf] %vm12339, %v12117
        %12375 = vst.msk [vmem:[%s201 + $0x8c] sm:$0xf] %vm12339, %v12118
        %12376 = vst.msk [vmem:[%s201 + $0x90] sm:$0xf] %vm12339, %v12119
        %12377 = vst.msk [vmem:[%s201 + $0x94] sm:$0xf] %vm12339, %v12120
        %12378 = vst.msk [vmem:[%s201 + $0x98] sm:$0xf] %vm12339, %v12121
        %12379 = vst.msk [vmem:[%s201 + $0x9c] sm:$0xf] %vm12339, %v12122
        %12380 = vst.msk [vmem:[%s201 + $0xa0] sm:$0xf] %vm12339, %v12123
        %12381 = vst.msk [vmem:[%s201 + $0xa4] sm:$0xf] %vm12339, %v12124
        %12382 = vst.msk [vmem:[%s201 + $0xa8] sm:$0xf] %vm12339, %v12125
        %12383 = vst.msk [vmem:[%s201 + $0xac] sm:$0xf] %vm12339, %v12126
        %12384 = vst.msk [vmem:[%s201 + $0xb0] sm:$0xf] %vm12339, %v12127
        %12385 = vst.msk [vmem:[%s201 + $0xb4] sm:$0xf] %vm12339, %v12128
        %12386 = vst.msk [vmem:[%s201 + $0xb8] sm:$0xf] %vm12339, %v12129
        %12387 = vst.msk [vmem:[%s201 + $0xbc] sm:$0xf] %vm12339, %v12130
        %12388 = vst.msk [vmem:[%s201 + $0xc0] sm:$0xf] %vm12339, %v12131
        %12389 = vst.msk [vmem:[%s201 + $0xc4] sm:$0xf] %vm12339, %v12132
        %12390 = vst.msk [vmem:[%s201 + $0xc8] sm:$0xf] %vm12339, %v12133
        %12391 = vst.msk [vmem:[%s201 + $0xcc] sm:$0xf] %vm12339, %v12134
        %12392 = vst.msk [vmem:[%s201 + $0xd0] sm:$0xf] %vm12339, %v12135
        %12393 = vst.msk [vmem:[%s201 + $0xd4] sm:$0xf] %vm12339, %v12136
        %12394 = vst.msk [vmem:[%s201 + $0xd8] sm:$0xf] %vm12339, %v12137
        %12395 = vst.msk [vmem:[%s201 + $0xdc] sm:$0xf] %vm12339, %v12138
        %12396 = vst.msk [vmem:[%s201 + $0xe0] sm:$0xf] %vm12339, %v12139
        %12397 = vst.msk [vmem:[%s201 + $0xe4] sm:$0xf] %vm12339, %v12140
        %12398 = vst.msk [vmem:[%s201 + $0xe8] sm:$0xf] %vm12339, %v12141
        %12399 = vst.msk [vmem:[%s201 + $0xec] sm:$0xf] %vm12339, %v12142
        %12400 = vst.msk [vmem:[%s201 + $0xf0] sm:$0xf] %vm12339, %v12143
        %12401 = vst.msk [vmem:[%s201 + $0xf4] sm:$0xf] %vm12339, %v12144
        %12402 = vst.msk [vmem:[%s201 + $0xf8] sm:$0xf] %vm12339, %v12145
        %12403 = vst.msk [vmem:[%s201 + $0xfc] sm:$0xf] %vm12339, %v12146
        %12404 = vst.msk [vmem:[%s201 + $0x100] sm:$0xf] %vm12339, %v12147
        %12405 = vst.msk [vmem:[%s201 + $0x104] sm:$0xf] %vm12339, %v12148
        %12406 = vst.msk [vmem:[%s201 + $0x108] sm:$0xf] %vm12339, %v12149
        %12407 = vst.msk [vmem:[%s201 + $0x10c] sm:$0xf] %vm12339, %v12150
        %12408 = vst.msk [vmem:[%s201 + $0x110] sm:$0xf] %vm12339, %v12151
        %12409 = vst.msk [vmem:[%s201 + $0x114] sm:$0xf] %vm12339, %v12152
        %12410 = vst.msk [vmem:[%s201 + $0x118] sm:$0xf] %vm12339, %v12153
        %12411 = vst.msk [vmem:[%s201 + $0x11c] sm:$0xf] %vm12339, %v12154
        %12412 = vst.msk [vmem:[%s201 + $0x120] sm:$0xf] %vm12339, %v12155
        %12413 = vst.msk [vmem:[%s201 + $0x124] sm:$0xf] %vm12339, %v12156
        %12414 = vst.msk [vmem:[%s201 + $0x128] sm:$0xf] %vm12339, %v12157
        %12415 = vst.msk [vmem:[%s201 + $0x12c] sm:$0xf] %vm12339, %v12158
        %12416 = vst.msk [vmem:[%s201 + $0x130] sm:$0xf] %vm12339, %v12159
        %12417 = vst.msk [vmem:[%s201 + $0x134] sm:$0xf] %vm12339, %v12160
        %12418 = vst.msk [vmem:[%s201 + $0x138] sm:$0xf] %vm12339, %v12161
        %12419 = vst.msk [vmem:[%s201 + $0x13c] sm:$0xf] %vm12339, %v12162
        %12420 = vst.msk [vmem:[%s201 + $0x140] sm:$0xf] %vm12339, %v12163
        %12421 = vst.msk [vmem:[%s201 + $0x144] sm:$0xf] %vm12339, %v12164
        %12422 = vst.msk [vmem:[%s201 + $0x148] sm:$0xf] %vm12339, %v12165
        %12423 = vst.msk [vmem:[%s201 + $0x14c] sm:$0xf] %vm12339, %v12166
        %12424 = vst.msk [vmem:[%s201 + $0x150] sm:$0xf] %vm12339, %v12167
        %12425 = vst.msk [vmem:[%s201 + $0x154] sm:$0xf] %vm12339, %v12168
        %12426 = vst.msk [vmem:[%s201 + $0x158] sm:$0xf] %vm12339, %v12169
        %12427 = vst.msk [vmem:[%s201 + $0x15c] sm:$0xf] %vm12339, %v12170
        %12428 = vst.msk [vmem:[%s201 + $0x160] sm:$0xf] %vm12339, %v12171
        %12429 = vst.msk [vmem:[%s201 + $0x164] sm:$0xf] %vm12339, %v12172
        %12430 = vst.msk [vmem:[%s201 + $0x168] sm:$0xf] %vm12339, %v12173
        %12431 = vst.msk [vmem:[%s201 + $0x16c] sm:$0xf] %vm12339, %v12174
        %12432 = vst.msk [vmem:[%s201 + $0x170] sm:$0xf] %vm12339, %v12175
        %12433 = vst.msk [vmem:[%s201 + $0x174] sm:$0xf] %vm12339, %v12176
        %12434 = vst.msk [vmem:[%s201 + $0x178] sm:$0xf] %vm12339, %v12177
        %12435 = vst.msk [vmem:[%s201 + $0x17c] sm:$0xf] %vm12339, %v12178
        %12436 = vst.msk [vmem:[%s201 + $0x180] sm:$0xf] %vm12339, %v12179
        %12437 = vst.msk [vmem:[%s201 + $0x184] sm:$0xf] %vm12339, %v12180
        %12438 = vst.msk [vmem:[%s201 + $0x188] sm:$0xf] %vm12339, %v12181
        %12439 = vst.msk [vmem:[%s201 + $0x18c] sm:$0xf] %vm12339, %v12182
        %12440 = vst.msk [vmem:[%s201 + $0x190] sm:$0xf] %vm12339, %v12183
        %12441 = vst.msk [vmem:[%s201 + $0x194] sm:$0xf] %vm12339, %v12184
        %12442 = vst.msk [vmem:[%s201 + $0x198] sm:$0xf] %vm12339, %v12185
        %12443 = vst.msk [vmem:[%s201 + $0x19c] sm:$0xf] %vm12339, %v12186
        %12444 = vst.msk [vmem:[%s201 + $0x1a0] sm:$0xf] %vm12339, %v12187
        %12445 = vst.msk [vmem:[%s201 + $0x1a4] sm:$0xf] %vm12339, %v12188
        %12446 = vst.msk [vmem:[%s201 + $0x1a8] sm:$0xf] %vm12339, %v12189
        %12447 = vst.msk [vmem:[%s201 + $0x1ac] sm:$0xf] %vm12339, %v12190
        %12448 = vst.msk [vmem:[%s201 + $0x1b0] sm:$0xf] %vm12339, %v12191
        %12449 = vst.msk [vmem:[%s201 + $0x1b4] sm:$0xf] %vm12339, %v12192
        %12450 = vst.msk [vmem:[%s201 + $0x1b8] sm:$0xf] %vm12339, %v12193
        %12451 = vst.msk [vmem:[%s201 + $0x1bc] sm:$0xf] %vm12339, %v12194
        %12452 = vst.msk [vmem:[%s201 + $0x1c0] sm:$0xf] %vm12339, %v12195
        %12453 = vst.msk [vmem:[%s201 + $0x1c4] sm:$0xf] %vm12339, %v12196
        %12454 = vst.msk [vmem:[%s201 + $0x1c8] sm:$0xf] %vm12339, %v12197
        %12455 = vst.msk [vmem:[%s201 + $0x1cc] sm:$0xf] %vm12339, %v12198
        %12456 = vst.msk [vmem:[%s201 + $0x1d0] sm:$0xf] %vm12339, %v12199
        %12457 = vst.msk [vmem:[%s201 + $0x1d4] sm:$0xf] %vm12339, %v12200
        %12458 = vst.msk [vmem:[%s201 + $0x1d8] sm:$0xf] %vm12339, %v12201
        %12459 = vst.msk [vmem:[%s201 + $0x1dc] sm:$0xf] %vm12339, %v12202
        %12460 = vst.msk [vmem:[%s201 + $0x1e0] sm:$0xf] %vm12339, %v12203
        %12461 = vst.msk [vmem:[%s201 + $0x1e4] sm:$0xf] %vm12339, %v12204
        %12462 = vst.msk [vmem:[%s201 + $0x1e8] sm:$0xf] %vm12339, %v12205
        %12463 = vst.msk [vmem:[%s201 + $0x1ec] sm:$0xf] %vm12339, %v12206
        %12464 = vst.msk [vmem:[%s201 + $0x1f0] sm:$0xf] %vm12339, %v12207
        %12465 = vst.msk [vmem:[%s201 + $0x1f4] sm:$0xf] %vm12339, %v12208
        %12466 = vst.msk [vmem:[%s201 + $0x1f8] sm:$0xf] %vm12339, %v12209
        %12467 = vst.msk [vmem:[%s201 + $0x1fc] sm:$0xf] %vm12339, %v12210
        %s12468 = sand.u32 %s117, 1
        %s12469 = scalar_lea.sflag [#allocation4], %s12468
        %s12470 = sand.u32 %s117, 1
        %s12471 = smul.addr %s12470, 512
        %s12472 = scalar_lea.vmem [#allocation3], %s12471
        // Predicated region
        $region33: #{tpu_custom_call.1} parent=31 // pred_check
          %p12473 = pneg %p127
        $region34: #{tpu_custom_call.1} parent=31 // pred_check_branch
          %12475 = sbr.rel (%p12473) target = $region36
        $region35: #{tpu_custom_call.1} parent=31 // pred_region
          %s12477 = ssub.s32 8192, 8192
          %12478 = vsyncadd %s12469, %s12477
          %s12479 = smul.addr %s21, 128
          %s12480 = sadd.s32 %s22, %s12479
          %s12481 = smul.addr %s12480, 64
          %s12482 = scalar_lea.hbm %s3, %s12481
          %s12483 = sshll.u32 %s12472, 4
          %s12484 = int_to_ptr.vmem [resolvable:$true] %s12483
          %12489 = dma.vmem_to_hbm [thread:$0]  %s12484, 8192, %s12482, %s12469, 64, 64, 4
        $region36: #{tpu_custom_call.1} parent=31 // pred_fallthru
          _
      $region32: #{tpu_custom_call.1} parent=5 // pred_fallthru
        _
      %p12490 = scmp.le.s32.totalorder 2, %s12
      // Predicated region
      $region37: #{tpu_custom_call.1} parent=5 // pred_check
        %p12491 = pneg %p12490
      $region38: #{tpu_custom_call.1} parent=5 // pred_check_branch
        %12493 = sbr.rel (%p12491) target = $region40
      $region39: #{tpu_custom_call.1} parent=5 // pred_region
        %s12494 = ssub.s32 %s12, 2
        // Predicated region
        $region41: #{tpu_custom_call.1} parent=39 // pred_check
          %p12495 = pneg %p133
        $region42: #{tpu_custom_call.1} parent=39 // pred_check_branch
          %12497 = sbr.rel (%p12495) target = $region44
        $region43: #{tpu_custom_call.1} parent=39 // pred_region
          %s12498 = sand.u32 %s118, 1
          %s12499 = scalar_lea.sflag [#allocation4], %s12498
          %s12500 = sand.u32 %s118, 1
          %s12501 = smul.addr %s12500, 512
          %s12502 = scalar_lea.vmem [#allocation3], %s12501
          %12503 = dma.done %s12499, 8192
        $region44: #{tpu_custom_call.1} parent=39 // pred_fallthru
          _
      $region40: #{tpu_custom_call.1} parent=5 // pred_fallthru
        _
    $region6: #{tpu_custom_call.1} parent=1 // loop_footer
      %s16 = sadd.s32 1, %s12
    $region7: #{tpu_custom_call.1} parent=1 // loop_footer_branch
      %11 = sbr.rel target = $region3
    $region8: #{tpu_custom_call.1} parent=1 // loop_exit
      _
    %12504 = vsyncpa [#allocation4], 1
    %s12505 = scalar_lea.sflag [#allocation4], 1
    %12506 = vsyncpa %s12505, 1

</llo_original>
